<compile_context>
chip_gen: v7x
topology: tpu7x:2x2x1
jax: 0.10.0
libtpu: 0.0.40
codegen_flags: <defaults>
</compile_context>

<pallas_src>
import functools

import jax
import jax.numpy as jnp
from jax.experimental import pallas as pl
from jax.experimental.pallas import tpu as pltpu


def _round_up(x, m):
    return (x + m - 1) // m * m


def _conv1d_out_len(l_in, padding, dilation, kernel_size, stride):
    return (l_in + 2 * padding - dilation * (kernel_size - 1) - 1) // stride + 1


# ---------------------------------------------------------------------------
# The single fused forward kernel.
# ---------------------------------------------------------------------------
def _fused_forward_kernel(cfg,
                          p1e_ref, p1o_ref,            # conv1 im2col patches
                          w1_ref, b1_ref,              # conv1
                          w2e_ref, w2o_ref, b2_ref,    # conv2 (even/odd taps)
                          f1w_ref, f1b_ref,            # fc1 (flatten folded in)
                          f2w_ref, f2b_ref,            # fc2
                          f3w_ref, f3b_ref,            # fc3
                          out_ref,                     # (B, num_classes)
                          h1e_pad, h1o_pad):           # VMEM scratch
    B = cfg["B"]
    L2 = cfg["L2"]
    OFFJ = cfg["OFFJ"]         # zero-margin positions in front of h1[0]
    HP2 = cfg["HALF_PAD2"]     # conv2 padding // 2
    NTAP = cfg["NTAP"]         # conv2 taps per parity (= conv2 kernel // 2)

    C2 = w2e_ref.shape[2]
    F1 = f1w_ref.shape[2]

    # ---- conv1 + ReLU -------------------------------------------------------
    # Rows of p1e / p1o are (conv1 output position, batch)-interleaved, so one
    # matmul handles the whole batch per output-position parity.
    w1 = w1_ref[...]
    b1 = b1_ref[...]
    he = jnp.maximum(
        jnp.dot(p1e_ref[...], w1, preferred_element_type=jnp.float32) + b1, 0.0)
    ho = jnp.maximum(
        jnp.dot(p1o_ref[...], w1, preferred_element_type=jnp.float32) + b1, 0.0)

    # Zero-padded scratch supplies conv2's zero padding / boundary handling.
    h1e_pad[...] = jnp.zeros_like(h1e_pad)
    h1o_pad[...] = jnp.zeros_like(h1o_pad)
    h1e_pad[OFFJ * B: OFFJ * B + he.shape[0], :] = he
    h1o_pad[OFFJ * B: OFFJ * B + ho.shape[0], :] = ho

    # ---- conv2 + ReLU -------------------------------------------------------
    # Stride-2 conv over h1 == sum over kernel taps of
    #   (contiguous slice of the parity-split, zero-padded h1) @ (tap weight).
    # Slices are contiguous because the batch is interleaved per position.
    nrows = L2 * B
    acc2 = jnp.zeros((nrows, C2), jnp.float32)
    for t in range(NTAP):
        s = (OFFJ + t - HP2) * B
        acc2 = acc2 + jnp.dot(
            h1e_pad[s: s + nrows, :].astype(jnp.bfloat16), w2e_ref[t],
            preferred_element_type=jnp.float32)
        acc2 = acc2 + jnp.dot(
            h1o_pad[s: s + nrows, :].astype(jnp.bfloat16), w2o_ref[t],
            preferred_element_type=jnp.float32)
    h2 = jnp.maximum(acc2 + b2_ref[...], 0.0)          # (L2*B, C2), rows=(m, b)

    # ---- fc1 + ReLU ---------------------------------------------------------
    # PyTorch's channel-major flatten is folded into f1w: f1w[m] is the
    # (C2, F1) weight slab of spatial position m, so fc1 is L2 accumulated
    # (B, C2) x (C2, F1) matmuls over the VMEM-resident h2 (no relayout).
    acc3 = jnp.zeros((B, F1), jnp.float32)
    for m in range(L2):
        acc3 = acc3 + jnp.dot(
            h2[m * B: (m + 1) * B, :].astype(jnp.bfloat16), f1w_ref[m],
            preferred_element_type=jnp.float32)
    h3 = jnp.maximum(acc3 + f1b_ref[...], 0.0).astype(jnp.bfloat16)

    # ---- fc2 + ReLU ---------------------------------------------------------
    h4 = jnp.maximum(
        jnp.dot(h3, f2w_ref[...], preferred_element_type=jnp.float32)
        + f2b_ref[...], 0.0).astype(jnp.bfloat16)

    # ---- fc3 + log_softmax --------------------------------------------------
    logits = (jnp.dot(h4, f3w_ref[...], preferred_element_type=jnp.float32)
              + f3b_ref[...])
    mx = jnp.max(logits, axis=-1, keepdims=True)
    z = logits - mx
    lse = jnp.log(jnp.sum(jnp.exp(z), axis=-1, keepdims=True))
    out_ref[...] = z - lse


# ---------------------------------------------------------------------------
# Model setup / parameter preparation (trace-time only; no per-layer kernels).
# ---------------------------------------------------------------------------
def make_dims(image_dim_w=256, num_of_classes=20,
              c1_out=32, c1_kernel=16, c1_padding=2, c1_stride=2,
              c2_out=32, c2_kernel=8, c2_padding=2, c2_stride=2):
    dilation = 1
    l1 = _conv1d_out_len(image_dim_w, c1_padding, dilation, c1_kernel, c1_stride)
    l2 = _conv1d_out_len(l1, c2_padding, dilation, c2_kernel, c2_stride)
    # Assumptions baked into the fused kernel's even/odd tap decomposition.
    assert c2_stride == 2 and c2_kernel % 2 == 0 and c2_padding % 2 == 0
    return dict(W=image_dim_w, NC=num_of_classes,
                C1=c1_out, K1=c1_kernel, P1=c1_padding, S1=c1_stride,
                C2=c2_out, K2=c2_kernel, P2=c2_padding, S2=c2_stride,
                L1=l1, L2=l2, F1=128 * 4, F2=128)


def init_params(key, dims):
    keys = jax.random.split(key, 10)

    def unif(k, shape, fan_in):
        bound = 1.0 / float(fan_in) ** 0.5
        return jax.random.uniform(k, shape, jnp.float32, -bound, bound)

    C1, K1, C2, K2 = dims["C1"], dims["K1"], dims["C2"], dims["K2"]
    L2, F1, F2, NC = dims["L2"], dims["F1"], dims["F2"], dims["NC"]
    return {
        "w1": unif(keys[0], (C1, 1, K1), 1 * K1),
        "b1": unif(keys[1], (C1,), 1 * K1),
        "w2": unif(keys[2], (C2, C1, K2), C1 * K2),
        "b2": unif(keys[3], (C2,), C1 * K2),
        "fc1_w": unif(keys[4], (F1, C2 * L2), C2 * L2),
        "fc1_b": unif(keys[5], (F1,), C2 * L2),
        "fc2_w": unif(keys[6], (F2, F1), F1),
        "fc2_b": unif(keys[7], (F2,), F1),
        "fc3_w": unif(keys[8], (NC, F2), F2),
        "fc3_b": unif(keys[9], (NC,), F2),
    }


def prepare_params(params, dims):
    """One-time weight re-layout + bf16 cast (all trace-time / free)."""
    C1, K1, C2, K2 = dims["C1"], dims["K1"], dims["C2"], dims["K2"]
    L2, F1, F2, NC = dims["L2"], dims["F1"], dims["F2"], dims["NC"]
    ntap = K2 // 2
    w2 = params["w2"]                                   # (C2, C1, K2)
    return {
        "w1": params["w1"].reshape(C1, K1).T.astype(jnp.bfloat16),       # (K1, C1)
        "b1": params["b1"].reshape(1, C1).astype(jnp.float32),
        # even / odd kernel taps, each (C1, C2)
        "w2e": jnp.stack([w2[:, :, 2 * t].T for t in range(ntap)], 0
                         ).astype(jnp.bfloat16),
        "w2o": jnp.stack([w2[:, :, 2 * t + 1].T for t in range(ntap)], 0
                         ).astype(jnp.bfloat16),
        "b2": params["b2"].reshape(1, C2).astype(jnp.float32),
        # fold PyTorch's channel-major flatten into fc1: f1w[m, c, :]
        "f1w": jnp.transpose(params["fc1_w"].reshape(F1, C2, L2), (2, 1, 0)
                             ).astype(jnp.bfloat16),
        "f1b": params["fc1_b"].reshape(1, F1).astype(jnp.float32),
        "f2w": params["fc2_w"].T.astype(jnp.bfloat16),                   # (F1, F2)
        "f2b": params["fc2_b"].reshape(1, F2).astype(jnp.float32),
        "f3w": params["fc3_w"].T.astype(jnp.bfloat16),                   # (F2, NC)
        "f3b": params["fc3_b"].reshape(1, NC).astype(jnp.float32),
    }


def build_forward(dims):
    W, NC = dims["W"], dims["NC"]
    C1, K1, P1, S1 = dims["C1"], dims["K1"], dims["P1"], dims["S1"]
    C2, K2, P2, S2 = dims["C2"], dims["K2"], dims["P2"], dims["S2"]
    L1, L2, F1, F2 = dims["L1"], dims["L2"], dims["F1"], dims["F2"]

    L1e = (L1 + 1) // 2            # even conv1 output positions
    L1o = L1 // 2                  # odd  conv1 output positions
    NTAP = K2 // 2
    HP2 = P2 // 2
    OFFJ = 8                       # zero-margin positions before h1[0]
    assert OFFJ >= HP2

    @jax.jit
    def forward(prepped, x):
        B = x.shape[0]
        assert x.shape[-1] == W
        xr = x.reshape(B, W).astype(jnp.float32)        # squeeze NCHW -> (B, W)
        xp = jnp.pad(xr, ((0, 0), (P1, P1)))

        # conv1 im2col patches (strided slices only, no gather), split by the
        # parity of the conv1 output position and laid out position-major /
        # batch-minor so every in-kernel access is a contiguous slice.
        def parity_patches(start0, n_pos):
            step = 2 * S1
            cols = [jax.lax.slice_in_dim(
                        xp, start0 + k, start0 + k + step * (n_pos - 1) + 1,
                        stride=step, axis=1)
                    for k in range(K1)]
            p = jnp.stack(cols, axis=-1)                # (B, n_pos, K1)
            p = jnp.transpose(p, (1, 0, 2))             # (n_pos, B, K1)
            return p.reshape(n_pos * B, K1).astype(jnp.bfloat16)

        p1e = parity_patches(0, L1e)
        p1o = parity_patches(S1, L1o)

        # Scratch sizing: front zero margin + interleaved h1 rows + tap reach.
        read_end = (OFFJ + NTAP - 1 - HP2) * B + L2 * B
        rows = _round_up(max(OFFJ * B + L1e * B,
                             OFFJ * B + L1o * B,
                             read_end), 8)

        cfg = dict(B=B, L2=L2, OFFJ=OFFJ, HALF_PAD2=HP2, NTAP=NTAP)
        kernel = functools.partial(_fused_forward_kernel, cfg)

        operands = (p1e, p1o,
                    prepped["w1"], prepped["b1"],
                    prepped["w2e"], prepped["w2o"], prepped["b2"],
                    prepped["f1w"], prepped["f1b"],
                    prepped["f2w"], prepped["f2b"],
                    prepped["f3w"], prepped["f3b"])

        flops = 2 * B * (L1 * C1 * K1 + L2 * C2 * C1 * K2
                         + F1 * C2 * L2 + F2 * F1 + NC * F2)
        bytes_accessed = (sum(int(o.size) * o.dtype.itemsize for o in operands)
                          + B * NC * 4)
        cost = pl.CostEstimate(flops=flops, transcendentals=B * (NC + 1),
                               bytes_accessed=bytes_accessed)

        vmem = pl.BlockSpec(memory_space=pltpu.MemorySpace.VMEM)
        return pl.pallas_call(
            kernel,
            out_shape=jax.ShapeDtypeStruct((B, NC), jnp.float32),
            in_specs=[vmem] * len(operands),
            out_specs=vmem,
            scratch_shapes=[pltpu.VMEM((rows, C1), jnp.float32),
                            pltpu.VMEM((rows, C1), jnp.float32)],
            cost_estimate=cost,
        )(*operands)

    return forward


# ---------------------------------------------------------------------------
# Pure-JAX f32 reference (independent of the kernel's decomposition).
# ---------------------------------------------------------------------------
def reference_forward(params, x, dims):
    B, W = x.shape[0], dims["W"]
    xr = x.reshape(B, 1, W).astype(jnp.float32)
    h = jax.lax.conv_general_dilated(
        xr, params["w1"], window_strides=(dims["S1"],),
        padding=[(dims["P1"], dims["P1"])],
        dimension_numbers=("NCH", "OIH", "NCH"))
    h = jax.nn.relu(h + params["b1"][None, :, None])
    h = jax.lax.conv_general_dilated(
        h, params["w2"], window_strides=(dims["S2"],),
        padding=[(dims["P2"], dims["P2"])],
        dimension_numbers=("NCH", "OIH", "NCH"))
    h = jax.nn.relu(h + params["b2"][None, :, None])
    flat = h.reshape(B, -1)
    h = jax.nn.relu(flat @ params["fc1_w"].T + params["fc1_b"])
    h = jax.nn.relu(h @ params["fc2_w"].T + params["fc2_b"])
    logits = h @ params["fc3_w"].T + params["fc3_b"]
    return jax.nn.log_softmax(logits, axis=-1)


if __name__ == "__main__":
    key = jax.random.PRNGKey(0)
    pkey, xkey = jax.random.split(key)

    B, W, NUM_CLASSES = 2, 256, 20
    dims = make_dims(image_dim_w=W, num_of_classes=NUM_CLASSES)
    params = init_params(pkey, dims)
    prepped = prepare_params(params, dims)
    forward = build_forward(dims)

    x = jax.random.normal(xkey, (B, 1, 1, W), jnp.float32)

    out = jax.block_until_ready(forward(prepped, x))
    assert out.shape == (B, NUM_CLASSES), out.shape

    # log_softmax rows must exponentiate-sum to 1.
    row_sums = jnp.exp(out).sum(axis=1)
    assert jnp.allclose(row_sums, 1.0, atol=1e-4), row_sums

    # Cross-check against a pure-JAX f32 reference (kernel uses bf16 weights,
    # hence the loose tolerance).
    ref = reference_forward(params, x, dims)
    max_err = float(jnp.max(jnp.abs(out - ref)))
    assert jnp.allclose(out, ref, atol=0.15, rtol=0.05), max_err

    print("KERNEL_OK")
</pallas_src>

<mosaic_0001>
module attributes {stable_mosaic.version = 11 : i64} {
  func.func @_fused_forward_kernel(%arg0: memref<124x16xbf16, #tpu.memory_space<vmem>>, %arg1: memref<122x16xbf16, #tpu.memory_space<vmem>>, %arg2: memref<16x32xbf16, #tpu.memory_space<vmem>>, %arg3: memref<1x32xf32, #tpu.memory_space<vmem>>, %arg4: memref<4x32x32xbf16, #tpu.memory_space<vmem>>, %arg5: memref<4x32x32xbf16, #tpu.memory_space<vmem>>, %arg6: memref<1x32xf32, #tpu.memory_space<vmem>>, %arg7: memref<60x32x512xbf16, #tpu.memory_space<vmem>>, %arg8: memref<1x512xf32, #tpu.memory_space<vmem>>, %arg9: memref<512x128xbf16, #tpu.memory_space<vmem>>, %arg10: memref<1x128xf32, #tpu.memory_space<vmem>>, %arg11: memref<128x20xbf16, #tpu.memory_space<vmem>>, %arg12: memref<1x20xf32, #tpu.memory_space<vmem>>, %arg13: memref<2x20xf32, #tpu.memory_space<vmem>>, %arg14: memref<144x32xf32, #tpu.memory_space<vmem>>, %arg15: memref<144x32xf32, #tpu.memory_space<vmem>>) attributes {dimension_semantics = [], scalar_prefetch = 0 : i64, scratch_operands = 2 : i64, tpu.core_type = #tpu.core_type<tc>} {
    %c0 = arith.constant 0 : index
    %c0_0 = arith.constant 0 : index
    %0 = vector.load %arg2[%c0, %c0_0] : memref<16x32xbf16, #tpu.memory_space<vmem>>, vector<16x32xbf16>
    %c0_1 = arith.constant 0 : index
    %c0_2 = arith.constant 0 : index
    %1 = vector.load %arg3[%c0_1, %c0_2] : memref<1x32xf32, #tpu.memory_space<vmem>>, vector<1x32xf32>
    %c0_3 = arith.constant 0 : index
    %c0_4 = arith.constant 0 : index
    %2 = vector.load %arg0[%c0_3, %c0_4] : memref<124x16xbf16, #tpu.memory_space<vmem>>, vector<124x16xbf16>
    %cst = arith.constant dense<0.000000e+00> : vector<124x32xf32>
    %3 = tpu.matmul %2, %0, %cst {dimension_numbers = #tpu.dot_dimension_numbers<[1], [0], [0], [1], [0, 0, 1, 1], [], []>} : vector<124x16xbf16>, vector<16x32xbf16>, vector<124x32xf32> -> vector<124x32xf32>
    %4 = vector.broadcast %1 : vector<1x32xf32> to vector<124x32xf32>
    %5 = arith.addf %3, %4 : vector<124x32xf32>
    %cst_5 = arith.constant 0.000000e+00 : f32
    %6 = vector.broadcast %cst_5 : f32 to vector<124x32xf32>
    %7 = arith.maximumf %5, %6 : vector<124x32xf32>
    %c0_6 = arith.constant 0 : index
    %c0_7 = arith.constant 0 : index
    %8 = vector.load %arg1[%c0_6, %c0_7] : memref<122x16xbf16, #tpu.memory_space<vmem>>, vector<122x16xbf16>
    %cst_8 = arith.constant dense<0.000000e+00> : vector<122x32xf32>
    %9 = tpu.matmul %8, %0, %cst_8 {dimension_numbers = #tpu.dot_dimension_numbers<[1], [0], [0], [1], [0, 0, 1, 1], [], []>} : vector<122x16xbf16>, vector<16x32xbf16>, vector<122x32xf32> -> vector<122x32xf32>
    %10 = vector.broadcast %1 : vector<1x32xf32> to vector<122x32xf32>
    %11 = arith.addf %9, %10 : vector<122x32xf32>
    %cst_9 = arith.constant 0.000000e+00 : f32
    %12 = vector.broadcast %cst_9 : f32 to vector<122x32xf32>
    %13 = arith.maximumf %11, %12 : vector<122x32xf32>
    %cst_10 = arith.constant 0.000000e+00 : f32
    %14 = vector.broadcast %cst_10 : f32 to vector<144x32xf32>
    %c0_11 = arith.constant 0 : index
    %c0_12 = arith.constant 0 : index
    %15 = vector.load %arg14[%c0_11, %c0_12] : memref<144x32xf32, #tpu.memory_space<vmem>>, vector<144x32xf32>
    tpu.vector_store %arg14[%c0_11, %c0_12], %14 {strides = array<i32>} : memref<144x32xf32, #tpu.memory_space<vmem>>, vector<144x32xf32>,
    %cst_13 = arith.constant 0.000000e+00 : f32
    %16 = vector.broadcast %cst_13 : f32 to vector<144x32xf32>
    %c0_14 = arith.constant 0 : index
    %c0_15 = arith.constant 0 : index
    %17 = vector.load %arg15[%c0_14, %c0_15] : memref<144x32xf32, #tpu.memory_space<vmem>>, vector<144x32xf32>
    tpu.vector_store %arg15[%c0_14, %c0_15], %16 {strides = array<i32>} : memref<144x32xf32, #tpu.memory_space<vmem>>, vector<144x32xf32>,
    %c16 = arith.constant 16 : index
    %c0_16 = arith.constant 0 : index
    %18 = vector.load %arg14[%c16, %c0_16] : memref<144x32xf32, #tpu.memory_space<vmem>>, vector<124x32xf32>
    tpu.vector_store %arg14[%c16, %c0_16], %7 {strides = array<i32>} : memref<144x32xf32, #tpu.memory_space<vmem>>, vector<124x32xf32>,
    %c16_17 = arith.constant 16 : index
    %c0_18 = arith.constant 0 : index
    %19 = vector.load %arg15[%c16_17, %c0_18] : memref<144x32xf32, #tpu.memory_space<vmem>>, vector<122x32xf32>
    tpu.vector_store %arg15[%c16_17, %c0_18], %13 {strides = array<i32>} : memref<144x32xf32, #tpu.memory_space<vmem>>, vector<122x32xf32>,
    %cst_19 = arith.constant 0.000000e+00 : f32
    %20 = vector.broadcast %cst_19 : f32 to vector<120x32xf32>
    %c14 = arith.constant 14 : index
    %c0_20 = arith.constant 0 : index
    %21 = vector.load %arg14[%c14, %c0_20] : memref<144x32xf32, #tpu.memory_space<vmem>>, vector<120x32xf32>
    %22 = arith.truncf %21 : vector<120x32xf32> to vector<120x32xbf16>
    %c0_21 = arith.constant 0 : index
    %c0_22 = arith.constant 0 : index
    %c0_23 = arith.constant 0 : index
    %23 = vector.load %arg4[%c0_21, %c0_22, %c0_23] : memref<4x32x32xbf16, #tpu.memory_space<vmem>>, vector<1x32x32xbf16>
    %24 = vector.shape_cast %23 : vector<1x32x32xbf16> to vector<32x32xbf16>
    %cst_24 = arith.constant dense<0.000000e+00> : vector<120x32xf32>
    %25 = tpu.matmul %22, %24, %cst_24 {dimension_numbers = #tpu.dot_dimension_numbers<[1], [0], [0], [1], [0, 0, 1, 1], [], []>} : vector<120x32xbf16>, vector<32x32xbf16>, vector<120x32xf32> -> vector<120x32xf32>
    %26 = arith.addf %20, %25 : vector<120x32xf32>
    %c14_25 = arith.constant 14 : index
    %c0_26 = arith.constant 0 : index
    %27 = vector.load %arg15[%c14_25, %c0_26] : memref<144x32xf32, #tpu.memory_space<vmem>>, vector<120x32xf32>
    %28 = arith.truncf %27 : vector<120x32xf32> to vector<120x32xbf16>
    %c0_27 = arith.constant 0 : index
    %c0_28 = arith.constant 0 : index
    %c0_29 = arith.constant 0 : index
    %29 = vector.load %arg5[%c0_27, %c0_28, %c0_29] : memref<4x32x32xbf16, #tpu.memory_space<vmem>>, vector<1x32x32xbf16>
    %30 = vector.shape_cast %29 : vector<1x32x32xbf16> to vector<32x32xbf16>
    %cst_30 = arith.constant dense<0.000000e+00> : vector<120x32xf32>
    %31 = tpu.matmul %28, %30, %cst_30 {dimension_numbers = #tpu.dot_dimension_numbers<[1], [0], [0], [1], [0, 0, 1, 1], [], []>} : vector<120x32xbf16>, vector<32x32xbf16>, vector<120x32xf32> -> vector<120x32xf32>
    %32 = arith.addf %26, %31 : vector<120x32xf32>
    %c16_31 = arith.constant 16 : index
    %c0_32 = arith.constant 0 : index
    %33 = vector.load %arg14[%c16_31, %c0_32] : memref<144x32xf32, #tpu.memory_space<vmem>>, vector<120x32xf32>
    %34 = arith.truncf %33 : vector<120x32xf32> to vector<120x32xbf16>
    %c1 = arith.constant 1 : index
    %c0_33 = arith.constant 0 : index
    %c0_34 = arith.constant 0 : index
    %35 = vector.load %arg4[%c1, %c0_33, %c0_34] : memref<4x32x32xbf16, #tpu.memory_space<vmem>>, vector<1x32x32xbf16>
    %36 = vector.shape_cast %35 : vector<1x32x32xbf16> to vector<32x32xbf16>
    %cst_35 = arith.constant dense<0.000000e+00> : vector<120x32xf32>
    %37 = tpu.matmul %34, %36, %cst_35 {dimension_numbers = #tpu.dot_dimension_numbers<[1], [0], [0], [1], [0, 0, 1, 1], [], []>} : vector<120x32xbf16>, vector<32x32xbf16>, vector<120x32xf32> -> vector<120x32xf32>
    %38 = arith.addf %32, %37 : vector<120x32xf32>
    %c16_36 = arith.constant 16 : index
    %c0_37 = arith.constant 0 : index
    %39 = vector.load %arg15[%c16_36, %c0_37] : memref<144x32xf32, #tpu.memory_space<vmem>>, vector<120x32xf32>
    %40 = arith.truncf %39 : vector<120x32xf32> to vector<120x32xbf16>
    %c1_38 = arith.constant 1 : index
    %c0_39 = arith.constant 0 : index
    %c0_40 = arith.constant 0 : index
    %41 = vector.load %arg5[%c1_38, %c0_39, %c0_40] : memref<4x32x32xbf16, #tpu.memory_space<vmem>>, vector<1x32x32xbf16>
    %42 = vector.shape_cast %41 : vector<1x32x32xbf16> to vector<32x32xbf16>
    %cst_41 = arith.constant dense<0.000000e+00> : vector<120x32xf32>
    %43 = tpu.matmul %40, %42, %cst_41 {dimension_numbers = #tpu.dot_dimension_numbers<[1], [0], [0], [1], [0, 0, 1, 1], [], []>} : vector<120x32xbf16>, vector<32x32xbf16>, vector<120x32xf32> -> vector<120x32xf32>
    %44 = arith.addf %38, %43 : vector<120x32xf32>
    %c18 = arith.constant 18 : index
    %c0_42 = arith.constant 0 : index
    %45 = vector.load %arg14[%c18, %c0_42] : memref<144x32xf32, #tpu.memory_space<vmem>>, vector<120x32xf32>
    %46 = arith.truncf %45 : vector<120x32xf32> to vector<120x32xbf16>
    %c2 = arith.constant 2 : index
    %c0_43 = arith.constant 0 : index
    %c0_44 = arith.constant 0 : index
    %47 = vector.load %arg4[%c2, %c0_43, %c0_44] : memref<4x32x32xbf16, #tpu.memory_space<vmem>>, vector<1x32x32xbf16>
    %48 = vector.shape_cast %47 : vector<1x32x32xbf16> to vector<32x32xbf16>
    %cst_45 = arith.constant dense<0.000000e+00> : vector<120x32xf32>
    %49 = tpu.matmul %46, %48, %cst_45 {dimension_numbers = #tpu.dot_dimension_numbers<[1], [0], [0], [1], [0, 0, 1, 1], [], []>} : vector<120x32xbf16>, vector<32x32xbf16>, vector<120x32xf32> -> vector<120x32xf32>
    %50 = arith.addf %44, %49 : vector<120x32xf32>
    %c18_46 = arith.constant 18 : index
    %c0_47 = arith.constant 0 : index
    %51 = vector.load %arg15[%c18_46, %c0_47] : memref<144x32xf32, #tpu.memory_space<vmem>>, vector<120x32xf32>
    %52 = arith.truncf %51 : vector<120x32xf32> to vector<120x32xbf16>
    %c2_48 = arith.constant 2 : index
    %c0_49 = arith.constant 0 : index
    %c0_50 = arith.constant 0 : index
    %53 = vector.load %arg5[%c2_48, %c0_49, %c0_50] : memref<4x32x32xbf16, #tpu.memory_space<vmem>>, vector<1x32x32xbf16>
    %54 = vector.shape_cast %53 : vector<1x32x32xbf16> to vector<32x32xbf16>
    %cst_51 = arith.constant dense<0.000000e+00> : vector<120x32xf32>
    %55 = tpu.matmul %52, %54, %cst_51 {dimension_numbers = #tpu.dot_dimension_numbers<[1], [0], [0], [1], [0, 0, 1, 1], [], []>} : vector<120x32xbf16>, vector<32x32xbf16>, vector<120x32xf32> -> vector<120x32xf32>
    %56 = arith.addf %50, %55 : vector<120x32xf32>
    %c20 = arith.constant 20 : index
    %c0_52 = arith.constant 0 : index
    %57 = vector.load %arg14[%c20, %c0_52] : memref<144x32xf32, #tpu.memory_space<vmem>>, vector<120x32xf32>
    %58 = arith.truncf %57 : vector<120x32xf32> to vector<120x32xbf16>
    %c3 = arith.constant 3 : index
    %c0_53 = arith.constant 0 : index
    %c0_54 = arith.constant 0 : index
    %59 = vector.load %arg4[%c3, %c0_53, %c0_54] : memref<4x32x32xbf16, #tpu.memory_space<vmem>>, vector<1x32x32xbf16>
    %60 = vector.shape_cast %59 : vector<1x32x32xbf16> to vector<32x32xbf16>
    %cst_55 = arith.constant dense<0.000000e+00> : vector<120x32xf32>
    %61 = tpu.matmul %58, %60, %cst_55 {dimension_numbers = #tpu.dot_dimension_numbers<[1], [0], [0], [1], [0, 0, 1, 1], [], []>} : vector<120x32xbf16>, vector<32x32xbf16>, vector<120x32xf32> -> vector<120x32xf32>
    %62 = arith.addf %56, %61 : vector<120x32xf32>
    %c20_56 = arith.constant 20 : index
    %c0_57 = arith.constant 0 : index
    %63 = vector.load %arg15[%c20_56, %c0_57] : memref<144x32xf32, #tpu.memory_space<vmem>>, vector<120x32xf32>
    %64 = arith.truncf %63 : vector<120x32xf32> to vector<120x32xbf16>
    %c3_58 = arith.constant 3 : index
    %c0_59 = arith.constant 0 : index
    %c0_60 = arith.constant 0 : index
    %65 = vector.load %arg5[%c3_58, %c0_59, %c0_60] : memref<4x32x32xbf16, #tpu.memory_space<vmem>>, vector<1x32x32xbf16>
    %66 = vector.shape_cast %65 : vector<1x32x32xbf16> to vector<32x32xbf16>
    %cst_61 = arith.constant dense<0.000000e+00> : vector<120x32xf32>
    %67 = tpu.matmul %64, %66, %cst_61 {dimension_numbers = #tpu.dot_dimension_numbers<[1], [0], [0], [1], [0, 0, 1, 1], [], []>} : vector<120x32xbf16>, vector<32x32xbf16>, vector<120x32xf32> -> vector<120x32xf32>
    %68 = arith.addf %62, %67 : vector<120x32xf32>
    %c0_62 = arith.constant 0 : index
    %c0_63 = arith.constant 0 : index
    %69 = vector.load %arg6[%c0_62, %c0_63] : memref<1x32xf32, #tpu.memory_space<vmem>>, vector<1x32xf32>
    %70 = vector.broadcast %69 : vector<1x32xf32> to vector<120x32xf32>
    %71 = arith.addf %68, %70 : vector<120x32xf32>
    %cst_64 = arith.constant 0.000000e+00 : f32
    %72 = vector.broadcast %cst_64 : f32 to vector<120x32xf32>
    %73 = arith.maximumf %71, %72 : vector<120x32xf32>
    %cst_65 = arith.constant 0.000000e+00 : f32
    %74 = vector.broadcast %cst_65 : f32 to vector<2x512xf32>
    %75 = vector.extract_strided_slice %73 {offsets = [0, 0], sizes = [2, 32], strides = [1, 1]} : vector<120x32xf32> to vector<2x32xf32>
    %76 = arith.truncf %75 : vector<2x32xf32> to vector<2x32xbf16>
    %c0_66 = arith.constant 0 : index
    %c0_67 = arith.constant 0 : index
    %c0_68 = arith.constant 0 : index
    %77 = vector.load %arg7[%c0_66, %c0_67, %c0_68] : memref<60x32x512xbf16, #tpu.memory_space<vmem>>, vector<1x32x512xbf16>
    %78 = vector.shape_cast %77 : vector<1x32x512xbf16> to vector<32x512xbf16>
    %cst_69 = arith.constant dense<0.000000e+00> : vector<2x512xf32>
    %79 = tpu.matmul %76, %78, %cst_69 {dimension_numbers = #tpu.dot_dimension_numbers<[1], [0], [0], [1], [0, 0, 1, 1], [], []>} : vector<2x32xbf16>, vector<32x512xbf16>, vector<2x512xf32> -> vector<2x512xf32>
    %80 = arith.addf %74, %79 : vector<2x512xf32>
    %81 = vector.extract_strided_slice %73 {offsets = [2, 0], sizes = [2, 32], strides = [1, 1]} : vector<120x32xf32> to vector<2x32xf32>
    %82 = arith.truncf %81 : vector<2x32xf32> to vector<2x32xbf16>
    %c1_70 = arith.constant 1 : index
    %c0_71 = arith.constant 0 : index
    %c0_72 = arith.constant 0 : index
    %83 = vector.load %arg7[%c1_70, %c0_71, %c0_72] : memref<60x32x512xbf16, #tpu.memory_space<vmem>>, vector<1x32x512xbf16>
    %84 = vector.shape_cast %83 : vector<1x32x512xbf16> to vector<32x512xbf16>
    %cst_73 = arith.constant dense<0.000000e+00> : vector<2x512xf32>
    %85 = tpu.matmul %82, %84, %cst_73 {dimension_numbers = #tpu.dot_dimension_numbers<[1], [0], [0], [1], [0, 0, 1, 1], [], []>} : vector<2x32xbf16>, vector<32x512xbf16>, vector<2x512xf32> -> vector<2x512xf32>
    %86 = arith.addf %80, %85 : vector<2x512xf32>
    %87 = vector.extract_strided_slice %73 {offsets = [4, 0], sizes = [2, 32], strides = [1, 1]} : vector<120x32xf32> to vector<2x32xf32>
    %88 = arith.truncf %87 : vector<2x32xf32> to vector<2x32xbf16>
    %c2_74 = arith.constant 2 : index
    %c0_75 = arith.constant 0 : index
    %c0_76 = arith.constant 0 : index
    %89 = vector.load %arg7[%c2_74, %c0_75, %c0_76] : memref<60x32x512xbf16, #tpu.memory_space<vmem>>, vector<1x32x512xbf16>
    %90 = vector.shape_cast %89 : vector<1x32x512xbf16> to vector<32x512xbf16>
    %cst_77 = arith.constant dense<0.000000e+00> : vector<2x512xf32>
    %91 = tpu.matmul %88, %90, %cst_77 {dimension_numbers = #tpu.dot_dimension_numbers<[1], [0], [0], [1], [0, 0, 1, 1], [], []>} : vector<2x32xbf16>, vector<32x512xbf16>, vector<2x512xf32> -> vector<2x512xf32>
    %92 = arith.addf %86, %91 : vector<2x512xf32>
    %93 = vector.extract_strided_slice %73 {offsets = [6, 0], sizes = [2, 32], strides = [1, 1]} : vector<120x32xf32> to vector<2x32xf32>
    %94 = arith.truncf %93 : vector<2x32xf32> to vector<2x32xbf16>
    %c3_78 = arith.constant 3 : index
    %c0_79 = arith.constant 0 : index
    %c0_80 = arith.constant 0 : index
    %95 = vector.load %arg7[%c3_78, %c0_79, %c0_80] : memref<60x32x512xbf16, #tpu.memory_space<vmem>>, vector<1x32x512xbf16>
    %96 = vector.shape_cast %95 : vector<1x32x512xbf16> to vector<32x512xbf16>
    %cst_81 = arith.constant dense<0.000000e+00> : vector<2x512xf32>
    %97 = tpu.matmul %94, %96, %cst_81 {dimension_numbers = #tpu.dot_dimension_numbers<[1], [0], [0], [1], [0, 0, 1, 1], [], []>} : vector<2x32xbf16>, vector<32x512xbf16>, vector<2x512xf32> -> vector<2x512xf32>
    %98 = arith.addf %92, %97 : vector<2x512xf32>
    %99 = vector.extract_strided_slice %73 {offsets = [8, 0], sizes = [2, 32], strides = [1, 1]} : vector<120x32xf32> to vector<2x32xf32>
    %100 = arith.truncf %99 : vector<2x32xf32> to vector<2x32xbf16>
    %c4 = arith.constant 4 : index
    %c0_82 = arith.constant 0 : index
    %c0_83 = arith.constant 0 : index
    %101 = vector.load %arg7[%c4, %c0_82, %c0_83] : memref<60x32x512xbf16, #tpu.memory_space<vmem>>, vector<1x32x512xbf16>
    %102 = vector.shape_cast %101 : vector<1x32x512xbf16> to vector<32x512xbf16>
    %cst_84 = arith.constant dense<0.000000e+00> : vector<2x512xf32>
    %103 = tpu.matmul %100, %102, %cst_84 {dimension_numbers = #tpu.dot_dimension_numbers<[1], [0], [0], [1], [0, 0, 1, 1], [], []>} : vector<2x32xbf16>, vector<32x512xbf16>, vector<2x512xf32> -> vector<2x512xf32>
    %104 = arith.addf %98, %103 : vector<2x512xf32>
    %105 = vector.extract_strided_slice %73 {offsets = [10, 0], sizes = [2, 32], strides = [1, 1]} : vector<120x32xf32> to vector<2x32xf32>
    %106 = arith.truncf %105 : vector<2x32xf32> to vector<2x32xbf16>
    %c5 = arith.constant 5 : index
    %c0_85 = arith.constant 0 : index
    %c0_86 = arith.constant 0 : index
    %107 = vector.load %arg7[%c5, %c0_85, %c0_86] : memref<60x32x512xbf16, #tpu.memory_space<vmem>>, vector<1x32x512xbf16>
    %108 = vector.shape_cast %107 : vector<1x32x512xbf16> to vector<32x512xbf16>
    %cst_87 = arith.constant dense<0.000000e+00> : vector<2x512xf32>
    %109 = tpu.matmul %106, %108, %cst_87 {dimension_numbers = #tpu.dot_dimension_numbers<[1], [0], [0], [1], [0, 0, 1, 1], [], []>} : vector<2x32xbf16>, vector<32x512xbf16>, vector<2x512xf32> -> vector<2x512xf32>
    %110 = arith.addf %104, %109 : vector<2x512xf32>
    %111 = vector.extract_strided_slice %73 {offsets = [12, 0], sizes = [2, 32], strides = [1, 1]} : vector<120x32xf32> to vector<2x32xf32>
    %112 = arith.truncf %111 : vector<2x32xf32> to vector<2x32xbf16>
    %c6 = arith.constant 6 : index
    %c0_88 = arith.constant 0 : index
    %c0_89 = arith.constant 0 : index
    %113 = vector.load %arg7[%c6, %c0_88, %c0_89] : memref<60x32x512xbf16, #tpu.memory_space<vmem>>, vector<1x32x512xbf16>
    %114 = vector.shape_cast %113 : vector<1x32x512xbf16> to vector<32x512xbf16>
    %cst_90 = arith.constant dense<0.000000e+00> : vector<2x512xf32>
    %115 = tpu.matmul %112, %114, %cst_90 {dimension_numbers = #tpu.dot_dimension_numbers<[1], [0], [0], [1], [0, 0, 1, 1], [], []>} : vector<2x32xbf16>, vector<32x512xbf16>, vector<2x512xf32> -> vector<2x512xf32>
    %116 = arith.addf %110, %115 : vector<2x512xf32>
    %117 = vector.extract_strided_slice %73 {offsets = [14, 0], sizes = [2, 32], strides = [1, 1]} : vector<120x32xf32> to vector<2x32xf32>
    %118 = arith.truncf %117 : vector<2x32xf32> to vector<2x32xbf16>
    %c7 = arith.constant 7 : index
    %c0_91 = arith.constant 0 : index
    %c0_92 = arith.constant 0 : index
    %119 = vector.load %arg7[%c7, %c0_91, %c0_92] : memref<60x32x512xbf16, #tpu.memory_space<vmem>>, vector<1x32x512xbf16>
    %120 = vector.shape_cast %119 : vector<1x32x512xbf16> to vector<32x512xbf16>
    %cst_93 = arith.constant dense<0.000000e+00> : vector<2x512xf32>
    %121 = tpu.matmul %118, %120, %cst_93 {dimension_numbers = #tpu.dot_dimension_numbers<[1], [0], [0], [1], [0, 0, 1, 1], [], []>} : vector<2x32xbf16>, vector<32x512xbf16>, vector<2x512xf32> -> vector<2x512xf32>
    %122 = arith.addf %116, %121 : vector<2x512xf32>
    %123 = vector.extract_strided_slice %73 {offsets = [16, 0], sizes = [2, 32], strides = [1, 1]} : vector<120x32xf32> to vector<2x32xf32>
    %124 = arith.truncf %123 : vector<2x32xf32> to vector<2x32xbf16>
    %c8 = arith.constant 8 : index
    %c0_94 = arith.constant 0 : index
    %c0_95 = arith.constant 0 : index
    %125 = vector.load %arg7[%c8, %c0_94, %c0_95] : memref<60x32x512xbf16, #tpu.memory_space<vmem>>, vector<1x32x512xbf16>
    %126 = vector.shape_cast %125 : vector<1x32x512xbf16> to vector<32x512xbf16>
    %cst_96 = arith.constant dense<0.000000e+00> : vector<2x512xf32>
    %127 = tpu.matmul %124, %126, %cst_96 {dimension_numbers = #tpu.dot_dimension_numbers<[1], [0], [0], [1], [0, 0, 1, 1], [], []>} : vector<2x32xbf16>, vector<32x512xbf16>, vector<2x512xf32> -> vector<2x512xf32>
    %128 = arith.addf %122, %127 : vector<2x512xf32>
    %129 = vector.extract_strided_slice %73 {offsets = [18, 0], sizes = [2, 32], strides = [1, 1]} : vector<120x32xf32> to vector<2x32xf32>
    %130 = arith.truncf %129 : vector<2x32xf32> to vector<2x32xbf16>
    %c9 = arith.constant 9 : index
    %c0_97 = arith.constant 0 : index
    %c0_98 = arith.constant 0 : index
    %131 = vector.load %arg7[%c9, %c0_97, %c0_98] : memref<60x32x512xbf16, #tpu.memory_space<vmem>>, vector<1x32x512xbf16>
    %132 = vector.shape_cast %131 : vector<1x32x512xbf16> to vector<32x512xbf16>
    %cst_99 = arith.constant dense<0.000000e+00> : vector<2x512xf32>
    %133 = tpu.matmul %130, %132, %cst_99 {dimension_numbers = #tpu.dot_dimension_numbers<[1], [0], [0], [1], [0, 0, 1, 1], [], []>} : vector<2x32xbf16>, vector<32x512xbf16>, vector<2x512xf32> -> vector<2x512xf32>
    %134 = arith.addf %128, %133 : vector<2x512xf32>
    %135 = vector.extract_strided_slice %73 {offsets = [20, 0], sizes = [2, 32], strides = [1, 1]} : vector<120x32xf32> to vector<2x32xf32>
    %136 = arith.truncf %135 : vector<2x32xf32> to vector<2x32xbf16>
    %c10 = arith.constant 10 : index
    %c0_100 = arith.constant 0 : index
    %c0_101 = arith.constant 0 : index
    %137 = vector.load %arg7[%c10, %c0_100, %c0_101] : memref<60x32x512xbf16, #tpu.memory_space<vmem>>, vector<1x32x512xbf16>
    %138 = vector.shape_cast %137 : vector<1x32x512xbf16> to vector<32x512xbf16>
    %cst_102 = arith.constant dense<0.000000e+00> : vector<2x512xf32>
    %139 = tpu.matmul %136, %138, %cst_102 {dimension_numbers = #tpu.dot_dimension_numbers<[1], [0], [0], [1], [0, 0, 1, 1], [], []>} : vector<2x32xbf16>, vector<32x512xbf16>, vector<2x512xf32> -> vector<2x512xf32>
    %140 = arith.addf %134, %139 : vector<2x512xf32>
    %141 = vector.extract_strided_slice %73 {offsets = [22, 0], sizes = [2, 32], strides = [1, 1]} : vector<120x32xf32> to vector<2x32xf32>
    %142 = arith.truncf %141 : vector<2x32xf32> to vector<2x32xbf16>
    %c11 = arith.constant 11 : index
    %c0_103 = arith.constant 0 : index
    %c0_104 = arith.constant 0 : index
    %143 = vector.load %arg7[%c11, %c0_103, %c0_104] : memref<60x32x512xbf16, #tpu.memory_space<vmem>>, vector<1x32x512xbf16>
    %144 = vector.shape_cast %143 : vector<1x32x512xbf16> to vector<32x512xbf16>
    %cst_105 = arith.constant dense<0.000000e+00> : vector<2x512xf32>
    %145 = tpu.matmul %142, %144, %cst_105 {dimension_numbers = #tpu.dot_dimension_numbers<[1], [0], [0], [1], [0, 0, 1, 1], [], []>} : vector<2x32xbf16>, vector<32x512xbf16>, vector<2x512xf32> -> vector<2x512xf32>
    %146 = arith.addf %140, %145 : vector<2x512xf32>
    %147 = vector.extract_strided_slice %73 {offsets = [24, 0], sizes = [2, 32], strides = [1, 1]} : vector<120x32xf32> to vector<2x32xf32>
    %148 = arith.truncf %147 : vector<2x32xf32> to vector<2x32xbf16>
    %c12 = arith.constant 12 : index
    %c0_106 = arith.constant 0 : index
    %c0_107 = arith.constant 0 : index
    %149 = vector.load %arg7[%c12, %c0_106, %c0_107] : memref<60x32x512xbf16, #tpu.memory_space<vmem>>, vector<1x32x512xbf16>
    %150 = vector.shape_cast %149 : vector<1x32x512xbf16> to vector<32x512xbf16>
    %cst_108 = arith.constant dense<0.000000e+00> : vector<2x512xf32>
    %151 = tpu.matmul %148, %150, %cst_108 {dimension_numbers = #tpu.dot_dimension_numbers<[1], [0], [0], [1], [0, 0, 1, 1], [], []>} : vector<2x32xbf16>, vector<32x512xbf16>, vector<2x512xf32> -> vector<2x512xf32>
    %152 = arith.addf %146, %151 : vector<2x512xf32>
    %153 = vector.extract_strided_slice %73 {offsets = [26, 0], sizes = [2, 32], strides = [1, 1]} : vector<120x32xf32> to vector<2x32xf32>
    %154 = arith.truncf %153 : vector<2x32xf32> to vector<2x32xbf16>
    %c13 = arith.constant 13 : index
    %c0_109 = arith.constant 0 : index
    %c0_110 = arith.constant 0 : index
    %155 = vector.load %arg7[%c13, %c0_109, %c0_110] : memref<60x32x512xbf16, #tpu.memory_space<vmem>>, vector<1x32x512xbf16>
    %156 = vector.shape_cast %155 : vector<1x32x512xbf16> to vector<32x512xbf16>
    %cst_111 = arith.constant dense<0.000000e+00> : vector<2x512xf32>
    %157 = tpu.matmul %154, %156, %cst_111 {dimension_numbers = #tpu.dot_dimension_numbers<[1], [0], [0], [1], [0, 0, 1, 1], [], []>} : vector<2x32xbf16>, vector<32x512xbf16>, vector<2x512xf32> -> vector<2x512xf32>
    %158 = arith.addf %152, %157 : vector<2x512xf32>
    %159 = vector.extract_strided_slice %73 {offsets = [28, 0], sizes = [2, 32], strides = [1, 1]} : vector<120x32xf32> to vector<2x32xf32>
    %160 = arith.truncf %159 : vector<2x32xf32> to vector<2x32xbf16>
    %c14_112 = arith.constant 14 : index
    %c0_113 = arith.constant 0 : index
    %c0_114 = arith.constant 0 : index
    %161 = vector.load %arg7[%c14_112, %c0_113, %c0_114] : memref<60x32x512xbf16, #tpu.memory_space<vmem>>, vector<1x32x512xbf16>
    %162 = vector.shape_cast %161 : vector<1x32x512xbf16> to vector<32x512xbf16>
    %cst_115 = arith.constant dense<0.000000e+00> : vector<2x512xf32>
    %163 = tpu.matmul %160, %162, %cst_115 {dimension_numbers = #tpu.dot_dimension_numbers<[1], [0], [0], [1], [0, 0, 1, 1], [], []>} : vector<2x32xbf16>, vector<32x512xbf16>, vector<2x512xf32> -> vector<2x512xf32>
    %164 = arith.addf %158, %163 : vector<2x512xf32>
    %165 = vector.extract_strided_slice %73 {offsets = [30, 0], sizes = [2, 32], strides = [1, 1]} : vector<120x32xf32> to vector<2x32xf32>
    %166 = arith.truncf %165 : vector<2x32xf32> to vector<2x32xbf16>
    %c15 = arith.constant 15 : index
    %c0_116 = arith.constant 0 : index
    %c0_117 = arith.constant 0 : index
    %167 = vector.load %arg7[%c15, %c0_116, %c0_117] : memref<60x32x512xbf16, #tpu.memory_space<vmem>>, vector<1x32x512xbf16>
    %168 = vector.shape_cast %167 : vector<1x32x512xbf16> to vector<32x512xbf16>
    %cst_118 = arith.constant dense<0.000000e+00> : vector<2x512xf32>
    %169 = tpu.matmul %166, %168, %cst_118 {dimension_numbers = #tpu.dot_dimension_numbers<[1], [0], [0], [1], [0, 0, 1, 1], [], []>} : vector<2x32xbf16>, vector<32x512xbf16>, vector<2x512xf32> -> vector<2x512xf32>
    %170 = arith.addf %164, %169 : vector<2x512xf32>
    %171 = vector.extract_strided_slice %73 {offsets = [32, 0], sizes = [2, 32], strides = [1, 1]} : vector<120x32xf32> to vector<2x32xf32>
    %172 = arith.truncf %171 : vector<2x32xf32> to vector<2x32xbf16>
    %c16_119 = arith.constant 16 : index
    %c0_120 = arith.constant 0 : index
    %c0_121 = arith.constant 0 : index
    %173 = vector.load %arg7[%c16_119, %c0_120, %c0_121] : memref<60x32x512xbf16, #tpu.memory_space<vmem>>, vector<1x32x512xbf16>
    %174 = vector.shape_cast %173 : vector<1x32x512xbf16> to vector<32x512xbf16>
    %cst_122 = arith.constant dense<0.000000e+00> : vector<2x512xf32>
    %175 = tpu.matmul %172, %174, %cst_122 {dimension_numbers = #tpu.dot_dimension_numbers<[1], [0], [0], [1], [0, 0, 1, 1], [], []>} : vector<2x32xbf16>, vector<32x512xbf16>, vector<2x512xf32> -> vector<2x512xf32>
    %176 = arith.addf %170, %175 : vector<2x512xf32>
    %177 = vector.extract_strided_slice %73 {offsets = [34, 0], sizes = [2, 32], strides = [1, 1]} : vector<120x32xf32> to vector<2x32xf32>
    %178 = arith.truncf %177 : vector<2x32xf32> to vector<2x32xbf16>
    %c17 = arith.constant 17 : index
    %c0_123 = arith.constant 0 : index
    %c0_124 = arith.constant 0 : index
    %179 = vector.load %arg7[%c17, %c0_123, %c0_124] : memref<60x32x512xbf16, #tpu.memory_space<vmem>>, vector<1x32x512xbf16>
    %180 = vector.shape_cast %179 : vector<1x32x512xbf16> to vector<32x512xbf16>
    %cst_125 = arith.constant dense<0.000000e+00> : vector<2x512xf32>
    %181 = tpu.matmul %178, %180, %cst_125 {dimension_numbers = #tpu.dot_dimension_numbers<[1], [0], [0], [1], [0, 0, 1, 1], [], []>} : vector<2x32xbf16>, vector<32x512xbf16>, vector<2x512xf32> -> vector<2x512xf32>
    %182 = arith.addf %176, %181 : vector<2x512xf32>
    %183 = vector.extract_strided_slice %73 {offsets = [36, 0], sizes = [2, 32], strides = [1, 1]} : vector<120x32xf32> to vector<2x32xf32>
    %184 = arith.truncf %183 : vector<2x32xf32> to vector<2x32xbf16>
    %c18_126 = arith.constant 18 : index
    %c0_127 = arith.constant 0 : index
    %c0_128 = arith.constant 0 : index
    %185 = vector.load %arg7[%c18_126, %c0_127, %c0_128] : memref<60x32x512xbf16, #tpu.memory_space<vmem>>, vector<1x32x512xbf16>
    %186 = vector.shape_cast %185 : vector<1x32x512xbf16> to vector<32x512xbf16>
    %cst_129 = arith.constant dense<0.000000e+00> : vector<2x512xf32>
    %187 = tpu.matmul %184, %186, %cst_129 {dimension_numbers = #tpu.dot_dimension_numbers<[1], [0], [0], [1], [0, 0, 1, 1], [], []>} : vector<2x32xbf16>, vector<32x512xbf16>, vector<2x512xf32> -> vector<2x512xf32>
    %188 = arith.addf %182, %187 : vector<2x512xf32>
    %189 = vector.extract_strided_slice %73 {offsets = [38, 0], sizes = [2, 32], strides = [1, 1]} : vector<120x32xf32> to vector<2x32xf32>
    %190 = arith.truncf %189 : vector<2x32xf32> to vector<2x32xbf16>
    %c19 = arith.constant 19 : index
    %c0_130 = arith.constant 0 : index
    %c0_131 = arith.constant 0 : index
    %191 = vector.load %arg7[%c19, %c0_130, %c0_131] : memref<60x32x512xbf16, #tpu.memory_space<vmem>>, vector<1x32x512xbf16>
    %192 = vector.shape_cast %191 : vector<1x32x512xbf16> to vector<32x512xbf16>
    %cst_132 = arith.constant dense<0.000000e+00> : vector<2x512xf32>
    %193 = tpu.matmul %190, %192, %cst_132 {dimension_numbers = #tpu.dot_dimension_numbers<[1], [0], [0], [1], [0, 0, 1, 1], [], []>} : vector<2x32xbf16>, vector<32x512xbf16>, vector<2x512xf32> -> vector<2x512xf32>
    %194 = arith.addf %188, %193 : vector<2x512xf32>
    %195 = vector.extract_strided_slice %73 {offsets = [40, 0], sizes = [2, 32], strides = [1, 1]} : vector<120x32xf32> to vector<2x32xf32>
    %196 = arith.truncf %195 : vector<2x32xf32> to vector<2x32xbf16>
    %c20_133 = arith.constant 20 : index
    %c0_134 = arith.constant 0 : index
    %c0_135 = arith.constant 0 : index
    %197 = vector.load %arg7[%c20_133, %c0_134, %c0_135] : memref<60x32x512xbf16, #tpu.memory_space<vmem>>, vector<1x32x512xbf16>
    %198 = vector.shape_cast %197 : vector<1x32x512xbf16> to vector<32x512xbf16>
    %cst_136 = arith.constant dense<0.000000e+00> : vector<2x512xf32>
    %199 = tpu.matmul %196, %198, %cst_136 {dimension_numbers = #tpu.dot_dimension_numbers<[1], [0], [0], [1], [0, 0, 1, 1], [], []>} : vector<2x32xbf16>, vector<32x512xbf16>, vector<2x512xf32> -> vector<2x512xf32>
    %200 = arith.addf %194, %199 : vector<2x512xf32>
    %201 = vector.extract_strided_slice %73 {offsets = [42, 0], sizes = [2, 32], strides = [1, 1]} : vector<120x32xf32> to vector<2x32xf32>
    %202 = arith.truncf %201 : vector<2x32xf32> to vector<2x32xbf16>
    %c21 = arith.constant 21 : index
    %c0_137 = arith.constant 0 : index
    %c0_138 = arith.constant 0 : index
    %203 = vector.load %arg7[%c21, %c0_137, %c0_138] : memref<60x32x512xbf16, #tpu.memory_space<vmem>>, vector<1x32x512xbf16>
    %204 = vector.shape_cast %203 : vector<1x32x512xbf16> to vector<32x512xbf16>
    %cst_139 = arith.constant dense<0.000000e+00> : vector<2x512xf32>
    %205 = tpu.matmul %202, %204, %cst_139 {dimension_numbers = #tpu.dot_dimension_numbers<[1], [0], [0], [1], [0, 0, 1, 1], [], []>} : vector<2x32xbf16>, vector<32x512xbf16>, vector<2x512xf32> -> vector<2x512xf32>
    %206 = arith.addf %200, %205 : vector<2x512xf32>
    %207 = vector.extract_strided_slice %73 {offsets = [44, 0], sizes = [2, 32], strides = [1, 1]} : vector<120x32xf32> to vector<2x32xf32>
    %208 = arith.truncf %207 : vector<2x32xf32> to vector<2x32xbf16>
    %c22 = arith.constant 22 : index
    %c0_140 = arith.constant 0 : index
    %c0_141 = arith.constant 0 : index
    %209 = vector.load %arg7[%c22, %c0_140, %c0_141] : memref<60x32x512xbf16, #tpu.memory_space<vmem>>, vector<1x32x512xbf16>
    %210 = vector.shape_cast %209 : vector<1x32x512xbf16> to vector<32x512xbf16>
    %cst_142 = arith.constant dense<0.000000e+00> : vector<2x512xf32>
    %211 = tpu.matmul %208, %210, %cst_142 {dimension_numbers = #tpu.dot_dimension_numbers<[1], [0], [0], [1], [0, 0, 1, 1], [], []>} : vector<2x32xbf16>, vector<32x512xbf16>, vector<2x512xf32> -> vector<2x512xf32>
    %212 = arith.addf %206, %211 : vector<2x512xf32>
    %213 = vector.extract_strided_slice %73 {offsets = [46, 0], sizes = [2, 32], strides = [1, 1]} : vector<120x32xf32> to vector<2x32xf32>
    %214 = arith.truncf %213 : vector<2x32xf32> to vector<2x32xbf16>
    %c23 = arith.constant 23 : index
    %c0_143 = arith.constant 0 : index
    %c0_144 = arith.constant 0 : index
    %215 = vector.load %arg7[%c23, %c0_143, %c0_144] : memref<60x32x512xbf16, #tpu.memory_space<vmem>>, vector<1x32x512xbf16>
    %216 = vector.shape_cast %215 : vector<1x32x512xbf16> to vector<32x512xbf16>
    %cst_145 = arith.constant dense<0.000000e+00> : vector<2x512xf32>
    %217 = tpu.matmul %214, %216, %cst_145 {dimension_numbers = #tpu.dot_dimension_numbers<[1], [0], [0], [1], [0, 0, 1, 1], [], []>} : vector<2x32xbf16>, vector<32x512xbf16>, vector<2x512xf32> -> vector<2x512xf32>
    %218 = arith.addf %212, %217 : vector<2x512xf32>
    %219 = vector.extract_strided_slice %73 {offsets = [48, 0], sizes = [2, 32], strides = [1, 1]} : vector<120x32xf32> to vector<2x32xf32>
    %220 = arith.truncf %219 : vector<2x32xf32> to vector<2x32xbf16>
    %c24 = arith.constant 24 : index
    %c0_146 = arith.constant 0 : index
    %c0_147 = arith.constant 0 : index
    %221 = vector.load %arg7[%c24, %c0_146, %c0_147] : memref<60x32x512xbf16, #tpu.memory_space<vmem>>, vector<1x32x512xbf16>
    %222 = vector.shape_cast %221 : vector<1x32x512xbf16> to vector<32x512xbf16>
    %cst_148 = arith.constant dense<0.000000e+00> : vector<2x512xf32>
    %223 = tpu.matmul %220, %222, %cst_148 {dimension_numbers = #tpu.dot_dimension_numbers<[1], [0], [0], [1], [0, 0, 1, 1], [], []>} : vector<2x32xbf16>, vector<32x512xbf16>, vector<2x512xf32> -> vector<2x512xf32>
    %224 = arith.addf %218, %223 : vector<2x512xf32>
    %225 = vector.extract_strided_slice %73 {offsets = [50, 0], sizes = [2, 32], strides = [1, 1]} : vector<120x32xf32> to vector<2x32xf32>
    %226 = arith.truncf %225 : vector<2x32xf32> to vector<2x32xbf16>
    %c25 = arith.constant 25 : index
    %c0_149 = arith.constant 0 : index
    %c0_150 = arith.constant 0 : index
    %227 = vector.load %arg7[%c25, %c0_149, %c0_150] : memref<60x32x512xbf16, #tpu.memory_space<vmem>>, vector<1x32x512xbf16>
    %228 = vector.shape_cast %227 : vector<1x32x512xbf16> to vector<32x512xbf16>
    %cst_151 = arith.constant dense<0.000000e+00> : vector<2x512xf32>
    %229 = tpu.matmul %226, %228, %cst_151 {dimension_numbers = #tpu.dot_dimension_numbers<[1], [0], [0], [1], [0, 0, 1, 1], [], []>} : vector<2x32xbf16>, vector<32x512xbf16>, vector<2x512xf32> -> vector<2x512xf32>
    %230 = arith.addf %224, %229 : vector<2x512xf32>
    %231 = vector.extract_strided_slice %73 {offsets = [52, 0], sizes = [2, 32], strides = [1, 1]} : vector<120x32xf32> to vector<2x32xf32>
    %232 = arith.truncf %231 : vector<2x32xf32> to vector<2x32xbf16>
    %c26 = arith.constant 26 : index
    %c0_152 = arith.constant 0 : index
    %c0_153 = arith.constant 0 : index
    %233 = vector.load %arg7[%c26, %c0_152, %c0_153] : memref<60x32x512xbf16, #tpu.memory_space<vmem>>, vector<1x32x512xbf16>
    %234 = vector.shape_cast %233 : vector<1x32x512xbf16> to vector<32x512xbf16>
    %cst_154 = arith.constant dense<0.000000e+00> : vector<2x512xf32>
    %235 = tpu.matmul %232, %234, %cst_154 {dimension_numbers = #tpu.dot_dimension_numbers<[1], [0], [0], [1], [0, 0, 1, 1], [], []>} : vector<2x32xbf16>, vector<32x512xbf16>, vector<2x512xf32> -> vector<2x512xf32>
    %236 = arith.addf %230, %235 : vector<2x512xf32>
    %237 = vector.extract_strided_slice %73 {offsets = [54, 0], sizes = [2, 32], strides = [1, 1]} : vector<120x32xf32> to vector<2x32xf32>
    %238 = arith.truncf %237 : vector<2x32xf32> to vector<2x32xbf16>
    %c27 = arith.constant 27 : index
    %c0_155 = arith.constant 0 : index
    %c0_156 = arith.constant 0 : index
    %239 = vector.load %arg7[%c27, %c0_155, %c0_156] : memref<60x32x512xbf16, #tpu.memory_space<vmem>>, vector<1x32x512xbf16>
    %240 = vector.shape_cast %239 : vector<1x32x512xbf16> to vector<32x512xbf16>
    %cst_157 = arith.constant dense<0.000000e+00> : vector<2x512xf32>
    %241 = tpu.matmul %238, %240, %cst_157 {dimension_numbers = #tpu.dot_dimension_numbers<[1], [0], [0], [1], [0, 0, 1, 1], [], []>} : vector<2x32xbf16>, vector<32x512xbf16>, vector<2x512xf32> -> vector<2x512xf32>
    %242 = arith.addf %236, %241 : vector<2x512xf32>
    %243 = vector.extract_strided_slice %73 {offsets = [56, 0], sizes = [2, 32], strides = [1, 1]} : vector<120x32xf32> to vector<2x32xf32>
    %244 = arith.truncf %243 : vector<2x32xf32> to vector<2x32xbf16>
    %c28 = arith.constant 28 : index
    %c0_158 = arith.constant 0 : index
    %c0_159 = arith.constant 0 : index
    %245 = vector.load %arg7[%c28, %c0_158, %c0_159] : memref<60x32x512xbf16, #tpu.memory_space<vmem>>, vector<1x32x512xbf16>
    %246 = vector.shape_cast %245 : vector<1x32x512xbf16> to vector<32x512xbf16>
    %cst_160 = arith.constant dense<0.000000e+00> : vector<2x512xf32>
    %247 = tpu.matmul %244, %246, %cst_160 {dimension_numbers = #tpu.dot_dimension_numbers<[1], [0], [0], [1], [0, 0, 1, 1], [], []>} : vector<2x32xbf16>, vector<32x512xbf16>, vector<2x512xf32> -> vector<2x512xf32>
    %248 = arith.addf %242, %247 : vector<2x512xf32>
    %249 = vector.extract_strided_slice %73 {offsets = [58, 0], sizes = [2, 32], strides = [1, 1]} : vector<120x32xf32> to vector<2x32xf32>
    %250 = arith.truncf %249 : vector<2x32xf32> to vector<2x32xbf16>
    %c29 = arith.constant 29 : index
    %c0_161 = arith.constant 0 : index
    %c0_162 = arith.constant 0 : index
    %251 = vector.load %arg7[%c29, %c0_161, %c0_162] : memref<60x32x512xbf16, #tpu.memory_space<vmem>>, vector<1x32x512xbf16>
    %252 = vector.shape_cast %251 : vector<1x32x512xbf16> to vector<32x512xbf16>
    %cst_163 = arith.constant dense<0.000000e+00> : vector<2x512xf32>
    %253 = tpu.matmul %250, %252, %cst_163 {dimension_numbers = #tpu.dot_dimension_numbers<[1], [0], [0], [1], [0, 0, 1, 1], [], []>} : vector<2x32xbf16>, vector<32x512xbf16>, vector<2x512xf32> -> vector<2x512xf32>
    %254 = arith.addf %248, %253 : vector<2x512xf32>
    %255 = vector.extract_strided_slice %73 {offsets = [60, 0], sizes = [2, 32], strides = [1, 1]} : vector<120x32xf32> to vector<2x32xf32>
    %256 = arith.truncf %255 : vector<2x32xf32> to vector<2x32xbf16>
    %c30 = arith.constant 30 : index
    %c0_164 = arith.constant 0 : index
    %c0_165 = arith.constant 0 : index
    %257 = vector.load %arg7[%c30, %c0_164, %c0_165] : memref<60x32x512xbf16, #tpu.memory_space<vmem>>, vector<1x32x512xbf16>
    %258 = vector.shape_cast %257 : vector<1x32x512xbf16> to vector<32x512xbf16>
    %cst_166 = arith.constant dense<0.000000e+00> : vector<2x512xf32>
    %259 = tpu.matmul %256, %258, %cst_166 {dimension_numbers = #tpu.dot_dimension_numbers<[1], [0], [0], [1], [0, 0, 1, 1], [], []>} : vector<2x32xbf16>, vector<32x512xbf16>, vector<2x512xf32> -> vector<2x512xf32>
    %260 = arith.addf %254, %259 : vector<2x512xf32>
    %261 = vector.extract_strided_slice %73 {offsets = [62, 0], sizes = [2, 32], strides = [1, 1]} : vector<120x32xf32> to vector<2x32xf32>
    %262 = arith.truncf %261 : vector<2x32xf32> to vector<2x32xbf16>
    %c31 = arith.constant 31 : index
    %c0_167 = arith.constant 0 : index
    %c0_168 = arith.constant 0 : index
    %263 = vector.load %arg7[%c31, %c0_167, %c0_168] : memref<60x32x512xbf16, #tpu.memory_space<vmem>>, vector<1x32x512xbf16>
    %264 = vector.shape_cast %263 : vector<1x32x512xbf16> to vector<32x512xbf16>
    %cst_169 = arith.constant dense<0.000000e+00> : vector<2x512xf32>
    %265 = tpu.matmul %262, %264, %cst_169 {dimension_numbers = #tpu.dot_dimension_numbers<[1], [0], [0], [1], [0, 0, 1, 1], [], []>} : vector<2x32xbf16>, vector<32x512xbf16>, vector<2x512xf32> -> vector<2x512xf32>
    %266 = arith.addf %260, %265 : vector<2x512xf32>
    %267 = vector.extract_strided_slice %73 {offsets = [64, 0], sizes = [2, 32], strides = [1, 1]} : vector<120x32xf32> to vector<2x32xf32>
    %268 = arith.truncf %267 : vector<2x32xf32> to vector<2x32xbf16>
    %c32 = arith.constant 32 : index
    %c0_170 = arith.constant 0 : index
    %c0_171 = arith.constant 0 : index
    %269 = vector.load %arg7[%c32, %c0_170, %c0_171] : memref<60x32x512xbf16, #tpu.memory_space<vmem>>, vector<1x32x512xbf16>
    %270 = vector.shape_cast %269 : vector<1x32x512xbf16> to vector<32x512xbf16>
    %cst_172 = arith.constant dense<0.000000e+00> : vector<2x512xf32>
    %271 = tpu.matmul %268, %270, %cst_172 {dimension_numbers = #tpu.dot_dimension_numbers<[1], [0], [0], [1], [0, 0, 1, 1], [], []>} : vector<2x32xbf16>, vector<32x512xbf16>, vector<2x512xf32> -> vector<2x512xf32>
    %272 = arith.addf %266, %271 : vector<2x512xf32>
    %273 = vector.extract_strided_slice %73 {offsets = [66, 0], sizes = [2, 32], strides = [1, 1]} : vector<120x32xf32> to vector<2x32xf32>
    %274 = arith.truncf %273 : vector<2x32xf32> to vector<2x32xbf16>
    %c33 = arith.constant 33 : index
    %c0_173 = arith.constant 0 : index
    %c0_174 = arith.constant 0 : index
    %275 = vector.load %arg7[%c33, %c0_173, %c0_174] : memref<60x32x512xbf16, #tpu.memory_space<vmem>>, vector<1x32x512xbf16>
    %276 = vector.shape_cast %275 : vector<1x32x512xbf16> to vector<32x512xbf16>
    %cst_175 = arith.constant dense<0.000000e+00> : vector<2x512xf32>
    %277 = tpu.matmul %274, %276, %cst_175 {dimension_numbers = #tpu.dot_dimension_numbers<[1], [0], [0], [1], [0, 0, 1, 1], [], []>} : vector<2x32xbf16>, vector<32x512xbf16>, vector<2x512xf32> -> vector<2x512xf32>
    %278 = arith.addf %272, %277 : vector<2x512xf32>
    %279 = vector.extract_strided_slice %73 {offsets = [68, 0], sizes = [2, 32], strides = [1, 1]} : vector<120x32xf32> to vector<2x32xf32>
    %280 = arith.truncf %279 : vector<2x32xf32> to vector<2x32xbf16>
    %c34 = arith.constant 34 : index
    %c0_176 = arith.constant 0 : index
    %c0_177 = arith.constant 0 : index
    %281 = vector.load %arg7[%c34, %c0_176, %c0_177] : memref<60x32x512xbf16, #tpu.memory_space<vmem>>, vector<1x32x512xbf16>
    %282 = vector.shape_cast %281 : vector<1x32x512xbf16> to vector<32x512xbf16>
    %cst_178 = arith.constant dense<0.000000e+00> : vector<2x512xf32>
    %283 = tpu.matmul %280, %282, %cst_178 {dimension_numbers = #tpu.dot_dimension_numbers<[1], [0], [0], [1], [0, 0, 1, 1], [], []>} : vector<2x32xbf16>, vector<32x512xbf16>, vector<2x512xf32> -> vector<2x512xf32>
    %284 = arith.addf %278, %283 : vector<2x512xf32>
    %285 = vector.extract_strided_slice %73 {offsets = [70, 0], sizes = [2, 32], strides = [1, 1]} : vector<120x32xf32> to vector<2x32xf32>
    %286 = arith.truncf %285 : vector<2x32xf32> to vector<2x32xbf16>
    %c35 = arith.constant 35 : index
    %c0_179 = arith.constant 0 : index
    %c0_180 = arith.constant 0 : index
    %287 = vector.load %arg7[%c35, %c0_179, %c0_180] : memref<60x32x512xbf16, #tpu.memory_space<vmem>>, vector<1x32x512xbf16>
    %288 = vector.shape_cast %287 : vector<1x32x512xbf16> to vector<32x512xbf16>
    %cst_181 = arith.constant dense<0.000000e+00> : vector<2x512xf32>
    %289 = tpu.matmul %286, %288, %cst_181 {dimension_numbers = #tpu.dot_dimension_numbers<[1], [0], [0], [1], [0, 0, 1, 1], [], []>} : vector<2x32xbf16>, vector<32x512xbf16>, vector<2x512xf32> -> vector<2x512xf32>
    %290 = arith.addf %284, %289 : vector<2x512xf32>
    %291 = vector.extract_strided_slice %73 {offsets = [72, 0], sizes = [2, 32], strides = [1, 1]} : vector<120x32xf32> to vector<2x32xf32>
    %292 = arith.truncf %291 : vector<2x32xf32> to vector<2x32xbf16>
    %c36 = arith.constant 36 : index
    %c0_182 = arith.constant 0 : index
    %c0_183 = arith.constant 0 : index
    %293 = vector.load %arg7[%c36, %c0_182, %c0_183] : memref<60x32x512xbf16, #tpu.memory_space<vmem>>, vector<1x32x512xbf16>
    %294 = vector.shape_cast %293 : vector<1x32x512xbf16> to vector<32x512xbf16>
    %cst_184 = arith.constant dense<0.000000e+00> : vector<2x512xf32>
    %295 = tpu.matmul %292, %294, %cst_184 {dimension_numbers = #tpu.dot_dimension_numbers<[1], [0], [0], [1], [0, 0, 1, 1], [], []>} : vector<2x32xbf16>, vector<32x512xbf16>, vector<2x512xf32> -> vector<2x512xf32>
    %296 = arith.addf %290, %295 : vector<2x512xf32>
    %297 = vector.extract_strided_slice %73 {offsets = [74, 0], sizes = [2, 32], strides = [1, 1]} : vector<120x32xf32> to vector<2x32xf32>
    %298 = arith.truncf %297 : vector<2x32xf32> to vector<2x32xbf16>
    %c37 = arith.constant 37 : index
    %c0_185 = arith.constant 0 : index
    %c0_186 = arith.constant 0 : index
    %299 = vector.load %arg7[%c37, %c0_185, %c0_186] : memref<60x32x512xbf16, #tpu.memory_space<vmem>>, vector<1x32x512xbf16>
    %300 = vector.shape_cast %299 : vector<1x32x512xbf16> to vector<32x512xbf16>
    %cst_187 = arith.constant dense<0.000000e+00> : vector<2x512xf32>
    %301 = tpu.matmul %298, %300, %cst_187 {dimension_numbers = #tpu.dot_dimension_numbers<[1], [0], [0], [1], [0, 0, 1, 1], [], []>} : vector<2x32xbf16>, vector<32x512xbf16>, vector<2x512xf32> -> vector<2x512xf32>
    %302 = arith.addf %296, %301 : vector<2x512xf32>
    %303 = vector.extract_strided_slice %73 {offsets = [76, 0], sizes = [2, 32], strides = [1, 1]} : vector<120x32xf32> to vector<2x32xf32>
    %304 = arith.truncf %303 : vector<2x32xf32> to vector<2x32xbf16>
    %c38 = arith.constant 38 : index
    %c0_188 = arith.constant 0 : index
    %c0_189 = arith.constant 0 : index
    %305 = vector.load %arg7[%c38, %c0_188, %c0_189] : memref<60x32x512xbf16, #tpu.memory_space<vmem>>, vector<1x32x512xbf16>
    %306 = vector.shape_cast %305 : vector<1x32x512xbf16> to vector<32x512xbf16>
    %cst_190 = arith.constant dense<0.000000e+00> : vector<2x512xf32>
    %307 = tpu.matmul %304, %306, %cst_190 {dimension_numbers = #tpu.dot_dimension_numbers<[1], [0], [0], [1], [0, 0, 1, 1], [], []>} : vector<2x32xbf16>, vector<32x512xbf16>, vector<2x512xf32> -> vector<2x512xf32>
    %308 = arith.addf %302, %307 : vector<2x512xf32>
    %309 = vector.extract_strided_slice %73 {offsets = [78, 0], sizes = [2, 32], strides = [1, 1]} : vector<120x32xf32> to vector<2x32xf32>
    %310 = arith.truncf %309 : vector<2x32xf32> to vector<2x32xbf16>
    %c39 = arith.constant 39 : index
    %c0_191 = arith.constant 0 : index
    %c0_192 = arith.constant 0 : index
    %311 = vector.load %arg7[%c39, %c0_191, %c0_192] : memref<60x32x512xbf16, #tpu.memory_space<vmem>>, vector<1x32x512xbf16>
    %312 = vector.shape_cast %311 : vector<1x32x512xbf16> to vector<32x512xbf16>
    %cst_193 = arith.constant dense<0.000000e+00> : vector<2x512xf32>
    %313 = tpu.matmul %310, %312, %cst_193 {dimension_numbers = #tpu.dot_dimension_numbers<[1], [0], [0], [1], [0, 0, 1, 1], [], []>} : vector<2x32xbf16>, vector<32x512xbf16>, vector<2x512xf32> -> vector<2x512xf32>
    %314 = arith.addf %308, %313 : vector<2x512xf32>
    %315 = vector.extract_strided_slice %73 {offsets = [80, 0], sizes = [2, 32], strides = [1, 1]} : vector<120x32xf32> to vector<2x32xf32>
    %316 = arith.truncf %315 : vector<2x32xf32> to vector<2x32xbf16>
    %c40 = arith.constant 40 : index
    %c0_194 = arith.constant 0 : index
    %c0_195 = arith.constant 0 : index
    %317 = vector.load %arg7[%c40, %c0_194, %c0_195] : memref<60x32x512xbf16, #tpu.memory_space<vmem>>, vector<1x32x512xbf16>
    %318 = vector.shape_cast %317 : vector<1x32x512xbf16> to vector<32x512xbf16>
    %cst_196 = arith.constant dense<0.000000e+00> : vector<2x512xf32>
    %319 = tpu.matmul %316, %318, %cst_196 {dimension_numbers = #tpu.dot_dimension_numbers<[1], [0], [0], [1], [0, 0, 1, 1], [], []>} : vector<2x32xbf16>, vector<32x512xbf16>, vector<2x512xf32> -> vector<2x512xf32>
    %320 = arith.addf %314, %319 : vector<2x512xf32>
    %321 = vector.extract_strided_slice %73 {offsets = [82, 0], sizes = [2, 32], strides = [1, 1]} : vector<120x32xf32> to vector<2x32xf32>
    %322 = arith.truncf %321 : vector<2x32xf32> to vector<2x32xbf16>
    %c41 = arith.constant 41 : index
    %c0_197 = arith.constant 0 : index
    %c0_198 = arith.constant 0 : index
    %323 = vector.load %arg7[%c41, %c0_197, %c0_198] : memref<60x32x512xbf16, #tpu.memory_space<vmem>>, vector<1x32x512xbf16>
    %324 = vector.shape_cast %323 : vector<1x32x512xbf16> to vector<32x512xbf16>
    %cst_199 = arith.constant dense<0.000000e+00> : vector<2x512xf32>
    %325 = tpu.matmul %322, %324, %cst_199 {dimension_numbers = #tpu.dot_dimension_numbers<[1], [0], [0], [1], [0, 0, 1, 1], [], []>} : vector<2x32xbf16>, vector<32x512xbf16>, vector<2x512xf32> -> vector<2x512xf32>
    %326 = arith.addf %320, %325 : vector<2x512xf32>
    %327 = vector.extract_strided_slice %73 {offsets = [84, 0], sizes = [2, 32], strides = [1, 1]} : vector<120x32xf32> to vector<2x32xf32>
    %328 = arith.truncf %327 : vector<2x32xf32> to vector<2x32xbf16>
    %c42 = arith.constant 42 : index
    %c0_200 = arith.constant 0 : index
    %c0_201 = arith.constant 0 : index
    %329 = vector.load %arg7[%c42, %c0_200, %c0_201] : memref<60x32x512xbf16, #tpu.memory_space<vmem>>, vector<1x32x512xbf16>
    %330 = vector.shape_cast %329 : vector<1x32x512xbf16> to vector<32x512xbf16>
    %cst_202 = arith.constant dense<0.000000e+00> : vector<2x512xf32>
    %331 = tpu.matmul %328, %330, %cst_202 {dimension_numbers = #tpu.dot_dimension_numbers<[1], [0], [0], [1], [0, 0, 1, 1], [], []>} : vector<2x32xbf16>, vector<32x512xbf16>, vector<2x512xf32> -> vector<2x512xf32>
    %332 = arith.addf %326, %331 : vector<2x512xf32>
    %333 = vector.extract_strided_slice %73 {offsets = [86, 0], sizes = [2, 32], strides = [1, 1]} : vector<120x32xf32> to vector<2x32xf32>
    %334 = arith.truncf %333 : vector<2x32xf32> to vector<2x32xbf16>
    %c43 = arith.constant 43 : index
    %c0_203 = arith.constant 0 : index
    %c0_204 = arith.constant 0 : index
    %335 = vector.load %arg7[%c43, %c0_203, %c0_204] : memref<60x32x512xbf16, #tpu.memory_space<vmem>>, vector<1x32x512xbf16>
    %336 = vector.shape_cast %335 : vector<1x32x512xbf16> to vector<32x512xbf16>
    %cst_205 = arith.constant dense<0.000000e+00> : vector<2x512xf32>
    %337 = tpu.matmul %334, %336, %cst_205 {dimension_numbers = #tpu.dot_dimension_numbers<[1], [0], [0], [1], [0, 0, 1, 1], [], []>} : vector<2x32xbf16>, vector<32x512xbf16>, vector<2x512xf32> -> vector<2x512xf32>
    %338 = arith.addf %332, %337 : vector<2x512xf32>
    %339 = vector.extract_strided_slice %73 {offsets = [88, 0], sizes = [2, 32], strides = [1, 1]} : vector<120x32xf32> to vector<2x32xf32>
    %340 = arith.truncf %339 : vector<2x32xf32> to vector<2x32xbf16>
    %c44 = arith.constant 44 : index
    %c0_206 = arith.constant 0 : index
    %c0_207 = arith.constant 0 : index
    %341 = vector.load %arg7[%c44, %c0_206, %c0_207] : memref<60x32x512xbf16, #tpu.memory_space<vmem>>, vector<1x32x512xbf16>
    %342 = vector.shape_cast %341 : vector<1x32x512xbf16> to vector<32x512xbf16>
    %cst_208 = arith.constant dense<0.000000e+00> : vector<2x512xf32>
    %343 = tpu.matmul %340, %342, %cst_208 {dimension_numbers = #tpu.dot_dimension_numbers<[1], [0], [0], [1], [0, 0, 1, 1], [], []>} : vector<2x32xbf16>, vector<32x512xbf16>, vector<2x512xf32> -> vector<2x512xf32>
    %344 = arith.addf %338, %343 : vector<2x512xf32>
    %345 = vector.extract_strided_slice %73 {offsets = [90, 0], sizes = [2, 32], strides = [1, 1]} : vector<120x32xf32> to vector<2x32xf32>
    %346 = arith.truncf %345 : vector<2x32xf32> to vector<2x32xbf16>
    %c45 = arith.constant 45 : index
    %c0_209 = arith.constant 0 : index
    %c0_210 = arith.constant 0 : index
    %347 = vector.load %arg7[%c45, %c0_209, %c0_210] : memref<60x32x512xbf16, #tpu.memory_space<vmem>>, vector<1x32x512xbf16>
    %348 = vector.shape_cast %347 : vector<1x32x512xbf16> to vector<32x512xbf16>
    %cst_211 = arith.constant dense<0.000000e+00> : vector<2x512xf32>
    %349 = tpu.matmul %346, %348, %cst_211 {dimension_numbers = #tpu.dot_dimension_numbers<[1], [0], [0], [1], [0, 0, 1, 1], [], []>} : vector<2x32xbf16>, vector<32x512xbf16>, vector<2x512xf32> -> vector<2x512xf32>
    %350 = arith.addf %344, %349 : vector<2x512xf32>
    %351 = vector.extract_strided_slice %73 {offsets = [92, 0], sizes = [2, 32], strides = [1, 1]} : vector<120x32xf32> to vector<2x32xf32>
    %352 = arith.truncf %351 : vector<2x32xf32> to vector<2x32xbf16>
    %c46 = arith.constant 46 : index
    %c0_212 = arith.constant 0 : index
    %c0_213 = arith.constant 0 : index
    %353 = vector.load %arg7[%c46, %c0_212, %c0_213] : memref<60x32x512xbf16, #tpu.memory_space<vmem>>, vector<1x32x512xbf16>
    %354 = vector.shape_cast %353 : vector<1x32x512xbf16> to vector<32x512xbf16>
    %cst_214 = arith.constant dense<0.000000e+00> : vector<2x512xf32>
    %355 = tpu.matmul %352, %354, %cst_214 {dimension_numbers = #tpu.dot_dimension_numbers<[1], [0], [0], [1], [0, 0, 1, 1], [], []>} : vector<2x32xbf16>, vector<32x512xbf16>, vector<2x512xf32> -> vector<2x512xf32>
    %356 = arith.addf %350, %355 : vector<2x512xf32>
    %357 = vector.extract_strided_slice %73 {offsets = [94, 0], sizes = [2, 32], strides = [1, 1]} : vector<120x32xf32> to vector<2x32xf32>
    %358 = arith.truncf %357 : vector<2x32xf32> to vector<2x32xbf16>
    %c47 = arith.constant 47 : index
    %c0_215 = arith.constant 0 : index
    %c0_216 = arith.constant 0 : index
    %359 = vector.load %arg7[%c47, %c0_215, %c0_216] : memref<60x32x512xbf16, #tpu.memory_space<vmem>>, vector<1x32x512xbf16>
    %360 = vector.shape_cast %359 : vector<1x32x512xbf16> to vector<32x512xbf16>
    %cst_217 = arith.constant dense<0.000000e+00> : vector<2x512xf32>
    %361 = tpu.matmul %358, %360, %cst_217 {dimension_numbers = #tpu.dot_dimension_numbers<[1], [0], [0], [1], [0, 0, 1, 1], [], []>} : vector<2x32xbf16>, vector<32x512xbf16>, vector<2x512xf32> -> vector<2x512xf32>
    %362 = arith.addf %356, %361 : vector<2x512xf32>
    %363 = vector.extract_strided_slice %73 {offsets = [96, 0], sizes = [2, 32], strides = [1, 1]} : vector<120x32xf32> to vector<2x32xf32>
    %364 = arith.truncf %363 : vector<2x32xf32> to vector<2x32xbf16>
    %c48 = arith.constant 48 : index
    %c0_218 = arith.constant 0 : index
    %c0_219 = arith.constant 0 : index
    %365 = vector.load %arg7[%c48, %c0_218, %c0_219] : memref<60x32x512xbf16, #tpu.memory_space<vmem>>, vector<1x32x512xbf16>
    %366 = vector.shape_cast %365 : vector<1x32x512xbf16> to vector<32x512xbf16>
    %cst_220 = arith.constant dense<0.000000e+00> : vector<2x512xf32>
    %367 = tpu.matmul %364, %366, %cst_220 {dimension_numbers = #tpu.dot_dimension_numbers<[1], [0], [0], [1], [0, 0, 1, 1], [], []>} : vector<2x32xbf16>, vector<32x512xbf16>, vector<2x512xf32> -> vector<2x512xf32>
    %368 = arith.addf %362, %367 : vector<2x512xf32>
    %369 = vector.extract_strided_slice %73 {offsets = [98, 0], sizes = [2, 32], strides = [1, 1]} : vector<120x32xf32> to vector<2x32xf32>
    %370 = arith.truncf %369 : vector<2x32xf32> to vector<2x32xbf16>
    %c49 = arith.constant 49 : index
    %c0_221 = arith.constant 0 : index
    %c0_222 = arith.constant 0 : index
    %371 = vector.load %arg7[%c49, %c0_221, %c0_222] : memref<60x32x512xbf16, #tpu.memory_space<vmem>>, vector<1x32x512xbf16>
    %372 = vector.shape_cast %371 : vector<1x32x512xbf16> to vector<32x512xbf16>
    %cst_223 = arith.constant dense<0.000000e+00> : vector<2x512xf32>
    %373 = tpu.matmul %370, %372, %cst_223 {dimension_numbers = #tpu.dot_dimension_numbers<[1], [0], [0], [1], [0, 0, 1, 1], [], []>} : vector<2x32xbf16>, vector<32x512xbf16>, vector<2x512xf32> -> vector<2x512xf32>
    %374 = arith.addf %368, %373 : vector<2x512xf32>
    %375 = vector.extract_strided_slice %73 {offsets = [100, 0], sizes = [2, 32], strides = [1, 1]} : vector<120x32xf32> to vector<2x32xf32>
    %376 = arith.truncf %375 : vector<2x32xf32> to vector<2x32xbf16>
    %c50 = arith.constant 50 : index
    %c0_224 = arith.constant 0 : index
    %c0_225 = arith.constant 0 : index
    %377 = vector.load %arg7[%c50, %c0_224, %c0_225] : memref<60x32x512xbf16, #tpu.memory_space<vmem>>, vector<1x32x512xbf16>
    %378 = vector.shape_cast %377 : vector<1x32x512xbf16> to vector<32x512xbf16>
    %cst_226 = arith.constant dense<0.000000e+00> : vector<2x512xf32>
    %379 = tpu.matmul %376, %378, %cst_226 {dimension_numbers = #tpu.dot_dimension_numbers<[1], [0], [0], [1], [0, 0, 1, 1], [], []>} : vector<2x32xbf16>, vector<32x512xbf16>, vector<2x512xf32> -> vector<2x512xf32>
    %380 = arith.addf %374, %379 : vector<2x512xf32>
    %381 = vector.extract_strided_slice %73 {offsets = [102, 0], sizes = [2, 32], strides = [1, 1]} : vector<120x32xf32> to vector<2x32xf32>
    %382 = arith.truncf %381 : vector<2x32xf32> to vector<2x32xbf16>
    %c51 = arith.constant 51 : index
    %c0_227 = arith.constant 0 : index
    %c0_228 = arith.constant 0 : index
    %383 = vector.load %arg7[%c51, %c0_227, %c0_228] : memref<60x32x512xbf16, #tpu.memory_space<vmem>>, vector<1x32x512xbf16>
    %384 = vector.shape_cast %383 : vector<1x32x512xbf16> to vector<32x512xbf16>
    %cst_229 = arith.constant dense<0.000000e+00> : vector<2x512xf32>
    %385 = tpu.matmul %382, %384, %cst_229 {dimension_numbers = #tpu.dot_dimension_numbers<[1], [0], [0], [1], [0, 0, 1, 1], [], []>} : vector<2x32xbf16>, vector<32x512xbf16>, vector<2x512xf32> -> vector<2x512xf32>
    %386 = arith.addf %380, %385 : vector<2x512xf32>
    %387 = vector.extract_strided_slice %73 {offsets = [104, 0], sizes = [2, 32], strides = [1, 1]} : vector<120x32xf32> to vector<2x32xf32>
    %388 = arith.truncf %387 : vector<2x32xf32> to vector<2x32xbf16>
    %c52 = arith.constant 52 : index
    %c0_230 = arith.constant 0 : index
    %c0_231 = arith.constant 0 : index
    %389 = vector.load %arg7[%c52, %c0_230, %c0_231] : memref<60x32x512xbf16, #tpu.memory_space<vmem>>, vector<1x32x512xbf16>
    %390 = vector.shape_cast %389 : vector<1x32x512xbf16> to vector<32x512xbf16>
    %cst_232 = arith.constant dense<0.000000e+00> : vector<2x512xf32>
    %391 = tpu.matmul %388, %390, %cst_232 {dimension_numbers = #tpu.dot_dimension_numbers<[1], [0], [0], [1], [0, 0, 1, 1], [], []>} : vector<2x32xbf16>, vector<32x512xbf16>, vector<2x512xf32> -> vector<2x512xf32>
    %392 = arith.addf %386, %391 : vector<2x512xf32>
    %393 = vector.extract_strided_slice %73 {offsets = [106, 0], sizes = [2, 32], strides = [1, 1]} : vector<120x32xf32> to vector<2x32xf32>
    %394 = arith.truncf %393 : vector<2x32xf32> to vector<2x32xbf16>
    %c53 = arith.constant 53 : index
    %c0_233 = arith.constant 0 : index
    %c0_234 = arith.constant 0 : index
    %395 = vector.load %arg7[%c53, %c0_233, %c0_234] : memref<60x32x512xbf16, #tpu.memory_space<vmem>>, vector<1x32x512xbf16>
    %396 = vector.shape_cast %395 : vector<1x32x512xbf16> to vector<32x512xbf16>
    %cst_235 = arith.constant dense<0.000000e+00> : vector<2x512xf32>
    %397 = tpu.matmul %394, %396, %cst_235 {dimension_numbers = #tpu.dot_dimension_numbers<[1], [0], [0], [1], [0, 0, 1, 1], [], []>} : vector<2x32xbf16>, vector<32x512xbf16>, vector<2x512xf32> -> vector<2x512xf32>
    %398 = arith.addf %392, %397 : vector<2x512xf32>
    %399 = vector.extract_strided_slice %73 {offsets = [108, 0], sizes = [2, 32], strides = [1, 1]} : vector<120x32xf32> to vector<2x32xf32>
    %400 = arith.truncf %399 : vector<2x32xf32> to vector<2x32xbf16>
    %c54 = arith.constant 54 : index
    %c0_236 = arith.constant 0 : index
    %c0_237 = arith.constant 0 : index
    %401 = vector.load %arg7[%c54, %c0_236, %c0_237] : memref<60x32x512xbf16, #tpu.memory_space<vmem>>, vector<1x32x512xbf16>
    %402 = vector.shape_cast %401 : vector<1x32x512xbf16> to vector<32x512xbf16>
    %cst_238 = arith.constant dense<0.000000e+00> : vector<2x512xf32>
    %403 = tpu.matmul %400, %402, %cst_238 {dimension_numbers = #tpu.dot_dimension_numbers<[1], [0], [0], [1], [0, 0, 1, 1], [], []>} : vector<2x32xbf16>, vector<32x512xbf16>, vector<2x512xf32> -> vector<2x512xf32>
    %404 = arith.addf %398, %403 : vector<2x512xf32>
    %405 = vector.extract_strided_slice %73 {offsets = [110, 0], sizes = [2, 32], strides = [1, 1]} : vector<120x32xf32> to vector<2x32xf32>
    %406 = arith.truncf %405 : vector<2x32xf32> to vector<2x32xbf16>
    %c55 = arith.constant 55 : index
    %c0_239 = arith.constant 0 : index
    %c0_240 = arith.constant 0 : index
    %407 = vector.load %arg7[%c55, %c0_239, %c0_240] : memref<60x32x512xbf16, #tpu.memory_space<vmem>>, vector<1x32x512xbf16>
    %408 = vector.shape_cast %407 : vector<1x32x512xbf16> to vector<32x512xbf16>
    %cst_241 = arith.constant dense<0.000000e+00> : vector<2x512xf32>
    %409 = tpu.matmul %406, %408, %cst_241 {dimension_numbers = #tpu.dot_dimension_numbers<[1], [0], [0], [1], [0, 0, 1, 1], [], []>} : vector<2x32xbf16>, vector<32x512xbf16>, vector<2x512xf32> -> vector<2x512xf32>
    %410 = arith.addf %404, %409 : vector<2x512xf32>
    %411 = vector.extract_strided_slice %73 {offsets = [112, 0], sizes = [2, 32], strides = [1, 1]} : vector<120x32xf32> to vector<2x32xf32>
    %412 = arith.truncf %411 : vector<2x32xf32> to vector<2x32xbf16>
    %c56 = arith.constant 56 : index
    %c0_242 = arith.constant 0 : index
    %c0_243 = arith.constant 0 : index
    %413 = vector.load %arg7[%c56, %c0_242, %c0_243] : memref<60x32x512xbf16, #tpu.memory_space<vmem>>, vector<1x32x512xbf16>
    %414 = vector.shape_cast %413 : vector<1x32x512xbf16> to vector<32x512xbf16>
    %cst_244 = arith.constant dense<0.000000e+00> : vector<2x512xf32>
    %415 = tpu.matmul %412, %414, %cst_244 {dimension_numbers = #tpu.dot_dimension_numbers<[1], [0], [0], [1], [0, 0, 1, 1], [], []>} : vector<2x32xbf16>, vector<32x512xbf16>, vector<2x512xf32> -> vector<2x512xf32>
    %416 = arith.addf %410, %415 : vector<2x512xf32>
    %417 = vector.extract_strided_slice %73 {offsets = [114, 0], sizes = [2, 32], strides = [1, 1]} : vector<120x32xf32> to vector<2x32xf32>
    %418 = arith.truncf %417 : vector<2x32xf32> to vector<2x32xbf16>
    %c57 = arith.constant 57 : index
    %c0_245 = arith.constant 0 : index
    %c0_246 = arith.constant 0 : index
    %419 = vector.load %arg7[%c57, %c0_245, %c0_246] : memref<60x32x512xbf16, #tpu.memory_space<vmem>>, vector<1x32x512xbf16>
    %420 = vector.shape_cast %419 : vector<1x32x512xbf16> to vector<32x512xbf16>
    %cst_247 = arith.constant dense<0.000000e+00> : vector<2x512xf32>
    %421 = tpu.matmul %418, %420, %cst_247 {dimension_numbers = #tpu.dot_dimension_numbers<[1], [0], [0], [1], [0, 0, 1, 1], [], []>} : vector<2x32xbf16>, vector<32x512xbf16>, vector<2x512xf32> -> vector<2x512xf32>
    %422 = arith.addf %416, %421 : vector<2x512xf32>
    %423 = vector.extract_strided_slice %73 {offsets = [116, 0], sizes = [2, 32], strides = [1, 1]} : vector<120x32xf32> to vector<2x32xf32>
    %424 = arith.truncf %423 : vector<2x32xf32> to vector<2x32xbf16>
    %c58 = arith.constant 58 : index
    %c0_248 = arith.constant 0 : index
    %c0_249 = arith.constant 0 : index
    %425 = vector.load %arg7[%c58, %c0_248, %c0_249] : memref<60x32x512xbf16, #tpu.memory_space<vmem>>, vector<1x32x512xbf16>
    %426 = vector.shape_cast %425 : vector<1x32x512xbf16> to vector<32x512xbf16>
    %cst_250 = arith.constant dense<0.000000e+00> : vector<2x512xf32>
    %427 = tpu.matmul %424, %426, %cst_250 {dimension_numbers = #tpu.dot_dimension_numbers<[1], [0], [0], [1], [0, 0, 1, 1], [], []>} : vector<2x32xbf16>, vector<32x512xbf16>, vector<2x512xf32> -> vector<2x512xf32>
    %428 = arith.addf %422, %427 : vector<2x512xf32>
    %429 = vector.extract_strided_slice %73 {offsets = [118, 0], sizes = [2, 32], strides = [1, 1]} : vector<120x32xf32> to vector<2x32xf32>
    %430 = arith.truncf %429 : vector<2x32xf32> to vector<2x32xbf16>
    %c59 = arith.constant 59 : index
    %c0_251 = arith.constant 0 : index
    %c0_252 = arith.constant 0 : index
    %431 = vector.load %arg7[%c59, %c0_251, %c0_252] : memref<60x32x512xbf16, #tpu.memory_space<vmem>>, vector<1x32x512xbf16>
    %432 = vector.shape_cast %431 : vector<1x32x512xbf16> to vector<32x512xbf16>
    %cst_253 = arith.constant dense<0.000000e+00> : vector<2x512xf32>
    %433 = tpu.matmul %430, %432, %cst_253 {dimension_numbers = #tpu.dot_dimension_numbers<[1], [0], [0], [1], [0, 0, 1, 1], [], []>} : vector<2x32xbf16>, vector<32x512xbf16>, vector<2x512xf32> -> vector<2x512xf32>
    %434 = arith.addf %428, %433 : vector<2x512xf32>
    %c0_254 = arith.constant 0 : index
    %c0_255 = arith.constant 0 : index
    %435 = vector.load %arg8[%c0_254, %c0_255] : memref<1x512xf32, #tpu.memory_space<vmem>>, vector<1x512xf32>
    %436 = vector.broadcast %435 : vector<1x512xf32> to vector<2x512xf32>
    %437 = arith.addf %434, %436 : vector<2x512xf32>
    %cst_256 = arith.constant 0.000000e+00 : f32
    %438 = vector.broadcast %cst_256 : f32 to vector<2x512xf32>
    %439 = arith.maximumf %437, %438 : vector<2x512xf32>
    %440 = arith.truncf %439 : vector<2x512xf32> to vector<2x512xbf16>
    %c0_257 = arith.constant 0 : index
    %c0_258 = arith.constant 0 : index
    %441 = vector.load %arg9[%c0_257, %c0_258] : memref<512x128xbf16, #tpu.memory_space<vmem>>, vector<512x128xbf16>
    %cst_259 = arith.constant dense<0.000000e+00> : vector<2x128xf32>
    %442 = tpu.matmul %440, %441, %cst_259 {dimension_numbers = #tpu.dot_dimension_numbers<[1], [0], [0], [1], [0, 0, 1, 1], [], []>} : vector<2x512xbf16>, vector<512x128xbf16>, vector<2x128xf32> -> vector<2x128xf32>
    %c0_260 = arith.constant 0 : index
    %c0_261 = arith.constant 0 : index
    %443 = vector.load %arg10[%c0_260, %c0_261] : memref<1x128xf32, #tpu.memory_space<vmem>>, vector<1x128xf32>
    %444 = vector.broadcast %443 : vector<1x128xf32> to vector<2x128xf32>
    %445 = arith.addf %442, %444 : vector<2x128xf32>
    %cst_262 = arith.constant 0.000000e+00 : f32
    %446 = vector.broadcast %cst_262 : f32 to vector<2x128xf32>
    %447 = arith.maximumf %445, %446 : vector<2x128xf32>
    %448 = arith.truncf %447 : vector<2x128xf32> to vector<2x128xbf16>
    %c0_263 = arith.constant 0 : index
    %c0_264 = arith.constant 0 : index
    %449 = vector.load %arg11[%c0_263, %c0_264] : memref<128x20xbf16, #tpu.memory_space<vmem>>, vector<128x20xbf16>
    %cst_265 = arith.constant dense<0.000000e+00> : vector<2x20xf32>
    %450 = tpu.matmul %448, %449, %cst_265 {dimension_numbers = #tpu.dot_dimension_numbers<[1], [0], [0], [1], [0, 0, 1, 1], [], []>} : vector<2x128xbf16>, vector<128x20xbf16>, vector<2x20xf32> -> vector<2x20xf32>
    %c0_266 = arith.constant 0 : index
    %c0_267 = arith.constant 0 : index
    %451 = vector.load %arg12[%c0_266, %c0_267] : memref<1x20xf32, #tpu.memory_space<vmem>>, vector<1x20xf32>
    %452 = vector.broadcast %451 : vector<1x20xf32> to vector<2x20xf32>
    %453 = arith.addf %450, %452 : vector<2x20xf32>
    %cst_268 = arith.constant dense<0xFF800000> : vector<2xf32>
    %454 = vector.multi_reduction <maximumf>, %453, %cst_268 [1] : vector<2x20xf32> to vector<2xf32>
    %455 = vector.shape_cast %454 : vector<2xf32> to vector<2x1xf32>
    %456 = vector.broadcast %455 : vector<2x1xf32> to vector<2x20xf32>
    %457 = arith.subf %453, %456 : vector<2x20xf32>
    %458 = math.exp %457 : vector<2x20xf32>
    %cst_269 = arith.constant dense<0.000000e+00> : vector<2xf32>
    %459 = vector.multi_reduction <add>, %458, %cst_269 [1] : vector<2x20xf32> to vector<2xf32>
    %460 = vector.shape_cast %459 : vector<2xf32> to vector<2x1xf32>
    %461 = math.log %460 : vector<2x1xf32>
    %462 = vector.broadcast %461 : vector<2x1xf32> to vector<2x20xf32>
    %463 = arith.subf %457, %462 : vector<2x20xf32>
    %c0_270 = arith.constant 0 : index
    %c0_271 = arith.constant 0 : index
    %464 = vector.load %arg13[%c0_270, %c0_271] : memref<2x20xf32, #tpu.memory_space<vmem>>, vector<2x20xf32>
    tpu.vector_store %arg13[%c0_270, %c0_271], %463 {strides = array<i32>} : memref<2x20xf32, #tpu.memory_space<vmem>>, vector<2x20xf32>,
    return
  }
}

</mosaic_0001>

<llo_original>
// kernel: forward.1
$region0: #{forward.1}
  #allocation0 [shape = 'u32[]', space=smem, size = 0x4, offset = 0x4, fixed_abs, tag = 'smem constant byte address 0x4 - core index']
  #allocation1 [shape = 'u32[144,128]{1,0:T(1,128)}', space=vmem, size = 0x12000, scoped, tag = 'internal scratch']
  #allocation2 [shape = 'f32[144,32]{1,0:T(8,128)}', space=vmem, size = 0x12000, scoped, tag = 'scratch operand']
  #allocation3 [shape = 'f32[144,32]{1,0:T(8,128)}', space=vmem, size = 0x12000, scoped, tag = 'scratch operand']
  %s0 = inlined_call_operand.vmem [shape: bf16[124,16], index: 0, kind: input, shape index: {}]
  %s1 = inlined_call_operand.vmem [shape: bf16[122,16], index: 1, kind: input, shape index: {}]
  %s2 = inlined_call_operand.hbm [shape: bf16[16,32], index: 2, kind: input, shape index: {}]
  %s3 = inlined_call_operand.hbm [shape: f32[1,32], index: 3, kind: input, shape index: {}]
  %s4 = inlined_call_operand.hbm [shape: bf16[4,32,32], index: 4, kind: input, shape index: {}]
  %s5 = inlined_call_operand.hbm [shape: bf16[4,32,32], index: 5, kind: input, shape index: {}]
  %s6 = inlined_call_operand.hbm [shape: f32[1,32], index: 6, kind: input, shape index: {}]
  %s7 = inlined_call_operand.hbm [shape: bf16[60,32,512], index: 7, kind: input, shape index: {}]
  %s8 = inlined_call_operand.hbm [shape: f32[1,512], index: 8, kind: input, shape index: {}]
  %s9 = inlined_call_operand.hbm [shape: bf16[512,128], index: 9, kind: input, shape index: {}]
  %s10 = inlined_call_operand.hbm [shape: f32[1,128], index: 10, kind: input, shape index: {}]
  %s11 = inlined_call_operand.vmem [shape: bf16[128,20], index: 11, kind: input, shape index: {}]
  %s12 = inlined_call_operand.hbm [shape: f32[1,20], index: 12, kind: input, shape index: {}]
  %s13 = inlined_call_operand.hbm [shape: f32[2,20], index: 13, kind: output, shape index: {}]
  %s14 = sld [smem:[#allocation0]]
  $region102: #{forward.1} parent=0
    _
  %s16 = ssub.s32 1, %s14
  %s17 = scalar_select 0, %s16, %s14
  $region1: #{forward.1} parent=0
    #allocation4 [shape = 'u8[4096]{0}', space=vmem, size = 0x1000, scoped, tag = 'input window, operand 2, single buffered']
    #allocation5 [shape = 's32[1]{0}', space=sflag, size = 0x4, scoped, tag = 'scoped memory for forward.1']
    #allocation6 [shape = 's32[1]{0}', space=sflag, size = 0x4, scoped, tag = 'scoped memory for forward.1']
    #allocation7 [shape = 'u8[512]{0}', space=vmem, size = 0x400, scoped, tag = 'input window, operand 3, single buffered']
    #allocation8 [shape = 's32[1]{0}', space=sflag, size = 0x4, scoped, tag = 'scoped memory for forward.1']
    #allocation9 [shape = 'u8[32768]{0}', space=vmem, size = 0x8000, scoped, tag = 'input window, operand 4, single buffered']
    #allocation10 [shape = 'u8[32768]{0}', space=vmem, size = 0x8000, scoped, tag = 'input window, operand 5, single buffered']
    #allocation11 [shape = 's32[1]{0}', space=sflag, size = 0x4, scoped, tag = 'scoped memory for forward.1']
    #allocation12 [shape = 'u8[512]{0}', space=vmem, size = 0x400, scoped, tag = 'input window, operand 6, single buffered']
    #allocation13 [shape = 'u8[1966080]{0}', space=vmem, size = 0x1e0000, scoped, tag = 'input window, operand 7, single buffered']
    #allocation14 [shape = 's32[1]{0}', space=sflag, size = 0x4, scoped, tag = 'scoped memory for forward.1']
    #allocation15 [shape = 'u8[2048]{0}', space=vmem, size = 0x800, scoped, tag = 'input window, operand 8, single buffered']
    #allocation16 [shape = 'u8[131072]{0}', space=vmem, size = 0x20000, scoped, tag = 'input window, operand 9, single buffered']
    #allocation17 [shape = 's32[1]{0}', space=sflag, size = 0x4, scoped, tag = 'scoped memory for forward.1']
    #allocation18 [shape = 'u8[512]{0}', space=vmem, size = 0x400, scoped, tag = 'input window, operand 10, single buffered']
    #allocation19 [shape = 'u8[512]{0}', space=vmem, size = 0x400, scoped, tag = 'input window, operand 12, single buffered']
    #allocation20 [shape = 's32[1]{0}', space=sflag, size = 0x4, scoped, tag = 'scoped memory for forward.1']
    #allocation21 [shape = 'u8[1024]{0}', space=vmem, size = 0x400, scoped, tag = 'output window, operand 0, single buffered']
    %18 = vsyncpa [#allocation5], 0
    %19 = vsyncpa [#allocation8], 0
    %20 = vsyncpa [#allocation11], 0
    %21 = vsyncpa [#allocation14], 0
    %22 = vsyncpa [#allocation17], 0
    %23 = vsyncpa [#allocation20], 0
    %24 = vsyncpa [#allocation6], 0
    // Predicated region
    $region2: #{forward.1} parent=1 // pred_check
      _
    $region3: #{forward.1} parent=1 // pred_check_branch
      %26 = sbr.rel (0) target = $region5
    $region4: #{forward.1} parent=1 // pred_region
      _
    $region5: #{forward.1} parent=1 // pred_fallthru
      _
    // Predicated region
    $region6: #{forward.1} parent=1 // pred_check
      _
    $region7: #{forward.1} parent=1 // pred_check_branch
      %28 = sbr.rel (0) target = $region9
    $region8: #{forward.1} parent=1 // pred_region
      _
    $region9: #{forward.1} parent=1 // pred_fallthru
      _
    // Predicated region
    $region10: #{forward.1} parent=1 // pred_check
      _
    $region11: #{forward.1} parent=1 // pred_check_branch
      %30 = sbr.rel (0) target = $region13
    $region12: #{forward.1} parent=1 // pred_region
      %s32 = ssub.s32 128, 128
      %33 = vsyncadd [#allocation5], %s32
      %s34 = sshll.u32 [#allocation4], 4
      %s35 = int_to_ptr.vmem [resolvable:$true] %s34
      %40 = dma.hbm_to_vmem [thread:$0]  %s2, 128, %s35, [#allocation5], 64, 64, 4
    $region13: #{forward.1} parent=1 // pred_fallthru
      _
    // Predicated region
    $region14: #{forward.1} parent=1 // pred_check
      _
    $region15: #{forward.1} parent=1 // pred_check_branch
      %42 = sbr.rel (0) target = $region17
    $region16: #{forward.1} parent=1 // pred_region
      %s44 = ssub.s32 16, 16
      %45 = vsyncadd [#allocation8], %s44
      %s47 = sshll.u32 [#allocation7], 4
      %s48 = int_to_ptr.vmem [resolvable:$true] %s47
      %50 = dma.hbm_to_vmem [thread:$0]  %s3, 16, %s48, [#allocation8]
    $region17: #{forward.1} parent=1 // pred_fallthru
      _
    // Predicated region
    $region18: #{forward.1} parent=1 // pred_check
      _
    $region19: #{forward.1} parent=1 // pred_check_branch
      %52 = sbr.rel (0) target = $region21
    $region20: #{forward.1} parent=1 // pred_region
      %s54 = ssub.s32 1024, 1024
      %55 = vsyncadd [#allocation8], %s54
      %s56 = sshll.u32 [#allocation9], 4
      %s57 = int_to_ptr.vmem [resolvable:$true] %s56
      %62 = dma.hbm_to_vmem [thread:$0]  %s4, 1024, %s57, [#allocation8], 64, 64, 4
    $region21: #{forward.1} parent=1 // pred_fallthru
      _
    // Predicated region
    $region22: #{forward.1} parent=1 // pred_check
      _
    $region23: #{forward.1} parent=1 // pred_check_branch
      %64 = sbr.rel (0) target = $region25
    $region24: #{forward.1} parent=1 // pred_region
      %s66 = ssub.s32 1024, 1024
      %67 = vsyncadd [#allocation11], %s66
      %s68 = sshll.u32 [#allocation10], 4
      %s69 = int_to_ptr.vmem [resolvable:$true] %s68
      %74 = dma.hbm_to_vmem [thread:$0]  %s5, 1024, %s69, [#allocation11], 64, 64, 4
    $region25: #{forward.1} parent=1 // pred_fallthru
      _
    // Predicated region
    $region26: #{forward.1} parent=1 // pred_check
      _
    $region27: #{forward.1} parent=1 // pred_check_branch
      %76 = sbr.rel (0) target = $region29
    $region28: #{forward.1} parent=1 // pred_region
      %s78 = ssub.s32 16, 16
      %79 = vsyncadd [#allocation11], %s78
      %s81 = sshll.u32 [#allocation12], 4
      %s82 = int_to_ptr.vmem [resolvable:$true] %s81
      %84 = dma.hbm_to_vmem [thread:$0]  %s6, 16, %s82, [#allocation11]
    $region29: #{forward.1} parent=1 // pred_fallthru
      _
    // Predicated region
    $region30: #{forward.1} parent=1 // pred_check
      _
    $region31: #{forward.1} parent=1 // pred_check_branch
      %86 = sbr.rel (0) target = $region33
    $region32: #{forward.1} parent=1 // pred_region
      %s88 = ssub.s32 61440, 61440
      %89 = vsyncadd [#allocation14], %s88
      %s90 = sshll.u32 [#allocation13], 4
      %s91 = int_to_ptr.vmem [resolvable:$true] %s90
      %96 = dma.hbm_to_vmem [thread:$0]  %s7, 61440, %s91, [#allocation14], 256, 256, 16
    $region33: #{forward.1} parent=1 // pred_fallthru
      _
    // Predicated region
    $region34: #{forward.1} parent=1 // pred_check
      _
    $region35: #{forward.1} parent=1 // pred_check_branch
      %98 = sbr.rel (0) target = $region37
    $region36: #{forward.1} parent=1 // pred_region
      %s100 = ssub.s32 64, 64
      %101 = vsyncadd [#allocation14], %s100
      %s103 = sshll.u32 [#allocation15], 4
      %s104 = int_to_ptr.vmem [resolvable:$true] %s103
      %106 = dma.hbm_to_vmem [thread:$0]  %s8, 64, %s104, [#allocation14]
    $region37: #{forward.1} parent=1 // pred_fallthru
      _
    // Predicated region
    $region38: #{forward.1} parent=1 // pred_check
      _
    $region39: #{forward.1} parent=1 // pred_check_branch
      %108 = sbr.rel (0) target = $region41
    $region40: #{forward.1} parent=1 // pred_region
      %s110 = ssub.s32 4096, 4096
      %111 = vsyncadd [#allocation17], %s110
      %s112 = sshll.u32 [#allocation16], 4
      %s113 = int_to_ptr.vmem [resolvable:$true] %s112
      %118 = dma.hbm_to_vmem [thread:$0]  %s9, 4096, %s113, [#allocation17], 64, 64, 4
    $region41: #{forward.1} parent=1 // pred_fallthru
      _
    // Predicated region
    $region42: #{forward.1} parent=1 // pred_check
      _
    $region43: #{forward.1} parent=1 // pred_check_branch
      %120 = sbr.rel (0) target = $region45
    $region44: #{forward.1} parent=1 // pred_region
      %s122 = ssub.s32 16, 16
      %123 = vsyncadd [#allocation17], %s122
      %s125 = sshll.u32 [#allocation18], 4
      %s126 = int_to_ptr.vmem [resolvable:$true] %s125
      %128 = dma.hbm_to_vmem [thread:$0]  %s10, 16, %s126, [#allocation17]
    $region45: #{forward.1} parent=1 // pred_fallthru
      _
    // Predicated region
    $region46: #{forward.1} parent=1 // pred_check
      _
    $region47: #{forward.1} parent=1 // pred_check_branch
      %130 = sbr.rel (0) target = $region49
    $region48: #{forward.1} parent=1 // pred_region
      _
    $region49: #{forward.1} parent=1 // pred_fallthru
      _
    // Predicated region
    $region50: #{forward.1} parent=1 // pred_check
      _
    $region51: #{forward.1} parent=1 // pred_check_branch
      %132 = sbr.rel (0) target = $region53
    $region52: #{forward.1} parent=1 // pred_region
      %s134 = ssub.s32 16, 16
      %135 = vsyncadd [#allocation20], %s134
      %s137 = sshll.u32 [#allocation19], 4
      %s138 = int_to_ptr.vmem [resolvable:$true] %s137
      %140 = dma.hbm_to_vmem [thread:$0]  %s12, 16, %s138, [#allocation20]
    $region53: #{forward.1} parent=1 // pred_fallthru
      _
    // Predicated region
    $region54: #{forward.1} parent=1 // pred_check
      _
    $region55: #{forward.1} parent=1 // pred_check_branch
      %142 = sbr.rel (0) target = $region57
    $region56: #{forward.1} parent=1 // pred_region
      %143 = dma.done [#allocation5], 128
    $region57: #{forward.1} parent=1 // pred_fallthru
      _
    // Predicated region
    $region58: #{forward.1} parent=1 // pred_check
      _
    $region59: #{forward.1} parent=1 // pred_check_branch
      %145 = sbr.rel (0) target = $region61
    $region60: #{forward.1} parent=1 // pred_region
      %146 = dma.done [#allocation8], 16
    $region61: #{forward.1} parent=1 // pred_fallthru
      _
    // Predicated region
    $region62: #{forward.1} parent=1 // pred_check
      _
    $region63: #{forward.1} parent=1 // pred_check_branch
      %148 = sbr.rel (0) target = $region65
    $region64: #{forward.1} parent=1 // pred_region
      %149 = dma.done [#allocation8], 1024
    $region65: #{forward.1} parent=1 // pred_fallthru
      _
    // Predicated region
    $region66: #{forward.1} parent=1 // pred_check
      _
    $region67: #{forward.1} parent=1 // pred_check_branch
      %151 = sbr.rel (0) target = $region69
    $region68: #{forward.1} parent=1 // pred_region
      %152 = dma.done [#allocation11], 1024
    $region69: #{forward.1} parent=1 // pred_fallthru
      _
    // Predicated region
    $region70: #{forward.1} parent=1 // pred_check
      _
    $region71: #{forward.1} parent=1 // pred_check_branch
      %154 = sbr.rel (0) target = $region73
    $region72: #{forward.1} parent=1 // pred_region
      %155 = dma.done [#allocation11], 16
    $region73: #{forward.1} parent=1 // pred_fallthru
      _
    // Predicated region
    $region74: #{forward.1} parent=1 // pred_check
      _
    $region75: #{forward.1} parent=1 // pred_check_branch
      %157 = sbr.rel (0) target = $region77
    $region76: #{forward.1} parent=1 // pred_region
      %158 = dma.done [#allocation14], 61440
    $region77: #{forward.1} parent=1 // pred_fallthru
      _
    // Predicated region
    $region78: #{forward.1} parent=1 // pred_check
      _
    $region79: #{forward.1} parent=1 // pred_check_branch
      %160 = sbr.rel (0) target = $region81
    $region80: #{forward.1} parent=1 // pred_region
      %161 = dma.done [#allocation14], 64
    $region81: #{forward.1} parent=1 // pred_fallthru
      _
    // Predicated region
    $region82: #{forward.1} parent=1 // pred_check
      _
    $region83: #{forward.1} parent=1 // pred_check_branch
      %163 = sbr.rel (0) target = $region85
    $region84: #{forward.1} parent=1 // pred_region
      %164 = dma.done [#allocation17], 4096
    $region85: #{forward.1} parent=1 // pred_fallthru
      _
    // Predicated region
    $region86: #{forward.1} parent=1 // pred_check
      _
    $region87: #{forward.1} parent=1 // pred_check_branch
      %166 = sbr.rel (0) target = $region89
    $region88: #{forward.1} parent=1 // pred_region
      %167 = dma.done [#allocation17], 16
    $region89: #{forward.1} parent=1 // pred_fallthru
      _
    // Predicated region
    $region90: #{forward.1} parent=1 // pred_check
      _
    $region91: #{forward.1} parent=1 // pred_check_branch
      %169 = sbr.rel (0) target = $region93
    $region92: #{forward.1} parent=1 // pred_region
      %170 = dma.done [#allocation20], 16
    $region93: #{forward.1} parent=1 // pred_fallthru
      _
    %v172 = vld [vmem:[#allocation4] sm:$0xf]
    %v173 = vld [vmem:[#allocation4 + $0x4] sm:$0xf]
    %v174 = vld [vmem:[#allocation7] sm:$0x1]
    %v175 = vld [vmem:[%s0] sm:$0xf]
    %v176 = vld [vmem:[%s0 + $0x4] sm:$0xf]
    %v177 = vld [vmem:[%s0 + $0x8] sm:$0xf]
    %v178 = vld [vmem:[%s0 + $0xc] sm:$0xf]
    %v179 = vld [vmem:[%s0 + $0x10] sm:$0xf]
    %v180 = vld [vmem:[%s0 + $0x14] sm:$0xf]
    %v181 = vld [vmem:[%s0 + $0x18] sm:$0xf]
    %v182 = vld [vmem:[%s0 + $0x1c] sm:$0xf]
    %v183 = vld [vmem:[%s0 + $0x20] sm:$0xf]
    %v184 = vld [vmem:[%s0 + $0x24] sm:$0xf]
    %v185 = vld [vmem:[%s0 + $0x28] sm:$0xf]
    %v186 = vld [vmem:[%s0 + $0x2c] sm:$0xf]
    %v187 = vld [vmem:[%s0 + $0x30] sm:$0xf]
    %v188 = vld [vmem:[%s0 + $0x34] sm:$0xf]
    %v189 = vld [vmem:[%s0 + $0x38] sm:$0xf]
    %v190 = vld [vmem:[%s0 + $0x3c] sm:$0x3]
    %v192 = vlaneseq
    %v193 = vshrl.u32 %v192, 7
    %v194 = vsub.s32 0, %v193
    %v195 = vrot.slane %v174, %v194
    %v213 = vunpack.c.l.b16 %v175
    %v214 = vunpack.c.l.b16 %v176
    %v215 = vunpack.c.l.b16 %v177
    %v216 = vunpack.c.l.b16 %v178
    %v217 = vunpack.c.l.b16 %v179
    %v218 = vunpack.c.l.b16 %v180
    %v219 = vunpack.c.l.b16 %v181
    %v220 = vunpack.c.l.b16 %v182
    %v221 = vunpack.c.l.b16 %v183
    %v222 = vunpack.c.l.b16 %v184
    %v223 = vunpack.c.l.b16 %v185
    %v224 = vunpack.c.l.b16 %v186
    %v225 = vunpack.c.l.b16 %v187
    %v226 = vunpack.c.l.b16 %v188
    %v227 = vunpack.c.l.b16 %v189
    %v228 = vunpack.c.l.b16 %v190
    %v229 = vpack.c.b16 %v214, %v213
    %v230 = vpack.c.b16 %v216, %v215
    %v231 = vpack.c.b16 %v218, %v217
    %v232 = vpack.c.b16 %v220, %v219
    %v233 = vpack.c.b16 %v222, %v221
    %v234 = vpack.c.b16 %v224, %v223
    %v235 = vpack.c.b16 %v226, %v225
    %v236 = vpack.c.b16 %v228, %v227
    %v239 = vunpack.c.l.b16 %v172
    %v240 = vunpack.c.l.b16 %v173
    %v241 = vpack.c.b16 %v240, %v239
    %vm243 = vcmask 130048
    %v245 = vsel %vm243, %v229, 0
    %v248 = vsel %vm243, %v230, 0
    %v251 = vsel %vm243, %v231, 0
    %v254 = vsel %vm243, %v232, 0
    %v257 = vsel %vm243, %v233, 0
    %v260 = vsel %vm243, %v234, 0
    %v263 = vsel %vm243, %v235, 0
    %v266 = vsel %vm243, %v236, 0
    %268 = vmatprep.subr.bf16.mxu0 0
    %269 = vmatpush1.bf16.msra.mxu0 %v241
    %270 = vmatprep.subr.bf16.mxu0 0
    %271 = vmatpush1.bf16.msra.mxu0 0
    %272 = vmatprep.subr.bf16.mxu0 0
    %273 = vmatpush1.bf16.msra.mxu0 0
    %274 = vmatprep.subr.bf16.mxu0 0
    %275 = vmatpush1.bf16.msra.mxu0 0
    %276 = vmatprep.subr.bf16.mxu0 0
    %277 = vmatpush1.bf16.msra.mxu0 0
    %278 = vmatprep.subr.bf16.mxu0 0
    %279 = vmatpush1.bf16.msra.mxu0 0
    %280 = vmatprep.subr.bf16.mxu0 0
    %281 = vmatpush1.bf16.msra.mxu0 0
    %282 = vmatprep.subr.bf16.mxu0 0
    %283 = vmatpush1.bf16.msra.mxu0 0
    %284 = vmatprep.subr.bf16.mxu0 0
    %285 = vmatpush1.bf16.msra.mxu0 0
    %286 = vmatprep.subr.bf16.mxu0 0
    %287 = vmatpush1.bf16.msra.mxu0 0
    %288 = vmatprep.subr.bf16.mxu0 0
    %289 = vmatpush1.bf16.msra.mxu0 0
    %290 = vmatprep.subr.bf16.mxu0 0
    %291 = vmatpush1.bf16.msra.mxu0 0
    %292 = vmatprep.subr.bf16.mxu0 0
    %293 = vmatpush1.bf16.msra.mxu0 0
    %294 = vmatprep.subr.bf16.mxu0 0
    %295 = vmatpush1.bf16.msra.mxu0 0
    %296 = vmatprep.subr.bf16.mxu0 0
    %297 = vmatpush1.bf16.msra.mxu0 0
    %298 = vmatprep.subr.bf16.mxu0 0
    %299 = vmatpush1.bf16.msra.mxu0 0
    %300 = vmatprep.mubr.bf16.mxu0 0
    %301 = vmatmul.mubr.bf16.gmra.mrb[0].mxu0 %v245
    %v302 = vpop.f32.mrb[0].mxu0
    %v303 = vadd.f32 %v195, %v302
    %v304 = vpop.f32.mrb[0].mxu0
    %v305 = vpop.f32.mrb[0].mxu0
    %v306 = vadd.f32 %v195, %v305
    %v307 = vpop.f32.mrb[0].mxu0
    %308 = vmatprep.mubr.bf16.mxu0 0
    %309 = vmatmul.mubr.bf16.gmra.mrb[0].mxu0 %v248
    %v310 = vpop.f32.mrb[0].mxu0
    %v311 = vadd.f32 %v195, %v310
    %v312 = vpop.f32.mrb[0].mxu0
    %v313 = vpop.f32.mrb[0].mxu0
    %v314 = vadd.f32 %v195, %v313
    %v315 = vpop.f32.mrb[0].mxu0
    %316 = vmatprep.mubr.bf16.mxu0 0
    %317 = vmatmul.mubr.bf16.gmra.mrb[0].mxu0 %v251
    %v318 = vpop.f32.mrb[0].mxu0
    %v319 = vadd.f32 %v195, %v318
    %v320 = vpop.f32.mrb[0].mxu0
    %v321 = vpop.f32.mrb[0].mxu0
    %v322 = vadd.f32 %v195, %v321
    %v323 = vpop.f32.mrb[0].mxu0
    %324 = vmatprep.mubr.bf16.mxu0 0
    %325 = vmatmul.mubr.bf16.gmra.mrb[0].mxu0 %v254
    %v326 = vpop.f32.mrb[0].mxu0
    %v327 = vadd.f32 %v195, %v326
    %v328 = vpop.f32.mrb[0].mxu0
    %v329 = vpop.f32.mrb[0].mxu0
    %v330 = vadd.f32 %v195, %v329
    %v331 = vpop.f32.mrb[0].mxu0
    %332 = vmatprep.mubr.bf16.mxu0 0
    %333 = vmatmul.mubr.bf16.gmra.mrb[0].mxu0 %v257
    %v334 = vpop.f32.mrb[0].mxu0
    %v335 = vadd.f32 %v195, %v334
    %v336 = vpop.f32.mrb[0].mxu0
    %v337 = vpop.f32.mrb[0].mxu0
    %v338 = vadd.f32 %v195, %v337
    %v339 = vpop.f32.mrb[0].mxu0
    %340 = vmatprep.mubr.bf16.mxu0 0
    %341 = vmatmul.mubr.bf16.gmra.mrb[0].mxu0 %v260
    %v342 = vpop.f32.mrb[0].mxu0
    %v343 = vadd.f32 %v195, %v342
    %v344 = vpop.f32.mrb[0].mxu0
    %v345 = vpop.f32.mrb[0].mxu0
    %v346 = vadd.f32 %v195, %v345
    %v347 = vpop.f32.mrb[0].mxu0
    %348 = vmatprep.mubr.bf16.mxu0 0
    %349 = vmatmul.mubr.bf16.gmra.mrb[0].mxu0 %v263
    %v350 = vpop.f32.mrb[0].mxu0
    %v351 = vadd.f32 %v195, %v350
    %v352 = vpop.f32.mrb[0].mxu0
    %v353 = vpop.f32.mrb[0].mxu0
    %v354 = vadd.f32 %v195, %v353
    %v355 = vpop.f32.mrb[0].mxu0
    %356 = vmatprep.mubr.bf16.mxu0 0
    %357 = vmatmul.mubr.bf16.gmra.mrb[0].mxu0 %v266
    %v358 = vpop.f32.mrb[0].mxu0
    %v359 = vadd.f32 %v195, %v358
    %v360 = vpop.f32.mrb[0].mxu0
    %v361 = vpop.f32.mrb[0].mxu0
    %v362 = vadd.f32 %v195, %v361
    %v363 = vpop.f32.mrb[0].mxu0
    %364 = vdwg.mxu0
    %v365 = vmax.f32 %v303, 0.0
    %v366 = vmax.f32 %v306, 0.0
    %v367 = vmax.f32 %v311, 0.0
    %v368 = vmax.f32 %v314, 0.0
    %v369 = vmax.f32 %v319, 0.0
    %v370 = vmax.f32 %v322, 0.0
    %v371 = vmax.f32 %v327, 0.0
    %v372 = vmax.f32 %v330, 0.0
    %v373 = vmax.f32 %v335, 0.0
    %v374 = vmax.f32 %v338, 0.0
    %v375 = vmax.f32 %v343, 0.0
    %v376 = vmax.f32 %v346, 0.0
    %v377 = vmax.f32 %v351, 0.0
    %v378 = vmax.f32 %v354, 0.0
    %v379 = vmax.f32 %v359, 0.0
    %v380 = vmax.f32 %v362, 0.0
    %v381 = vld [vmem:[%s1] sm:$0xf]
    %v382 = vld [vmem:[%s1 + $0x4] sm:$0xf]
    %v383 = vld [vmem:[%s1 + $0x8] sm:$0xf]
    %v384 = vld [vmem:[%s1 + $0xc] sm:$0xf]
    %v385 = vld [vmem:[%s1 + $0x10] sm:$0xf]
    %v386 = vld [vmem:[%s1 + $0x14] sm:$0xf]
    %v387 = vld [vmem:[%s1 + $0x18] sm:$0xf]
    %v388 = vld [vmem:[%s1 + $0x1c] sm:$0xf]
    %v389 = vld [vmem:[%s1 + $0x20] sm:$0xf]
    %v390 = vld [vmem:[%s1 + $0x24] sm:$0xf]
    %v391 = vld [vmem:[%s1 + $0x28] sm:$0xf]
    %v392 = vld [vmem:[%s1 + $0x2c] sm:$0xf]
    %v393 = vld [vmem:[%s1 + $0x30] sm:$0xf]
    %v394 = vld [vmem:[%s1 + $0x34] sm:$0xf]
    %v395 = vld [vmem:[%s1 + $0x38] sm:$0xf]
    %v396 = vld [vmem:[%s1 + $0x3c] sm:$0x1]
    %v413 = vunpack.c.l.b16 %v381
    %v414 = vunpack.c.l.b16 %v382
    %v415 = vunpack.c.l.b16 %v383
    %v416 = vunpack.c.l.b16 %v384
    %v417 = vunpack.c.l.b16 %v385
    %v418 = vunpack.c.l.b16 %v386
    %v419 = vunpack.c.l.b16 %v387
    %v420 = vunpack.c.l.b16 %v388
    %v421 = vunpack.c.l.b16 %v389
    %v422 = vunpack.c.l.b16 %v390
    %v423 = vunpack.c.l.b16 %v391
    %v424 = vunpack.c.l.b16 %v392
    %v425 = vunpack.c.l.b16 %v393
    %v426 = vunpack.c.l.b16 %v394
    %v427 = vunpack.c.l.b16 %v395
    %v428 = vunpack.c.l.b16 %v396
    %v429 = vpack.c.b16 %v414, %v413
    %v430 = vpack.c.b16 %v416, %v415
    %v431 = vpack.c.b16 %v418, %v417
    %v432 = vpack.c.b16 %v420, %v419
    %v433 = vpack.c.b16 %v422, %v421
    %v434 = vpack.c.b16 %v424, %v423
    %v435 = vpack.c.b16 %v426, %v425
    %v436 = vpack.c.b16 %v428, %v427
    %v438 = vsel %vm243, %v429, 0
    %v441 = vsel %vm243, %v430, 0
    %v444 = vsel %vm243, %v431, 0
    %v447 = vsel %vm243, %v432, 0
    %v450 = vsel %vm243, %v433, 0
    %v453 = vsel %vm243, %v434, 0
    %v456 = vsel %vm243, %v435, 0
    %v459 = vsel %vm243, %v436, 0
    %461 = vmatprep.subr.bf16.mxu0 0
    %462 = vmatpush1.bf16.msra.mxu0 %v241
    %463 = vmatprep.subr.bf16.mxu0 0
    %464 = vmatpush1.bf16.msra.mxu0 0
    %465 = vmatprep.subr.bf16.mxu0 0
    %466 = vmatpush1.bf16.msra.mxu0 0
    %467 = vmatprep.subr.bf16.mxu0 0
    %468 = vmatpush1.bf16.msra.mxu0 0
    %469 = vmatprep.subr.bf16.mxu0 0
    %470 = vmatpush1.bf16.msra.mxu0 0
    %471 = vmatprep.subr.bf16.mxu0 0
    %472 = vmatpush1.bf16.msra.mxu0 0
    %473 = vmatprep.subr.bf16.mxu0 0
    %474 = vmatpush1.bf16.msra.mxu0 0
    %475 = vmatprep.subr.bf16.mxu0 0
    %476 = vmatpush1.bf16.msra.mxu0 0
    %477 = vmatprep.subr.bf16.mxu0 0
    %478 = vmatpush1.bf16.msra.mxu0 0
    %479 = vmatprep.subr.bf16.mxu0 0
    %480 = vmatpush1.bf16.msra.mxu0 0
    %481 = vmatprep.subr.bf16.mxu0 0
    %482 = vmatpush1.bf16.msra.mxu0 0
    %483 = vmatprep.subr.bf16.mxu0 0
    %484 = vmatpush1.bf16.msra.mxu0 0
    %485 = vmatprep.subr.bf16.mxu0 0
    %486 = vmatpush1.bf16.msra.mxu0 0
    %487 = vmatprep.subr.bf16.mxu0 0
    %488 = vmatpush1.bf16.msra.mxu0 0
    %489 = vmatprep.subr.bf16.mxu0 0
    %490 = vmatpush1.bf16.msra.mxu0 0
    %491 = vmatprep.subr.bf16.mxu0 0
    %492 = vmatpush1.bf16.msra.mxu0 0
    %493 = vmatprep.mubr.bf16.mxu0 0
    %494 = vmatmul.mubr.bf16.gmra.mrb[0].mxu0 %v438
    %v495 = vpop.f32.mrb[0].mxu0
    %v496 = vadd.f32 %v195, %v495
    %v497 = vpop.f32.mrb[0].mxu0
    %v498 = vpop.f32.mrb[0].mxu0
    %v499 = vadd.f32 %v195, %v498
    %v500 = vpop.f32.mrb[0].mxu0
    %501 = vmatprep.mubr.bf16.mxu0 0
    %502 = vmatmul.mubr.bf16.gmra.mrb[0].mxu0 %v441
    %v503 = vpop.f32.mrb[0].mxu0
    %v504 = vadd.f32 %v195, %v503
    %v505 = vpop.f32.mrb[0].mxu0
    %v506 = vpop.f32.mrb[0].mxu0
    %v507 = vadd.f32 %v195, %v506
    %v508 = vpop.f32.mrb[0].mxu0
    %509 = vmatprep.mubr.bf16.mxu0 0
    %510 = vmatmul.mubr.bf16.gmra.mrb[0].mxu0 %v444
    %v511 = vpop.f32.mrb[0].mxu0
    %v512 = vadd.f32 %v195, %v511
    %v513 = vpop.f32.mrb[0].mxu0
    %v514 = vpop.f32.mrb[0].mxu0
    %v515 = vadd.f32 %v195, %v514
    %v516 = vpop.f32.mrb[0].mxu0
    %517 = vmatprep.mubr.bf16.mxu0 0
    %518 = vmatmul.mubr.bf16.gmra.mrb[0].mxu0 %v447
    %v519 = vpop.f32.mrb[0].mxu0
    %v520 = vadd.f32 %v195, %v519
    %v521 = vpop.f32.mrb[0].mxu0
    %v522 = vpop.f32.mrb[0].mxu0
    %v523 = vadd.f32 %v195, %v522
    %v524 = vpop.f32.mrb[0].mxu0
    %525 = vmatprep.mubr.bf16.mxu0 0
    %526 = vmatmul.mubr.bf16.gmra.mrb[0].mxu0 %v450
    %v527 = vpop.f32.mrb[0].mxu0
    %v528 = vadd.f32 %v195, %v527
    %v529 = vpop.f32.mrb[0].mxu0
    %v530 = vpop.f32.mrb[0].mxu0
    %v531 = vadd.f32 %v195, %v530
    %v532 = vpop.f32.mrb[0].mxu0
    %533 = vmatprep.mubr.bf16.mxu0 0
    %534 = vmatmul.mubr.bf16.gmra.mrb[0].mxu0 %v453
    %v535 = vpop.f32.mrb[0].mxu0
    %v536 = vadd.f32 %v195, %v535
    %v537 = vpop.f32.mrb[0].mxu0
    %v538 = vpop.f32.mrb[0].mxu0
    %v539 = vadd.f32 %v195, %v538
    %v540 = vpop.f32.mrb[0].mxu0
    %541 = vmatprep.mubr.bf16.mxu0 0
    %542 = vmatmul.mubr.bf16.gmra.mrb[0].mxu0 %v456
    %v543 = vpop.f32.mrb[0].mxu0
    %v544 = vadd.f32 %v195, %v543
    %v545 = vpop.f32.mrb[0].mxu0
    %v546 = vpop.f32.mrb[0].mxu0
    %v547 = vadd.f32 %v195, %v546
    %v548 = vpop.f32.mrb[0].mxu0
    %549 = vmatprep.mubr.bf16.mxu0 0
    %550 = vmatmul.mubr.bf16.gmra.mrb[0].mxu0 %v459
    %v551 = vpop.f32.mrb[0].mxu0
    %v552 = vadd.f32 %v195, %v551
    %v553 = vpop.f32.mrb[0].mxu0
    %v554 = vpop.f32.mrb[0].mxu0
    %v555 = vadd.f32 %v195, %v554
    %v556 = vpop.f32.mrb[0].mxu0
    %557 = vdwg.mxu0
    %v558 = vmax.f32 %v496, 0.0
    %v559 = vmax.f32 %v499, 0.0
    %v560 = vmax.f32 %v504, 0.0
    %v561 = vmax.f32 %v507, 0.0
    %v562 = vmax.f32 %v512, 0.0
    %v563 = vmax.f32 %v515, 0.0
    %v564 = vmax.f32 %v520, 0.0
    %v565 = vmax.f32 %v523, 0.0
    %v566 = vmax.f32 %v528, 0.0
    %v567 = vmax.f32 %v531, 0.0
    %v568 = vmax.f32 %v536, 0.0
    %v569 = vmax.f32 %v539, 0.0
    %v570 = vmax.f32 %v544, 0.0
    %v571 = vmax.f32 %v547, 0.0
    %v572 = vmax.f32 %v552, 0.0
    %v573 = vmax.f32 %v555, 0.0
    %vm574 = vcmask 261120
    %575 = vst.msk [vmem:[#allocation2] sm:$0xff] %vm574, 0.0
    %576 = vst.msk [vmem:[#allocation2 + $0x8] sm:$0xff] %vm574, 0.0
    %577 = vst.msk [vmem:[#allocation2 + $0x10] sm:$0xff] %vm574, 0.0
    %578 = vst.msk [vmem:[#allocation2 + $0x18] sm:$0xff] %vm574, 0.0
    %579 = vst.msk [vmem:[#allocation2 + $0x20] sm:$0xff] %vm574, 0.0
    %580 = vst.msk [vmem:[#allocation2 + $0x28] sm:$0xff] %vm574, 0.0
    %581 = vst.msk [vmem:[#allocation2 + $0x30] sm:$0xff] %vm574, 0.0
    %582 = vst.msk [vmem:[#allocation2 + $0x38] sm:$0xff] %vm574, 0.0
    %583 = vst.msk [vmem:[#allocation2 + $0x40] sm:$0xff] %vm574, 0.0
    %584 = vst.msk [vmem:[#allocation2 + $0x48] sm:$0xff] %vm574, 0.0
    %585 = vst.msk [vmem:[#allocation2 + $0x50] sm:$0xff] %vm574, 0.0
    %586 = vst.msk [vmem:[#allocation2 + $0x58] sm:$0xff] %vm574, 0.0
    %587 = vst.msk [vmem:[#allocation2 + $0x60] sm:$0xff] %vm574, 0.0
    %588 = vst.msk [vmem:[#allocation2 + $0x68] sm:$0xff] %vm574, 0.0
    %589 = vst.msk [vmem:[#allocation2 + $0x70] sm:$0xff] %vm574, 0.0
    %590 = vst.msk [vmem:[#allocation2 + $0x78] sm:$0xff] %vm574, 0.0
    %591 = vst.msk [vmem:[#allocation2 + $0x80] sm:$0xff] %vm574, 0.0
    %592 = vst.msk [vmem:[#allocation2 + $0x88] sm:$0xff] %vm574, 0.0
    %593 = vst.msk [vmem:[#allocation3] sm:$0xff] %vm574, 0.0
    %594 = vst.msk [vmem:[#allocation3 + $0x8] sm:$0xff] %vm574, 0.0
    %595 = vst.msk [vmem:[#allocation3 + $0x10] sm:$0xff] %vm574, 0.0
    %596 = vst.msk [vmem:[#allocation3 + $0x18] sm:$0xff] %vm574, 0.0
    %597 = vst.msk [vmem:[#allocation3 + $0x20] sm:$0xff] %vm574, 0.0
    %598 = vst.msk [vmem:[#allocation3 + $0x28] sm:$0xff] %vm574, 0.0
    %599 = vst.msk [vmem:[#allocation3 + $0x30] sm:$0xff] %vm574, 0.0
    %600 = vst.msk [vmem:[#allocation3 + $0x38] sm:$0xff] %vm574, 0.0
    %601 = vst.msk [vmem:[#allocation3 + $0x40] sm:$0xff] %vm574, 0.0
    %602 = vst.msk [vmem:[#allocation3 + $0x48] sm:$0xff] %vm574, 0.0
    %603 = vst.msk [vmem:[#allocation3 + $0x50] sm:$0xff] %vm574, 0.0
    %604 = vst.msk [vmem:[#allocation3 + $0x58] sm:$0xff] %vm574, 0.0
    %605 = vst.msk [vmem:[#allocation3 + $0x60] sm:$0xff] %vm574, 0.0
    %606 = vst.msk [vmem:[#allocation3 + $0x68] sm:$0xff] %vm574, 0.0
    %607 = vst.msk [vmem:[#allocation3 + $0x70] sm:$0xff] %vm574, 0.0
    %608 = vst.msk [vmem:[#allocation3 + $0x78] sm:$0xff] %vm574, 0.0
    %609 = vst.msk [vmem:[#allocation3 + $0x80] sm:$0xff] %vm574, 0.0
    %610 = vst.msk [vmem:[#allocation3 + $0x88] sm:$0xff] %vm574, 0.0
    %611 = vst.msk [vmem:[#allocation2 + $0x10] sm:$0xff] %vm574, %v365
    %612 = vst.msk [vmem:[#allocation2 + $0x18] sm:$0xff] %vm574, %v366
    %613 = vst.msk [vmem:[#allocation2 + $0x20] sm:$0xff] %vm574, %v367
    %614 = vst.msk [vmem:[#allocation2 + $0x28] sm:$0xff] %vm574, %v368
    %615 = vst.msk [vmem:[#allocation2 + $0x30] sm:$0xff] %vm574, %v369
    %616 = vst.msk [vmem:[#allocation2 + $0x38] sm:$0xff] %vm574, %v370
    %617 = vst.msk [vmem:[#allocation2 + $0x40] sm:$0xff] %vm574, %v371
    %618 = vst.msk [vmem:[#allocation2 + $0x48] sm:$0xff] %vm574, %v372
    %619 = vst.msk [vmem:[#allocation2 + $0x50] sm:$0xff] %vm574, %v373
    %620 = vst.msk [vmem:[#allocation2 + $0x58] sm:$0xff] %vm574, %v374
    %621 = vst.msk [vmem:[#allocation2 + $0x60] sm:$0xff] %vm574, %v375
    %622 = vst.msk [vmem:[#allocation2 + $0x68] sm:$0xff] %vm574, %v376
    %623 = vst.msk [vmem:[#allocation2 + $0x70] sm:$0xff] %vm574, %v377
    %624 = vst.msk [vmem:[#allocation2 + $0x78] sm:$0xff] %vm574, %v378
    %625 = vst.msk [vmem:[#allocation2 + $0x80] sm:$0xff] %vm574, %v379
    %vm626 = vcmask 257024
    %627 = vst.msk [vmem:[#allocation2 + $0x88] sm:$0xf] %vm626, %v380
    %628 = vst.msk [vmem:[#allocation3 + $0x10] sm:$0xff] %vm574, %v558
    %629 = vst.msk [vmem:[#allocation3 + $0x18] sm:$0xff] %vm574, %v559
    %630 = vst.msk [vmem:[#allocation3 + $0x20] sm:$0xff] %vm574, %v560
    %631 = vst.msk [vmem:[#allocation3 + $0x28] sm:$0xff] %vm574, %v561
    %632 = vst.msk [vmem:[#allocation3 + $0x30] sm:$0xff] %vm574, %v562
    %633 = vst.msk [vmem:[#allocation3 + $0x38] sm:$0xff] %vm574, %v563
    %634 = vst.msk [vmem:[#allocation3 + $0x40] sm:$0xff] %vm574, %v564
    %635 = vst.msk [vmem:[#allocation3 + $0x48] sm:$0xff] %vm574, %v565
    %636 = vst.msk [vmem:[#allocation3 + $0x50] sm:$0xff] %vm574, %v566
    %637 = vst.msk [vmem:[#allocation3 + $0x58] sm:$0xff] %vm574, %v567
    %638 = vst.msk [vmem:[#allocation3 + $0x60] sm:$0xff] %vm574, %v568
    %639 = vst.msk [vmem:[#allocation3 + $0x68] sm:$0xff] %vm574, %v569
    %640 = vst.msk [vmem:[#allocation3 + $0x70] sm:$0xff] %vm574, %v570
    %641 = vst.msk [vmem:[#allocation3 + $0x78] sm:$0xff] %vm574, %v571
    %642 = vst.msk [vmem:[#allocation3 + $0x80] sm:$0xff] %vm574, %v572
    %vm643 = vcmask 254976
    %644 = vst.msk [vmem:[#allocation3 + $0x88] sm:$0x3] %vm643, %v573
    %v645 = vld [vmem:[#allocation2 + $0xe] sm:$0xff]
    %v646 = vld [vmem:[#allocation2 + $0x16] sm:$0xff]
    %v647 = vld [vmem:[#allocation2 + $0x1e] sm:$0xff]
    %v648 = vld [vmem:[#allocation2 + $0x26] sm:$0xff]
    %v649 = vld [vmem:[#allocation2 + $0x2e] sm:$0xff]
    %v650 = vld [vmem:[#allocation2 + $0x36] sm:$0xff]
    %v651 = vld [vmem:[#allocation2 + $0x3e] sm:$0xff]
    %v652 = vld [vmem:[#allocation2 + $0x46] sm:$0xff]
    %v653 = vld [vmem:[#allocation2 + $0x4e] sm:$0xff]
    %v654 = vld [vmem:[#allocation2 + $0x56] sm:$0xff]
    %v655 = vld [vmem:[#allocation2 + $0x5e] sm:$0xff]
    %v656 = vld [vmem:[#allocation2 + $0x66] sm:$0xff]
    %v657 = vld [vmem:[#allocation2 + $0x6e] sm:$0xff]
    %v658 = vld [vmem:[#allocation2 + $0x76] sm:$0xff]
    %v659 = vld [vmem:[#allocation2 + $0x7e] sm:$0xff]
    %v660 = vpack.c.bf16 %v646, %v645
    %v661 = vpack.c.bf16 %v648, %v647
    %v662 = vpack.c.bf16 %v650, %v649
    %v663 = vpack.c.bf16 %v652, %v651
    %v664 = vpack.c.bf16 %v654, %v653
    %v665 = vpack.c.bf16 %v656, %v655
    %v666 = vpack.c.bf16 %v658, %v657
    %v667 = vpack.c.bf16 %v659, %v659
    %v668 = vld [vmem:[#allocation9] sm:$0xf]
    %v669 = vld [vmem:[#allocation9 + $0x4] sm:$0xf]
    %v670 = vld [vmem:[#allocation9 + $0x8] sm:$0xf]
    %v671 = vld [vmem:[#allocation9 + $0xc] sm:$0xf]
    %v672 = vld [vmem:[#allocation3 + $0xe] sm:$0xff]
    %v673 = vld [vmem:[#allocation3 + $0x16] sm:$0xff]
    %v674 = vld [vmem:[#allocation3 + $0x1e] sm:$0xff]
    %v675 = vld [vmem:[#allocation3 + $0x26] sm:$0xff]
    %v676 = vld [vmem:[#allocation3 + $0x2e] sm:$0xff]
    %v677 = vld [vmem:[#allocation3 + $0x36] sm:$0xff]
    %v678 = vld [vmem:[#allocation3 + $0x3e] sm:$0xff]
    %v679 = vld [vmem:[#allocation3 + $0x46] sm:$0xff]
    %v680 = vld [vmem:[#allocation3 + $0x4e] sm:$0xff]
    %v681 = vld [vmem:[#allocation3 + $0x56] sm:$0xff]
    %v682 = vld [vmem:[#allocation3 + $0x5e] sm:$0xff]
    %v683 = vld [vmem:[#allocation3 + $0x66] sm:$0xff]
    %v684 = vld [vmem:[#allocation3 + $0x6e] sm:$0xff]
    %v685 = vld [vmem:[#allocation3 + $0x76] sm:$0xff]
    %v686 = vld [vmem:[#allocation3 + $0x7e] sm:$0xff]
    %v687 = vpack.c.bf16 %v673, %v672
    %v688 = vpack.c.bf16 %v675, %v674
    %v689 = vpack.c.bf16 %v677, %v676
    %v690 = vpack.c.bf16 %v679, %v678
    %v691 = vpack.c.bf16 %v681, %v680
    %v692 = vpack.c.bf16 %v683, %v682
    %v693 = vpack.c.bf16 %v685, %v684
    %v694 = vpack.c.bf16 %v686, %v686
    %v695 = vld [vmem:[#allocation10] sm:$0xf]
    %v696 = vld [vmem:[#allocation10 + $0x4] sm:$0xf]
    %v697 = vld [vmem:[#allocation10 + $0x8] sm:$0xf]
    %v698 = vld [vmem:[#allocation10 + $0xc] sm:$0xf]
    %v703 = vunpack.c.l.b16 %v695
    %v704 = vunpack.c.l.b16 %v696
    %v705 = vunpack.c.l.b16 %v697
    %v706 = vunpack.c.l.b16 %v698
    %v707 = vpack.c.b16 %v704, %v703
    %v708 = vpack.c.b16 %v706, %v705
    %v712 = vsel %vm574, %v687, 0
    %v715 = vsel %vm574, %v688, 0
    %v718 = vsel %vm574, %v689, 0
    %v721 = vsel %vm574, %v690, 0
    %v724 = vsel %vm574, %v691, 0
    %v727 = vsel %vm574, %v692, 0
    %v730 = vsel %vm574, %v693, 0
    %v733 = vsel %vm574, %v694, 0
    %735 = vmatprep.subr.bf16.mxu0 0
    %736 = vmatpush1.bf16.msra.mxu0 %v707
    %737 = vmatprep.subr.bf16.mxu0 0
    %738 = vmatpush1.bf16.msra.mxu0 %v708
    %739 = vmatprep.subr.bf16.mxu0 0
    %740 = vmatpush1.bf16.msra.mxu0 0
    %741 = vmatprep.subr.bf16.mxu0 0
    %742 = vmatpush1.bf16.msra.mxu0 0
    %743 = vmatprep.subr.bf16.mxu0 0
    %744 = vmatpush1.bf16.msra.mxu0 0
    %745 = vmatprep.subr.bf16.mxu0 0
    %746 = vmatpush1.bf16.msra.mxu0 0
    %747 = vmatprep.subr.bf16.mxu0 0
    %748 = vmatpush1.bf16.msra.mxu0 0
    %749 = vmatprep.subr.bf16.mxu0 0
    %750 = vmatpush1.bf16.msra.mxu0 0
    %751 = vmatprep.subr.bf16.mxu0 0
    %752 = vmatpush1.bf16.msra.mxu0 0
    %753 = vmatprep.subr.bf16.mxu0 0
    %754 = vmatpush1.bf16.msra.mxu0 0
    %755 = vmatprep.subr.bf16.mxu0 0
    %756 = vmatpush1.bf16.msra.mxu0 0
    %757 = vmatprep.subr.bf16.mxu0 0
    %758 = vmatpush1.bf16.msra.mxu0 0
    %759 = vmatprep.subr.bf16.mxu0 0
    %760 = vmatpush1.bf16.msra.mxu0 0
    %761 = vmatprep.subr.bf16.mxu0 0
    %762 = vmatpush1.bf16.msra.mxu0 0
    %763 = vmatprep.subr.bf16.mxu0 0
    %764 = vmatpush1.bf16.msra.mxu0 0
    %765 = vmatprep.subr.bf16.mxu0 0
    %766 = vmatpush1.bf16.msra.mxu0 0
    %767 = vmatprep.mubr.bf16.mxu0 0
    %768 = vmatmul.mubr.bf16.gmra.mrb[0].mxu0 %v712
    %v769 = vpop.f32.mrb[0].mxu0
    %v770 = vadd.f32 0.0, %v769
    %v771 = vpop.f32.mrb[0].mxu0
    %v772 = vpop.f32.mrb[0].mxu0
    %v773 = vadd.f32 0.0, %v772
    %v774 = vpop.f32.mrb[0].mxu0
    %775 = vmatprep.mubr.bf16.mxu0 0
    %776 = vmatmul.mubr.bf16.gmra.mrb[0].mxu0 %v715
    %v777 = vpop.f32.mrb[0].mxu0
    %v778 = vadd.f32 0.0, %v777
    %v779 = vpop.f32.mrb[0].mxu0
    %v780 = vpop.f32.mrb[0].mxu0
    %v781 = vadd.f32 0.0, %v780
    %v782 = vpop.f32.mrb[0].mxu0
    %783 = vmatprep.mubr.bf16.mxu0 0
    %784 = vmatmul.mubr.bf16.gmra.mrb[0].mxu0 %v718
    %v785 = vpop.f32.mrb[0].mxu0
    %v786 = vadd.f32 0.0, %v785
    %v787 = vpop.f32.mrb[0].mxu0
    %v788 = vpop.f32.mrb[0].mxu0
    %v789 = vadd.f32 0.0, %v788
    %v790 = vpop.f32.mrb[0].mxu0
    %791 = vmatprep.mubr.bf16.mxu0 0
    %792 = vmatmul.mubr.bf16.gmra.mrb[0].mxu0 %v721
    %v793 = vpop.f32.mrb[0].mxu0
    %v794 = vadd.f32 0.0, %v793
    %v795 = vpop.f32.mrb[0].mxu0
    %v796 = vpop.f32.mrb[0].mxu0
    %v797 = vadd.f32 0.0, %v796
    %v798 = vpop.f32.mrb[0].mxu0
    %799 = vmatprep.mubr.bf16.mxu0 0
    %800 = vmatmul.mubr.bf16.gmra.mrb[0].mxu0 %v724
    %v801 = vpop.f32.mrb[0].mxu0
    %v802 = vadd.f32 0.0, %v801
    %v803 = vpop.f32.mrb[0].mxu0
    %v804 = vpop.f32.mrb[0].mxu0
    %v805 = vadd.f32 0.0, %v804
    %v806 = vpop.f32.mrb[0].mxu0
    %807 = vmatprep.mubr.bf16.mxu0 0
    %808 = vmatmul.mubr.bf16.gmra.mrb[0].mxu0 %v727
    %v809 = vpop.f32.mrb[0].mxu0
    %v810 = vadd.f32 0.0, %v809
    %v811 = vpop.f32.mrb[0].mxu0
    %v812 = vpop.f32.mrb[0].mxu0
    %v813 = vadd.f32 0.0, %v812
    %v814 = vpop.f32.mrb[0].mxu0
    %815 = vmatprep.mubr.bf16.mxu0 0
    %816 = vmatmul.mubr.bf16.gmra.mrb[0].mxu0 %v730
    %v817 = vpop.f32.mrb[0].mxu0
    %v818 = vadd.f32 0.0, %v817
    %v819 = vpop.f32.mrb[0].mxu0
    %v820 = vpop.f32.mrb[0].mxu0
    %v821 = vadd.f32 0.0, %v820
    %v822 = vpop.f32.mrb[0].mxu0
    %823 = vmatprep.mubr.bf16.mxu0 0
    %824 = vmatmul.mubr.bf16.gmra.mrb[0].mxu0 %v733
    %v825 = vpop.f32.mrb[0].mxu0
    %v826 = vadd.f32 0.0, %v825
    %v827 = vpop.f32.mrb[0].mxu0
    %v828 = vpop.f32.mrb[0].mxu0
    %v829 = vpop.f32.mrb[0].mxu0
    %830 = vdwg.mxu0
    %v835 = vunpack.c.l.b16 %v668
    %v836 = vunpack.c.l.b16 %v669
    %v837 = vunpack.c.l.b16 %v670
    %v838 = vunpack.c.l.b16 %v671
    %v839 = vpack.c.b16 %v836, %v835
    %v840 = vpack.c.b16 %v838, %v837
    %v844 = vsel %vm574, %v660, 0
    %v847 = vsel %vm574, %v661, 0
    %v850 = vsel %vm574, %v662, 0
    %v853 = vsel %vm574, %v663, 0
    %v856 = vsel %vm574, %v664, 0
    %v859 = vsel %vm574, %v665, 0
    %v862 = vsel %vm574, %v666, 0
    %v865 = vsel %vm574, %v667, 0
    %867 = vmatprep.subr.bf16.mxu0 0
    %868 = vmatpush1.bf16.msra.mxu0 %v839
    %869 = vmatprep.subr.bf16.mxu0 0
    %870 = vmatpush1.bf16.msra.mxu0 %v840
    %871 = vmatprep.subr.bf16.mxu0 0
    %872 = vmatpush1.bf16.msra.mxu0 0
    %873 = vmatprep.subr.bf16.mxu0 0
    %874 = vmatpush1.bf16.msra.mxu0 0
    %875 = vmatprep.subr.bf16.mxu0 0
    %876 = vmatpush1.bf16.msra.mxu0 0
    %877 = vmatprep.subr.bf16.mxu0 0
    %878 = vmatpush1.bf16.msra.mxu0 0
    %879 = vmatprep.subr.bf16.mxu0 0
    %880 = vmatpush1.bf16.msra.mxu0 0
    %881 = vmatprep.subr.bf16.mxu0 0
    %882 = vmatpush1.bf16.msra.mxu0 0
    %883 = vmatprep.subr.bf16.mxu0 0
    %884 = vmatpush1.bf16.msra.mxu0 0
    %885 = vmatprep.subr.bf16.mxu0 0
    %886 = vmatpush1.bf16.msra.mxu0 0
    %887 = vmatprep.subr.bf16.mxu0 0
    %888 = vmatpush1.bf16.msra.mxu0 0
    %889 = vmatprep.subr.bf16.mxu0 0
    %890 = vmatpush1.bf16.msra.mxu0 0
    %891 = vmatprep.subr.bf16.mxu0 0
    %892 = vmatpush1.bf16.msra.mxu0 0
    %893 = vmatprep.subr.bf16.mxu0 0
    %894 = vmatpush1.bf16.msra.mxu0 0
    %895 = vmatprep.subr.bf16.mxu0 0
    %896 = vmatpush1.bf16.msra.mxu0 0
    %897 = vmatprep.subr.bf16.mxu0 0
    %898 = vmatpush1.bf16.msra.mxu0 0
    %899 = vmatprep.mubr.bf16.mxu0 0
    %900 = vmatmul.mubr.bf16.gmra.mrb[0].mxu0 %v844
    %v901 = vpop.f32.mrb[0].mxu0
    %v902 = vadd.f32 %v770, %v901
    %v903 = vpop.f32.mrb[0].mxu0
    %v904 = vpop.f32.mrb[0].mxu0
    %v905 = vadd.f32 %v773, %v904
    %v906 = vpop.f32.mrb[0].mxu0
    %907 = vmatprep.mubr.bf16.mxu0 0
    %908 = vmatmul.mubr.bf16.gmra.mrb[0].mxu0 %v847
    %v909 = vpop.f32.mrb[0].mxu0
    %v910 = vadd.f32 %v778, %v909
    %v911 = vpop.f32.mrb[0].mxu0
    %v912 = vpop.f32.mrb[0].mxu0
    %v913 = vadd.f32 %v781, %v912
    %v914 = vpop.f32.mrb[0].mxu0
    %915 = vmatprep.mubr.bf16.mxu0 0
    %916 = vmatmul.mubr.bf16.gmra.mrb[0].mxu0 %v850
    %v917 = vpop.f32.mrb[0].mxu0
    %v918 = vadd.f32 %v786, %v917
    %v919 = vpop.f32.mrb[0].mxu0
    %v920 = vpop.f32.mrb[0].mxu0
    %v921 = vadd.f32 %v789, %v920
    %v922 = vpop.f32.mrb[0].mxu0
    %923 = vmatprep.mubr.bf16.mxu0 0
    %924 = vmatmul.mubr.bf16.gmra.mrb[0].mxu0 %v853
    %v925 = vpop.f32.mrb[0].mxu0
    %v926 = vadd.f32 %v794, %v925
    %v927 = vpop.f32.mrb[0].mxu0
    %v928 = vpop.f32.mrb[0].mxu0
    %v929 = vadd.f32 %v797, %v928
    %v930 = vpop.f32.mrb[0].mxu0
    %931 = vmatprep.mubr.bf16.mxu0 0
    %932 = vmatmul.mubr.bf16.gmra.mrb[0].mxu0 %v856
    %v933 = vpop.f32.mrb[0].mxu0
    %v934 = vadd.f32 %v802, %v933
    %v935 = vpop.f32.mrb[0].mxu0
    %v936 = vpop.f32.mrb[0].mxu0
    %v937 = vadd.f32 %v805, %v936
    %v938 = vpop.f32.mrb[0].mxu0
    %939 = vmatprep.mubr.bf16.mxu0 0
    %940 = vmatmul.mubr.bf16.gmra.mrb[0].mxu0 %v859
    %v941 = vpop.f32.mrb[0].mxu0
    %v942 = vadd.f32 %v810, %v941
    %v943 = vpop.f32.mrb[0].mxu0
    %v944 = vpop.f32.mrb[0].mxu0
    %v945 = vadd.f32 %v813, %v944
    %v946 = vpop.f32.mrb[0].mxu0
    %947 = vmatprep.mubr.bf16.mxu0 0
    %948 = vmatmul.mubr.bf16.gmra.mrb[0].mxu0 %v862
    %v949 = vpop.f32.mrb[0].mxu0
    %v950 = vadd.f32 %v818, %v949
    %v951 = vpop.f32.mrb[0].mxu0
    %v952 = vpop.f32.mrb[0].mxu0
    %v953 = vadd.f32 %v821, %v952
    %v954 = vpop.f32.mrb[0].mxu0
    %955 = vmatprep.mubr.bf16.mxu0 0
    %956 = vmatmul.mubr.bf16.gmra.mrb[0].mxu0 %v865
    %v957 = vpop.f32.mrb[0].mxu0
    %v958 = vadd.f32 %v826, %v957
    %v959 = vpop.f32.mrb[0].mxu0
    %v960 = vpop.f32.mrb[0].mxu0
    %v961 = vpop.f32.mrb[0].mxu0
    %962 = vdwg.mxu0
    %v963 = vld [vmem:[#allocation2 + $0x10] sm:$0xff]
    %v964 = vld [vmem:[#allocation2 + $0x18] sm:$0xff]
    %v965 = vld [vmem:[#allocation2 + $0x20] sm:$0xff]
    %v966 = vld [vmem:[#allocation2 + $0x28] sm:$0xff]
    %v967 = vld [vmem:[#allocation2 + $0x30] sm:$0xff]
    %v968 = vld [vmem:[#allocation2 + $0x38] sm:$0xff]
    %v969 = vld [vmem:[#allocation2 + $0x40] sm:$0xff]
    %v970 = vld [vmem:[#allocation2 + $0x48] sm:$0xff]
    %v971 = vld [vmem:[#allocation2 + $0x50] sm:$0xff]
    %v972 = vld [vmem:[#allocation2 + $0x58] sm:$0xff]
    %v973 = vld [vmem:[#allocation2 + $0x60] sm:$0xff]
    %v974 = vld [vmem:[#allocation2 + $0x68] sm:$0xff]
    %v975 = vld [vmem:[#allocation2 + $0x70] sm:$0xff]
    %v976 = vld [vmem:[#allocation2 + $0x78] sm:$0xff]
    %v977 = vld [vmem:[#allocation2 + $0x80] sm:$0xff]
    %v978 = vpack.c.bf16 %v964, %v963
    %v979 = vpack.c.bf16 %v966, %v965
    %v980 = vpack.c.bf16 %v968, %v967
    %v981 = vpack.c.bf16 %v970, %v969
    %v982 = vpack.c.bf16 %v972, %v971
    %v983 = vpack.c.bf16 %v974, %v973
    %v984 = vpack.c.bf16 %v976, %v975
    %v985 = vpack.c.bf16 %v977, %v977
    %s986 = scalar_lea.vmem [#allocation9], 16
    %v987 = vld [vmem:[%s986] sm:$0xf]
    %v988 = vld [vmem:[%s986 + $0x4] sm:$0xf]
    %v989 = vld [vmem:[%s986 + $0x8] sm:$0xf]
    %v990 = vld [vmem:[%s986 + $0xc] sm:$0xf]
    %v995 = vunpack.c.l.b16 %v987
    %v996 = vunpack.c.l.b16 %v988
    %v997 = vunpack.c.l.b16 %v989
    %v998 = vunpack.c.l.b16 %v990
    %v999 = vpack.c.b16 %v996, %v995
    %v1000 = vpack.c.b16 %v998, %v997
    %v1004 = vsel %vm574, %v978, 0
    %v1007 = vsel %vm574, %v979, 0
    %v1010 = vsel %vm574, %v980, 0
    %v1013 = vsel %vm574, %v981, 0
    %v1016 = vsel %vm574, %v982, 0
    %v1019 = vsel %vm574, %v983, 0
    %v1022 = vsel %vm574, %v984, 0
    %v1025 = vsel %vm574, %v985, 0
    %1027 = vmatprep.subr.bf16.mxu0 0
    %1028 = vmatpush1.bf16.msra.mxu0 %v999
    %1029 = vmatprep.subr.bf16.mxu0 0
    %1030 = vmatpush1.bf16.msra.mxu0 %v1000
    %1031 = vmatprep.subr.bf16.mxu0 0
    %1032 = vmatpush1.bf16.msra.mxu0 0
    %1033 = vmatprep.subr.bf16.mxu0 0
    %1034 = vmatpush1.bf16.msra.mxu0 0
    %1035 = vmatprep.subr.bf16.mxu0 0
    %1036 = vmatpush1.bf16.msra.mxu0 0
    %1037 = vmatprep.subr.bf16.mxu0 0
    %1038 = vmatpush1.bf16.msra.mxu0 0
    %1039 = vmatprep.subr.bf16.mxu0 0
    %1040 = vmatpush1.bf16.msra.mxu0 0
    %1041 = vmatprep.subr.bf16.mxu0 0
    %1042 = vmatpush1.bf16.msra.mxu0 0
    %1043 = vmatprep.subr.bf16.mxu0 0
    %1044 = vmatpush1.bf16.msra.mxu0 0
    %1045 = vmatprep.subr.bf16.mxu0 0
    %1046 = vmatpush1.bf16.msra.mxu0 0
    %1047 = vmatprep.subr.bf16.mxu0 0
    %1048 = vmatpush1.bf16.msra.mxu0 0
    %1049 = vmatprep.subr.bf16.mxu0 0
    %1050 = vmatpush1.bf16.msra.mxu0 0
    %1051 = vmatprep.subr.bf16.mxu0 0
    %1052 = vmatpush1.bf16.msra.mxu0 0
    %1053 = vmatprep.subr.bf16.mxu0 0
    %1054 = vmatpush1.bf16.msra.mxu0 0
    %1055 = vmatprep.subr.bf16.mxu0 0
    %1056 = vmatpush1.bf16.msra.mxu0 0
    %1057 = vmatprep.subr.bf16.mxu0 0
    %1058 = vmatpush1.bf16.msra.mxu0 0
    %1059 = vmatprep.mubr.bf16.mxu0 0
    %1060 = vmatmul.mubr.bf16.gmra.mrb[0].mxu0 %v1004
    %v1061 = vpop.f32.mrb[0].mxu0
    %v1062 = vadd.f32 0.0, %v1061
    %v1063 = vpop.f32.mrb[0].mxu0
    %v1064 = vpop.f32.mrb[0].mxu0
    %v1065 = vadd.f32 0.0, %v1064
    %v1066 = vpop.f32.mrb[0].mxu0
    %1067 = vmatprep.mubr.bf16.mxu0 0
    %1068 = vmatmul.mubr.bf16.gmra.mrb[0].mxu0 %v1007
    %v1069 = vpop.f32.mrb[0].mxu0
    %v1070 = vadd.f32 0.0, %v1069
    %v1071 = vpop.f32.mrb[0].mxu0
    %v1072 = vpop.f32.mrb[0].mxu0
    %v1073 = vadd.f32 0.0, %v1072
    %v1074 = vpop.f32.mrb[0].mxu0
    %1075 = vmatprep.mubr.bf16.mxu0 0
    %1076 = vmatmul.mubr.bf16.gmra.mrb[0].mxu0 %v1010
    %v1077 = vpop.f32.mrb[0].mxu0
    %v1078 = vadd.f32 0.0, %v1077
    %v1079 = vpop.f32.mrb[0].mxu0
    %v1080 = vpop.f32.mrb[0].mxu0
    %v1081 = vadd.f32 0.0, %v1080
    %v1082 = vpop.f32.mrb[0].mxu0
    %1083 = vmatprep.mubr.bf16.mxu0 0
    %1084 = vmatmul.mubr.bf16.gmra.mrb[0].mxu0 %v1013
    %v1085 = vpop.f32.mrb[0].mxu0
    %v1086 = vadd.f32 0.0, %v1085
    %v1087 = vpop.f32.mrb[0].mxu0
    %v1088 = vpop.f32.mrb[0].mxu0
    %v1089 = vadd.f32 0.0, %v1088
    %v1090 = vpop.f32.mrb[0].mxu0
    %1091 = vmatprep.mubr.bf16.mxu0 0
    %1092 = vmatmul.mubr.bf16.gmra.mrb[0].mxu0 %v1016
    %v1093 = vpop.f32.mrb[0].mxu0
    %v1094 = vadd.f32 0.0, %v1093
    %v1095 = vpop.f32.mrb[0].mxu0
    %v1096 = vpop.f32.mrb[0].mxu0
    %v1097 = vadd.f32 0.0, %v1096
    %v1098 = vpop.f32.mrb[0].mxu0
    %1099 = vmatprep.mubr.bf16.mxu0 0
    %1100 = vmatmul.mubr.bf16.gmra.mrb[0].mxu0 %v1019
    %v1101 = vpop.f32.mrb[0].mxu0
    %v1102 = vadd.f32 0.0, %v1101
    %v1103 = vpop.f32.mrb[0].mxu0
    %v1104 = vpop.f32.mrb[0].mxu0
    %v1105 = vadd.f32 0.0, %v1104
    %v1106 = vpop.f32.mrb[0].mxu0
    %1107 = vmatprep.mubr.bf16.mxu0 0
    %1108 = vmatmul.mubr.bf16.gmra.mrb[0].mxu0 %v1022
    %v1109 = vpop.f32.mrb[0].mxu0
    %v1110 = vadd.f32 0.0, %v1109
    %v1111 = vpop.f32.mrb[0].mxu0
    %v1112 = vpop.f32.mrb[0].mxu0
    %v1113 = vadd.f32 0.0, %v1112
    %v1114 = vpop.f32.mrb[0].mxu0
    %1115 = vmatprep.mubr.bf16.mxu0 0
    %1116 = vmatmul.mubr.bf16.gmra.mrb[0].mxu0 %v1025
    %v1117 = vpop.f32.mrb[0].mxu0
    %v1118 = vadd.f32 0.0, %v1117
    %v1119 = vpop.f32.mrb[0].mxu0
    %v1120 = vpop.f32.mrb[0].mxu0
    %v1121 = vpop.f32.mrb[0].mxu0
    %1122 = vdwg.mxu0
    %v1123 = vadd.f32 %v902, %v1062
    %v1124 = vadd.f32 %v905, %v1065
    %v1125 = vadd.f32 %v910, %v1070
    %v1126 = vadd.f32 %v913, %v1073
    %v1127 = vadd.f32 %v918, %v1078
    %v1128 = vadd.f32 %v921, %v1081
    %v1129 = vadd.f32 %v926, %v1086
    %v1130 = vadd.f32 %v929, %v1089
    %v1131 = vadd.f32 %v934, %v1094
    %v1132 = vadd.f32 %v937, %v1097
    %v1133 = vadd.f32 %v942, %v1102
    %v1134 = vadd.f32 %v945, %v1105
    %v1135 = vadd.f32 %v950, %v1110
    %v1136 = vadd.f32 %v953, %v1113
    %v1137 = vadd.f32 %v958, %v1118
    %v1138 = vld [vmem:[#allocation3 + $0x10] sm:$0xff]
    %v1139 = vld [vmem:[#allocation3 + $0x18] sm:$0xff]
    %v1140 = vld [vmem:[#allocation3 + $0x20] sm:$0xff]
    %v1141 = vld [vmem:[#allocation3 + $0x28] sm:$0xff]
    %v1142 = vld [vmem:[#allocation3 + $0x30] sm:$0xff]
    %v1143 = vld [vmem:[#allocation3 + $0x38] sm:$0xff]
    %v1144 = vld [vmem:[#allocation3 + $0x40] sm:$0xff]
    %v1145 = vld [vmem:[#allocation3 + $0x48] sm:$0xff]
    %v1146 = vld [vmem:[#allocation3 + $0x50] sm:$0xff]
    %v1147 = vld [vmem:[#allocation3 + $0x58] sm:$0xff]
    %v1148 = vld [vmem:[#allocation3 + $0x60] sm:$0xff]
    %v1149 = vld [vmem:[#allocation3 + $0x68] sm:$0xff]
    %v1150 = vld [vmem:[#allocation3 + $0x70] sm:$0xff]
    %v1151 = vld [vmem:[#allocation3 + $0x78] sm:$0xff]
    %v1152 = vld [vmem:[#allocation3 + $0x80] sm:$0xff]
    %v1153 = vpack.c.bf16 %v1139, %v1138
    %v1154 = vpack.c.bf16 %v1141, %v1140
    %v1155 = vpack.c.bf16 %v1143, %v1142
    %v1156 = vpack.c.bf16 %v1145, %v1144
    %v1157 = vpack.c.bf16 %v1147, %v1146
    %v1158 = vpack.c.bf16 %v1149, %v1148
    %v1159 = vpack.c.bf16 %v1151, %v1150
    %v1160 = vpack.c.bf16 %v1152, %v1152
    %s1161 = scalar_lea.vmem [#allocation10], 16
    %v1162 = vld [vmem:[%s1161] sm:$0xf]
    %v1163 = vld [vmem:[%s1161 + $0x4] sm:$0xf]
    %v1164 = vld [vmem:[%s1161 + $0x8] sm:$0xf]
    %v1165 = vld [vmem:[%s1161 + $0xc] sm:$0xf]
    %v1170 = vunpack.c.l.b16 %v1162
    %v1171 = vunpack.c.l.b16 %v1163
    %v1172 = vunpack.c.l.b16 %v1164
    %v1173 = vunpack.c.l.b16 %v1165
    %v1174 = vpack.c.b16 %v1171, %v1170
    %v1175 = vpack.c.b16 %v1173, %v1172
    %v1179 = vsel %vm574, %v1153, 0
    %v1182 = vsel %vm574, %v1154, 0
    %v1185 = vsel %vm574, %v1155, 0
    %v1188 = vsel %vm574, %v1156, 0
    %v1191 = vsel %vm574, %v1157, 0
    %v1194 = vsel %vm574, %v1158, 0
    %v1197 = vsel %vm574, %v1159, 0
    %v1200 = vsel %vm574, %v1160, 0
    %1202 = vmatprep.subr.bf16.mxu0 0
    %1203 = vmatpush1.bf16.msra.mxu0 %v1174
    %1204 = vmatprep.subr.bf16.mxu0 0
    %1205 = vmatpush1.bf16.msra.mxu0 %v1175
    %1206 = vmatprep.subr.bf16.mxu0 0
    %1207 = vmatpush1.bf16.msra.mxu0 0
    %1208 = vmatprep.subr.bf16.mxu0 0
    %1209 = vmatpush1.bf16.msra.mxu0 0
    %1210 = vmatprep.subr.bf16.mxu0 0
    %1211 = vmatpush1.bf16.msra.mxu0 0
    %1212 = vmatprep.subr.bf16.mxu0 0
    %1213 = vmatpush1.bf16.msra.mxu0 0
    %1214 = vmatprep.subr.bf16.mxu0 0
    %1215 = vmatpush1.bf16.msra.mxu0 0
    %1216 = vmatprep.subr.bf16.mxu0 0
    %1217 = vmatpush1.bf16.msra.mxu0 0
    %1218 = vmatprep.subr.bf16.mxu0 0
    %1219 = vmatpush1.bf16.msra.mxu0 0
    %1220 = vmatprep.subr.bf16.mxu0 0
    %1221 = vmatpush1.bf16.msra.mxu0 0
    %1222 = vmatprep.subr.bf16.mxu0 0
    %1223 = vmatpush1.bf16.msra.mxu0 0
    %1224 = vmatprep.subr.bf16.mxu0 0
    %1225 = vmatpush1.bf16.msra.mxu0 0
    %1226 = vmatprep.subr.bf16.mxu0 0
    %1227 = vmatpush1.bf16.msra.mxu0 0
    %1228 = vmatprep.subr.bf16.mxu0 0
    %1229 = vmatpush1.bf16.msra.mxu0 0
    %1230 = vmatprep.subr.bf16.mxu0 0
    %1231 = vmatpush1.bf16.msra.mxu0 0
    %1232 = vmatprep.subr.bf16.mxu0 0
    %1233 = vmatpush1.bf16.msra.mxu0 0
    %1234 = vmatprep.mubr.bf16.mxu0 0
    %1235 = vmatmul.mubr.bf16.gmra.mrb[0].mxu0 %v1179
    %v1236 = vpop.f32.mrb[0].mxu0
    %v1237 = vadd.f32 0.0, %v1236
    %v1238 = vpop.f32.mrb[0].mxu0
    %v1239 = vpop.f32.mrb[0].mxu0
    %v1240 = vadd.f32 0.0, %v1239
    %v1241 = vpop.f32.mrb[0].mxu0
    %1242 = vmatprep.mubr.bf16.mxu0 0
    %1243 = vmatmul.mubr.bf16.gmra.mrb[0].mxu0 %v1182
    %v1244 = vpop.f32.mrb[0].mxu0
    %v1245 = vadd.f32 0.0, %v1244
    %v1246 = vpop.f32.mrb[0].mxu0
    %v1247 = vpop.f32.mrb[0].mxu0
    %v1248 = vadd.f32 0.0, %v1247
    %v1249 = vpop.f32.mrb[0].mxu0
    %1250 = vmatprep.mubr.bf16.mxu0 0
    %1251 = vmatmul.mubr.bf16.gmra.mrb[0].mxu0 %v1185
    %v1252 = vpop.f32.mrb[0].mxu0
    %v1253 = vadd.f32 0.0, %v1252
    %v1254 = vpop.f32.mrb[0].mxu0
    %v1255 = vpop.f32.mrb[0].mxu0
    %v1256 = vadd.f32 0.0, %v1255
    %v1257 = vpop.f32.mrb[0].mxu0
    %1258 = vmatprep.mubr.bf16.mxu0 0
    %1259 = vmatmul.mubr.bf16.gmra.mrb[0].mxu0 %v1188
    %v1260 = vpop.f32.mrb[0].mxu0
    %v1261 = vadd.f32 0.0, %v1260
    %v1262 = vpop.f32.mrb[0].mxu0
    %v1263 = vpop.f32.mrb[0].mxu0
    %v1264 = vadd.f32 0.0, %v1263
    %v1265 = vpop.f32.mrb[0].mxu0
    %1266 = vmatprep.mubr.bf16.mxu0 0
    %1267 = vmatmul.mubr.bf16.gmra.mrb[0].mxu0 %v1191
    %v1268 = vpop.f32.mrb[0].mxu0
    %v1269 = vadd.f32 0.0, %v1268
    %v1270 = vpop.f32.mrb[0].mxu0
    %v1271 = vpop.f32.mrb[0].mxu0
    %v1272 = vadd.f32 0.0, %v1271
    %v1273 = vpop.f32.mrb[0].mxu0
    %1274 = vmatprep.mubr.bf16.mxu0 0
    %1275 = vmatmul.mubr.bf16.gmra.mrb[0].mxu0 %v1194
    %v1276 = vpop.f32.mrb[0].mxu0
    %v1277 = vadd.f32 0.0, %v1276
    %v1278 = vpop.f32.mrb[0].mxu0
    %v1279 = vpop.f32.mrb[0].mxu0
    %v1280 = vadd.f32 0.0, %v1279
    %v1281 = vpop.f32.mrb[0].mxu0
    %1282 = vmatprep.mubr.bf16.mxu0 0
    %1283 = vmatmul.mubr.bf16.gmra.mrb[0].mxu0 %v1197
    %v1284 = vpop.f32.mrb[0].mxu0
    %v1285 = vadd.f32 0.0, %v1284
    %v1286 = vpop.f32.mrb[0].mxu0
    %v1287 = vpop.f32.mrb[0].mxu0
    %v1288 = vadd.f32 0.0, %v1287
    %v1289 = vpop.f32.mrb[0].mxu0
    %1290 = vmatprep.mubr.bf16.mxu0 0
    %1291 = vmatmul.mubr.bf16.gmra.mrb[0].mxu0 %v1200
    %v1292 = vpop.f32.mrb[0].mxu0
    %v1293 = vadd.f32 0.0, %v1292
    %v1294 = vpop.f32.mrb[0].mxu0
    %v1295 = vpop.f32.mrb[0].mxu0
    %v1296 = vpop.f32.mrb[0].mxu0
    %1297 = vdwg.mxu0
    %v1298 = vadd.f32 %v1123, %v1237
    %v1299 = vadd.f32 %v1124, %v1240
    %v1300 = vadd.f32 %v1125, %v1245
    %v1301 = vadd.f32 %v1126, %v1248
    %v1302 = vadd.f32 %v1127, %v1253
    %v1303 = vadd.f32 %v1128, %v1256
    %v1304 = vadd.f32 %v1129, %v1261
    %v1305 = vadd.f32 %v1130, %v1264
    %v1306 = vadd.f32 %v1131, %v1269
    %v1307 = vadd.f32 %v1132, %v1272
    %v1308 = vadd.f32 %v1133, %v1277
    %v1309 = vadd.f32 %v1134, %v1280
    %v1310 = vadd.f32 %v1135, %v1285
    %v1311 = vadd.f32 %v1136, %v1288
    %v1312 = vadd.f32 %v1137, %v1293
    %v1313 = vld [vmem:[#allocation2 + $0x12] sm:$0xff]
    %v1314 = vld [vmem:[#allocation2 + $0x1a] sm:$0xff]
    %v1315 = vld [vmem:[#allocation2 + $0x22] sm:$0xff]
    %v1316 = vld [vmem:[#allocation2 + $0x2a] sm:$0xff]
    %v1317 = vld [vmem:[#allocation2 + $0x32] sm:$0xff]
    %v1318 = vld [vmem:[#allocation2 + $0x3a] sm:$0xff]
    %v1319 = vld [vmem:[#allocation2 + $0x42] sm:$0xff]
    %v1320 = vld [vmem:[#allocation2 + $0x4a] sm:$0xff]
    %v1321 = vld [vmem:[#allocation2 + $0x52] sm:$0xff]
    %v1322 = vld [vmem:[#allocation2 + $0x5a] sm:$0xff]
    %v1323 = vld [vmem:[#allocation2 + $0x62] sm:$0xff]
    %v1324 = vld [vmem:[#allocation2 + $0x6a] sm:$0xff]
    %v1325 = vld [vmem:[#allocation2 + $0x72] sm:$0xff]
    %v1326 = vld [vmem:[#allocation2 + $0x7a] sm:$0xff]
    %v1327 = vld [vmem:[#allocation2 + $0x82] sm:$0xff]
    %v1328 = vpack.c.bf16 %v1314, %v1313
    %v1329 = vpack.c.bf16 %v1316, %v1315
    %v1330 = vpack.c.bf16 %v1318, %v1317
    %v1331 = vpack.c.bf16 %v1320, %v1319
    %v1332 = vpack.c.bf16 %v1322, %v1321
    %v1333 = vpack.c.bf16 %v1324, %v1323
    %v1334 = vpack.c.bf16 %v1326, %v1325
    %v1335 = vpack.c.bf16 %v1327, %v1327
    %s1336 = scalar_lea.vmem [#allocation9], 32
    %v1337 = vld [vmem:[%s1336] sm:$0xf]
    %v1338 = vld [vmem:[%s1336 + $0x4] sm:$0xf]
    %v1339 = vld [vmem:[%s1336 + $0x8] sm:$0xf]
    %v1340 = vld [vmem:[%s1336 + $0xc] sm:$0xf]
    %v1345 = vunpack.c.l.b16 %v1337
    %v1346 = vunpack.c.l.b16 %v1338
    %v1347 = vunpack.c.l.b16 %v1339
    %v1348 = vunpack.c.l.b16 %v1340
    %v1349 = vpack.c.b16 %v1346, %v1345
    %v1350 = vpack.c.b16 %v1348, %v1347
    %v1354 = vsel %vm574, %v1328, 0
    %v1357 = vsel %vm574, %v1329, 0
    %v1360 = vsel %vm574, %v1330, 0
    %v1363 = vsel %vm574, %v1331, 0
    %v1366 = vsel %vm574, %v1332, 0
    %v1369 = vsel %vm574, %v1333, 0
    %v1372 = vsel %vm574, %v1334, 0
    %v1375 = vsel %vm574, %v1335, 0
    %1377 = vmatprep.subr.bf16.mxu0 0
    %1378 = vmatpush1.bf16.msra.mxu0 %v1349
    %1379 = vmatprep.subr.bf16.mxu0 0
    %1380 = vmatpush1.bf16.msra.mxu0 %v1350
    %1381 = vmatprep.subr.bf16.mxu0 0
    %1382 = vmatpush1.bf16.msra.mxu0 0
    %1383 = vmatprep.subr.bf16.mxu0 0
    %1384 = vmatpush1.bf16.msra.mxu0 0
    %1385 = vmatprep.subr.bf16.mxu0 0
    %1386 = vmatpush1.bf16.msra.mxu0 0
    %1387 = vmatprep.subr.bf16.mxu0 0
    %1388 = vmatpush1.bf16.msra.mxu0 0
    %1389 = vmatprep.subr.bf16.mxu0 0
    %1390 = vmatpush1.bf16.msra.mxu0 0
    %1391 = vmatprep.subr.bf16.mxu0 0
    %1392 = vmatpush1.bf16.msra.mxu0 0
    %1393 = vmatprep.subr.bf16.mxu0 0
    %1394 = vmatpush1.bf16.msra.mxu0 0
    %1395 = vmatprep.subr.bf16.mxu0 0
    %1396 = vmatpush1.bf16.msra.mxu0 0
    %1397 = vmatprep.subr.bf16.mxu0 0
    %1398 = vmatpush1.bf16.msra.mxu0 0
    %1399 = vmatprep.subr.bf16.mxu0 0
    %1400 = vmatpush1.bf16.msra.mxu0 0
    %1401 = vmatprep.subr.bf16.mxu0 0
    %1402 = vmatpush1.bf16.msra.mxu0 0
    %1403 = vmatprep.subr.bf16.mxu0 0
    %1404 = vmatpush1.bf16.msra.mxu0 0
    %1405 = vmatprep.subr.bf16.mxu0 0
    %1406 = vmatpush1.bf16.msra.mxu0 0
    %1407 = vmatprep.subr.bf16.mxu0 0
    %1408 = vmatpush1.bf16.msra.mxu0 0
    %1409 = vmatprep.mubr.bf16.mxu0 0
    %1410 = vmatmul.mubr.bf16.gmra.mrb[0].mxu0 %v1354
    %v1411 = vpop.f32.mrb[0].mxu0
    %v1412 = vadd.f32 0.0, %v1411
    %v1413 = vpop.f32.mrb[0].mxu0
    %v1414 = vpop.f32.mrb[0].mxu0
    %v1415 = vadd.f32 0.0, %v1414
    %v1416 = vpop.f32.mrb[0].mxu0
    %1417 = vmatprep.mubr.bf16.mxu0 0
    %1418 = vmatmul.mubr.bf16.gmra.mrb[0].mxu0 %v1357
    %v1419 = vpop.f32.mrb[0].mxu0
    %v1420 = vadd.f32 0.0, %v1419
    %v1421 = vpop.f32.mrb[0].mxu0
    %v1422 = vpop.f32.mrb[0].mxu0
    %v1423 = vadd.f32 0.0, %v1422
    %v1424 = vpop.f32.mrb[0].mxu0
    %1425 = vmatprep.mubr.bf16.mxu0 0
    %1426 = vmatmul.mubr.bf16.gmra.mrb[0].mxu0 %v1360
    %v1427 = vpop.f32.mrb[0].mxu0
    %v1428 = vadd.f32 0.0, %v1427
    %v1429 = vpop.f32.mrb[0].mxu0
    %v1430 = vpop.f32.mrb[0].mxu0
    %v1431 = vadd.f32 0.0, %v1430
    %v1432 = vpop.f32.mrb[0].mxu0
    %1433 = vmatprep.mubr.bf16.mxu0 0
    %1434 = vmatmul.mubr.bf16.gmra.mrb[0].mxu0 %v1363
    %v1435 = vpop.f32.mrb[0].mxu0
    %v1436 = vadd.f32 0.0, %v1435
    %v1437 = vpop.f32.mrb[0].mxu0
    %v1438 = vpop.f32.mrb[0].mxu0
    %v1439 = vadd.f32 0.0, %v1438
    %v1440 = vpop.f32.mrb[0].mxu0
    %1441 = vmatprep.mubr.bf16.mxu0 0
    %1442 = vmatmul.mubr.bf16.gmra.mrb[0].mxu0 %v1366
    %v1443 = vpop.f32.mrb[0].mxu0
    %v1444 = vadd.f32 0.0, %v1443
    %v1445 = vpop.f32.mrb[0].mxu0
    %v1446 = vpop.f32.mrb[0].mxu0
    %v1447 = vadd.f32 0.0, %v1446
    %v1448 = vpop.f32.mrb[0].mxu0
    %1449 = vmatprep.mubr.bf16.mxu0 0
    %1450 = vmatmul.mubr.bf16.gmra.mrb[0].mxu0 %v1369
    %v1451 = vpop.f32.mrb[0].mxu0
    %v1452 = vadd.f32 0.0, %v1451
    %v1453 = vpop.f32.mrb[0].mxu0
    %v1454 = vpop.f32.mrb[0].mxu0
    %v1455 = vadd.f32 0.0, %v1454
    %v1456 = vpop.f32.mrb[0].mxu0
    %1457 = vmatprep.mubr.bf16.mxu0 0
    %1458 = vmatmul.mubr.bf16.gmra.mrb[0].mxu0 %v1372
    %v1459 = vpop.f32.mrb[0].mxu0
    %v1460 = vadd.f32 0.0, %v1459
    %v1461 = vpop.f32.mrb[0].mxu0
    %v1462 = vpop.f32.mrb[0].mxu0
    %v1463 = vadd.f32 0.0, %v1462
    %v1464 = vpop.f32.mrb[0].mxu0
    %1465 = vmatprep.mubr.bf16.mxu0 0
    %1466 = vmatmul.mubr.bf16.gmra.mrb[0].mxu0 %v1375
    %v1467 = vpop.f32.mrb[0].mxu0
    %v1468 = vadd.f32 0.0, %v1467
    %v1469 = vpop.f32.mrb[0].mxu0
    %v1470 = vpop.f32.mrb[0].mxu0
    %v1471 = vpop.f32.mrb[0].mxu0
    %1472 = vdwg.mxu0
    %v1473 = vadd.f32 %v1298, %v1412
    %v1474 = vadd.f32 %v1299, %v1415
    %v1475 = vadd.f32 %v1300, %v1420
    %v1476 = vadd.f32 %v1301, %v1423
    %v1477 = vadd.f32 %v1302, %v1428
    %v1478 = vadd.f32 %v1303, %v1431
    %v1479 = vadd.f32 %v1304, %v1436
    %v1480 = vadd.f32 %v1305, %v1439
    %v1481 = vadd.f32 %v1306, %v1444
    %v1482 = vadd.f32 %v1307, %v1447
    %v1483 = vadd.f32 %v1308, %v1452
    %v1484 = vadd.f32 %v1309, %v1455
    %v1485 = vadd.f32 %v1310, %v1460
    %v1486 = vadd.f32 %v1311, %v1463
    %v1487 = vadd.f32 %v1312, %v1468
    %v1488 = vld [vmem:[#allocation3 + $0x12] sm:$0xff]
    %v1489 = vld [vmem:[#allocation3 + $0x1a] sm:$0xff]
    %v1490 = vld [vmem:[#allocation3 + $0x22] sm:$0xff]
    %v1491 = vld [vmem:[#allocation3 + $0x2a] sm:$0xff]
    %v1492 = vld [vmem:[#allocation3 + $0x32] sm:$0xff]
    %v1493 = vld [vmem:[#allocation3 + $0x3a] sm:$0xff]
    %v1494 = vld [vmem:[#allocation3 + $0x42] sm:$0xff]
    %v1495 = vld [vmem:[#allocation3 + $0x4a] sm:$0xff]
    %v1496 = vld [vmem:[#allocation3 + $0x52] sm:$0xff]
    %v1497 = vld [vmem:[#allocation3 + $0x5a] sm:$0xff]
    %v1498 = vld [vmem:[#allocation3 + $0x62] sm:$0xff]
    %v1499 = vld [vmem:[#allocation3 + $0x6a] sm:$0xff]
    %v1500 = vld [vmem:[#allocation3 + $0x72] sm:$0xff]
    %v1501 = vld [vmem:[#allocation3 + $0x7a] sm:$0xff]
    %v1502 = vld [vmem:[#allocation3 + $0x82] sm:$0xff]
    %v1503 = vpack.c.bf16 %v1489, %v1488
    %v1504 = vpack.c.bf16 %v1491, %v1490
    %v1505 = vpack.c.bf16 %v1493, %v1492
    %v1506 = vpack.c.bf16 %v1495, %v1494
    %v1507 = vpack.c.bf16 %v1497, %v1496
    %v1508 = vpack.c.bf16 %v1499, %v1498
    %v1509 = vpack.c.bf16 %v1501, %v1500
    %v1510 = vpack.c.bf16 %v1502, %v1502
    %s1511 = scalar_lea.vmem [#allocation10], 32
    %v1512 = vld [vmem:[%s1511] sm:$0xf]
    %v1513 = vld [vmem:[%s1511 + $0x4] sm:$0xf]
    %v1514 = vld [vmem:[%s1511 + $0x8] sm:$0xf]
    %v1515 = vld [vmem:[%s1511 + $0xc] sm:$0xf]
    %v1520 = vunpack.c.l.b16 %v1512
    %v1521 = vunpack.c.l.b16 %v1513
    %v1522 = vunpack.c.l.b16 %v1514
    %v1523 = vunpack.c.l.b16 %v1515
    %v1524 = vpack.c.b16 %v1521, %v1520
    %v1525 = vpack.c.b16 %v1523, %v1522
    %v1529 = vsel %vm574, %v1503, 0
    %v1532 = vsel %vm574, %v1504, 0
    %v1535 = vsel %vm574, %v1505, 0
    %v1538 = vsel %vm574, %v1506, 0
    %v1541 = vsel %vm574, %v1507, 0
    %v1544 = vsel %vm574, %v1508, 0
    %v1547 = vsel %vm574, %v1509, 0
    %v1550 = vsel %vm574, %v1510, 0
    %1552 = vmatprep.subr.bf16.mxu0 0
    %1553 = vmatpush1.bf16.msra.mxu0 %v1524
    %1554 = vmatprep.subr.bf16.mxu0 0
    %1555 = vmatpush1.bf16.msra.mxu0 %v1525
    %1556 = vmatprep.subr.bf16.mxu0 0
    %1557 = vmatpush1.bf16.msra.mxu0 0
    %1558 = vmatprep.subr.bf16.mxu0 0
    %1559 = vmatpush1.bf16.msra.mxu0 0
    %1560 = vmatprep.subr.bf16.mxu0 0
    %1561 = vmatpush1.bf16.msra.mxu0 0
    %1562 = vmatprep.subr.bf16.mxu0 0
    %1563 = vmatpush1.bf16.msra.mxu0 0
    %1564 = vmatprep.subr.bf16.mxu0 0
    %1565 = vmatpush1.bf16.msra.mxu0 0
    %1566 = vmatprep.subr.bf16.mxu0 0
    %1567 = vmatpush1.bf16.msra.mxu0 0
    %1568 = vmatprep.subr.bf16.mxu0 0
    %1569 = vmatpush1.bf16.msra.mxu0 0
    %1570 = vmatprep.subr.bf16.mxu0 0
    %1571 = vmatpush1.bf16.msra.mxu0 0
    %1572 = vmatprep.subr.bf16.mxu0 0
    %1573 = vmatpush1.bf16.msra.mxu0 0
    %1574 = vmatprep.subr.bf16.mxu0 0
    %1575 = vmatpush1.bf16.msra.mxu0 0
    %1576 = vmatprep.subr.bf16.mxu0 0
    %1577 = vmatpush1.bf16.msra.mxu0 0
    %1578 = vmatprep.subr.bf16.mxu0 0
    %1579 = vmatpush1.bf16.msra.mxu0 0
    %1580 = vmatprep.subr.bf16.mxu0 0
    %1581 = vmatpush1.bf16.msra.mxu0 0
    %1582 = vmatprep.subr.bf16.mxu0 0
    %1583 = vmatpush1.bf16.msra.mxu0 0
    %1584 = vmatprep.mubr.bf16.mxu0 0
    %1585 = vmatmul.mubr.bf16.gmra.mrb[0].mxu0 %v1529
    %v1586 = vpop.f32.mrb[0].mxu0
    %v1587 = vadd.f32 0.0, %v1586
    %v1588 = vpop.f32.mrb[0].mxu0
    %v1589 = vpop.f32.mrb[0].mxu0
    %v1590 = vadd.f32 0.0, %v1589
    %v1591 = vpop.f32.mrb[0].mxu0
    %1592 = vmatprep.mubr.bf16.mxu0 0
    %1593 = vmatmul.mubr.bf16.gmra.mrb[0].mxu0 %v1532
    %v1594 = vpop.f32.mrb[0].mxu0
    %v1595 = vadd.f32 0.0, %v1594
    %v1596 = vpop.f32.mrb[0].mxu0
    %v1597 = vpop.f32.mrb[0].mxu0
    %v1598 = vadd.f32 0.0, %v1597
    %v1599 = vpop.f32.mrb[0].mxu0
    %1600 = vmatprep.mubr.bf16.mxu0 0
    %1601 = vmatmul.mubr.bf16.gmra.mrb[0].mxu0 %v1535
    %v1602 = vpop.f32.mrb[0].mxu0
    %v1603 = vadd.f32 0.0, %v1602
    %v1604 = vpop.f32.mrb[0].mxu0
    %v1605 = vpop.f32.mrb[0].mxu0
    %v1606 = vadd.f32 0.0, %v1605
    %v1607 = vpop.f32.mrb[0].mxu0
    %1608 = vmatprep.mubr.bf16.mxu0 0
    %1609 = vmatmul.mubr.bf16.gmra.mrb[0].mxu0 %v1538
    %v1610 = vpop.f32.mrb[0].mxu0
    %v1611 = vadd.f32 0.0, %v1610
    %v1612 = vpop.f32.mrb[0].mxu0
    %v1613 = vpop.f32.mrb[0].mxu0
    %v1614 = vadd.f32 0.0, %v1613
    %v1615 = vpop.f32.mrb[0].mxu0
    %1616 = vmatprep.mubr.bf16.mxu0 0
    %1617 = vmatmul.mubr.bf16.gmra.mrb[0].mxu0 %v1541
    %v1618 = vpop.f32.mrb[0].mxu0
    %v1619 = vadd.f32 0.0, %v1618
    %v1620 = vpop.f32.mrb[0].mxu0
    %v1621 = vpop.f32.mrb[0].mxu0
    %v1622 = vadd.f32 0.0, %v1621
    %v1623 = vpop.f32.mrb[0].mxu0
    %1624 = vmatprep.mubr.bf16.mxu0 0
    %1625 = vmatmul.mubr.bf16.gmra.mrb[0].mxu0 %v1544
    %v1626 = vpop.f32.mrb[0].mxu0
    %v1627 = vadd.f32 0.0, %v1626
    %v1628 = vpop.f32.mrb[0].mxu0
    %v1629 = vpop.f32.mrb[0].mxu0
    %v1630 = vadd.f32 0.0, %v1629
    %v1631 = vpop.f32.mrb[0].mxu0
    %1632 = vmatprep.mubr.bf16.mxu0 0
    %1633 = vmatmul.mubr.bf16.gmra.mrb[0].mxu0 %v1547
    %v1634 = vpop.f32.mrb[0].mxu0
    %v1635 = vadd.f32 0.0, %v1634
    %v1636 = vpop.f32.mrb[0].mxu0
    %v1637 = vpop.f32.mrb[0].mxu0
    %v1638 = vadd.f32 0.0, %v1637
    %v1639 = vpop.f32.mrb[0].mxu0
    %1640 = vmatprep.mubr.bf16.mxu0 0
    %1641 = vmatmul.mubr.bf16.gmra.mrb[0].mxu0 %v1550
    %v1642 = vpop.f32.mrb[0].mxu0
    %v1643 = vadd.f32 0.0, %v1642
    %v1644 = vpop.f32.mrb[0].mxu0
    %v1645 = vpop.f32.mrb[0].mxu0
    %v1646 = vpop.f32.mrb[0].mxu0
    %1647 = vdwg.mxu0
    %v1648 = vadd.f32 %v1473, %v1587
    %v1649 = vadd.f32 %v1474, %v1590
    %v1650 = vadd.f32 %v1475, %v1595
    %v1651 = vadd.f32 %v1476, %v1598
    %v1652 = vadd.f32 %v1477, %v1603
    %v1653 = vadd.f32 %v1478, %v1606
    %v1654 = vadd.f32 %v1479, %v1611
    %v1655 = vadd.f32 %v1480, %v1614
    %v1656 = vadd.f32 %v1481, %v1619
    %v1657 = vadd.f32 %v1482, %v1622
    %v1658 = vadd.f32 %v1483, %v1627
    %v1659 = vadd.f32 %v1484, %v1630
    %v1660 = vadd.f32 %v1485, %v1635
    %v1661 = vadd.f32 %v1486, %v1638
    %v1662 = vadd.f32 %v1487, %v1643
    %v1663 = vld [vmem:[#allocation2 + $0x14] sm:$0xff]
    %v1664 = vld [vmem:[#allocation2 + $0x1c] sm:$0xff]
    %v1665 = vld [vmem:[#allocation2 + $0x24] sm:$0xff]
    %v1666 = vld [vmem:[#allocation2 + $0x2c] sm:$0xff]
    %v1667 = vld [vmem:[#allocation2 + $0x34] sm:$0xff]
    %v1668 = vld [vmem:[#allocation2 + $0x3c] sm:$0xff]
    %v1669 = vld [vmem:[#allocation2 + $0x44] sm:$0xff]
    %v1670 = vld [vmem:[#allocation2 + $0x4c] sm:$0xff]
    %v1671 = vld [vmem:[#allocation2 + $0x54] sm:$0xff]
    %v1672 = vld [vmem:[#allocation2 + $0x5c] sm:$0xff]
    %v1673 = vld [vmem:[#allocation2 + $0x64] sm:$0xff]
    %v1674 = vld [vmem:[#allocation2 + $0x6c] sm:$0xff]
    %v1675 = vld [vmem:[#allocation2 + $0x74] sm:$0xff]
    %v1676 = vld [vmem:[#allocation2 + $0x7c] sm:$0xff]
    %v1677 = vld [vmem:[#allocation2 + $0x84] sm:$0xff]
    %v1678 = vpack.c.bf16 %v1664, %v1663
    %v1679 = vpack.c.bf16 %v1666, %v1665
    %v1680 = vpack.c.bf16 %v1668, %v1667
    %v1681 = vpack.c.bf16 %v1670, %v1669
    %v1682 = vpack.c.bf16 %v1672, %v1671
    %v1683 = vpack.c.bf16 %v1674, %v1673
    %v1684 = vpack.c.bf16 %v1676, %v1675
    %v1685 = vpack.c.bf16 %v1677, %v1677
    %s1686 = scalar_lea.vmem [#allocation9], 48
    %v1687 = vld [vmem:[%s1686] sm:$0xf]
    %v1688 = vld [vmem:[%s1686 + $0x4] sm:$0xf]
    %v1689 = vld [vmem:[%s1686 + $0x8] sm:$0xf]
    %v1690 = vld [vmem:[%s1686 + $0xc] sm:$0xf]
    %v1695 = vunpack.c.l.b16 %v1687
    %v1696 = vunpack.c.l.b16 %v1688
    %v1697 = vunpack.c.l.b16 %v1689
    %v1698 = vunpack.c.l.b16 %v1690
    %v1699 = vpack.c.b16 %v1696, %v1695
    %v1700 = vpack.c.b16 %v1698, %v1697
    %v1704 = vsel %vm574, %v1678, 0
    %v1707 = vsel %vm574, %v1679, 0
    %v1710 = vsel %vm574, %v1680, 0
    %v1713 = vsel %vm574, %v1681, 0
    %v1716 = vsel %vm574, %v1682, 0
    %v1719 = vsel %vm574, %v1683, 0
    %v1722 = vsel %vm574, %v1684, 0
    %v1725 = vsel %vm574, %v1685, 0
    %1727 = vmatprep.subr.bf16.mxu0 0
    %1728 = vmatpush1.bf16.msra.mxu0 %v1699
    %1729 = vmatprep.subr.bf16.mxu0 0
    %1730 = vmatpush1.bf16.msra.mxu0 %v1700
    %1731 = vmatprep.subr.bf16.mxu0 0
    %1732 = vmatpush1.bf16.msra.mxu0 0
    %1733 = vmatprep.subr.bf16.mxu0 0
    %1734 = vmatpush1.bf16.msra.mxu0 0
    %1735 = vmatprep.subr.bf16.mxu0 0
    %1736 = vmatpush1.bf16.msra.mxu0 0
    %1737 = vmatprep.subr.bf16.mxu0 0
    %1738 = vmatpush1.bf16.msra.mxu0 0
    %1739 = vmatprep.subr.bf16.mxu0 0
    %1740 = vmatpush1.bf16.msra.mxu0 0
    %1741 = vmatprep.subr.bf16.mxu0 0
    %1742 = vmatpush1.bf16.msra.mxu0 0
    %1743 = vmatprep.subr.bf16.mxu0 0
    %1744 = vmatpush1.bf16.msra.mxu0 0
    %1745 = vmatprep.subr.bf16.mxu0 0
    %1746 = vmatpush1.bf16.msra.mxu0 0
    %1747 = vmatprep.subr.bf16.mxu0 0
    %1748 = vmatpush1.bf16.msra.mxu0 0
    %1749 = vmatprep.subr.bf16.mxu0 0
    %1750 = vmatpush1.bf16.msra.mxu0 0
    %1751 = vmatprep.subr.bf16.mxu0 0
    %1752 = vmatpush1.bf16.msra.mxu0 0
    %1753 = vmatprep.subr.bf16.mxu0 0
    %1754 = vmatpush1.bf16.msra.mxu0 0
    %1755 = vmatprep.subr.bf16.mxu0 0
    %1756 = vmatpush1.bf16.msra.mxu0 0
    %1757 = vmatprep.subr.bf16.mxu0 0
    %1758 = vmatpush1.bf16.msra.mxu0 0
    %1759 = vmatprep.mubr.bf16.mxu0 0
    %1760 = vmatmul.mubr.bf16.gmra.mrb[0].mxu0 %v1704
    %v1761 = vpop.f32.mrb[0].mxu0
    %v1762 = vadd.f32 0.0, %v1761
    %v1763 = vpop.f32.mrb[0].mxu0
    %v1764 = vpop.f32.mrb[0].mxu0
    %v1765 = vadd.f32 0.0, %v1764
    %v1766 = vpop.f32.mrb[0].mxu0
    %1767 = vmatprep.mubr.bf16.mxu0 0
    %1768 = vmatmul.mubr.bf16.gmra.mrb[0].mxu0 %v1707
    %v1769 = vpop.f32.mrb[0].mxu0
    %v1770 = vadd.f32 0.0, %v1769
    %v1771 = vpop.f32.mrb[0].mxu0
    %v1772 = vpop.f32.mrb[0].mxu0
    %v1773 = vadd.f32 0.0, %v1772
    %v1774 = vpop.f32.mrb[0].mxu0
    %1775 = vmatprep.mubr.bf16.mxu0 0
    %1776 = vmatmul.mubr.bf16.gmra.mrb[0].mxu0 %v1710
    %v1777 = vpop.f32.mrb[0].mxu0
    %v1778 = vadd.f32 0.0, %v1777
    %v1779 = vpop.f32.mrb[0].mxu0
    %v1780 = vpop.f32.mrb[0].mxu0
    %v1781 = vadd.f32 0.0, %v1780
    %v1782 = vpop.f32.mrb[0].mxu0
    %1783 = vmatprep.mubr.bf16.mxu0 0
    %1784 = vmatmul.mubr.bf16.gmra.mrb[0].mxu0 %v1713
    %v1785 = vpop.f32.mrb[0].mxu0
    %v1786 = vadd.f32 0.0, %v1785
    %v1787 = vpop.f32.mrb[0].mxu0
    %v1788 = vpop.f32.mrb[0].mxu0
    %v1789 = vadd.f32 0.0, %v1788
    %v1790 = vpop.f32.mrb[0].mxu0
    %1791 = vmatprep.mubr.bf16.mxu0 0
    %1792 = vmatmul.mubr.bf16.gmra.mrb[0].mxu0 %v1716
    %v1793 = vpop.f32.mrb[0].mxu0
    %v1794 = vadd.f32 0.0, %v1793
    %v1795 = vpop.f32.mrb[0].mxu0
    %v1796 = vpop.f32.mrb[0].mxu0
    %v1797 = vadd.f32 0.0, %v1796
    %v1798 = vpop.f32.mrb[0].mxu0
    %1799 = vmatprep.mubr.bf16.mxu0 0
    %1800 = vmatmul.mubr.bf16.gmra.mrb[0].mxu0 %v1719
    %v1801 = vpop.f32.mrb[0].mxu0
    %v1802 = vadd.f32 0.0, %v1801
    %v1803 = vpop.f32.mrb[0].mxu0
    %v1804 = vpop.f32.mrb[0].mxu0
    %v1805 = vadd.f32 0.0, %v1804
    %v1806 = vpop.f32.mrb[0].mxu0
    %1807 = vmatprep.mubr.bf16.mxu0 0
    %1808 = vmatmul.mubr.bf16.gmra.mrb[0].mxu0 %v1722
    %v1809 = vpop.f32.mrb[0].mxu0
    %v1810 = vadd.f32 0.0, %v1809
    %v1811 = vpop.f32.mrb[0].mxu0
    %v1812 = vpop.f32.mrb[0].mxu0
    %v1813 = vadd.f32 0.0, %v1812
    %v1814 = vpop.f32.mrb[0].mxu0
    %1815 = vmatprep.mubr.bf16.mxu0 0
    %1816 = vmatmul.mubr.bf16.gmra.mrb[0].mxu0 %v1725
    %v1817 = vpop.f32.mrb[0].mxu0
    %v1818 = vadd.f32 0.0, %v1817
    %v1819 = vpop.f32.mrb[0].mxu0
    %v1820 = vpop.f32.mrb[0].mxu0
    %v1821 = vpop.f32.mrb[0].mxu0
    %1822 = vdwg.mxu0
    %v1823 = vadd.f32 %v1648, %v1762
    %v1824 = vadd.f32 %v1649, %v1765
    %v1825 = vadd.f32 %v1650, %v1770
    %v1826 = vadd.f32 %v1651, %v1773
    %v1827 = vadd.f32 %v1652, %v1778
    %v1828 = vadd.f32 %v1653, %v1781
    %v1829 = vadd.f32 %v1654, %v1786
    %v1830 = vadd.f32 %v1655, %v1789
    %v1831 = vadd.f32 %v1656, %v1794
    %v1832 = vadd.f32 %v1657, %v1797
    %v1833 = vadd.f32 %v1658, %v1802
    %v1834 = vadd.f32 %v1659, %v1805
    %v1835 = vadd.f32 %v1660, %v1810
    %v1836 = vadd.f32 %v1661, %v1813
    %v1837 = vadd.f32 %v1662, %v1818
    %v1838 = vld [vmem:[#allocation3 + $0x14] sm:$0xff]
    %v1839 = vld [vmem:[#allocation3 + $0x1c] sm:$0xff]
    %v1840 = vld [vmem:[#allocation3 + $0x24] sm:$0xff]
    %v1841 = vld [vmem:[#allocation3 + $0x2c] sm:$0xff]
    %v1842 = vld [vmem:[#allocation3 + $0x34] sm:$0xff]
    %v1843 = vld [vmem:[#allocation3 + $0x3c] sm:$0xff]
    %v1844 = vld [vmem:[#allocation3 + $0x44] sm:$0xff]
    %v1845 = vld [vmem:[#allocation3 + $0x4c] sm:$0xff]
    %v1846 = vld [vmem:[#allocation3 + $0x54] sm:$0xff]
    %v1847 = vld [vmem:[#allocation3 + $0x5c] sm:$0xff]
    %v1848 = vld [vmem:[#allocation3 + $0x64] sm:$0xff]
    %v1849 = vld [vmem:[#allocation3 + $0x6c] sm:$0xff]
    %v1850 = vld [vmem:[#allocation3 + $0x74] sm:$0xff]
    %v1851 = vld [vmem:[#allocation3 + $0x7c] sm:$0xff]
    %v1852 = vld [vmem:[#allocation3 + $0x84] sm:$0xff]
    %v1853 = vpack.c.bf16 %v1839, %v1838
    %v1854 = vpack.c.bf16 %v1841, %v1840
    %v1855 = vpack.c.bf16 %v1843, %v1842
    %v1856 = vpack.c.bf16 %v1845, %v1844
    %v1857 = vpack.c.bf16 %v1847, %v1846
    %v1858 = vpack.c.bf16 %v1849, %v1848
    %v1859 = vpack.c.bf16 %v1851, %v1850
    %v1860 = vpack.c.bf16 %v1852, %v1852
    %s1861 = scalar_lea.vmem [#allocation10], 48
    %v1862 = vld [vmem:[%s1861] sm:$0xf]
    %v1863 = vld [vmem:[%s1861 + $0x4] sm:$0xf]
    %v1864 = vld [vmem:[%s1861 + $0x8] sm:$0xf]
    %v1865 = vld [vmem:[%s1861 + $0xc] sm:$0xf]
    %v1870 = vunpack.c.l.b16 %v1862
    %v1871 = vunpack.c.l.b16 %v1863
    %v1872 = vunpack.c.l.b16 %v1864
    %v1873 = vunpack.c.l.b16 %v1865
    %v1874 = vpack.c.b16 %v1871, %v1870
    %v1875 = vpack.c.b16 %v1873, %v1872
    %v1879 = vsel %vm574, %v1853, 0
    %v1882 = vsel %vm574, %v1854, 0
    %v1885 = vsel %vm574, %v1855, 0
    %v1888 = vsel %vm574, %v1856, 0
    %v1891 = vsel %vm574, %v1857, 0
    %v1894 = vsel %vm574, %v1858, 0
    %v1897 = vsel %vm574, %v1859, 0
    %v1900 = vsel %vm574, %v1860, 0
    %1902 = vmatprep.subr.bf16.mxu0 0
    %1903 = vmatpush1.bf16.msra.mxu0 %v1874
    %1904 = vmatprep.subr.bf16.mxu0 0
    %1905 = vmatpush1.bf16.msra.mxu0 %v1875
    %1906 = vmatprep.subr.bf16.mxu0 0
    %1907 = vmatpush1.bf16.msra.mxu0 0
    %1908 = vmatprep.subr.bf16.mxu0 0
    %1909 = vmatpush1.bf16.msra.mxu0 0
    %1910 = vmatprep.subr.bf16.mxu0 0
    %1911 = vmatpush1.bf16.msra.mxu0 0
    %1912 = vmatprep.subr.bf16.mxu0 0
    %1913 = vmatpush1.bf16.msra.mxu0 0
    %1914 = vmatprep.subr.bf16.mxu0 0
    %1915 = vmatpush1.bf16.msra.mxu0 0
    %1916 = vmatprep.subr.bf16.mxu0 0
    %1917 = vmatpush1.bf16.msra.mxu0 0
    %1918 = vmatprep.subr.bf16.mxu0 0
    %1919 = vmatpush1.bf16.msra.mxu0 0
    %1920 = vmatprep.subr.bf16.mxu0 0
    %1921 = vmatpush1.bf16.msra.mxu0 0
    %1922 = vmatprep.subr.bf16.mxu0 0
    %1923 = vmatpush1.bf16.msra.mxu0 0
    %1924 = vmatprep.subr.bf16.mxu0 0
    %1925 = vmatpush1.bf16.msra.mxu0 0
    %1926 = vmatprep.subr.bf16.mxu0 0
    %1927 = vmatpush1.bf16.msra.mxu0 0
    %1928 = vmatprep.subr.bf16.mxu0 0
    %1929 = vmatpush1.bf16.msra.mxu0 0
    %1930 = vmatprep.subr.bf16.mxu0 0
    %1931 = vmatpush1.bf16.msra.mxu0 0
    %1932 = vmatprep.subr.bf16.mxu0 0
    %1933 = vmatpush1.bf16.msra.mxu0 0
    %1934 = vmatprep.mubr.bf16.mxu0 0
    %1935 = vmatmul.mubr.bf16.gmra.mrb[0].mxu0 %v1879
    %v1936 = vpop.f32.mrb[0].mxu0
    %v1937 = vadd.f32 0.0, %v1936
    %v1938 = vpop.f32.mrb[0].mxu0
    %v1939 = vpop.f32.mrb[0].mxu0
    %v1940 = vadd.f32 0.0, %v1939
    %v1941 = vpop.f32.mrb[0].mxu0
    %1942 = vmatprep.mubr.bf16.mxu0 0
    %1943 = vmatmul.mubr.bf16.gmra.mrb[0].mxu0 %v1882
    %v1944 = vpop.f32.mrb[0].mxu0
    %v1945 = vadd.f32 0.0, %v1944
    %v1946 = vpop.f32.mrb[0].mxu0
    %v1947 = vpop.f32.mrb[0].mxu0
    %v1948 = vadd.f32 0.0, %v1947
    %v1949 = vpop.f32.mrb[0].mxu0
    %1950 = vmatprep.mubr.bf16.mxu0 0
    %1951 = vmatmul.mubr.bf16.gmra.mrb[0].mxu0 %v1885
    %v1952 = vpop.f32.mrb[0].mxu0
    %v1953 = vadd.f32 0.0, %v1952
    %v1954 = vpop.f32.mrb[0].mxu0
    %v1955 = vpop.f32.mrb[0].mxu0
    %v1956 = vadd.f32 0.0, %v1955
    %v1957 = vpop.f32.mrb[0].mxu0
    %1958 = vmatprep.mubr.bf16.mxu0 0
    %1959 = vmatmul.mubr.bf16.gmra.mrb[0].mxu0 %v1888
    %v1960 = vpop.f32.mrb[0].mxu0
    %v1961 = vadd.f32 0.0, %v1960
    %v1962 = vpop.f32.mrb[0].mxu0
    %v1963 = vpop.f32.mrb[0].mxu0
    %v1964 = vadd.f32 0.0, %v1963
    %v1965 = vpop.f32.mrb[0].mxu0
    %1966 = vmatprep.mubr.bf16.mxu0 0
    %1967 = vmatmul.mubr.bf16.gmra.mrb[0].mxu0 %v1891
    %v1968 = vpop.f32.mrb[0].mxu0
    %v1969 = vadd.f32 0.0, %v1968
    %v1970 = vpop.f32.mrb[0].mxu0
    %v1971 = vpop.f32.mrb[0].mxu0
    %v1972 = vadd.f32 0.0, %v1971
    %v1973 = vpop.f32.mrb[0].mxu0
    %1974 = vmatprep.mubr.bf16.mxu0 0
    %1975 = vmatmul.mubr.bf16.gmra.mrb[0].mxu0 %v1894
    %v1976 = vpop.f32.mrb[0].mxu0
    %v1977 = vadd.f32 0.0, %v1976
    %v1978 = vpop.f32.mrb[0].mxu0
    %v1979 = vpop.f32.mrb[0].mxu0
    %v1980 = vadd.f32 0.0, %v1979
    %v1981 = vpop.f32.mrb[0].mxu0
    %1982 = vmatprep.mubr.bf16.mxu0 0
    %1983 = vmatmul.mubr.bf16.gmra.mrb[0].mxu0 %v1897
    %v1984 = vpop.f32.mrb[0].mxu0
    %v1985 = vadd.f32 0.0, %v1984
    %v1986 = vpop.f32.mrb[0].mxu0
    %v1987 = vpop.f32.mrb[0].mxu0
    %v1988 = vadd.f32 0.0, %v1987
    %v1989 = vpop.f32.mrb[0].mxu0
    %1990 = vmatprep.mubr.bf16.mxu0 0
    %1991 = vmatmul.mubr.bf16.gmra.mrb[0].mxu0 %v1900
    %v1992 = vpop.f32.mrb[0].mxu0
    %v1993 = vadd.f32 0.0, %v1992
    %v1994 = vpop.f32.mrb[0].mxu0
    %v1995 = vpop.f32.mrb[0].mxu0
    %v1996 = vpop.f32.mrb[0].mxu0
    %1997 = vdwg.mxu0
    %v1998 = vadd.f32 %v1823, %v1937
    %v1999 = vadd.f32 %v1824, %v1940
    %v2000 = vadd.f32 %v1825, %v1945
    %v2001 = vadd.f32 %v1826, %v1948
    %v2002 = vadd.f32 %v1827, %v1953
    %v2003 = vadd.f32 %v1828, %v1956
    %v2004 = vadd.f32 %v1829, %v1961
    %v2005 = vadd.f32 %v1830, %v1964
    %v2006 = vadd.f32 %v1831, %v1969
    %v2007 = vadd.f32 %v1832, %v1972
    %v2008 = vadd.f32 %v1833, %v1977
    %v2009 = vadd.f32 %v1834, %v1980
    %v2010 = vadd.f32 %v1835, %v1985
    %v2011 = vadd.f32 %v1836, %v1988
    %v2012 = vadd.f32 %v1837, %v1993
    %v2013 = vld [vmem:[#allocation12] sm:$0x1]
    %v2015 = vlaneseq
    %v2016 = vshrl.u32 %v2015, 7
    %v2017 = vsub.s32 0, %v2016
    %v2018 = vrot.slane %v2013, %v2017
    %v2020 = vadd.f32 %v1998, %v2018
    %v2021 = vadd.f32 %v1999, %v2018
    %v2022 = vadd.f32 %v2000, %v2018
    %v2023 = vadd.f32 %v2001, %v2018
    %v2024 = vadd.f32 %v2002, %v2018
    %v2025 = vadd.f32 %v2003, %v2018
    %v2026 = vadd.f32 %v2004, %v2018
    %v2027 = vadd.f32 %v2005, %v2018
    %v2028 = vadd.f32 %v2006, %v2018
    %v2029 = vadd.f32 %v2007, %v2018
    %v2030 = vadd.f32 %v2008, %v2018
    %v2031 = vadd.f32 %v2009, %v2018
    %v2032 = vadd.f32 %v2010, %v2018
    %v2033 = vadd.f32 %v2011, %v2018
    %v2034 = vadd.f32 %v2012, %v2018
    %v2035 = vmax.f32 %v2020, 0.0
    %v2036 = vmax.f32 %v2021, 0.0
    %v2037 = vmax.f32 %v2022, 0.0
    %v2038 = vmax.f32 %v2023, 0.0
    %v2039 = vmax.f32 %v2024, 0.0
    %v2040 = vmax.f32 %v2025, 0.0
    %v2041 = vmax.f32 %v2026, 0.0
    %v2042 = vmax.f32 %v2027, 0.0
    %v2043 = vmax.f32 %v2028, 0.0
    %v2044 = vmax.f32 %v2029, 0.0
    %v2045 = vmax.f32 %v2030, 0.0
    %v2046 = vmax.f32 %v2031, 0.0
    %v2047 = vmax.f32 %v2032, 0.0
    %v2048 = vmax.f32 %v2033, 0.0
    %v2049 = vmax.f32 %v2034, 0.0
    %v2050 = vpack.c.bf16 %v2035, %v2035
    %v2051 = vld [vmem:[#allocation13] sm:$0xff]
    %v2052 = vld [vmem:[#allocation13 + $0x8] sm:$0xff]
    %v2053 = vld [vmem:[#allocation13 + $0x10] sm:$0xff]
    %v2054 = vld [vmem:[#allocation13 + $0x18] sm:$0xff]
    %v2055 = vld [vmem:[#allocation13 + $0x20] sm:$0xff]
    %v2056 = vld [vmem:[#allocation13 + $0x28] sm:$0xff]
    %v2057 = vld [vmem:[#allocation13 + $0x30] sm:$0xff]
    %v2058 = vld [vmem:[#allocation13 + $0x38] sm:$0xff]
    %s2059 = scalar_lea.vmem [#allocation13], 64
    %v2060 = vld [vmem:[%s2059] sm:$0xff]
    %v2061 = vld [vmem:[%s2059 + $0x8] sm:$0xff]
    %v2062 = vld [vmem:[%s2059 + $0x10] sm:$0xff]
    %v2063 = vld [vmem:[%s2059 + $0x18] sm:$0xff]
    %v2064 = vld [vmem:[%s2059 + $0x20] sm:$0xff]
    %v2065 = vld [vmem:[%s2059 + $0x28] sm:$0xff]
    %v2066 = vld [vmem:[%s2059 + $0x30] sm:$0xff]
    %v2067 = vld [vmem:[%s2059 + $0x38] sm:$0xff]
    %v2069 = vrot.slane %v2050, 1
    %v2078 = vunpack.c.l.b16 %v2060
    %v2079 = vunpack.c.h.b16 %v2060
    %v2080 = vunpack.c.l.b16 %v2061
    %v2081 = vunpack.c.h.b16 %v2061
    %v2082 = vunpack.c.l.b16 %v2062
    %v2083 = vunpack.c.h.b16 %v2062
    %v2084 = vunpack.c.l.b16 %v2063
    %v2085 = vunpack.c.h.b16 %v2063
    %v2086 = vunpack.c.l.b16 %v2064
    %v2087 = vunpack.c.h.b16 %v2064
    %v2088 = vunpack.c.l.b16 %v2065
    %v2089 = vunpack.c.h.b16 %v2065
    %v2090 = vunpack.c.l.b16 %v2066
    %v2091 = vunpack.c.h.b16 %v2066
    %v2092 = vunpack.c.l.b16 %v2067
    %v2093 = vunpack.c.h.b16 %v2067
    %v2094 = vpack.c.b16 %v2082, %v2078
    %v2095 = vpack.c.b16 %v2083, %v2079
    %v2096 = vpack.c.b16 %v2084, %v2080
    %v2097 = vpack.c.b16 %v2085, %v2081
    %v2098 = vpack.c.b16 %v2090, %v2086
    %v2099 = vpack.c.b16 %v2091, %v2087
    %v2100 = vpack.c.b16 %v2092, %v2088
    %v2101 = vpack.c.b16 %v2093, %v2089
    %v2111 = vsel %vm574, %v2069, 0
    %2113 = vmatprep.subr.bf16.mxu0 %v2095
    %2114 = vmatpush1.bf16.msra.mxu0 %v2094
    %2115 = vmatprep.subr.bf16.mxu0 %v2099
    %2116 = vmatpush1.bf16.msra.mxu0 %v2098
    %2117 = vmatprep.subr.bf16.mxu0 0
    %2118 = vmatpush1.bf16.msra.mxu0 0
    %2119 = vmatprep.subr.bf16.mxu0 0
    %2120 = vmatpush1.bf16.msra.mxu0 0
    %2121 = vmatprep.subr.bf16.mxu0 0
    %2122 = vmatpush1.bf16.msra.mxu0 0
    %2123 = vmatprep.subr.bf16.mxu0 0
    %2124 = vmatpush1.bf16.msra.mxu0 0
    %2125 = vmatprep.subr.bf16.mxu0 0
    %2126 = vmatpush1.bf16.msra.mxu0 0
    %2127 = vmatprep.subr.bf16.mxu0 0
    %2128 = vmatpush1.bf16.msra.mxu0 0
    %2129 = vmatprep.subr.bf16.mxu0 0
    %2130 = vmatpush1.bf16.msra.mxu0 0
    %2131 = vmatprep.subr.bf16.mxu0 0
    %2132 = vmatpush1.bf16.msra.mxu0 0
    %2133 = vmatprep.subr.bf16.mxu0 0
    %2134 = vmatpush1.bf16.msra.mxu0 0
    %2135 = vmatprep.subr.bf16.mxu0 0
    %2136 = vmatpush1.bf16.msra.mxu0 0
    %2137 = vmatprep.subr.bf16.mxu0 0
    %2138 = vmatpush1.bf16.msra.mxu0 0
    %2139 = vmatprep.subr.bf16.mxu0 0
    %2140 = vmatpush1.bf16.msra.mxu0 0
    %2141 = vmatprep.subr.bf16.mxu0 0
    %2142 = vmatpush1.bf16.msra.mxu0 0
    %2143 = vmatprep.subr.bf16.mxu0 0
    %2144 = vmatpush1.bf16.msra.mxu0 0
    %2145 = vmatprep.mubr.bf16.mxu0 0
    %2146 = vmatmul.mubr.bf16.gmra.mrb[0].mxu0 %v2111
    %v2147 = vpop.f32.mrb[0].mxu0
    %v2148 = vadd.f32 0.0, %v2147
    %v2149 = vpop.f32.mrb[0].mxu0
    %v2150 = vadd.f32 0.0, %v2149
    %v2151 = vpop.f32.mrb[0].mxu0
    %v2152 = vpop.f32.mrb[0].mxu0
    %2153 = vdwg.mxu0
    %2154 = vmatprep.subr.bf16.mxu0 %v2097
    %2155 = vmatpush1.bf16.msra.mxu0 %v2096
    %2156 = vmatprep.subr.bf16.mxu0 %v2101
    %2157 = vmatpush1.bf16.msra.mxu0 %v2100
    %2158 = vmatprep.subr.bf16.mxu0 0
    %2159 = vmatpush1.bf16.msra.mxu0 0
    %2160 = vmatprep.subr.bf16.mxu0 0
    %2161 = vmatpush1.bf16.msra.mxu0 0
    %2162 = vmatprep.subr.bf16.mxu0 0
    %2163 = vmatpush1.bf16.msra.mxu0 0
    %2164 = vmatprep.subr.bf16.mxu0 0
    %2165 = vmatpush1.bf16.msra.mxu0 0
    %2166 = vmatprep.subr.bf16.mxu0 0
    %2167 = vmatpush1.bf16.msra.mxu0 0
    %2168 = vmatprep.subr.bf16.mxu0 0
    %2169 = vmatpush1.bf16.msra.mxu0 0
    %2170 = vmatprep.subr.bf16.mxu0 0
    %2171 = vmatpush1.bf16.msra.mxu0 0
    %2172 = vmatprep.subr.bf16.mxu0 0
    %2173 = vmatpush1.bf16.msra.mxu0 0
    %2174 = vmatprep.subr.bf16.mxu0 0
    %2175 = vmatpush1.bf16.msra.mxu0 0
    %2176 = vmatprep.subr.bf16.mxu0 0
    %2177 = vmatpush1.bf16.msra.mxu0 0
    %2178 = vmatprep.subr.bf16.mxu0 0
    %2179 = vmatpush1.bf16.msra.mxu0 0
    %2180 = vmatprep.subr.bf16.mxu0 0
    %2181 = vmatpush1.bf16.msra.mxu0 0
    %2182 = vmatprep.subr.bf16.mxu0 0
    %2183 = vmatpush1.bf16.msra.mxu0 0
    %2184 = vmatprep.subr.bf16.mxu0 0
    %2185 = vmatpush1.bf16.msra.mxu0 0
    %2186 = vmatprep.mubr.bf16.mxu0 0
    %2187 = vmatmul.mubr.bf16.gmra.mrb[0].mxu0 %v2111
    %v2188 = vpop.f32.mrb[0].mxu0
    %v2189 = vadd.f32 0.0, %v2188
    %v2190 = vpop.f32.mrb[0].mxu0
    %v2191 = vadd.f32 0.0, %v2190
    %v2192 = vpop.f32.mrb[0].mxu0
    %v2193 = vpop.f32.mrb[0].mxu0
    %2194 = vdwg.mxu0
    %v2203 = vunpack.c.l.b16 %v2051
    %v2204 = vunpack.c.h.b16 %v2051
    %v2205 = vunpack.c.l.b16 %v2052
    %v2206 = vunpack.c.h.b16 %v2052
    %v2207 = vunpack.c.l.b16 %v2053
    %v2208 = vunpack.c.h.b16 %v2053
    %v2209 = vunpack.c.l.b16 %v2054
    %v2210 = vunpack.c.h.b16 %v2054
    %v2211 = vunpack.c.l.b16 %v2055
    %v2212 = vunpack.c.h.b16 %v2055
    %v2213 = vunpack.c.l.b16 %v2056
    %v2214 = vunpack.c.h.b16 %v2056
    %v2215 = vunpack.c.l.b16 %v2057
    %v2216 = vunpack.c.h.b16 %v2057
    %v2217 = vunpack.c.l.b16 %v2058
    %v2218 = vunpack.c.h.b16 %v2058
    %v2219 = vpack.c.b16 %v2207, %v2203
    %v2220 = vpack.c.b16 %v2208, %v2204
    %v2221 = vpack.c.b16 %v2209, %v2205
    %v2222 = vpack.c.b16 %v2210, %v2206
    %v2223 = vpack.c.b16 %v2215, %v2211
    %v2224 = vpack.c.b16 %v2216, %v2212
    %v2225 = vpack.c.b16 %v2217, %v2213
    %v2226 = vpack.c.b16 %v2218, %v2214
    %v2236 = vsel %vm574, %v2050, 0
    %2238 = vmatprep.subr.bf16.mxu0 %v2220
    %2239 = vmatpush1.bf16.msra.mxu0 %v2219
    %2240 = vmatprep.subr.bf16.mxu0 %v2224
    %2241 = vmatpush1.bf16.msra.mxu0 %v2223
    %2242 = vmatprep.subr.bf16.mxu0 0
    %2243 = vmatpush1.bf16.msra.mxu0 0
    %2244 = vmatprep.subr.bf16.mxu0 0
    %2245 = vmatpush1.bf16.msra.mxu0 0
    %2246 = vmatprep.subr.bf16.mxu0 0
    %2247 = vmatpush1.bf16.msra.mxu0 0
    %2248 = vmatprep.subr.bf16.mxu0 0
    %2249 = vmatpush1.bf16.msra.mxu0 0
    %2250 = vmatprep.subr.bf16.mxu0 0
    %2251 = vmatpush1.bf16.msra.mxu0 0
    %2252 = vmatprep.subr.bf16.mxu0 0
    %2253 = vmatpush1.bf16.msra.mxu0 0
    %2254 = vmatprep.subr.bf16.mxu0 0
    %2255 = vmatpush1.bf16.msra.mxu0 0
    %2256 = vmatprep.subr.bf16.mxu0 0
    %2257 = vmatpush1.bf16.msra.mxu0 0
    %2258 = vmatprep.subr.bf16.mxu0 0
    %2259 = vmatpush1.bf16.msra.mxu0 0
    %2260 = vmatprep.subr.bf16.mxu0 0
    %2261 = vmatpush1.bf16.msra.mxu0 0
    %2262 = vmatprep.subr.bf16.mxu0 0
    %2263 = vmatpush1.bf16.msra.mxu0 0
    %2264 = vmatprep.subr.bf16.mxu0 0
    %2265 = vmatpush1.bf16.msra.mxu0 0
    %2266 = vmatprep.subr.bf16.mxu0 0
    %2267 = vmatpush1.bf16.msra.mxu0 0
    %2268 = vmatprep.subr.bf16.mxu0 0
    %2269 = vmatpush1.bf16.msra.mxu0 0
    %2270 = vmatprep.mubr.bf16.mxu0 0
    %2271 = vmatmul.mubr.bf16.gmra.mrb[0].mxu0 %v2236
    %v2272 = vpop.f32.mrb[0].mxu0
    %v2273 = vadd.f32 %v2148, %v2272
    %v2274 = vpop.f32.mrb[0].mxu0
    %v2275 = vadd.f32 %v2150, %v2274
    %v2276 = vpop.f32.mrb[0].mxu0
    %v2277 = vpop.f32.mrb[0].mxu0
    %2278 = vdwg.mxu0
    %2279 = vmatprep.subr.bf16.mxu0 %v2222
    %2280 = vmatpush1.bf16.msra.mxu0 %v2221
    %2281 = vmatprep.subr.bf16.mxu0 %v2226
    %2282 = vmatpush1.bf16.msra.mxu0 %v2225
    %2283 = vmatprep.subr.bf16.mxu0 0
    %2284 = vmatpush1.bf16.msra.mxu0 0
    %2285 = vmatprep.subr.bf16.mxu0 0
    %2286 = vmatpush1.bf16.msra.mxu0 0
    %2287 = vmatprep.subr.bf16.mxu0 0
    %2288 = vmatpush1.bf16.msra.mxu0 0
    %2289 = vmatprep.subr.bf16.mxu0 0
    %2290 = vmatpush1.bf16.msra.mxu0 0
    %2291 = vmatprep.subr.bf16.mxu0 0
    %2292 = vmatpush1.bf16.msra.mxu0 0
    %2293 = vmatprep.subr.bf16.mxu0 0
    %2294 = vmatpush1.bf16.msra.mxu0 0
    %2295 = vmatprep.subr.bf16.mxu0 0
    %2296 = vmatpush1.bf16.msra.mxu0 0
    %2297 = vmatprep.subr.bf16.mxu0 0
    %2298 = vmatpush1.bf16.msra.mxu0 0
    %2299 = vmatprep.subr.bf16.mxu0 0
    %2300 = vmatpush1.bf16.msra.mxu0 0
    %2301 = vmatprep.subr.bf16.mxu0 0
    %2302 = vmatpush1.bf16.msra.mxu0 0
    %2303 = vmatprep.subr.bf16.mxu0 0
    %2304 = vmatpush1.bf16.msra.mxu0 0
    %2305 = vmatprep.subr.bf16.mxu0 0
    %2306 = vmatpush1.bf16.msra.mxu0 0
    %2307 = vmatprep.subr.bf16.mxu0 0
    %2308 = vmatpush1.bf16.msra.mxu0 0
    %2309 = vmatprep.subr.bf16.mxu0 0
    %2310 = vmatpush1.bf16.msra.mxu0 0
    %2311 = vmatprep.mubr.bf16.mxu0 0
    %2312 = vmatmul.mubr.bf16.gmra.mrb[0].mxu0 %v2236
    %v2313 = vpop.f32.mrb[0].mxu0
    %v2314 = vadd.f32 %v2189, %v2313
    %v2315 = vpop.f32.mrb[0].mxu0
    %v2316 = vadd.f32 %v2191, %v2315
    %v2317 = vpop.f32.mrb[0].mxu0
    %v2318 = vpop.f32.mrb[0].mxu0
    %2319 = vdwg.mxu0
    %s2320 = scalar_lea.vmem [#allocation13], 128
    %v2321 = vld [vmem:[%s2320] sm:$0xff]
    %v2322 = vld [vmem:[%s2320 + $0x8] sm:$0xff]
    %v2323 = vld [vmem:[%s2320 + $0x10] sm:$0xff]
    %v2324 = vld [vmem:[%s2320 + $0x18] sm:$0xff]
    %v2325 = vld [vmem:[%s2320 + $0x20] sm:$0xff]
    %v2326 = vld [vmem:[%s2320 + $0x28] sm:$0xff]
    %v2327 = vld [vmem:[%s2320 + $0x30] sm:$0xff]
    %v2328 = vld [vmem:[%s2320 + $0x38] sm:$0xff]
    %v2329 = vrot.slane %v2050, 2
    %v2338 = vunpack.c.l.b16 %v2321
    %v2339 = vunpack.c.h.b16 %v2321
    %v2340 = vunpack.c.l.b16 %v2322
    %v2341 = vunpack.c.h.b16 %v2322
    %v2342 = vunpack.c.l.b16 %v2323
    %v2343 = vunpack.c.h.b16 %v2323
    %v2344 = vunpack.c.l.b16 %v2324
    %v2345 = vunpack.c.h.b16 %v2324
    %v2346 = vunpack.c.l.b16 %v2325
    %v2347 = vunpack.c.h.b16 %v2325
    %v2348 = vunpack.c.l.b16 %v2326
    %v2349 = vunpack.c.h.b16 %v2326
    %v2350 = vunpack.c.l.b16 %v2327
    %v2351 = vunpack.c.h.b16 %v2327
    %v2352 = vunpack.c.l.b16 %v2328
    %v2353 = vunpack.c.h.b16 %v2328
    %v2354 = vpack.c.b16 %v2342, %v2338
    %v2355 = vpack.c.b16 %v2343, %v2339
    %v2356 = vpack.c.b16 %v2344, %v2340
    %v2357 = vpack.c.b16 %v2345, %v2341
    %v2358 = vpack.c.b16 %v2350, %v2346
    %v2359 = vpack.c.b16 %v2351, %v2347
    %v2360 = vpack.c.b16 %v2352, %v2348
    %v2361 = vpack.c.b16 %v2353, %v2349
    %v2371 = vsel %vm574, %v2329, 0
    %2373 = vmatprep.subr.bf16.mxu0 %v2355
    %2374 = vmatpush1.bf16.msra.mxu0 %v2354
    %2375 = vmatprep.subr.bf16.mxu0 %v2359
    %2376 = vmatpush1.bf16.msra.mxu0 %v2358
    %2377 = vmatprep.subr.bf16.mxu0 0
    %2378 = vmatpush1.bf16.msra.mxu0 0
    %2379 = vmatprep.subr.bf16.mxu0 0
    %2380 = vmatpush1.bf16.msra.mxu0 0
    %2381 = vmatprep.subr.bf16.mxu0 0
    %2382 = vmatpush1.bf16.msra.mxu0 0
    %2383 = vmatprep.subr.bf16.mxu0 0
    %2384 = vmatpush1.bf16.msra.mxu0 0
    %2385 = vmatprep.subr.bf16.mxu0 0
    %2386 = vmatpush1.bf16.msra.mxu0 0
    %2387 = vmatprep.subr.bf16.mxu0 0
    %2388 = vmatpush1.bf16.msra.mxu0 0
    %2389 = vmatprep.subr.bf16.mxu0 0
    %2390 = vmatpush1.bf16.msra.mxu0 0
    %2391 = vmatprep.subr.bf16.mxu0 0
    %2392 = vmatpush1.bf16.msra.mxu0 0
    %2393 = vmatprep.subr.bf16.mxu0 0
    %2394 = vmatpush1.bf16.msra.mxu0 0
    %2395 = vmatprep.subr.bf16.mxu0 0
    %2396 = vmatpush1.bf16.msra.mxu0 0
    %2397 = vmatprep.subr.bf16.mxu0 0
    %2398 = vmatpush1.bf16.msra.mxu0 0
    %2399 = vmatprep.subr.bf16.mxu0 0
    %2400 = vmatpush1.bf16.msra.mxu0 0
    %2401 = vmatprep.subr.bf16.mxu0 0
    %2402 = vmatpush1.bf16.msra.mxu0 0
    %2403 = vmatprep.subr.bf16.mxu0 0
    %2404 = vmatpush1.bf16.msra.mxu0 0
    %2405 = vmatprep.mubr.bf16.mxu0 0
    %2406 = vmatmul.mubr.bf16.gmra.mrb[0].mxu0 %v2371
    %v2407 = vpop.f32.mrb[0].mxu0
    %v2408 = vadd.f32 0.0, %v2407
    %v2409 = vpop.f32.mrb[0].mxu0
    %v2410 = vadd.f32 0.0, %v2409
    %v2411 = vpop.f32.mrb[0].mxu0
    %v2412 = vpop.f32.mrb[0].mxu0
    %2413 = vdwg.mxu0
    %2414 = vmatprep.subr.bf16.mxu0 %v2357
    %2415 = vmatpush1.bf16.msra.mxu0 %v2356
    %2416 = vmatprep.subr.bf16.mxu0 %v2361
    %2417 = vmatpush1.bf16.msra.mxu0 %v2360
    %2418 = vmatprep.subr.bf16.mxu0 0
    %2419 = vmatpush1.bf16.msra.mxu0 0
    %2420 = vmatprep.subr.bf16.mxu0 0
    %2421 = vmatpush1.bf16.msra.mxu0 0
    %2422 = vmatprep.subr.bf16.mxu0 0
    %2423 = vmatpush1.bf16.msra.mxu0 0
    %2424 = vmatprep.subr.bf16.mxu0 0
    %2425 = vmatpush1.bf16.msra.mxu0 0
    %2426 = vmatprep.subr.bf16.mxu0 0
    %2427 = vmatpush1.bf16.msra.mxu0 0
    %2428 = vmatprep.subr.bf16.mxu0 0
    %2429 = vmatpush1.bf16.msra.mxu0 0
    %2430 = vmatprep.subr.bf16.mxu0 0
    %2431 = vmatpush1.bf16.msra.mxu0 0
    %2432 = vmatprep.subr.bf16.mxu0 0
    %2433 = vmatpush1.bf16.msra.mxu0 0
    %2434 = vmatprep.subr.bf16.mxu0 0
    %2435 = vmatpush1.bf16.msra.mxu0 0
    %2436 = vmatprep.subr.bf16.mxu0 0
    %2437 = vmatpush1.bf16.msra.mxu0 0
    %2438 = vmatprep.subr.bf16.mxu0 0
    %2439 = vmatpush1.bf16.msra.mxu0 0
    %2440 = vmatprep.subr.bf16.mxu0 0
    %2441 = vmatpush1.bf16.msra.mxu0 0
    %2442 = vmatprep.subr.bf16.mxu0 0
    %2443 = vmatpush1.bf16.msra.mxu0 0
    %2444 = vmatprep.subr.bf16.mxu0 0
    %2445 = vmatpush1.bf16.msra.mxu0 0
    %2446 = vmatprep.mubr.bf16.mxu0 0
    %2447 = vmatmul.mubr.bf16.gmra.mrb[0].mxu0 %v2371
    %v2448 = vpop.f32.mrb[0].mxu0
    %v2449 = vadd.f32 0.0, %v2448
    %v2450 = vpop.f32.mrb[0].mxu0
    %v2451 = vadd.f32 0.0, %v2450
    %v2452 = vpop.f32.mrb[0].mxu0
    %v2453 = vpop.f32.mrb[0].mxu0
    %2454 = vdwg.mxu0
    %v2455 = vadd.f32 %v2273, %v2408
    %v2456 = vadd.f32 %v2275, %v2410
    %v2457 = vadd.f32 %v2314, %v2449
    %v2458 = vadd.f32 %v2316, %v2451
    %s2459 = scalar_lea.vmem [#allocation13], 192
    %v2460 = vld [vmem:[%s2459] sm:$0xff]
    %v2461 = vld [vmem:[%s2459 + $0x8] sm:$0xff]
    %v2462 = vld [vmem:[%s2459 + $0x10] sm:$0xff]
    %v2463 = vld [vmem:[%s2459 + $0x18] sm:$0xff]
    %v2464 = vld [vmem:[%s2459 + $0x20] sm:$0xff]
    %v2465 = vld [vmem:[%s2459 + $0x28] sm:$0xff]
    %v2466 = vld [vmem:[%s2459 + $0x30] sm:$0xff]
    %v2467 = vld [vmem:[%s2459 + $0x38] sm:$0xff]
    %v2468 = vrot.slane %v2050, 3
    %v2477 = vunpack.c.l.b16 %v2460
    %v2478 = vunpack.c.h.b16 %v2460
    %v2479 = vunpack.c.l.b16 %v2461
    %v2480 = vunpack.c.h.b16 %v2461
    %v2481 = vunpack.c.l.b16 %v2462
    %v2482 = vunpack.c.h.b16 %v2462
    %v2483 = vunpack.c.l.b16 %v2463
    %v2484 = vunpack.c.h.b16 %v2463
    %v2485 = vunpack.c.l.b16 %v2464
    %v2486 = vunpack.c.h.b16 %v2464
    %v2487 = vunpack.c.l.b16 %v2465
    %v2488 = vunpack.c.h.b16 %v2465
    %v2489 = vunpack.c.l.b16 %v2466
    %v2490 = vunpack.c.h.b16 %v2466
    %v2491 = vunpack.c.l.b16 %v2467
    %v2492 = vunpack.c.h.b16 %v2467
    %v2493 = vpack.c.b16 %v2481, %v2477
    %v2494 = vpack.c.b16 %v2482, %v2478
    %v2495 = vpack.c.b16 %v2483, %v2479
    %v2496 = vpack.c.b16 %v2484, %v2480
    %v2497 = vpack.c.b16 %v2489, %v2485
    %v2498 = vpack.c.b16 %v2490, %v2486
    %v2499 = vpack.c.b16 %v2491, %v2487
    %v2500 = vpack.c.b16 %v2492, %v2488
    %v2510 = vsel %vm574, %v2468, 0
    %2512 = vmatprep.subr.bf16.mxu0 %v2494
    %2513 = vmatpush1.bf16.msra.mxu0 %v2493
    %2514 = vmatprep.subr.bf16.mxu0 %v2498
    %2515 = vmatpush1.bf16.msra.mxu0 %v2497
    %2516 = vmatprep.subr.bf16.mxu0 0
    %2517 = vmatpush1.bf16.msra.mxu0 0
    %2518 = vmatprep.subr.bf16.mxu0 0
    %2519 = vmatpush1.bf16.msra.mxu0 0
    %2520 = vmatprep.subr.bf16.mxu0 0
    %2521 = vmatpush1.bf16.msra.mxu0 0
    %2522 = vmatprep.subr.bf16.mxu0 0
    %2523 = vmatpush1.bf16.msra.mxu0 0
    %2524 = vmatprep.subr.bf16.mxu0 0
    %2525 = vmatpush1.bf16.msra.mxu0 0
    %2526 = vmatprep.subr.bf16.mxu0 0
    %2527 = vmatpush1.bf16.msra.mxu0 0
    %2528 = vmatprep.subr.bf16.mxu0 0
    %2529 = vmatpush1.bf16.msra.mxu0 0
    %2530 = vmatprep.subr.bf16.mxu0 0
    %2531 = vmatpush1.bf16.msra.mxu0 0
    %2532 = vmatprep.subr.bf16.mxu0 0
    %2533 = vmatpush1.bf16.msra.mxu0 0
    %2534 = vmatprep.subr.bf16.mxu0 0
    %2535 = vmatpush1.bf16.msra.mxu0 0
    %2536 = vmatprep.subr.bf16.mxu0 0
    %2537 = vmatpush1.bf16.msra.mxu0 0
    %2538 = vmatprep.subr.bf16.mxu0 0
    %2539 = vmatpush1.bf16.msra.mxu0 0
    %2540 = vmatprep.subr.bf16.mxu0 0
    %2541 = vmatpush1.bf16.msra.mxu0 0
    %2542 = vmatprep.subr.bf16.mxu0 0
    %2543 = vmatpush1.bf16.msra.mxu0 0
    %2544 = vmatprep.mubr.bf16.mxu0 0
    %2545 = vmatmul.mubr.bf16.gmra.mrb[0].mxu0 %v2510
    %v2546 = vpop.f32.mrb[0].mxu0
    %v2547 = vadd.f32 0.0, %v2546
    %v2548 = vpop.f32.mrb[0].mxu0
    %v2549 = vadd.f32 0.0, %v2548
    %v2550 = vpop.f32.mrb[0].mxu0
    %v2551 = vpop.f32.mrb[0].mxu0
    %2552 = vdwg.mxu0
    %2553 = vmatprep.subr.bf16.mxu0 %v2496
    %2554 = vmatpush1.bf16.msra.mxu0 %v2495
    %2555 = vmatprep.subr.bf16.mxu0 %v2500
    %2556 = vmatpush1.bf16.msra.mxu0 %v2499
    %2557 = vmatprep.subr.bf16.mxu0 0
    %2558 = vmatpush1.bf16.msra.mxu0 0
    %2559 = vmatprep.subr.bf16.mxu0 0
    %2560 = vmatpush1.bf16.msra.mxu0 0
    %2561 = vmatprep.subr.bf16.mxu0 0
    %2562 = vmatpush1.bf16.msra.mxu0 0
    %2563 = vmatprep.subr.bf16.mxu0 0
    %2564 = vmatpush1.bf16.msra.mxu0 0
    %2565 = vmatprep.subr.bf16.mxu0 0
    %2566 = vmatpush1.bf16.msra.mxu0 0
    %2567 = vmatprep.subr.bf16.mxu0 0
    %2568 = vmatpush1.bf16.msra.mxu0 0
    %2569 = vmatprep.subr.bf16.mxu0 0
    %2570 = vmatpush1.bf16.msra.mxu0 0
    %2571 = vmatprep.subr.bf16.mxu0 0
    %2572 = vmatpush1.bf16.msra.mxu0 0
    %2573 = vmatprep.subr.bf16.mxu0 0
    %2574 = vmatpush1.bf16.msra.mxu0 0
    %2575 = vmatprep.subr.bf16.mxu0 0
    %2576 = vmatpush1.bf16.msra.mxu0 0
    %2577 = vmatprep.subr.bf16.mxu0 0
    %2578 = vmatpush1.bf16.msra.mxu0 0
    %2579 = vmatprep.subr.bf16.mxu0 0
    %2580 = vmatpush1.bf16.msra.mxu0 0
    %2581 = vmatprep.subr.bf16.mxu0 0
    %2582 = vmatpush1.bf16.msra.mxu0 0
    %2583 = vmatprep.subr.bf16.mxu0 0
    %2584 = vmatpush1.bf16.msra.mxu0 0
    %2585 = vmatprep.mubr.bf16.mxu0 0
    %2586 = vmatmul.mubr.bf16.gmra.mrb[0].mxu0 %v2510
    %v2587 = vpop.f32.mrb[0].mxu0
    %v2588 = vadd.f32 0.0, %v2587
    %v2589 = vpop.f32.mrb[0].mxu0
    %v2590 = vadd.f32 0.0, %v2589
    %v2591 = vpop.f32.mrb[0].mxu0
    %v2592 = vpop.f32.mrb[0].mxu0
    %2593 = vdwg.mxu0
    %v2594 = vadd.f32 %v2455, %v2547
    %v2595 = vadd.f32 %v2456, %v2549
    %v2596 = vadd.f32 %v2457, %v2588
    %v2597 = vadd.f32 %v2458, %v2590
    %v2598 = vpack.c.bf16 %v2036, %v2036
    %s2599 = scalar_lea.vmem [#allocation13], 256
    %v2600 = vld [vmem:[%s2599] sm:$0xff]
    %v2601 = vld [vmem:[%s2599 + $0x8] sm:$0xff]
    %v2602 = vld [vmem:[%s2599 + $0x10] sm:$0xff]
    %v2603 = vld [vmem:[%s2599 + $0x18] sm:$0xff]
    %v2604 = vld [vmem:[%s2599 + $0x20] sm:$0xff]
    %v2605 = vld [vmem:[%s2599 + $0x28] sm:$0xff]
    %v2606 = vld [vmem:[%s2599 + $0x30] sm:$0xff]
    %v2607 = vld [vmem:[%s2599 + $0x38] sm:$0xff]
    %v2616 = vunpack.c.l.b16 %v2600
    %v2617 = vunpack.c.h.b16 %v2600
    %v2618 = vunpack.c.l.b16 %v2601
    %v2619 = vunpack.c.h.b16 %v2601
    %v2620 = vunpack.c.l.b16 %v2602
    %v2621 = vunpack.c.h.b16 %v2602
    %v2622 = vunpack.c.l.b16 %v2603
    %v2623 = vunpack.c.h.b16 %v2603
    %v2624 = vunpack.c.l.b16 %v2604
    %v2625 = vunpack.c.h.b16 %v2604
    %v2626 = vunpack.c.l.b16 %v2605
    %v2627 = vunpack.c.h.b16 %v2605
    %v2628 = vunpack.c.l.b16 %v2606
    %v2629 = vunpack.c.h.b16 %v2606
    %v2630 = vunpack.c.l.b16 %v2607
    %v2631 = vunpack.c.h.b16 %v2607
    %v2632 = vpack.c.b16 %v2620, %v2616
    %v2633 = vpack.c.b16 %v2621, %v2617
    %v2634 = vpack.c.b16 %v2622, %v2618
    %v2635 = vpack.c.b16 %v2623, %v2619
    %v2636 = vpack.c.b16 %v2628, %v2624
    %v2637 = vpack.c.b16 %v2629, %v2625
    %v2638 = vpack.c.b16 %v2630, %v2626
    %v2639 = vpack.c.b16 %v2631, %v2627
    %v2649 = vsel %vm574, %v2598, 0
    %2651 = vmatprep.subr.bf16.mxu0 %v2633
    %2652 = vmatpush1.bf16.msra.mxu0 %v2632
    %2653 = vmatprep.subr.bf16.mxu0 %v2637
    %2654 = vmatpush1.bf16.msra.mxu0 %v2636
    %2655 = vmatprep.subr.bf16.mxu0 0
    %2656 = vmatpush1.bf16.msra.mxu0 0
    %2657 = vmatprep.subr.bf16.mxu0 0
    %2658 = vmatpush1.bf16.msra.mxu0 0
    %2659 = vmatprep.subr.bf16.mxu0 0
    %2660 = vmatpush1.bf16.msra.mxu0 0
    %2661 = vmatprep.subr.bf16.mxu0 0
    %2662 = vmatpush1.bf16.msra.mxu0 0
    %2663 = vmatprep.subr.bf16.mxu0 0
    %2664 = vmatpush1.bf16.msra.mxu0 0
    %2665 = vmatprep.subr.bf16.mxu0 0
    %2666 = vmatpush1.bf16.msra.mxu0 0
    %2667 = vmatprep.subr.bf16.mxu0 0
    %2668 = vmatpush1.bf16.msra.mxu0 0
    %2669 = vmatprep.subr.bf16.mxu0 0
    %2670 = vmatpush1.bf16.msra.mxu0 0
    %2671 = vmatprep.subr.bf16.mxu0 0
    %2672 = vmatpush1.bf16.msra.mxu0 0
    %2673 = vmatprep.subr.bf16.mxu0 0
    %2674 = vmatpush1.bf16.msra.mxu0 0
    %2675 = vmatprep.subr.bf16.mxu0 0
    %2676 = vmatpush1.bf16.msra.mxu0 0
    %2677 = vmatprep.subr.bf16.mxu0 0
    %2678 = vmatpush1.bf16.msra.mxu0 0
    %2679 = vmatprep.subr.bf16.mxu0 0
    %2680 = vmatpush1.bf16.msra.mxu0 0
    %2681 = vmatprep.subr.bf16.mxu0 0
    %2682 = vmatpush1.bf16.msra.mxu0 0
    %2683 = vmatprep.mubr.bf16.mxu0 0
    %2684 = vmatmul.mubr.bf16.gmra.mrb[0].mxu0 %v2649
    %v2685 = vpop.f32.mrb[0].mxu0
    %v2686 = vadd.f32 0.0, %v2685
    %v2687 = vpop.f32.mrb[0].mxu0
    %v2688 = vadd.f32 0.0, %v2687
    %v2689 = vpop.f32.mrb[0].mxu0
    %v2690 = vpop.f32.mrb[0].mxu0
    %2691 = vdwg.mxu0
    %2692 = vmatprep.subr.bf16.mxu0 %v2635
    %2693 = vmatpush1.bf16.msra.mxu0 %v2634
    %2694 = vmatprep.subr.bf16.mxu0 %v2639
    %2695 = vmatpush1.bf16.msra.mxu0 %v2638
    %2696 = vmatprep.subr.bf16.mxu0 0
    %2697 = vmatpush1.bf16.msra.mxu0 0
    %2698 = vmatprep.subr.bf16.mxu0 0
    %2699 = vmatpush1.bf16.msra.mxu0 0
    %2700 = vmatprep.subr.bf16.mxu0 0
    %2701 = vmatpush1.bf16.msra.mxu0 0
    %2702 = vmatprep.subr.bf16.mxu0 0
    %2703 = vmatpush1.bf16.msra.mxu0 0
    %2704 = vmatprep.subr.bf16.mxu0 0
    %2705 = vmatpush1.bf16.msra.mxu0 0
    %2706 = vmatprep.subr.bf16.mxu0 0
    %2707 = vmatpush1.bf16.msra.mxu0 0
    %2708 = vmatprep.subr.bf16.mxu0 0
    %2709 = vmatpush1.bf16.msra.mxu0 0
    %2710 = vmatprep.subr.bf16.mxu0 0
    %2711 = vmatpush1.bf16.msra.mxu0 0
    %2712 = vmatprep.subr.bf16.mxu0 0
    %2713 = vmatpush1.bf16.msra.mxu0 0
    %2714 = vmatprep.subr.bf16.mxu0 0
    %2715 = vmatpush1.bf16.msra.mxu0 0
    %2716 = vmatprep.subr.bf16.mxu0 0
    %2717 = vmatpush1.bf16.msra.mxu0 0
    %2718 = vmatprep.subr.bf16.mxu0 0
    %2719 = vmatpush1.bf16.msra.mxu0 0
    %2720 = vmatprep.subr.bf16.mxu0 0
    %2721 = vmatpush1.bf16.msra.mxu0 0
    %2722 = vmatprep.subr.bf16.mxu0 0
    %2723 = vmatpush1.bf16.msra.mxu0 0
    %2724 = vmatprep.mubr.bf16.mxu0 0
    %2725 = vmatmul.mubr.bf16.gmra.mrb[0].mxu0 %v2649
    %v2726 = vpop.f32.mrb[0].mxu0
    %v2727 = vadd.f32 0.0, %v2726
    %v2728 = vpop.f32.mrb[0].mxu0
    %v2729 = vadd.f32 0.0, %v2728
    %v2730 = vpop.f32.mrb[0].mxu0
    %v2731 = vpop.f32.mrb[0].mxu0
    %2732 = vdwg.mxu0
    %v2733 = vadd.f32 %v2594, %v2686
    %v2734 = vadd.f32 %v2595, %v2688
    %v2735 = vadd.f32 %v2596, %v2727
    %v2736 = vadd.f32 %v2597, %v2729
    %s2737 = scalar_lea.vmem [#allocation13], 320
    %v2738 = vld [vmem:[%s2737] sm:$0xff]
    %v2739 = vld [vmem:[%s2737 + $0x8] sm:$0xff]
    %v2740 = vld [vmem:[%s2737 + $0x10] sm:$0xff]
    %v2741 = vld [vmem:[%s2737 + $0x18] sm:$0xff]
    %v2742 = vld [vmem:[%s2737 + $0x20] sm:$0xff]
    %v2743 = vld [vmem:[%s2737 + $0x28] sm:$0xff]
    %v2744 = vld [vmem:[%s2737 + $0x30] sm:$0xff]
    %v2745 = vld [vmem:[%s2737 + $0x38] sm:$0xff]
    %v2747 = vrot.slane %v2598, 1
    %v2756 = vunpack.c.l.b16 %v2738
    %v2757 = vunpack.c.h.b16 %v2738
    %v2758 = vunpack.c.l.b16 %v2739
    %v2759 = vunpack.c.h.b16 %v2739
    %v2760 = vunpack.c.l.b16 %v2740
    %v2761 = vunpack.c.h.b16 %v2740
    %v2762 = vunpack.c.l.b16 %v2741
    %v2763 = vunpack.c.h.b16 %v2741
    %v2764 = vunpack.c.l.b16 %v2742
    %v2765 = vunpack.c.h.b16 %v2742
    %v2766 = vunpack.c.l.b16 %v2743
    %v2767 = vunpack.c.h.b16 %v2743
    %v2768 = vunpack.c.l.b16 %v2744
    %v2769 = vunpack.c.h.b16 %v2744
    %v2770 = vunpack.c.l.b16 %v2745
    %v2771 = vunpack.c.h.b16 %v2745
    %v2772 = vpack.c.b16 %v2760, %v2756
    %v2773 = vpack.c.b16 %v2761, %v2757
    %v2774 = vpack.c.b16 %v2762, %v2758
    %v2775 = vpack.c.b16 %v2763, %v2759
    %v2776 = vpack.c.b16 %v2768, %v2764
    %v2777 = vpack.c.b16 %v2769, %v2765
    %v2778 = vpack.c.b16 %v2770, %v2766
    %v2779 = vpack.c.b16 %v2771, %v2767
    %v2789 = vsel %vm574, %v2747, 0
    %2791 = vmatprep.subr.bf16.mxu0 %v2773
    %2792 = vmatpush1.bf16.msra.mxu0 %v2772
    %2793 = vmatprep.subr.bf16.mxu0 %v2777
    %2794 = vmatpush1.bf16.msra.mxu0 %v2776
    %2795 = vmatprep.subr.bf16.mxu0 0
    %2796 = vmatpush1.bf16.msra.mxu0 0
    %2797 = vmatprep.subr.bf16.mxu0 0
    %2798 = vmatpush1.bf16.msra.mxu0 0
    %2799 = vmatprep.subr.bf16.mxu0 0
    %2800 = vmatpush1.bf16.msra.mxu0 0
    %2801 = vmatprep.subr.bf16.mxu0 0
    %2802 = vmatpush1.bf16.msra.mxu0 0
    %2803 = vmatprep.subr.bf16.mxu0 0
    %2804 = vmatpush1.bf16.msra.mxu0 0
    %2805 = vmatprep.subr.bf16.mxu0 0
    %2806 = vmatpush1.bf16.msra.mxu0 0
    %2807 = vmatprep.subr.bf16.mxu0 0
    %2808 = vmatpush1.bf16.msra.mxu0 0
    %2809 = vmatprep.subr.bf16.mxu0 0
    %2810 = vmatpush1.bf16.msra.mxu0 0
    %2811 = vmatprep.subr.bf16.mxu0 0
    %2812 = vmatpush1.bf16.msra.mxu0 0
    %2813 = vmatprep.subr.bf16.mxu0 0
    %2814 = vmatpush1.bf16.msra.mxu0 0
    %2815 = vmatprep.subr.bf16.mxu0 0
    %2816 = vmatpush1.bf16.msra.mxu0 0
    %2817 = vmatprep.subr.bf16.mxu0 0
    %2818 = vmatpush1.bf16.msra.mxu0 0
    %2819 = vmatprep.subr.bf16.mxu0 0
    %2820 = vmatpush1.bf16.msra.mxu0 0
    %2821 = vmatprep.subr.bf16.mxu0 0
    %2822 = vmatpush1.bf16.msra.mxu0 0
    %2823 = vmatprep.mubr.bf16.mxu0 0
    %2824 = vmatmul.mubr.bf16.gmra.mrb[0].mxu0 %v2789
    %v2825 = vpop.f32.mrb[0].mxu0
    %v2826 = vadd.f32 0.0, %v2825
    %v2827 = vpop.f32.mrb[0].mxu0
    %v2828 = vadd.f32 0.0, %v2827
    %v2829 = vpop.f32.mrb[0].mxu0
    %v2830 = vpop.f32.mrb[0].mxu0
    %2831 = vdwg.mxu0
    %2832 = vmatprep.subr.bf16.mxu0 %v2775
    %2833 = vmatpush1.bf16.msra.mxu0 %v2774
    %2834 = vmatprep.subr.bf16.mxu0 %v2779
    %2835 = vmatpush1.bf16.msra.mxu0 %v2778
    %2836 = vmatprep.subr.bf16.mxu0 0
    %2837 = vmatpush1.bf16.msra.mxu0 0
    %2838 = vmatprep.subr.bf16.mxu0 0
    %2839 = vmatpush1.bf16.msra.mxu0 0
    %2840 = vmatprep.subr.bf16.mxu0 0
    %2841 = vmatpush1.bf16.msra.mxu0 0
    %2842 = vmatprep.subr.bf16.mxu0 0
    %2843 = vmatpush1.bf16.msra.mxu0 0
    %2844 = vmatprep.subr.bf16.mxu0 0
    %2845 = vmatpush1.bf16.msra.mxu0 0
    %2846 = vmatprep.subr.bf16.mxu0 0
    %2847 = vmatpush1.bf16.msra.mxu0 0
    %2848 = vmatprep.subr.bf16.mxu0 0
    %2849 = vmatpush1.bf16.msra.mxu0 0
    %2850 = vmatprep.subr.bf16.mxu0 0
    %2851 = vmatpush1.bf16.msra.mxu0 0
    %2852 = vmatprep.subr.bf16.mxu0 0
    %2853 = vmatpush1.bf16.msra.mxu0 0
    %2854 = vmatprep.subr.bf16.mxu0 0
    %2855 = vmatpush1.bf16.msra.mxu0 0
    %2856 = vmatprep.subr.bf16.mxu0 0
    %2857 = vmatpush1.bf16.msra.mxu0 0
    %2858 = vmatprep.subr.bf16.mxu0 0
    %2859 = vmatpush1.bf16.msra.mxu0 0
    %2860 = vmatprep.subr.bf16.mxu0 0
    %2861 = vmatpush1.bf16.msra.mxu0 0
    %2862 = vmatprep.subr.bf16.mxu0 0
    %2863 = vmatpush1.bf16.msra.mxu0 0
    %2864 = vmatprep.mubr.bf16.mxu0 0
    %2865 = vmatmul.mubr.bf16.gmra.mrb[0].mxu0 %v2789
    %v2866 = vpop.f32.mrb[0].mxu0
    %v2867 = vadd.f32 0.0, %v2866
    %v2868 = vpop.f32.mrb[0].mxu0
    %v2869 = vadd.f32 0.0, %v2868
    %v2870 = vpop.f32.mrb[0].mxu0
    %v2871 = vpop.f32.mrb[0].mxu0
    %2872 = vdwg.mxu0
    %v2873 = vadd.f32 %v2733, %v2826
    %v2874 = vadd.f32 %v2734, %v2828
    %v2875 = vadd.f32 %v2735, %v2867
    %v2876 = vadd.f32 %v2736, %v2869
    %s2877 = scalar_lea.vmem [#allocation13], 384
    %v2878 = vld [vmem:[%s2877] sm:$0xff]
    %v2879 = vld [vmem:[%s2877 + $0x8] sm:$0xff]
    %v2880 = vld [vmem:[%s2877 + $0x10] sm:$0xff]
    %v2881 = vld [vmem:[%s2877 + $0x18] sm:$0xff]
    %v2882 = vld [vmem:[%s2877 + $0x20] sm:$0xff]
    %v2883 = vld [vmem:[%s2877 + $0x28] sm:$0xff]
    %v2884 = vld [vmem:[%s2877 + $0x30] sm:$0xff]
    %v2885 = vld [vmem:[%s2877 + $0x38] sm:$0xff]
    %v2886 = vrot.slane %v2598, 2
    %v2895 = vunpack.c.l.b16 %v2878
    %v2896 = vunpack.c.h.b16 %v2878
    %v2897 = vunpack.c.l.b16 %v2879
    %v2898 = vunpack.c.h.b16 %v2879
    %v2899 = vunpack.c.l.b16 %v2880
    %v2900 = vunpack.c.h.b16 %v2880
    %v2901 = vunpack.c.l.b16 %v2881
    %v2902 = vunpack.c.h.b16 %v2881
    %v2903 = vunpack.c.l.b16 %v2882
    %v2904 = vunpack.c.h.b16 %v2882
    %v2905 = vunpack.c.l.b16 %v2883
    %v2906 = vunpack.c.h.b16 %v2883
    %v2907 = vunpack.c.l.b16 %v2884
    %v2908 = vunpack.c.h.b16 %v2884
    %v2909 = vunpack.c.l.b16 %v2885
    %v2910 = vunpack.c.h.b16 %v2885
    %v2911 = vpack.c.b16 %v2899, %v2895
    %v2912 = vpack.c.b16 %v2900, %v2896
    %v2913 = vpack.c.b16 %v2901, %v2897
    %v2914 = vpack.c.b16 %v2902, %v2898
    %v2915 = vpack.c.b16 %v2907, %v2903
    %v2916 = vpack.c.b16 %v2908, %v2904
    %v2917 = vpack.c.b16 %v2909, %v2905
    %v2918 = vpack.c.b16 %v2910, %v2906
    %v2928 = vsel %vm574, %v2886, 0
    %2930 = vmatprep.subr.bf16.mxu0 %v2912
    %2931 = vmatpush1.bf16.msra.mxu0 %v2911
    %2932 = vmatprep.subr.bf16.mxu0 %v2916
    %2933 = vmatpush1.bf16.msra.mxu0 %v2915
    %2934 = vmatprep.subr.bf16.mxu0 0
    %2935 = vmatpush1.bf16.msra.mxu0 0
    %2936 = vmatprep.subr.bf16.mxu0 0
    %2937 = vmatpush1.bf16.msra.mxu0 0
    %2938 = vmatprep.subr.bf16.mxu0 0
    %2939 = vmatpush1.bf16.msra.mxu0 0
    %2940 = vmatprep.subr.bf16.mxu0 0
    %2941 = vmatpush1.bf16.msra.mxu0 0
    %2942 = vmatprep.subr.bf16.mxu0 0
    %2943 = vmatpush1.bf16.msra.mxu0 0
    %2944 = vmatprep.subr.bf16.mxu0 0
    %2945 = vmatpush1.bf16.msra.mxu0 0
    %2946 = vmatprep.subr.bf16.mxu0 0
    %2947 = vmatpush1.bf16.msra.mxu0 0
    %2948 = vmatprep.subr.bf16.mxu0 0
    %2949 = vmatpush1.bf16.msra.mxu0 0
    %2950 = vmatprep.subr.bf16.mxu0 0
    %2951 = vmatpush1.bf16.msra.mxu0 0
    %2952 = vmatprep.subr.bf16.mxu0 0
    %2953 = vmatpush1.bf16.msra.mxu0 0
    %2954 = vmatprep.subr.bf16.mxu0 0
    %2955 = vmatpush1.bf16.msra.mxu0 0
    %2956 = vmatprep.subr.bf16.mxu0 0
    %2957 = vmatpush1.bf16.msra.mxu0 0
    %2958 = vmatprep.subr.bf16.mxu0 0
    %2959 = vmatpush1.bf16.msra.mxu0 0
    %2960 = vmatprep.subr.bf16.mxu0 0
    %2961 = vmatpush1.bf16.msra.mxu0 0
    %2962 = vmatprep.mubr.bf16.mxu0 0
    %2963 = vmatmul.mubr.bf16.gmra.mrb[0].mxu0 %v2928
    %v2964 = vpop.f32.mrb[0].mxu0
    %v2965 = vadd.f32 0.0, %v2964
    %v2966 = vpop.f32.mrb[0].mxu0
    %v2967 = vadd.f32 0.0, %v2966
    %v2968 = vpop.f32.mrb[0].mxu0
    %v2969 = vpop.f32.mrb[0].mxu0
    %2970 = vdwg.mxu0
    %2971 = vmatprep.subr.bf16.mxu0 %v2914
    %2972 = vmatpush1.bf16.msra.mxu0 %v2913
    %2973 = vmatprep.subr.bf16.mxu0 %v2918
    %2974 = vmatpush1.bf16.msra.mxu0 %v2917
    %2975 = vmatprep.subr.bf16.mxu0 0
    %2976 = vmatpush1.bf16.msra.mxu0 0
    %2977 = vmatprep.subr.bf16.mxu0 0
    %2978 = vmatpush1.bf16.msra.mxu0 0
    %2979 = vmatprep.subr.bf16.mxu0 0
    %2980 = vmatpush1.bf16.msra.mxu0 0
    %2981 = vmatprep.subr.bf16.mxu0 0
    %2982 = vmatpush1.bf16.msra.mxu0 0
    %2983 = vmatprep.subr.bf16.mxu0 0
    %2984 = vmatpush1.bf16.msra.mxu0 0
    %2985 = vmatprep.subr.bf16.mxu0 0
    %2986 = vmatpush1.bf16.msra.mxu0 0
    %2987 = vmatprep.subr.bf16.mxu0 0
    %2988 = vmatpush1.bf16.msra.mxu0 0
    %2989 = vmatprep.subr.bf16.mxu0 0
    %2990 = vmatpush1.bf16.msra.mxu0 0
    %2991 = vmatprep.subr.bf16.mxu0 0
    %2992 = vmatpush1.bf16.msra.mxu0 0
    %2993 = vmatprep.subr.bf16.mxu0 0
    %2994 = vmatpush1.bf16.msra.mxu0 0
    %2995 = vmatprep.subr.bf16.mxu0 0
    %2996 = vmatpush1.bf16.msra.mxu0 0
    %2997 = vmatprep.subr.bf16.mxu0 0
    %2998 = vmatpush1.bf16.msra.mxu0 0
    %2999 = vmatprep.subr.bf16.mxu0 0
    %3000 = vmatpush1.bf16.msra.mxu0 0
    %3001 = vmatprep.subr.bf16.mxu0 0
    %3002 = vmatpush1.bf16.msra.mxu0 0
    %3003 = vmatprep.mubr.bf16.mxu0 0
    %3004 = vmatmul.mubr.bf16.gmra.mrb[0].mxu0 %v2928
    %v3005 = vpop.f32.mrb[0].mxu0
    %v3006 = vadd.f32 0.0, %v3005
    %v3007 = vpop.f32.mrb[0].mxu0
    %v3008 = vadd.f32 0.0, %v3007
    %v3009 = vpop.f32.mrb[0].mxu0
    %v3010 = vpop.f32.mrb[0].mxu0
    %3011 = vdwg.mxu0
    %v3012 = vadd.f32 %v2873, %v2965
    %v3013 = vadd.f32 %v2874, %v2967
    %v3014 = vadd.f32 %v2875, %v3006
    %v3015 = vadd.f32 %v2876, %v3008
    %s3016 = scalar_lea.vmem [#allocation13], 448
    %v3017 = vld [vmem:[%s3016] sm:$0xff]
    %v3018 = vld [vmem:[%s3016 + $0x8] sm:$0xff]
    %v3019 = vld [vmem:[%s3016 + $0x10] sm:$0xff]
    %v3020 = vld [vmem:[%s3016 + $0x18] sm:$0xff]
    %v3021 = vld [vmem:[%s3016 + $0x20] sm:$0xff]
    %v3022 = vld [vmem:[%s3016 + $0x28] sm:$0xff]
    %v3023 = vld [vmem:[%s3016 + $0x30] sm:$0xff]
    %v3024 = vld [vmem:[%s3016 + $0x38] sm:$0xff]
    %v3025 = vrot.slane %v2598, 3
    %v3034 = vunpack.c.l.b16 %v3017
    %v3035 = vunpack.c.h.b16 %v3017
    %v3036 = vunpack.c.l.b16 %v3018
    %v3037 = vunpack.c.h.b16 %v3018
    %v3038 = vunpack.c.l.b16 %v3019
    %v3039 = vunpack.c.h.b16 %v3019
    %v3040 = vunpack.c.l.b16 %v3020
    %v3041 = vunpack.c.h.b16 %v3020
    %v3042 = vunpack.c.l.b16 %v3021
    %v3043 = vunpack.c.h.b16 %v3021
    %v3044 = vunpack.c.l.b16 %v3022
    %v3045 = vunpack.c.h.b16 %v3022
    %v3046 = vunpack.c.l.b16 %v3023
    %v3047 = vunpack.c.h.b16 %v3023
    %v3048 = vunpack.c.l.b16 %v3024
    %v3049 = vunpack.c.h.b16 %v3024
    %v3050 = vpack.c.b16 %v3038, %v3034
    %v3051 = vpack.c.b16 %v3039, %v3035
    %v3052 = vpack.c.b16 %v3040, %v3036
    %v3053 = vpack.c.b16 %v3041, %v3037
    %v3054 = vpack.c.b16 %v3046, %v3042
    %v3055 = vpack.c.b16 %v3047, %v3043
    %v3056 = vpack.c.b16 %v3048, %v3044
    %v3057 = vpack.c.b16 %v3049, %v3045
    %v3067 = vsel %vm574, %v3025, 0
    %3069 = vmatprep.subr.bf16.mxu0 %v3051
    %3070 = vmatpush1.bf16.msra.mxu0 %v3050
    %3071 = vmatprep.subr.bf16.mxu0 %v3055
    %3072 = vmatpush1.bf16.msra.mxu0 %v3054
    %3073 = vmatprep.subr.bf16.mxu0 0
    %3074 = vmatpush1.bf16.msra.mxu0 0
    %3075 = vmatprep.subr.bf16.mxu0 0
    %3076 = vmatpush1.bf16.msra.mxu0 0
    %3077 = vmatprep.subr.bf16.mxu0 0
    %3078 = vmatpush1.bf16.msra.mxu0 0
    %3079 = vmatprep.subr.bf16.mxu0 0
    %3080 = vmatpush1.bf16.msra.mxu0 0
    %3081 = vmatprep.subr.bf16.mxu0 0
    %3082 = vmatpush1.bf16.msra.mxu0 0
    %3083 = vmatprep.subr.bf16.mxu0 0
    %3084 = vmatpush1.bf16.msra.mxu0 0
    %3085 = vmatprep.subr.bf16.mxu0 0
    %3086 = vmatpush1.bf16.msra.mxu0 0
    %3087 = vmatprep.subr.bf16.mxu0 0
    %3088 = vmatpush1.bf16.msra.mxu0 0
    %3089 = vmatprep.subr.bf16.mxu0 0
    %3090 = vmatpush1.bf16.msra.mxu0 0
    %3091 = vmatprep.subr.bf16.mxu0 0
    %3092 = vmatpush1.bf16.msra.mxu0 0
    %3093 = vmatprep.subr.bf16.mxu0 0
    %3094 = vmatpush1.bf16.msra.mxu0 0
    %3095 = vmatprep.subr.bf16.mxu0 0
    %3096 = vmatpush1.bf16.msra.mxu0 0
    %3097 = vmatprep.subr.bf16.mxu0 0
    %3098 = vmatpush1.bf16.msra.mxu0 0
    %3099 = vmatprep.subr.bf16.mxu0 0
    %3100 = vmatpush1.bf16.msra.mxu0 0
    %3101 = vmatprep.mubr.bf16.mxu0 0
    %3102 = vmatmul.mubr.bf16.gmra.mrb[0].mxu0 %v3067
    %v3103 = vpop.f32.mrb[0].mxu0
    %v3104 = vadd.f32 0.0, %v3103
    %v3105 = vpop.f32.mrb[0].mxu0
    %v3106 = vadd.f32 0.0, %v3105
    %v3107 = vpop.f32.mrb[0].mxu0
    %v3108 = vpop.f32.mrb[0].mxu0
    %3109 = vdwg.mxu0
    %3110 = vmatprep.subr.bf16.mxu0 %v3053
    %3111 = vmatpush1.bf16.msra.mxu0 %v3052
    %3112 = vmatprep.subr.bf16.mxu0 %v3057
    %3113 = vmatpush1.bf16.msra.mxu0 %v3056
    %3114 = vmatprep.subr.bf16.mxu0 0
    %3115 = vmatpush1.bf16.msra.mxu0 0
    %3116 = vmatprep.subr.bf16.mxu0 0
    %3117 = vmatpush1.bf16.msra.mxu0 0
    %3118 = vmatprep.subr.bf16.mxu0 0
    %3119 = vmatpush1.bf16.msra.mxu0 0
    %3120 = vmatprep.subr.bf16.mxu0 0
    %3121 = vmatpush1.bf16.msra.mxu0 0
    %3122 = vmatprep.subr.bf16.mxu0 0
    %3123 = vmatpush1.bf16.msra.mxu0 0
    %3124 = vmatprep.subr.bf16.mxu0 0
    %3125 = vmatpush1.bf16.msra.mxu0 0
    %3126 = vmatprep.subr.bf16.mxu0 0
    %3127 = vmatpush1.bf16.msra.mxu0 0
    %3128 = vmatprep.subr.bf16.mxu0 0
    %3129 = vmatpush1.bf16.msra.mxu0 0
    %3130 = vmatprep.subr.bf16.mxu0 0
    %3131 = vmatpush1.bf16.msra.mxu0 0
    %3132 = vmatprep.subr.bf16.mxu0 0
    %3133 = vmatpush1.bf16.msra.mxu0 0
    %3134 = vmatprep.subr.bf16.mxu0 0
    %3135 = vmatpush1.bf16.msra.mxu0 0
    %3136 = vmatprep.subr.bf16.mxu0 0
    %3137 = vmatpush1.bf16.msra.mxu0 0
    %3138 = vmatprep.subr.bf16.mxu0 0
    %3139 = vmatpush1.bf16.msra.mxu0 0
    %3140 = vmatprep.subr.bf16.mxu0 0
    %3141 = vmatpush1.bf16.msra.mxu0 0
    %3142 = vmatprep.mubr.bf16.mxu0 0
    %3143 = vmatmul.mubr.bf16.gmra.mrb[0].mxu0 %v3067
    %v3144 = vpop.f32.mrb[0].mxu0
    %v3145 = vadd.f32 0.0, %v3144
    %v3146 = vpop.f32.mrb[0].mxu0
    %v3147 = vadd.f32 0.0, %v3146
    %v3148 = vpop.f32.mrb[0].mxu0
    %v3149 = vpop.f32.mrb[0].mxu0
    %3150 = vdwg.mxu0
    %v3151 = vadd.f32 %v3012, %v3104
    %v3152 = vadd.f32 %v3013, %v3106
    %v3153 = vadd.f32 %v3014, %v3145
    %v3154 = vadd.f32 %v3015, %v3147
    %v3155 = vpack.c.bf16 %v2037, %v2037
    %s3156 = scalar_lea.vmem [#allocation13], 512
    %v3157 = vld [vmem:[%s3156] sm:$0xff]
    %v3158 = vld [vmem:[%s3156 + $0x8] sm:$0xff]
    %v3159 = vld [vmem:[%s3156 + $0x10] sm:$0xff]
    %v3160 = vld [vmem:[%s3156 + $0x18] sm:$0xff]
    %v3161 = vld [vmem:[%s3156 + $0x20] sm:$0xff]
    %v3162 = vld [vmem:[%s3156 + $0x28] sm:$0xff]
    %v3163 = vld [vmem:[%s3156 + $0x30] sm:$0xff]
    %v3164 = vld [vmem:[%s3156 + $0x38] sm:$0xff]
    %v3173 = vunpack.c.l.b16 %v3157
    %v3174 = vunpack.c.h.b16 %v3157
    %v3175 = vunpack.c.l.b16 %v3158
    %v3176 = vunpack.c.h.b16 %v3158
    %v3177 = vunpack.c.l.b16 %v3159
    %v3178 = vunpack.c.h.b16 %v3159
    %v3179 = vunpack.c.l.b16 %v3160
    %v3180 = vunpack.c.h.b16 %v3160
    %v3181 = vunpack.c.l.b16 %v3161
    %v3182 = vunpack.c.h.b16 %v3161
    %v3183 = vunpack.c.l.b16 %v3162
    %v3184 = vunpack.c.h.b16 %v3162
    %v3185 = vunpack.c.l.b16 %v3163
    %v3186 = vunpack.c.h.b16 %v3163
    %v3187 = vunpack.c.l.b16 %v3164
    %v3188 = vunpack.c.h.b16 %v3164
    %v3189 = vpack.c.b16 %v3177, %v3173
    %v3190 = vpack.c.b16 %v3178, %v3174
    %v3191 = vpack.c.b16 %v3179, %v3175
    %v3192 = vpack.c.b16 %v3180, %v3176
    %v3193 = vpack.c.b16 %v3185, %v3181
    %v3194 = vpack.c.b16 %v3186, %v3182
    %v3195 = vpack.c.b16 %v3187, %v3183
    %v3196 = vpack.c.b16 %v3188, %v3184
    %v3206 = vsel %vm574, %v3155, 0
    %3208 = vmatprep.subr.bf16.mxu0 %v3190
    %3209 = vmatpush1.bf16.msra.mxu0 %v3189
    %3210 = vmatprep.subr.bf16.mxu0 %v3194
    %3211 = vmatpush1.bf16.msra.mxu0 %v3193
    %3212 = vmatprep.subr.bf16.mxu0 0
    %3213 = vmatpush1.bf16.msra.mxu0 0
    %3214 = vmatprep.subr.bf16.mxu0 0
    %3215 = vmatpush1.bf16.msra.mxu0 0
    %3216 = vmatprep.subr.bf16.mxu0 0
    %3217 = vmatpush1.bf16.msra.mxu0 0
    %3218 = vmatprep.subr.bf16.mxu0 0
    %3219 = vmatpush1.bf16.msra.mxu0 0
    %3220 = vmatprep.subr.bf16.mxu0 0
    %3221 = vmatpush1.bf16.msra.mxu0 0
    %3222 = vmatprep.subr.bf16.mxu0 0
    %3223 = vmatpush1.bf16.msra.mxu0 0
    %3224 = vmatprep.subr.bf16.mxu0 0
    %3225 = vmatpush1.bf16.msra.mxu0 0
    %3226 = vmatprep.subr.bf16.mxu0 0
    %3227 = vmatpush1.bf16.msra.mxu0 0
    %3228 = vmatprep.subr.bf16.mxu0 0
    %3229 = vmatpush1.bf16.msra.mxu0 0
    %3230 = vmatprep.subr.bf16.mxu0 0
    %3231 = vmatpush1.bf16.msra.mxu0 0
    %3232 = vmatprep.subr.bf16.mxu0 0
    %3233 = vmatpush1.bf16.msra.mxu0 0
    %3234 = vmatprep.subr.bf16.mxu0 0
    %3235 = vmatpush1.bf16.msra.mxu0 0
    %3236 = vmatprep.subr.bf16.mxu0 0
    %3237 = vmatpush1.bf16.msra.mxu0 0
    %3238 = vmatprep.subr.bf16.mxu0 0
    %3239 = vmatpush1.bf16.msra.mxu0 0
    %3240 = vmatprep.mubr.bf16.mxu0 0
    %3241 = vmatmul.mubr.bf16.gmra.mrb[0].mxu0 %v3206
    %v3242 = vpop.f32.mrb[0].mxu0
    %v3243 = vadd.f32 0.0, %v3242
    %v3244 = vpop.f32.mrb[0].mxu0
    %v3245 = vadd.f32 0.0, %v3244
    %v3246 = vpop.f32.mrb[0].mxu0
    %v3247 = vpop.f32.mrb[0].mxu0
    %3248 = vdwg.mxu0
    %3249 = vmatprep.subr.bf16.mxu0 %v3192
    %3250 = vmatpush1.bf16.msra.mxu0 %v3191
    %3251 = vmatprep.subr.bf16.mxu0 %v3196
    %3252 = vmatpush1.bf16.msra.mxu0 %v3195
    %3253 = vmatprep.subr.bf16.mxu0 0
    %3254 = vmatpush1.bf16.msra.mxu0 0
    %3255 = vmatprep.subr.bf16.mxu0 0
    %3256 = vmatpush1.bf16.msra.mxu0 0
    %3257 = vmatprep.subr.bf16.mxu0 0
    %3258 = vmatpush1.bf16.msra.mxu0 0
    %3259 = vmatprep.subr.bf16.mxu0 0
    %3260 = vmatpush1.bf16.msra.mxu0 0
    %3261 = vmatprep.subr.bf16.mxu0 0
    %3262 = vmatpush1.bf16.msra.mxu0 0
    %3263 = vmatprep.subr.bf16.mxu0 0
    %3264 = vmatpush1.bf16.msra.mxu0 0
    %3265 = vmatprep.subr.bf16.mxu0 0
    %3266 = vmatpush1.bf16.msra.mxu0 0
    %3267 = vmatprep.subr.bf16.mxu0 0
    %3268 = vmatpush1.bf16.msra.mxu0 0
    %3269 = vmatprep.subr.bf16.mxu0 0
    %3270 = vmatpush1.bf16.msra.mxu0 0
    %3271 = vmatprep.subr.bf16.mxu0 0
    %3272 = vmatpush1.bf16.msra.mxu0 0
    %3273 = vmatprep.subr.bf16.mxu0 0
    %3274 = vmatpush1.bf16.msra.mxu0 0
    %3275 = vmatprep.subr.bf16.mxu0 0
    %3276 = vmatpush1.bf16.msra.mxu0 0
    %3277 = vmatprep.subr.bf16.mxu0 0
    %3278 = vmatpush1.bf16.msra.mxu0 0
    %3279 = vmatprep.subr.bf16.mxu0 0
    %3280 = vmatpush1.bf16.msra.mxu0 0
    %3281 = vmatprep.mubr.bf16.mxu0 0
    %3282 = vmatmul.mubr.bf16.gmra.mrb[0].mxu0 %v3206
    %v3283 = vpop.f32.mrb[0].mxu0
    %v3284 = vadd.f32 0.0, %v3283
    %v3285 = vpop.f32.mrb[0].mxu0
    %v3286 = vadd.f32 0.0, %v3285
    %v3287 = vpop.f32.mrb[0].mxu0
    %v3288 = vpop.f32.mrb[0].mxu0
    %3289 = vdwg.mxu0
    %v3290 = vadd.f32 %v3151, %v3243
    %v3291 = vadd.f32 %v3152, %v3245
    %v3292 = vadd.f32 %v3153, %v3284
    %v3293 = vadd.f32 %v3154, %v3286
    %s3294 = scalar_lea.vmem [#allocation13], 576
    %v3295 = vld [vmem:[%s3294] sm:$0xff]
    %v3296 = vld [vmem:[%s3294 + $0x8] sm:$0xff]
    %v3297 = vld [vmem:[%s3294 + $0x10] sm:$0xff]
    %v3298 = vld [vmem:[%s3294 + $0x18] sm:$0xff]
    %v3299 = vld [vmem:[%s3294 + $0x20] sm:$0xff]
    %v3300 = vld [vmem:[%s3294 + $0x28] sm:$0xff]
    %v3301 = vld [vmem:[%s3294 + $0x30] sm:$0xff]
    %v3302 = vld [vmem:[%s3294 + $0x38] sm:$0xff]
    %v3304 = vrot.slane %v3155, 1
    %v3313 = vunpack.c.l.b16 %v3295
    %v3314 = vunpack.c.h.b16 %v3295
    %v3315 = vunpack.c.l.b16 %v3296
    %v3316 = vunpack.c.h.b16 %v3296
    %v3317 = vunpack.c.l.b16 %v3297
    %v3318 = vunpack.c.h.b16 %v3297
    %v3319 = vunpack.c.l.b16 %v3298
    %v3320 = vunpack.c.h.b16 %v3298
    %v3321 = vunpack.c.l.b16 %v3299
    %v3322 = vunpack.c.h.b16 %v3299
    %v3323 = vunpack.c.l.b16 %v3300
    %v3324 = vunpack.c.h.b16 %v3300
    %v3325 = vunpack.c.l.b16 %v3301
    %v3326 = vunpack.c.h.b16 %v3301
    %v3327 = vunpack.c.l.b16 %v3302
    %v3328 = vunpack.c.h.b16 %v3302
    %v3329 = vpack.c.b16 %v3317, %v3313
    %v3330 = vpack.c.b16 %v3318, %v3314
    %v3331 = vpack.c.b16 %v3319, %v3315
    %v3332 = vpack.c.b16 %v3320, %v3316
    %v3333 = vpack.c.b16 %v3325, %v3321
    %v3334 = vpack.c.b16 %v3326, %v3322
    %v3335 = vpack.c.b16 %v3327, %v3323
    %v3336 = vpack.c.b16 %v3328, %v3324
    %v3346 = vsel %vm574, %v3304, 0
    %3348 = vmatprep.subr.bf16.mxu0 %v3330
    %3349 = vmatpush1.bf16.msra.mxu0 %v3329
    %3350 = vmatprep.subr.bf16.mxu0 %v3334
    %3351 = vmatpush1.bf16.msra.mxu0 %v3333
    %3352 = vmatprep.subr.bf16.mxu0 0
    %3353 = vmatpush1.bf16.msra.mxu0 0
    %3354 = vmatprep.subr.bf16.mxu0 0
    %3355 = vmatpush1.bf16.msra.mxu0 0
    %3356 = vmatprep.subr.bf16.mxu0 0
    %3357 = vmatpush1.bf16.msra.mxu0 0
    %3358 = vmatprep.subr.bf16.mxu0 0
    %3359 = vmatpush1.bf16.msra.mxu0 0
    %3360 = vmatprep.subr.bf16.mxu0 0
    %3361 = vmatpush1.bf16.msra.mxu0 0
    %3362 = vmatprep.subr.bf16.mxu0 0
    %3363 = vmatpush1.bf16.msra.mxu0 0
    %3364 = vmatprep.subr.bf16.mxu0 0
    %3365 = vmatpush1.bf16.msra.mxu0 0
    %3366 = vmatprep.subr.bf16.mxu0 0
    %3367 = vmatpush1.bf16.msra.mxu0 0
    %3368 = vmatprep.subr.bf16.mxu0 0
    %3369 = vmatpush1.bf16.msra.mxu0 0
    %3370 = vmatprep.subr.bf16.mxu0 0
    %3371 = vmatpush1.bf16.msra.mxu0 0
    %3372 = vmatprep.subr.bf16.mxu0 0
    %3373 = vmatpush1.bf16.msra.mxu0 0
    %3374 = vmatprep.subr.bf16.mxu0 0
    %3375 = vmatpush1.bf16.msra.mxu0 0
    %3376 = vmatprep.subr.bf16.mxu0 0
    %3377 = vmatpush1.bf16.msra.mxu0 0
    %3378 = vmatprep.subr.bf16.mxu0 0
    %3379 = vmatpush1.bf16.msra.mxu0 0
    %3380 = vmatprep.mubr.bf16.mxu0 0
    %3381 = vmatmul.mubr.bf16.gmra.mrb[0].mxu0 %v3346
    %v3382 = vpop.f32.mrb[0].mxu0
    %v3383 = vadd.f32 0.0, %v3382
    %v3384 = vpop.f32.mrb[0].mxu0
    %v3385 = vadd.f32 0.0, %v3384
    %v3386 = vpop.f32.mrb[0].mxu0
    %v3387 = vpop.f32.mrb[0].mxu0
    %3388 = vdwg.mxu0
    %3389 = vmatprep.subr.bf16.mxu0 %v3332
    %3390 = vmatpush1.bf16.msra.mxu0 %v3331
    %3391 = vmatprep.subr.bf16.mxu0 %v3336
    %3392 = vmatpush1.bf16.msra.mxu0 %v3335
    %3393 = vmatprep.subr.bf16.mxu0 0
    %3394 = vmatpush1.bf16.msra.mxu0 0
    %3395 = vmatprep.subr.bf16.mxu0 0
    %3396 = vmatpush1.bf16.msra.mxu0 0
    %3397 = vmatprep.subr.bf16.mxu0 0
    %3398 = vmatpush1.bf16.msra.mxu0 0
    %3399 = vmatprep.subr.bf16.mxu0 0
    %3400 = vmatpush1.bf16.msra.mxu0 0
    %3401 = vmatprep.subr.bf16.mxu0 0
    %3402 = vmatpush1.bf16.msra.mxu0 0
    %3403 = vmatprep.subr.bf16.mxu0 0
    %3404 = vmatpush1.bf16.msra.mxu0 0
    %3405 = vmatprep.subr.bf16.mxu0 0
    %3406 = vmatpush1.bf16.msra.mxu0 0
    %3407 = vmatprep.subr.bf16.mxu0 0
    %3408 = vmatpush1.bf16.msra.mxu0 0
    %3409 = vmatprep.subr.bf16.mxu0 0
    %3410 = vmatpush1.bf16.msra.mxu0 0
    %3411 = vmatprep.subr.bf16.mxu0 0
    %3412 = vmatpush1.bf16.msra.mxu0 0
    %3413 = vmatprep.subr.bf16.mxu0 0
    %3414 = vmatpush1.bf16.msra.mxu0 0
    %3415 = vmatprep.subr.bf16.mxu0 0
    %3416 = vmatpush1.bf16.msra.mxu0 0
    %3417 = vmatprep.subr.bf16.mxu0 0
    %3418 = vmatpush1.bf16.msra.mxu0 0
    %3419 = vmatprep.subr.bf16.mxu0 0
    %3420 = vmatpush1.bf16.msra.mxu0 0
    %3421 = vmatprep.mubr.bf16.mxu0 0
    %3422 = vmatmul.mubr.bf16.gmra.mrb[0].mxu0 %v3346
    %v3423 = vpop.f32.mrb[0].mxu0
    %v3424 = vadd.f32 0.0, %v3423
    %v3425 = vpop.f32.mrb[0].mxu0
    %v3426 = vadd.f32 0.0, %v3425
    %v3427 = vpop.f32.mrb[0].mxu0
    %v3428 = vpop.f32.mrb[0].mxu0
    %3429 = vdwg.mxu0
    %v3430 = vadd.f32 %v3290, %v3383
    %v3431 = vadd.f32 %v3291, %v3385
    %v3432 = vadd.f32 %v3292, %v3424
    %v3433 = vadd.f32 %v3293, %v3426
    %s3434 = scalar_lea.vmem [#allocation13], 640
    %v3435 = vld [vmem:[%s3434] sm:$0xff]
    %v3436 = vld [vmem:[%s3434 + $0x8] sm:$0xff]
    %v3437 = vld [vmem:[%s3434 + $0x10] sm:$0xff]
    %v3438 = vld [vmem:[%s3434 + $0x18] sm:$0xff]
    %v3439 = vld [vmem:[%s3434 + $0x20] sm:$0xff]
    %v3440 = vld [vmem:[%s3434 + $0x28] sm:$0xff]
    %v3441 = vld [vmem:[%s3434 + $0x30] sm:$0xff]
    %v3442 = vld [vmem:[%s3434 + $0x38] sm:$0xff]
    %v3443 = vrot.slane %v3155, 2
    %v3452 = vunpack.c.l.b16 %v3435
    %v3453 = vunpack.c.h.b16 %v3435
    %v3454 = vunpack.c.l.b16 %v3436
    %v3455 = vunpack.c.h.b16 %v3436
    %v3456 = vunpack.c.l.b16 %v3437
    %v3457 = vunpack.c.h.b16 %v3437
    %v3458 = vunpack.c.l.b16 %v3438
    %v3459 = vunpack.c.h.b16 %v3438
    %v3460 = vunpack.c.l.b16 %v3439
    %v3461 = vunpack.c.h.b16 %v3439
    %v3462 = vunpack.c.l.b16 %v3440
    %v3463 = vunpack.c.h.b16 %v3440
    %v3464 = vunpack.c.l.b16 %v3441
    %v3465 = vunpack.c.h.b16 %v3441
    %v3466 = vunpack.c.l.b16 %v3442
    %v3467 = vunpack.c.h.b16 %v3442
    %v3468 = vpack.c.b16 %v3456, %v3452
    %v3469 = vpack.c.b16 %v3457, %v3453
    %v3470 = vpack.c.b16 %v3458, %v3454
    %v3471 = vpack.c.b16 %v3459, %v3455
    %v3472 = vpack.c.b16 %v3464, %v3460
    %v3473 = vpack.c.b16 %v3465, %v3461
    %v3474 = vpack.c.b16 %v3466, %v3462
    %v3475 = vpack.c.b16 %v3467, %v3463
    %v3485 = vsel %vm574, %v3443, 0
    %3487 = vmatprep.subr.bf16.mxu0 %v3469
    %3488 = vmatpush1.bf16.msra.mxu0 %v3468
    %3489 = vmatprep.subr.bf16.mxu0 %v3473
    %3490 = vmatpush1.bf16.msra.mxu0 %v3472
    %3491 = vmatprep.subr.bf16.mxu0 0
    %3492 = vmatpush1.bf16.msra.mxu0 0
    %3493 = vmatprep.subr.bf16.mxu0 0
    %3494 = vmatpush1.bf16.msra.mxu0 0
    %3495 = vmatprep.subr.bf16.mxu0 0
    %3496 = vmatpush1.bf16.msra.mxu0 0
    %3497 = vmatprep.subr.bf16.mxu0 0
    %3498 = vmatpush1.bf16.msra.mxu0 0
    %3499 = vmatprep.subr.bf16.mxu0 0
    %3500 = vmatpush1.bf16.msra.mxu0 0
    %3501 = vmatprep.subr.bf16.mxu0 0
    %3502 = vmatpush1.bf16.msra.mxu0 0
    %3503 = vmatprep.subr.bf16.mxu0 0
    %3504 = vmatpush1.bf16.msra.mxu0 0
    %3505 = vmatprep.subr.bf16.mxu0 0
    %3506 = vmatpush1.bf16.msra.mxu0 0
    %3507 = vmatprep.subr.bf16.mxu0 0
    %3508 = vmatpush1.bf16.msra.mxu0 0
    %3509 = vmatprep.subr.bf16.mxu0 0
    %3510 = vmatpush1.bf16.msra.mxu0 0
    %3511 = vmatprep.subr.bf16.mxu0 0
    %3512 = vmatpush1.bf16.msra.mxu0 0
    %3513 = vmatprep.subr.bf16.mxu0 0
    %3514 = vmatpush1.bf16.msra.mxu0 0
    %3515 = vmatprep.subr.bf16.mxu0 0
    %3516 = vmatpush1.bf16.msra.mxu0 0
    %3517 = vmatprep.subr.bf16.mxu0 0
    %3518 = vmatpush1.bf16.msra.mxu0 0
    %3519 = vmatprep.mubr.bf16.mxu0 0
    %3520 = vmatmul.mubr.bf16.gmra.mrb[0].mxu0 %v3485
    %v3521 = vpop.f32.mrb[0].mxu0
    %v3522 = vadd.f32 0.0, %v3521
    %v3523 = vpop.f32.mrb[0].mxu0
    %v3524 = vadd.f32 0.0, %v3523
    %v3525 = vpop.f32.mrb[0].mxu0
    %v3526 = vpop.f32.mrb[0].mxu0
    %3527 = vdwg.mxu0
    %3528 = vmatprep.subr.bf16.mxu0 %v3471
    %3529 = vmatpush1.bf16.msra.mxu0 %v3470
    %3530 = vmatprep.subr.bf16.mxu0 %v3475
    %3531 = vmatpush1.bf16.msra.mxu0 %v3474
    %3532 = vmatprep.subr.bf16.mxu0 0
    %3533 = vmatpush1.bf16.msra.mxu0 0
    %3534 = vmatprep.subr.bf16.mxu0 0
    %3535 = vmatpush1.bf16.msra.mxu0 0
    %3536 = vmatprep.subr.bf16.mxu0 0
    %3537 = vmatpush1.bf16.msra.mxu0 0
    %3538 = vmatprep.subr.bf16.mxu0 0
    %3539 = vmatpush1.bf16.msra.mxu0 0
    %3540 = vmatprep.subr.bf16.mxu0 0
    %3541 = vmatpush1.bf16.msra.mxu0 0
    %3542 = vmatprep.subr.bf16.mxu0 0
    %3543 = vmatpush1.bf16.msra.mxu0 0
    %3544 = vmatprep.subr.bf16.mxu0 0
    %3545 = vmatpush1.bf16.msra.mxu0 0
    %3546 = vmatprep.subr.bf16.mxu0 0
    %3547 = vmatpush1.bf16.msra.mxu0 0
    %3548 = vmatprep.subr.bf16.mxu0 0
    %3549 = vmatpush1.bf16.msra.mxu0 0
    %3550 = vmatprep.subr.bf16.mxu0 0
    %3551 = vmatpush1.bf16.msra.mxu0 0
    %3552 = vmatprep.subr.bf16.mxu0 0
    %3553 = vmatpush1.bf16.msra.mxu0 0
    %3554 = vmatprep.subr.bf16.mxu0 0
    %3555 = vmatpush1.bf16.msra.mxu0 0
    %3556 = vmatprep.subr.bf16.mxu0 0
    %3557 = vmatpush1.bf16.msra.mxu0 0
    %3558 = vmatprep.subr.bf16.mxu0 0
    %3559 = vmatpush1.bf16.msra.mxu0 0
    %3560 = vmatprep.mubr.bf16.mxu0 0
    %3561 = vmatmul.mubr.bf16.gmra.mrb[0].mxu0 %v3485
    %v3562 = vpop.f32.mrb[0].mxu0
    %v3563 = vadd.f32 0.0, %v3562
    %v3564 = vpop.f32.mrb[0].mxu0
    %v3565 = vadd.f32 0.0, %v3564
    %v3566 = vpop.f32.mrb[0].mxu0
    %v3567 = vpop.f32.mrb[0].mxu0
    %3568 = vdwg.mxu0
    %v3569 = vadd.f32 %v3430, %v3522
    %v3570 = vadd.f32 %v3431, %v3524
    %v3571 = vadd.f32 %v3432, %v3563
    %v3572 = vadd.f32 %v3433, %v3565
    %s3573 = scalar_lea.vmem [#allocation13], 704
    %v3574 = vld [vmem:[%s3573] sm:$0xff]
    %v3575 = vld [vmem:[%s3573 + $0x8] sm:$0xff]
    %v3576 = vld [vmem:[%s3573 + $0x10] sm:$0xff]
    %v3577 = vld [vmem:[%s3573 + $0x18] sm:$0xff]
    %v3578 = vld [vmem:[%s3573 + $0x20] sm:$0xff]
    %v3579 = vld [vmem:[%s3573 + $0x28] sm:$0xff]
    %v3580 = vld [vmem:[%s3573 + $0x30] sm:$0xff]
    %v3581 = vld [vmem:[%s3573 + $0x38] sm:$0xff]
    %v3582 = vrot.slane %v3155, 3
    %v3591 = vunpack.c.l.b16 %v3574
    %v3592 = vunpack.c.h.b16 %v3574
    %v3593 = vunpack.c.l.b16 %v3575
    %v3594 = vunpack.c.h.b16 %v3575
    %v3595 = vunpack.c.l.b16 %v3576
    %v3596 = vunpack.c.h.b16 %v3576
    %v3597 = vunpack.c.l.b16 %v3577
    %v3598 = vunpack.c.h.b16 %v3577
    %v3599 = vunpack.c.l.b16 %v3578
    %v3600 = vunpack.c.h.b16 %v3578
    %v3601 = vunpack.c.l.b16 %v3579
    %v3602 = vunpack.c.h.b16 %v3579
    %v3603 = vunpack.c.l.b16 %v3580
    %v3604 = vunpack.c.h.b16 %v3580
    %v3605 = vunpack.c.l.b16 %v3581
    %v3606 = vunpack.c.h.b16 %v3581
    %v3607 = vpack.c.b16 %v3595, %v3591
    %v3608 = vpack.c.b16 %v3596, %v3592
    %v3609 = vpack.c.b16 %v3597, %v3593
    %v3610 = vpack.c.b16 %v3598, %v3594
    %v3611 = vpack.c.b16 %v3603, %v3599
    %v3612 = vpack.c.b16 %v3604, %v3600
    %v3613 = vpack.c.b16 %v3605, %v3601
    %v3614 = vpack.c.b16 %v3606, %v3602
    %v3624 = vsel %vm574, %v3582, 0
    %3626 = vmatprep.subr.bf16.mxu0 %v3608
    %3627 = vmatpush1.bf16.msra.mxu0 %v3607
    %3628 = vmatprep.subr.bf16.mxu0 %v3612
    %3629 = vmatpush1.bf16.msra.mxu0 %v3611
    %3630 = vmatprep.subr.bf16.mxu0 0
    %3631 = vmatpush1.bf16.msra.mxu0 0
    %3632 = vmatprep.subr.bf16.mxu0 0
    %3633 = vmatpush1.bf16.msra.mxu0 0
    %3634 = vmatprep.subr.bf16.mxu0 0
    %3635 = vmatpush1.bf16.msra.mxu0 0
    %3636 = vmatprep.subr.bf16.mxu0 0
    %3637 = vmatpush1.bf16.msra.mxu0 0
    %3638 = vmatprep.subr.bf16.mxu0 0
    %3639 = vmatpush1.bf16.msra.mxu0 0
    %3640 = vmatprep.subr.bf16.mxu0 0
    %3641 = vmatpush1.bf16.msra.mxu0 0
    %3642 = vmatprep.subr.bf16.mxu0 0
    %3643 = vmatpush1.bf16.msra.mxu0 0
    %3644 = vmatprep.subr.bf16.mxu0 0
    %3645 = vmatpush1.bf16.msra.mxu0 0
    %3646 = vmatprep.subr.bf16.mxu0 0
    %3647 = vmatpush1.bf16.msra.mxu0 0
    %3648 = vmatprep.subr.bf16.mxu0 0
    %3649 = vmatpush1.bf16.msra.mxu0 0
    %3650 = vmatprep.subr.bf16.mxu0 0
    %3651 = vmatpush1.bf16.msra.mxu0 0
    %3652 = vmatprep.subr.bf16.mxu0 0
    %3653 = vmatpush1.bf16.msra.mxu0 0
    %3654 = vmatprep.subr.bf16.mxu0 0
    %3655 = vmatpush1.bf16.msra.mxu0 0
    %3656 = vmatprep.subr.bf16.mxu0 0
    %3657 = vmatpush1.bf16.msra.mxu0 0
    %3658 = vmatprep.mubr.bf16.mxu0 0
    %3659 = vmatmul.mubr.bf16.gmra.mrb[0].mxu0 %v3624
    %v3660 = vpop.f32.mrb[0].mxu0
    %v3661 = vadd.f32 0.0, %v3660
    %v3662 = vpop.f32.mrb[0].mxu0
    %v3663 = vadd.f32 0.0, %v3662
    %v3664 = vpop.f32.mrb[0].mxu0
    %v3665 = vpop.f32.mrb[0].mxu0
    %3666 = vdwg.mxu0
    %3667 = vmatprep.subr.bf16.mxu0 %v3610
    %3668 = vmatpush1.bf16.msra.mxu0 %v3609
    %3669 = vmatprep.subr.bf16.mxu0 %v3614
    %3670 = vmatpush1.bf16.msra.mxu0 %v3613
    %3671 = vmatprep.subr.bf16.mxu0 0
    %3672 = vmatpush1.bf16.msra.mxu0 0
    %3673 = vmatprep.subr.bf16.mxu0 0
    %3674 = vmatpush1.bf16.msra.mxu0 0
    %3675 = vmatprep.subr.bf16.mxu0 0
    %3676 = vmatpush1.bf16.msra.mxu0 0
    %3677 = vmatprep.subr.bf16.mxu0 0
    %3678 = vmatpush1.bf16.msra.mxu0 0
    %3679 = vmatprep.subr.bf16.mxu0 0
    %3680 = vmatpush1.bf16.msra.mxu0 0
    %3681 = vmatprep.subr.bf16.mxu0 0
    %3682 = vmatpush1.bf16.msra.mxu0 0
    %3683 = vmatprep.subr.bf16.mxu0 0
    %3684 = vmatpush1.bf16.msra.mxu0 0
    %3685 = vmatprep.subr.bf16.mxu0 0
    %3686 = vmatpush1.bf16.msra.mxu0 0
    %3687 = vmatprep.subr.bf16.mxu0 0
    %3688 = vmatpush1.bf16.msra.mxu0 0
    %3689 = vmatprep.subr.bf16.mxu0 0
    %3690 = vmatpush1.bf16.msra.mxu0 0
    %3691 = vmatprep.subr.bf16.mxu0 0
    %3692 = vmatpush1.bf16.msra.mxu0 0
    %3693 = vmatprep.subr.bf16.mxu0 0
    %3694 = vmatpush1.bf16.msra.mxu0 0
    %3695 = vmatprep.subr.bf16.mxu0 0
    %3696 = vmatpush1.bf16.msra.mxu0 0
    %3697 = vmatprep.subr.bf16.mxu0 0
    %3698 = vmatpush1.bf16.msra.mxu0 0
    %3699 = vmatprep.mubr.bf16.mxu0 0
    %3700 = vmatmul.mubr.bf16.gmra.mrb[0].mxu0 %v3624
    %v3701 = vpop.f32.mrb[0].mxu0
    %v3702 = vadd.f32 0.0, %v3701
    %v3703 = vpop.f32.mrb[0].mxu0
    %v3704 = vadd.f32 0.0, %v3703
    %v3705 = vpop.f32.mrb[0].mxu0
    %v3706 = vpop.f32.mrb[0].mxu0
    %3707 = vdwg.mxu0
    %v3708 = vadd.f32 %v3569, %v3661
    %v3709 = vadd.f32 %v3570, %v3663
    %v3710 = vadd.f32 %v3571, %v3702
    %v3711 = vadd.f32 %v3572, %v3704
    %v3712 = vpack.c.bf16 %v2038, %v2038
    %s3713 = scalar_lea.vmem [#allocation13], 768
    %v3714 = vld [vmem:[%s3713] sm:$0xff]
    %v3715 = vld [vmem:[%s3713 + $0x8] sm:$0xff]
    %v3716 = vld [vmem:[%s3713 + $0x10] sm:$0xff]
    %v3717 = vld [vmem:[%s3713 + $0x18] sm:$0xff]
    %v3718 = vld [vmem:[%s3713 + $0x20] sm:$0xff]
    %v3719 = vld [vmem:[%s3713 + $0x28] sm:$0xff]
    %v3720 = vld [vmem:[%s3713 + $0x30] sm:$0xff]
    %v3721 = vld [vmem:[%s3713 + $0x38] sm:$0xff]
    %v3730 = vunpack.c.l.b16 %v3714
    %v3731 = vunpack.c.h.b16 %v3714
    %v3732 = vunpack.c.l.b16 %v3715
    %v3733 = vunpack.c.h.b16 %v3715
    %v3734 = vunpack.c.l.b16 %v3716
    %v3735 = vunpack.c.h.b16 %v3716
    %v3736 = vunpack.c.l.b16 %v3717
    %v3737 = vunpack.c.h.b16 %v3717
    %v3738 = vunpack.c.l.b16 %v3718
    %v3739 = vunpack.c.h.b16 %v3718
    %v3740 = vunpack.c.l.b16 %v3719
    %v3741 = vunpack.c.h.b16 %v3719
    %v3742 = vunpack.c.l.b16 %v3720
    %v3743 = vunpack.c.h.b16 %v3720
    %v3744 = vunpack.c.l.b16 %v3721
    %v3745 = vunpack.c.h.b16 %v3721
    %v3746 = vpack.c.b16 %v3734, %v3730
    %v3747 = vpack.c.b16 %v3735, %v3731
    %v3748 = vpack.c.b16 %v3736, %v3732
    %v3749 = vpack.c.b16 %v3737, %v3733
    %v3750 = vpack.c.b16 %v3742, %v3738
    %v3751 = vpack.c.b16 %v3743, %v3739
    %v3752 = vpack.c.b16 %v3744, %v3740
    %v3753 = vpack.c.b16 %v3745, %v3741
    %v3763 = vsel %vm574, %v3712, 0
    %3765 = vmatprep.subr.bf16.mxu0 %v3747
    %3766 = vmatpush1.bf16.msra.mxu0 %v3746
    %3767 = vmatprep.subr.bf16.mxu0 %v3751
    %3768 = vmatpush1.bf16.msra.mxu0 %v3750
    %3769 = vmatprep.subr.bf16.mxu0 0
    %3770 = vmatpush1.bf16.msra.mxu0 0
    %3771 = vmatprep.subr.bf16.mxu0 0
    %3772 = vmatpush1.bf16.msra.mxu0 0
    %3773 = vmatprep.subr.bf16.mxu0 0
    %3774 = vmatpush1.bf16.msra.mxu0 0
    %3775 = vmatprep.subr.bf16.mxu0 0
    %3776 = vmatpush1.bf16.msra.mxu0 0
    %3777 = vmatprep.subr.bf16.mxu0 0
    %3778 = vmatpush1.bf16.msra.mxu0 0
    %3779 = vmatprep.subr.bf16.mxu0 0
    %3780 = vmatpush1.bf16.msra.mxu0 0
    %3781 = vmatprep.subr.bf16.mxu0 0
    %3782 = vmatpush1.bf16.msra.mxu0 0
    %3783 = vmatprep.subr.bf16.mxu0 0
    %3784 = vmatpush1.bf16.msra.mxu0 0
    %3785 = vmatprep.subr.bf16.mxu0 0
    %3786 = vmatpush1.bf16.msra.mxu0 0
    %3787 = vmatprep.subr.bf16.mxu0 0
    %3788 = vmatpush1.bf16.msra.mxu0 0
    %3789 = vmatprep.subr.bf16.mxu0 0
    %3790 = vmatpush1.bf16.msra.mxu0 0
    %3791 = vmatprep.subr.bf16.mxu0 0
    %3792 = vmatpush1.bf16.msra.mxu0 0
    %3793 = vmatprep.subr.bf16.mxu0 0
    %3794 = vmatpush1.bf16.msra.mxu0 0
    %3795 = vmatprep.subr.bf16.mxu0 0
    %3796 = vmatpush1.bf16.msra.mxu0 0
    %3797 = vmatprep.mubr.bf16.mxu0 0
    %3798 = vmatmul.mubr.bf16.gmra.mrb[0].mxu0 %v3763
    %v3799 = vpop.f32.mrb[0].mxu0
    %v3800 = vadd.f32 0.0, %v3799
    %v3801 = vpop.f32.mrb[0].mxu0
    %v3802 = vadd.f32 0.0, %v3801
    %v3803 = vpop.f32.mrb[0].mxu0
    %v3804 = vpop.f32.mrb[0].mxu0
    %3805 = vdwg.mxu0
    %3806 = vmatprep.subr.bf16.mxu0 %v3749
    %3807 = vmatpush1.bf16.msra.mxu0 %v3748
    %3808 = vmatprep.subr.bf16.mxu0 %v3753
    %3809 = vmatpush1.bf16.msra.mxu0 %v3752
    %3810 = vmatprep.subr.bf16.mxu0 0
    %3811 = vmatpush1.bf16.msra.mxu0 0
    %3812 = vmatprep.subr.bf16.mxu0 0
    %3813 = vmatpush1.bf16.msra.mxu0 0
    %3814 = vmatprep.subr.bf16.mxu0 0
    %3815 = vmatpush1.bf16.msra.mxu0 0
    %3816 = vmatprep.subr.bf16.mxu0 0
    %3817 = vmatpush1.bf16.msra.mxu0 0
    %3818 = vmatprep.subr.bf16.mxu0 0
    %3819 = vmatpush1.bf16.msra.mxu0 0
    %3820 = vmatprep.subr.bf16.mxu0 0
    %3821 = vmatpush1.bf16.msra.mxu0 0
    %3822 = vmatprep.subr.bf16.mxu0 0
    %3823 = vmatpush1.bf16.msra.mxu0 0
    %3824 = vmatprep.subr.bf16.mxu0 0
    %3825 = vmatpush1.bf16.msra.mxu0 0
    %3826 = vmatprep.subr.bf16.mxu0 0
    %3827 = vmatpush1.bf16.msra.mxu0 0
    %3828 = vmatprep.subr.bf16.mxu0 0
    %3829 = vmatpush1.bf16.msra.mxu0 0
    %3830 = vmatprep.subr.bf16.mxu0 0
    %3831 = vmatpush1.bf16.msra.mxu0 0
    %3832 = vmatprep.subr.bf16.mxu0 0
    %3833 = vmatpush1.bf16.msra.mxu0 0
    %3834 = vmatprep.subr.bf16.mxu0 0
    %3835 = vmatpush1.bf16.msra.mxu0 0
    %3836 = vmatprep.subr.bf16.mxu0 0
    %3837 = vmatpush1.bf16.msra.mxu0 0
    %3838 = vmatprep.mubr.bf16.mxu0 0
    %3839 = vmatmul.mubr.bf16.gmra.mrb[0].mxu0 %v3763
    %v3840 = vpop.f32.mrb[0].mxu0
    %v3841 = vadd.f32 0.0, %v3840
    %v3842 = vpop.f32.mrb[0].mxu0
    %v3843 = vadd.f32 0.0, %v3842
    %v3844 = vpop.f32.mrb[0].mxu0
    %v3845 = vpop.f32.mrb[0].mxu0
    %3846 = vdwg.mxu0
    %v3847 = vadd.f32 %v3708, %v3800
    %v3848 = vadd.f32 %v3709, %v3802
    %v3849 = vadd.f32 %v3710, %v3841
    %v3850 = vadd.f32 %v3711, %v3843
    %s3851 = scalar_lea.vmem [#allocation13], 832
    %v3852 = vld [vmem:[%s3851] sm:$0xff]
    %v3853 = vld [vmem:[%s3851 + $0x8] sm:$0xff]
    %v3854 = vld [vmem:[%s3851 + $0x10] sm:$0xff]
    %v3855 = vld [vmem:[%s3851 + $0x18] sm:$0xff]
    %v3856 = vld [vmem:[%s3851 + $0x20] sm:$0xff]
    %v3857 = vld [vmem:[%s3851 + $0x28] sm:$0xff]
    %v3858 = vld [vmem:[%s3851 + $0x30] sm:$0xff]
    %v3859 = vld [vmem:[%s3851 + $0x38] sm:$0xff]
    %v3861 = vrot.slane %v3712, 1
    %v3870 = vunpack.c.l.b16 %v3852
    %v3871 = vunpack.c.h.b16 %v3852
    %v3872 = vunpack.c.l.b16 %v3853
    %v3873 = vunpack.c.h.b16 %v3853
    %v3874 = vunpack.c.l.b16 %v3854
    %v3875 = vunpack.c.h.b16 %v3854
    %v3876 = vunpack.c.l.b16 %v3855
    %v3877 = vunpack.c.h.b16 %v3855
    %v3878 = vunpack.c.l.b16 %v3856
    %v3879 = vunpack.c.h.b16 %v3856
    %v3880 = vunpack.c.l.b16 %v3857
    %v3881 = vunpack.c.h.b16 %v3857
    %v3882 = vunpack.c.l.b16 %v3858
    %v3883 = vunpack.c.h.b16 %v3858
    %v3884 = vunpack.c.l.b16 %v3859
    %v3885 = vunpack.c.h.b16 %v3859
    %v3886 = vpack.c.b16 %v3874, %v3870
    %v3887 = vpack.c.b16 %v3875, %v3871
    %v3888 = vpack.c.b16 %v3876, %v3872
    %v3889 = vpack.c.b16 %v3877, %v3873
    %v3890 = vpack.c.b16 %v3882, %v3878
    %v3891 = vpack.c.b16 %v3883, %v3879
    %v3892 = vpack.c.b16 %v3884, %v3880
    %v3893 = vpack.c.b16 %v3885, %v3881
    %v3903 = vsel %vm574, %v3861, 0
    %3905 = vmatprep.subr.bf16.mxu0 %v3887
    %3906 = vmatpush1.bf16.msra.mxu0 %v3886
    %3907 = vmatprep.subr.bf16.mxu0 %v3891
    %3908 = vmatpush1.bf16.msra.mxu0 %v3890
    %3909 = vmatprep.subr.bf16.mxu0 0
    %3910 = vmatpush1.bf16.msra.mxu0 0
    %3911 = vmatprep.subr.bf16.mxu0 0
    %3912 = vmatpush1.bf16.msra.mxu0 0
    %3913 = vmatprep.subr.bf16.mxu0 0
    %3914 = vmatpush1.bf16.msra.mxu0 0
    %3915 = vmatprep.subr.bf16.mxu0 0
    %3916 = vmatpush1.bf16.msra.mxu0 0
    %3917 = vmatprep.subr.bf16.mxu0 0
    %3918 = vmatpush1.bf16.msra.mxu0 0
    %3919 = vmatprep.subr.bf16.mxu0 0
    %3920 = vmatpush1.bf16.msra.mxu0 0
    %3921 = vmatprep.subr.bf16.mxu0 0
    %3922 = vmatpush1.bf16.msra.mxu0 0
    %3923 = vmatprep.subr.bf16.mxu0 0
    %3924 = vmatpush1.bf16.msra.mxu0 0
    %3925 = vmatprep.subr.bf16.mxu0 0
    %3926 = vmatpush1.bf16.msra.mxu0 0
    %3927 = vmatprep.subr.bf16.mxu0 0
    %3928 = vmatpush1.bf16.msra.mxu0 0
    %3929 = vmatprep.subr.bf16.mxu0 0
    %3930 = vmatpush1.bf16.msra.mxu0 0
    %3931 = vmatprep.subr.bf16.mxu0 0
    %3932 = vmatpush1.bf16.msra.mxu0 0
    %3933 = vmatprep.subr.bf16.mxu0 0
    %3934 = vmatpush1.bf16.msra.mxu0 0
    %3935 = vmatprep.subr.bf16.mxu0 0
    %3936 = vmatpush1.bf16.msra.mxu0 0
    %3937 = vmatprep.mubr.bf16.mxu0 0
    %3938 = vmatmul.mubr.bf16.gmra.mrb[0].mxu0 %v3903
    %v3939 = vpop.f32.mrb[0].mxu0
    %v3940 = vadd.f32 0.0, %v3939
    %v3941 = vpop.f32.mrb[0].mxu0
    %v3942 = vadd.f32 0.0, %v3941
    %v3943 = vpop.f32.mrb[0].mxu0
    %v3944 = vpop.f32.mrb[0].mxu0
    %3945 = vdwg.mxu0
    %3946 = vmatprep.subr.bf16.mxu0 %v3889
    %3947 = vmatpush1.bf16.msra.mxu0 %v3888
    %3948 = vmatprep.subr.bf16.mxu0 %v3893
    %3949 = vmatpush1.bf16.msra.mxu0 %v3892
    %3950 = vmatprep.subr.bf16.mxu0 0
    %3951 = vmatpush1.bf16.msra.mxu0 0
    %3952 = vmatprep.subr.bf16.mxu0 0
    %3953 = vmatpush1.bf16.msra.mxu0 0
    %3954 = vmatprep.subr.bf16.mxu0 0
    %3955 = vmatpush1.bf16.msra.mxu0 0
    %3956 = vmatprep.subr.bf16.mxu0 0
    %3957 = vmatpush1.bf16.msra.mxu0 0
    %3958 = vmatprep.subr.bf16.mxu0 0
    %3959 = vmatpush1.bf16.msra.mxu0 0
    %3960 = vmatprep.subr.bf16.mxu0 0
    %3961 = vmatpush1.bf16.msra.mxu0 0
    %3962 = vmatprep.subr.bf16.mxu0 0
    %3963 = vmatpush1.bf16.msra.mxu0 0
    %3964 = vmatprep.subr.bf16.mxu0 0
    %3965 = vmatpush1.bf16.msra.mxu0 0
    %3966 = vmatprep.subr.bf16.mxu0 0
    %3967 = vmatpush1.bf16.msra.mxu0 0
    %3968 = vmatprep.subr.bf16.mxu0 0
    %3969 = vmatpush1.bf16.msra.mxu0 0
    %3970 = vmatprep.subr.bf16.mxu0 0
    %3971 = vmatpush1.bf16.msra.mxu0 0
    %3972 = vmatprep.subr.bf16.mxu0 0
    %3973 = vmatpush1.bf16.msra.mxu0 0
    %3974 = vmatprep.subr.bf16.mxu0 0
    %3975 = vmatpush1.bf16.msra.mxu0 0
    %3976 = vmatprep.subr.bf16.mxu0 0
    %3977 = vmatpush1.bf16.msra.mxu0 0
    %3978 = vmatprep.mubr.bf16.mxu0 0
    %3979 = vmatmul.mubr.bf16.gmra.mrb[0].mxu0 %v3903
    %v3980 = vpop.f32.mrb[0].mxu0
    %v3981 = vadd.f32 0.0, %v3980
    %v3982 = vpop.f32.mrb[0].mxu0
    %v3983 = vadd.f32 0.0, %v3982
    %v3984 = vpop.f32.mrb[0].mxu0
    %v3985 = vpop.f32.mrb[0].mxu0
    %3986 = vdwg.mxu0
    %v3987 = vadd.f32 %v3847, %v3940
    %v3988 = vadd.f32 %v3848, %v3942
    %v3989 = vadd.f32 %v3849, %v3981
    %v3990 = vadd.f32 %v3850, %v3983
    %s3991 = scalar_lea.vmem [#allocation13], 896
    %v3992 = vld [vmem:[%s3991] sm:$0xff]
    %v3993 = vld [vmem:[%s3991 + $0x8] sm:$0xff]
    %v3994 = vld [vmem:[%s3991 + $0x10] sm:$0xff]
    %v3995 = vld [vmem:[%s3991 + $0x18] sm:$0xff]
    %v3996 = vld [vmem:[%s3991 + $0x20] sm:$0xff]
    %v3997 = vld [vmem:[%s3991 + $0x28] sm:$0xff]
    %v3998 = vld [vmem:[%s3991 + $0x30] sm:$0xff]
    %v3999 = vld [vmem:[%s3991 + $0x38] sm:$0xff]
    %v4000 = vrot.slane %v3712, 2
    %v4009 = vunpack.c.l.b16 %v3992
    %v4010 = vunpack.c.h.b16 %v3992
    %v4011 = vunpack.c.l.b16 %v3993
    %v4012 = vunpack.c.h.b16 %v3993
    %v4013 = vunpack.c.l.b16 %v3994
    %v4014 = vunpack.c.h.b16 %v3994
    %v4015 = vunpack.c.l.b16 %v3995
    %v4016 = vunpack.c.h.b16 %v3995
    %v4017 = vunpack.c.l.b16 %v3996
    %v4018 = vunpack.c.h.b16 %v3996
    %v4019 = vunpack.c.l.b16 %v3997
    %v4020 = vunpack.c.h.b16 %v3997
    %v4021 = vunpack.c.l.b16 %v3998
    %v4022 = vunpack.c.h.b16 %v3998
    %v4023 = vunpack.c.l.b16 %v3999
    %v4024 = vunpack.c.h.b16 %v3999
    %v4025 = vpack.c.b16 %v4013, %v4009
    %v4026 = vpack.c.b16 %v4014, %v4010
    %v4027 = vpack.c.b16 %v4015, %v4011
    %v4028 = vpack.c.b16 %v4016, %v4012
    %v4029 = vpack.c.b16 %v4021, %v4017
    %v4030 = vpack.c.b16 %v4022, %v4018
    %v4031 = vpack.c.b16 %v4023, %v4019
    %v4032 = vpack.c.b16 %v4024, %v4020
    %v4042 = vsel %vm574, %v4000, 0
    %4044 = vmatprep.subr.bf16.mxu0 %v4026
    %4045 = vmatpush1.bf16.msra.mxu0 %v4025
    %4046 = vmatprep.subr.bf16.mxu0 %v4030
    %4047 = vmatpush1.bf16.msra.mxu0 %v4029
    %4048 = vmatprep.subr.bf16.mxu0 0
    %4049 = vmatpush1.bf16.msra.mxu0 0
    %4050 = vmatprep.subr.bf16.mxu0 0
    %4051 = vmatpush1.bf16.msra.mxu0 0
    %4052 = vmatprep.subr.bf16.mxu0 0
    %4053 = vmatpush1.bf16.msra.mxu0 0
    %4054 = vmatprep.subr.bf16.mxu0 0
    %4055 = vmatpush1.bf16.msra.mxu0 0
    %4056 = vmatprep.subr.bf16.mxu0 0
    %4057 = vmatpush1.bf16.msra.mxu0 0
    %4058 = vmatprep.subr.bf16.mxu0 0
    %4059 = vmatpush1.bf16.msra.mxu0 0
    %4060 = vmatprep.subr.bf16.mxu0 0
    %4061 = vmatpush1.bf16.msra.mxu0 0
    %4062 = vmatprep.subr.bf16.mxu0 0
    %4063 = vmatpush1.bf16.msra.mxu0 0
    %4064 = vmatprep.subr.bf16.mxu0 0
    %4065 = vmatpush1.bf16.msra.mxu0 0
    %4066 = vmatprep.subr.bf16.mxu0 0
    %4067 = vmatpush1.bf16.msra.mxu0 0
    %4068 = vmatprep.subr.bf16.mxu0 0
    %4069 = vmatpush1.bf16.msra.mxu0 0
    %4070 = vmatprep.subr.bf16.mxu0 0
    %4071 = vmatpush1.bf16.msra.mxu0 0
    %4072 = vmatprep.subr.bf16.mxu0 0
    %4073 = vmatpush1.bf16.msra.mxu0 0
    %4074 = vmatprep.subr.bf16.mxu0 0
    %4075 = vmatpush1.bf16.msra.mxu0 0
    %4076 = vmatprep.mubr.bf16.mxu0 0
    %4077 = vmatmul.mubr.bf16.gmra.mrb[0].mxu0 %v4042
    %v4078 = vpop.f32.mrb[0].mxu0
    %v4079 = vadd.f32 0.0, %v4078
    %v4080 = vpop.f32.mrb[0].mxu0
    %v4081 = vadd.f32 0.0, %v4080
    %v4082 = vpop.f32.mrb[0].mxu0
    %v4083 = vpop.f32.mrb[0].mxu0
    %4084 = vdwg.mxu0
    %4085 = vmatprep.subr.bf16.mxu0 %v4028
    %4086 = vmatpush1.bf16.msra.mxu0 %v4027
    %4087 = vmatprep.subr.bf16.mxu0 %v4032
    %4088 = vmatpush1.bf16.msra.mxu0 %v4031
    %4089 = vmatprep.subr.bf16.mxu0 0
    %4090 = vmatpush1.bf16.msra.mxu0 0
    %4091 = vmatprep.subr.bf16.mxu0 0
    %4092 = vmatpush1.bf16.msra.mxu0 0
    %4093 = vmatprep.subr.bf16.mxu0 0
    %4094 = vmatpush1.bf16.msra.mxu0 0
    %4095 = vmatprep.subr.bf16.mxu0 0
    %4096 = vmatpush1.bf16.msra.mxu0 0
    %4097 = vmatprep.subr.bf16.mxu0 0
    %4098 = vmatpush1.bf16.msra.mxu0 0
    %4099 = vmatprep.subr.bf16.mxu0 0
    %4100 = vmatpush1.bf16.msra.mxu0 0
    %4101 = vmatprep.subr.bf16.mxu0 0
    %4102 = vmatpush1.bf16.msra.mxu0 0
    %4103 = vmatprep.subr.bf16.mxu0 0
    %4104 = vmatpush1.bf16.msra.mxu0 0
    %4105 = vmatprep.subr.bf16.mxu0 0
    %4106 = vmatpush1.bf16.msra.mxu0 0
    %4107 = vmatprep.subr.bf16.mxu0 0
    %4108 = vmatpush1.bf16.msra.mxu0 0
    %4109 = vmatprep.subr.bf16.mxu0 0
    %4110 = vmatpush1.bf16.msra.mxu0 0
    %4111 = vmatprep.subr.bf16.mxu0 0
    %4112 = vmatpush1.bf16.msra.mxu0 0
    %4113 = vmatprep.subr.bf16.mxu0 0
    %4114 = vmatpush1.bf16.msra.mxu0 0
    %4115 = vmatprep.subr.bf16.mxu0 0
    %4116 = vmatpush1.bf16.msra.mxu0 0
    %4117 = vmatprep.mubr.bf16.mxu0 0
    %4118 = vmatmul.mubr.bf16.gmra.mrb[0].mxu0 %v4042
    %v4119 = vpop.f32.mrb[0].mxu0
    %v4120 = vadd.f32 0.0, %v4119
    %v4121 = vpop.f32.mrb[0].mxu0
    %v4122 = vadd.f32 0.0, %v4121
    %v4123 = vpop.f32.mrb[0].mxu0
    %v4124 = vpop.f32.mrb[0].mxu0
    %4125 = vdwg.mxu0
    %v4126 = vadd.f32 %v3987, %v4079
    %v4127 = vadd.f32 %v3988, %v4081
    %v4128 = vadd.f32 %v3989, %v4120
    %v4129 = vadd.f32 %v3990, %v4122
    %s4130 = scalar_lea.vmem [#allocation13], 960
    %v4131 = vld [vmem:[%s4130] sm:$0xff]
    %v4132 = vld [vmem:[%s4130 + $0x8] sm:$0xff]
    %v4133 = vld [vmem:[%s4130 + $0x10] sm:$0xff]
    %v4134 = vld [vmem:[%s4130 + $0x18] sm:$0xff]
    %v4135 = vld [vmem:[%s4130 + $0x20] sm:$0xff]
    %v4136 = vld [vmem:[%s4130 + $0x28] sm:$0xff]
    %v4137 = vld [vmem:[%s4130 + $0x30] sm:$0xff]
    %v4138 = vld [vmem:[%s4130 + $0x38] sm:$0xff]
    %v4139 = vrot.slane %v3712, 3
    %v4148 = vunpack.c.l.b16 %v4131
    %v4149 = vunpack.c.h.b16 %v4131
    %v4150 = vunpack.c.l.b16 %v4132
    %v4151 = vunpack.c.h.b16 %v4132
    %v4152 = vunpack.c.l.b16 %v4133
    %v4153 = vunpack.c.h.b16 %v4133
    %v4154 = vunpack.c.l.b16 %v4134
    %v4155 = vunpack.c.h.b16 %v4134
    %v4156 = vunpack.c.l.b16 %v4135
    %v4157 = vunpack.c.h.b16 %v4135
    %v4158 = vunpack.c.l.b16 %v4136
    %v4159 = vunpack.c.h.b16 %v4136
    %v4160 = vunpack.c.l.b16 %v4137
    %v4161 = vunpack.c.h.b16 %v4137
    %v4162 = vunpack.c.l.b16 %v4138
    %v4163 = vunpack.c.h.b16 %v4138
    %v4164 = vpack.c.b16 %v4152, %v4148
    %v4165 = vpack.c.b16 %v4153, %v4149
    %v4166 = vpack.c.b16 %v4154, %v4150
    %v4167 = vpack.c.b16 %v4155, %v4151
    %v4168 = vpack.c.b16 %v4160, %v4156
    %v4169 = vpack.c.b16 %v4161, %v4157
    %v4170 = vpack.c.b16 %v4162, %v4158
    %v4171 = vpack.c.b16 %v4163, %v4159
    %v4181 = vsel %vm574, %v4139, 0
    %4183 = vmatprep.subr.bf16.mxu0 %v4165
    %4184 = vmatpush1.bf16.msra.mxu0 %v4164
    %4185 = vmatprep.subr.bf16.mxu0 %v4169
    %4186 = vmatpush1.bf16.msra.mxu0 %v4168
    %4187 = vmatprep.subr.bf16.mxu0 0
    %4188 = vmatpush1.bf16.msra.mxu0 0
    %4189 = vmatprep.subr.bf16.mxu0 0
    %4190 = vmatpush1.bf16.msra.mxu0 0
    %4191 = vmatprep.subr.bf16.mxu0 0
    %4192 = vmatpush1.bf16.msra.mxu0 0
    %4193 = vmatprep.subr.bf16.mxu0 0
    %4194 = vmatpush1.bf16.msra.mxu0 0
    %4195 = vmatprep.subr.bf16.mxu0 0
    %4196 = vmatpush1.bf16.msra.mxu0 0
    %4197 = vmatprep.subr.bf16.mxu0 0
    %4198 = vmatpush1.bf16.msra.mxu0 0
    %4199 = vmatprep.subr.bf16.mxu0 0
    %4200 = vmatpush1.bf16.msra.mxu0 0
    %4201 = vmatprep.subr.bf16.mxu0 0
    %4202 = vmatpush1.bf16.msra.mxu0 0
    %4203 = vmatprep.subr.bf16.mxu0 0
    %4204 = vmatpush1.bf16.msra.mxu0 0
    %4205 = vmatprep.subr.bf16.mxu0 0
    %4206 = vmatpush1.bf16.msra.mxu0 0
    %4207 = vmatprep.subr.bf16.mxu0 0
    %4208 = vmatpush1.bf16.msra.mxu0 0
    %4209 = vmatprep.subr.bf16.mxu0 0
    %4210 = vmatpush1.bf16.msra.mxu0 0
    %4211 = vmatprep.subr.bf16.mxu0 0
    %4212 = vmatpush1.bf16.msra.mxu0 0
    %4213 = vmatprep.subr.bf16.mxu0 0
    %4214 = vmatpush1.bf16.msra.mxu0 0
    %4215 = vmatprep.mubr.bf16.mxu0 0
    %4216 = vmatmul.mubr.bf16.gmra.mrb[0].mxu0 %v4181
    %v4217 = vpop.f32.mrb[0].mxu0
    %v4218 = vadd.f32 0.0, %v4217
    %v4219 = vpop.f32.mrb[0].mxu0
    %v4220 = vadd.f32 0.0, %v4219
    %v4221 = vpop.f32.mrb[0].mxu0
    %v4222 = vpop.f32.mrb[0].mxu0
    %4223 = vdwg.mxu0
    %4224 = vmatprep.subr.bf16.mxu0 %v4167
    %4225 = vmatpush1.bf16.msra.mxu0 %v4166
    %4226 = vmatprep.subr.bf16.mxu0 %v4171
    %4227 = vmatpush1.bf16.msra.mxu0 %v4170
    %4228 = vmatprep.subr.bf16.mxu0 0
    %4229 = vmatpush1.bf16.msra.mxu0 0
    %4230 = vmatprep.subr.bf16.mxu0 0
    %4231 = vmatpush1.bf16.msra.mxu0 0
    %4232 = vmatprep.subr.bf16.mxu0 0
    %4233 = vmatpush1.bf16.msra.mxu0 0
    %4234 = vmatprep.subr.bf16.mxu0 0
    %4235 = vmatpush1.bf16.msra.mxu0 0
    %4236 = vmatprep.subr.bf16.mxu0 0
    %4237 = vmatpush1.bf16.msra.mxu0 0
    %4238 = vmatprep.subr.bf16.mxu0 0
    %4239 = vmatpush1.bf16.msra.mxu0 0
    %4240 = vmatprep.subr.bf16.mxu0 0
    %4241 = vmatpush1.bf16.msra.mxu0 0
    %4242 = vmatprep.subr.bf16.mxu0 0
    %4243 = vmatpush1.bf16.msra.mxu0 0
    %4244 = vmatprep.subr.bf16.mxu0 0
    %4245 = vmatpush1.bf16.msra.mxu0 0
    %4246 = vmatprep.subr.bf16.mxu0 0
    %4247 = vmatpush1.bf16.msra.mxu0 0
    %4248 = vmatprep.subr.bf16.mxu0 0
    %4249 = vmatpush1.bf16.msra.mxu0 0
    %4250 = vmatprep.subr.bf16.mxu0 0
    %4251 = vmatpush1.bf16.msra.mxu0 0
    %4252 = vmatprep.subr.bf16.mxu0 0
    %4253 = vmatpush1.bf16.msra.mxu0 0
    %4254 = vmatprep.subr.bf16.mxu0 0
    %4255 = vmatpush1.bf16.msra.mxu0 0
    %4256 = vmatprep.mubr.bf16.mxu0 0
    %4257 = vmatmul.mubr.bf16.gmra.mrb[0].mxu0 %v4181
    %v4258 = vpop.f32.mrb[0].mxu0
    %v4259 = vadd.f32 0.0, %v4258
    %v4260 = vpop.f32.mrb[0].mxu0
    %v4261 = vadd.f32 0.0, %v4260
    %v4262 = vpop.f32.mrb[0].mxu0
    %v4263 = vpop.f32.mrb[0].mxu0
    %4264 = vdwg.mxu0
    %v4265 = vadd.f32 %v4126, %v4218
    %v4266 = vadd.f32 %v4127, %v4220
    %v4267 = vadd.f32 %v4128, %v4259
    %v4268 = vadd.f32 %v4129, %v4261
    %v4269 = vpack.c.bf16 %v2039, %v2039
    %s4270 = scalar_lea.vmem [#allocation13], 1024
    %v4271 = vld [vmem:[%s4270] sm:$0xff]
    %v4272 = vld [vmem:[%s4270 + $0x8] sm:$0xff]
    %v4273 = vld [vmem:[%s4270 + $0x10] sm:$0xff]
    %v4274 = vld [vmem:[%s4270 + $0x18] sm:$0xff]
    %v4275 = vld [vmem:[%s4270 + $0x20] sm:$0xff]
    %v4276 = vld [vmem:[%s4270 + $0x28] sm:$0xff]
    %v4277 = vld [vmem:[%s4270 + $0x30] sm:$0xff]
    %v4278 = vld [vmem:[%s4270 + $0x38] sm:$0xff]
    %v4287 = vunpack.c.l.b16 %v4271
    %v4288 = vunpack.c.h.b16 %v4271
    %v4289 = vunpack.c.l.b16 %v4272
    %v4290 = vunpack.c.h.b16 %v4272
    %v4291 = vunpack.c.l.b16 %v4273
    %v4292 = vunpack.c.h.b16 %v4273
    %v4293 = vunpack.c.l.b16 %v4274
    %v4294 = vunpack.c.h.b16 %v4274
    %v4295 = vunpack.c.l.b16 %v4275
    %v4296 = vunpack.c.h.b16 %v4275
    %v4297 = vunpack.c.l.b16 %v4276
    %v4298 = vunpack.c.h.b16 %v4276
    %v4299 = vunpack.c.l.b16 %v4277
    %v4300 = vunpack.c.h.b16 %v4277
    %v4301 = vunpack.c.l.b16 %v4278
    %v4302 = vunpack.c.h.b16 %v4278
    %v4303 = vpack.c.b16 %v4291, %v4287
    %v4304 = vpack.c.b16 %v4292, %v4288
    %v4305 = vpack.c.b16 %v4293, %v4289
    %v4306 = vpack.c.b16 %v4294, %v4290
    %v4307 = vpack.c.b16 %v4299, %v4295
    %v4308 = vpack.c.b16 %v4300, %v4296
    %v4309 = vpack.c.b16 %v4301, %v4297
    %v4310 = vpack.c.b16 %v4302, %v4298
    %v4320 = vsel %vm574, %v4269, 0
    %4322 = vmatprep.subr.bf16.mxu0 %v4304
    %4323 = vmatpush1.bf16.msra.mxu0 %v4303
    %4324 = vmatprep.subr.bf16.mxu0 %v4308
    %4325 = vmatpush1.bf16.msra.mxu0 %v4307
    %4326 = vmatprep.subr.bf16.mxu0 0
    %4327 = vmatpush1.bf16.msra.mxu0 0
    %4328 = vmatprep.subr.bf16.mxu0 0
    %4329 = vmatpush1.bf16.msra.mxu0 0
    %4330 = vmatprep.subr.bf16.mxu0 0
    %4331 = vmatpush1.bf16.msra.mxu0 0
    %4332 = vmatprep.subr.bf16.mxu0 0
    %4333 = vmatpush1.bf16.msra.mxu0 0
    %4334 = vmatprep.subr.bf16.mxu0 0
    %4335 = vmatpush1.bf16.msra.mxu0 0
    %4336 = vmatprep.subr.bf16.mxu0 0
    %4337 = vmatpush1.bf16.msra.mxu0 0
    %4338 = vmatprep.subr.bf16.mxu0 0
    %4339 = vmatpush1.bf16.msra.mxu0 0
    %4340 = vmatprep.subr.bf16.mxu0 0
    %4341 = vmatpush1.bf16.msra.mxu0 0
    %4342 = vmatprep.subr.bf16.mxu0 0
    %4343 = vmatpush1.bf16.msra.mxu0 0
    %4344 = vmatprep.subr.bf16.mxu0 0
    %4345 = vmatpush1.bf16.msra.mxu0 0
    %4346 = vmatprep.subr.bf16.mxu0 0
    %4347 = vmatpush1.bf16.msra.mxu0 0
    %4348 = vmatprep.subr.bf16.mxu0 0
    %4349 = vmatpush1.bf16.msra.mxu0 0
    %4350 = vmatprep.subr.bf16.mxu0 0
    %4351 = vmatpush1.bf16.msra.mxu0 0
    %4352 = vmatprep.subr.bf16.mxu0 0
    %4353 = vmatpush1.bf16.msra.mxu0 0
    %4354 = vmatprep.mubr.bf16.mxu0 0
    %4355 = vmatmul.mubr.bf16.gmra.mrb[0].mxu0 %v4320
    %v4356 = vpop.f32.mrb[0].mxu0
    %v4357 = vadd.f32 0.0, %v4356
    %v4358 = vpop.f32.mrb[0].mxu0
    %v4359 = vadd.f32 0.0, %v4358
    %v4360 = vpop.f32.mrb[0].mxu0
    %v4361 = vpop.f32.mrb[0].mxu0
    %4362 = vdwg.mxu0
    %4363 = vmatprep.subr.bf16.mxu0 %v4306
    %4364 = vmatpush1.bf16.msra.mxu0 %v4305
    %4365 = vmatprep.subr.bf16.mxu0 %v4310
    %4366 = vmatpush1.bf16.msra.mxu0 %v4309
    %4367 = vmatprep.subr.bf16.mxu0 0
    %4368 = vmatpush1.bf16.msra.mxu0 0
    %4369 = vmatprep.subr.bf16.mxu0 0
    %4370 = vmatpush1.bf16.msra.mxu0 0
    %4371 = vmatprep.subr.bf16.mxu0 0
    %4372 = vmatpush1.bf16.msra.mxu0 0
    %4373 = vmatprep.subr.bf16.mxu0 0
    %4374 = vmatpush1.bf16.msra.mxu0 0
    %4375 = vmatprep.subr.bf16.mxu0 0
    %4376 = vmatpush1.bf16.msra.mxu0 0
    %4377 = vmatprep.subr.bf16.mxu0 0
    %4378 = vmatpush1.bf16.msra.mxu0 0
    %4379 = vmatprep.subr.bf16.mxu0 0
    %4380 = vmatpush1.bf16.msra.mxu0 0
    %4381 = vmatprep.subr.bf16.mxu0 0
    %4382 = vmatpush1.bf16.msra.mxu0 0
    %4383 = vmatprep.subr.bf16.mxu0 0
    %4384 = vmatpush1.bf16.msra.mxu0 0
    %4385 = vmatprep.subr.bf16.mxu0 0
    %4386 = vmatpush1.bf16.msra.mxu0 0
    %4387 = vmatprep.subr.bf16.mxu0 0
    %4388 = vmatpush1.bf16.msra.mxu0 0
    %4389 = vmatprep.subr.bf16.mxu0 0
    %4390 = vmatpush1.bf16.msra.mxu0 0
    %4391 = vmatprep.subr.bf16.mxu0 0
    %4392 = vmatpush1.bf16.msra.mxu0 0
    %4393 = vmatprep.subr.bf16.mxu0 0
    %4394 = vmatpush1.bf16.msra.mxu0 0
    %4395 = vmatprep.mubr.bf16.mxu0 0
    %4396 = vmatmul.mubr.bf16.gmra.mrb[0].mxu0 %v4320
    %v4397 = vpop.f32.mrb[0].mxu0
    %v4398 = vadd.f32 0.0, %v4397
    %v4399 = vpop.f32.mrb[0].mxu0
    %v4400 = vadd.f32 0.0, %v4399
    %v4401 = vpop.f32.mrb[0].mxu0
    %v4402 = vpop.f32.mrb[0].mxu0
    %4403 = vdwg.mxu0
    %v4404 = vadd.f32 %v4265, %v4357
    %v4405 = vadd.f32 %v4266, %v4359
    %v4406 = vadd.f32 %v4267, %v4398
    %v4407 = vadd.f32 %v4268, %v4400
    %s4408 = scalar_lea.vmem [#allocation13], 1088
    %v4409 = vld [vmem:[%s4408] sm:$0xff]
    %v4410 = vld [vmem:[%s4408 + $0x8] sm:$0xff]
    %v4411 = vld [vmem:[%s4408 + $0x10] sm:$0xff]
    %v4412 = vld [vmem:[%s4408 + $0x18] sm:$0xff]
    %v4413 = vld [vmem:[%s4408 + $0x20] sm:$0xff]
    %v4414 = vld [vmem:[%s4408 + $0x28] sm:$0xff]
    %v4415 = vld [vmem:[%s4408 + $0x30] sm:$0xff]
    %v4416 = vld [vmem:[%s4408 + $0x38] sm:$0xff]
    %v4418 = vrot.slane %v4269, 1
    %v4427 = vunpack.c.l.b16 %v4409
    %v4428 = vunpack.c.h.b16 %v4409
    %v4429 = vunpack.c.l.b16 %v4410
    %v4430 = vunpack.c.h.b16 %v4410
    %v4431 = vunpack.c.l.b16 %v4411
    %v4432 = vunpack.c.h.b16 %v4411
    %v4433 = vunpack.c.l.b16 %v4412
    %v4434 = vunpack.c.h.b16 %v4412
    %v4435 = vunpack.c.l.b16 %v4413
    %v4436 = vunpack.c.h.b16 %v4413
    %v4437 = vunpack.c.l.b16 %v4414
    %v4438 = vunpack.c.h.b16 %v4414
    %v4439 = vunpack.c.l.b16 %v4415
    %v4440 = vunpack.c.h.b16 %v4415
    %v4441 = vunpack.c.l.b16 %v4416
    %v4442 = vunpack.c.h.b16 %v4416
    %v4443 = vpack.c.b16 %v4431, %v4427
    %v4444 = vpack.c.b16 %v4432, %v4428
    %v4445 = vpack.c.b16 %v4433, %v4429
    %v4446 = vpack.c.b16 %v4434, %v4430
    %v4447 = vpack.c.b16 %v4439, %v4435
    %v4448 = vpack.c.b16 %v4440, %v4436
    %v4449 = vpack.c.b16 %v4441, %v4437
    %v4450 = vpack.c.b16 %v4442, %v4438
    %v4460 = vsel %vm574, %v4418, 0
    %4462 = vmatprep.subr.bf16.mxu0 %v4444
    %4463 = vmatpush1.bf16.msra.mxu0 %v4443
    %4464 = vmatprep.subr.bf16.mxu0 %v4448
    %4465 = vmatpush1.bf16.msra.mxu0 %v4447
    %4466 = vmatprep.subr.bf16.mxu0 0
    %4467 = vmatpush1.bf16.msra.mxu0 0
    %4468 = vmatprep.subr.bf16.mxu0 0
    %4469 = vmatpush1.bf16.msra.mxu0 0
    %4470 = vmatprep.subr.bf16.mxu0 0
    %4471 = vmatpush1.bf16.msra.mxu0 0
    %4472 = vmatprep.subr.bf16.mxu0 0
    %4473 = vmatpush1.bf16.msra.mxu0 0
    %4474 = vmatprep.subr.bf16.mxu0 0
    %4475 = vmatpush1.bf16.msra.mxu0 0
    %4476 = vmatprep.subr.bf16.mxu0 0
    %4477 = vmatpush1.bf16.msra.mxu0 0
    %4478 = vmatprep.subr.bf16.mxu0 0
    %4479 = vmatpush1.bf16.msra.mxu0 0
    %4480 = vmatprep.subr.bf16.mxu0 0
    %4481 = vmatpush1.bf16.msra.mxu0 0
    %4482 = vmatprep.subr.bf16.mxu0 0
    %4483 = vmatpush1.bf16.msra.mxu0 0
    %4484 = vmatprep.subr.bf16.mxu0 0
    %4485 = vmatpush1.bf16.msra.mxu0 0
    %4486 = vmatprep.subr.bf16.mxu0 0
    %4487 = vmatpush1.bf16.msra.mxu0 0
    %4488 = vmatprep.subr.bf16.mxu0 0
    %4489 = vmatpush1.bf16.msra.mxu0 0
    %4490 = vmatprep.subr.bf16.mxu0 0
    %4491 = vmatpush1.bf16.msra.mxu0 0
    %4492 = vmatprep.subr.bf16.mxu0 0
    %4493 = vmatpush1.bf16.msra.mxu0 0
    %4494 = vmatprep.mubr.bf16.mxu0 0
    %4495 = vmatmul.mubr.bf16.gmra.mrb[0].mxu0 %v4460
    %v4496 = vpop.f32.mrb[0].mxu0
    %v4497 = vadd.f32 0.0, %v4496
    %v4498 = vpop.f32.mrb[0].mxu0
    %v4499 = vadd.f32 0.0, %v4498
    %v4500 = vpop.f32.mrb[0].mxu0
    %v4501 = vpop.f32.mrb[0].mxu0
    %4502 = vdwg.mxu0
    %4503 = vmatprep.subr.bf16.mxu0 %v4446
    %4504 = vmatpush1.bf16.msra.mxu0 %v4445
    %4505 = vmatprep.subr.bf16.mxu0 %v4450
    %4506 = vmatpush1.bf16.msra.mxu0 %v4449
    %4507 = vmatprep.subr.bf16.mxu0 0
    %4508 = vmatpush1.bf16.msra.mxu0 0
    %4509 = vmatprep.subr.bf16.mxu0 0
    %4510 = vmatpush1.bf16.msra.mxu0 0
    %4511 = vmatprep.subr.bf16.mxu0 0
    %4512 = vmatpush1.bf16.msra.mxu0 0
    %4513 = vmatprep.subr.bf16.mxu0 0
    %4514 = vmatpush1.bf16.msra.mxu0 0
    %4515 = vmatprep.subr.bf16.mxu0 0
    %4516 = vmatpush1.bf16.msra.mxu0 0
    %4517 = vmatprep.subr.bf16.mxu0 0
    %4518 = vmatpush1.bf16.msra.mxu0 0
    %4519 = vmatprep.subr.bf16.mxu0 0
    %4520 = vmatpush1.bf16.msra.mxu0 0
    %4521 = vmatprep.subr.bf16.mxu0 0
    %4522 = vmatpush1.bf16.msra.mxu0 0
    %4523 = vmatprep.subr.bf16.mxu0 0
    %4524 = vmatpush1.bf16.msra.mxu0 0
    %4525 = vmatprep.subr.bf16.mxu0 0
    %4526 = vmatpush1.bf16.msra.mxu0 0
    %4527 = vmatprep.subr.bf16.mxu0 0
    %4528 = vmatpush1.bf16.msra.mxu0 0
    %4529 = vmatprep.subr.bf16.mxu0 0
    %4530 = vmatpush1.bf16.msra.mxu0 0
    %4531 = vmatprep.subr.bf16.mxu0 0
    %4532 = vmatpush1.bf16.msra.mxu0 0
    %4533 = vmatprep.subr.bf16.mxu0 0
    %4534 = vmatpush1.bf16.msra.mxu0 0
    %4535 = vmatprep.mubr.bf16.mxu0 0
    %4536 = vmatmul.mubr.bf16.gmra.mrb[0].mxu0 %v4460
    %v4537 = vpop.f32.mrb[0].mxu0
    %v4538 = vadd.f32 0.0, %v4537
    %v4539 = vpop.f32.mrb[0].mxu0
    %v4540 = vadd.f32 0.0, %v4539
    %v4541 = vpop.f32.mrb[0].mxu0
    %v4542 = vpop.f32.mrb[0].mxu0
    %4543 = vdwg.mxu0
    %v4544 = vadd.f32 %v4404, %v4497
    %v4545 = vadd.f32 %v4405, %v4499
    %v4546 = vadd.f32 %v4406, %v4538
    %v4547 = vadd.f32 %v4407, %v4540
    %s4548 = scalar_lea.vmem [#allocation13], 1152
    %v4549 = vld [vmem:[%s4548] sm:$0xff]
    %v4550 = vld [vmem:[%s4548 + $0x8] sm:$0xff]
    %v4551 = vld [vmem:[%s4548 + $0x10] sm:$0xff]
    %v4552 = vld [vmem:[%s4548 + $0x18] sm:$0xff]
    %v4553 = vld [vmem:[%s4548 + $0x20] sm:$0xff]
    %v4554 = vld [vmem:[%s4548 + $0x28] sm:$0xff]
    %v4555 = vld [vmem:[%s4548 + $0x30] sm:$0xff]
    %v4556 = vld [vmem:[%s4548 + $0x38] sm:$0xff]
    %v4557 = vrot.slane %v4269, 2
    %v4566 = vunpack.c.l.b16 %v4549
    %v4567 = vunpack.c.h.b16 %v4549
    %v4568 = vunpack.c.l.b16 %v4550
    %v4569 = vunpack.c.h.b16 %v4550
    %v4570 = vunpack.c.l.b16 %v4551
    %v4571 = vunpack.c.h.b16 %v4551
    %v4572 = vunpack.c.l.b16 %v4552
    %v4573 = vunpack.c.h.b16 %v4552
    %v4574 = vunpack.c.l.b16 %v4553
    %v4575 = vunpack.c.h.b16 %v4553
    %v4576 = vunpack.c.l.b16 %v4554
    %v4577 = vunpack.c.h.b16 %v4554
    %v4578 = vunpack.c.l.b16 %v4555
    %v4579 = vunpack.c.h.b16 %v4555
    %v4580 = vunpack.c.l.b16 %v4556
    %v4581 = vunpack.c.h.b16 %v4556
    %v4582 = vpack.c.b16 %v4570, %v4566
    %v4583 = vpack.c.b16 %v4571, %v4567
    %v4584 = vpack.c.b16 %v4572, %v4568
    %v4585 = vpack.c.b16 %v4573, %v4569
    %v4586 = vpack.c.b16 %v4578, %v4574
    %v4587 = vpack.c.b16 %v4579, %v4575
    %v4588 = vpack.c.b16 %v4580, %v4576
    %v4589 = vpack.c.b16 %v4581, %v4577
    %v4599 = vsel %vm574, %v4557, 0
    %4601 = vmatprep.subr.bf16.mxu0 %v4583
    %4602 = vmatpush1.bf16.msra.mxu0 %v4582
    %4603 = vmatprep.subr.bf16.mxu0 %v4587
    %4604 = vmatpush1.bf16.msra.mxu0 %v4586
    %4605 = vmatprep.subr.bf16.mxu0 0
    %4606 = vmatpush1.bf16.msra.mxu0 0
    %4607 = vmatprep.subr.bf16.mxu0 0
    %4608 = vmatpush1.bf16.msra.mxu0 0
    %4609 = vmatprep.subr.bf16.mxu0 0
    %4610 = vmatpush1.bf16.msra.mxu0 0
    %4611 = vmatprep.subr.bf16.mxu0 0
    %4612 = vmatpush1.bf16.msra.mxu0 0
    %4613 = vmatprep.subr.bf16.mxu0 0
    %4614 = vmatpush1.bf16.msra.mxu0 0
    %4615 = vmatprep.subr.bf16.mxu0 0
    %4616 = vmatpush1.bf16.msra.mxu0 0
    %4617 = vmatprep.subr.bf16.mxu0 0
    %4618 = vmatpush1.bf16.msra.mxu0 0
    %4619 = vmatprep.subr.bf16.mxu0 0
    %4620 = vmatpush1.bf16.msra.mxu0 0
    %4621 = vmatprep.subr.bf16.mxu0 0
    %4622 = vmatpush1.bf16.msra.mxu0 0
    %4623 = vmatprep.subr.bf16.mxu0 0
    %4624 = vmatpush1.bf16.msra.mxu0 0
    %4625 = vmatprep.subr.bf16.mxu0 0
    %4626 = vmatpush1.bf16.msra.mxu0 0
    %4627 = vmatprep.subr.bf16.mxu0 0
    %4628 = vmatpush1.bf16.msra.mxu0 0
    %4629 = vmatprep.subr.bf16.mxu0 0
    %4630 = vmatpush1.bf16.msra.mxu0 0
    %4631 = vmatprep.subr.bf16.mxu0 0
    %4632 = vmatpush1.bf16.msra.mxu0 0
    %4633 = vmatprep.mubr.bf16.mxu0 0
    %4634 = vmatmul.mubr.bf16.gmra.mrb[0].mxu0 %v4599
    %v4635 = vpop.f32.mrb[0].mxu0
    %v4636 = vadd.f32 0.0, %v4635
    %v4637 = vpop.f32.mrb[0].mxu0
    %v4638 = vadd.f32 0.0, %v4637
    %v4639 = vpop.f32.mrb[0].mxu0
    %v4640 = vpop.f32.mrb[0].mxu0
    %4641 = vdwg.mxu0
    %4642 = vmatprep.subr.bf16.mxu0 %v4585
    %4643 = vmatpush1.bf16.msra.mxu0 %v4584
    %4644 = vmatprep.subr.bf16.mxu0 %v4589
    %4645 = vmatpush1.bf16.msra.mxu0 %v4588
    %4646 = vmatprep.subr.bf16.mxu0 0
    %4647 = vmatpush1.bf16.msra.mxu0 0
    %4648 = vmatprep.subr.bf16.mxu0 0
    %4649 = vmatpush1.bf16.msra.mxu0 0
    %4650 = vmatprep.subr.bf16.mxu0 0
    %4651 = vmatpush1.bf16.msra.mxu0 0
    %4652 = vmatprep.subr.bf16.mxu0 0
    %4653 = vmatpush1.bf16.msra.mxu0 0
    %4654 = vmatprep.subr.bf16.mxu0 0
    %4655 = vmatpush1.bf16.msra.mxu0 0
    %4656 = vmatprep.subr.bf16.mxu0 0
    %4657 = vmatpush1.bf16.msra.mxu0 0
    %4658 = vmatprep.subr.bf16.mxu0 0
    %4659 = vmatpush1.bf16.msra.mxu0 0
    %4660 = vmatprep.subr.bf16.mxu0 0
    %4661 = vmatpush1.bf16.msra.mxu0 0
    %4662 = vmatprep.subr.bf16.mxu0 0
    %4663 = vmatpush1.bf16.msra.mxu0 0
    %4664 = vmatprep.subr.bf16.mxu0 0
    %4665 = vmatpush1.bf16.msra.mxu0 0
    %4666 = vmatprep.subr.bf16.mxu0 0
    %4667 = vmatpush1.bf16.msra.mxu0 0
    %4668 = vmatprep.subr.bf16.mxu0 0
    %4669 = vmatpush1.bf16.msra.mxu0 0
    %4670 = vmatprep.subr.bf16.mxu0 0
    %4671 = vmatpush1.bf16.msra.mxu0 0
    %4672 = vmatprep.subr.bf16.mxu0 0
    %4673 = vmatpush1.bf16.msra.mxu0 0
    %4674 = vmatprep.mubr.bf16.mxu0 0
    %4675 = vmatmul.mubr.bf16.gmra.mrb[0].mxu0 %v4599
    %v4676 = vpop.f32.mrb[0].mxu0
    %v4677 = vadd.f32 0.0, %v4676
    %v4678 = vpop.f32.mrb[0].mxu0
    %v4679 = vadd.f32 0.0, %v4678
    %v4680 = vpop.f32.mrb[0].mxu0
    %v4681 = vpop.f32.mrb[0].mxu0
    %4682 = vdwg.mxu0
    %v4683 = vadd.f32 %v4544, %v4636
    %v4684 = vadd.f32 %v4545, %v4638
    %v4685 = vadd.f32 %v4546, %v4677
    %v4686 = vadd.f32 %v4547, %v4679
    %s4687 = scalar_lea.vmem [#allocation13], 1216
    %v4688 = vld [vmem:[%s4687] sm:$0xff]
    %v4689 = vld [vmem:[%s4687 + $0x8] sm:$0xff]
    %v4690 = vld [vmem:[%s4687 + $0x10] sm:$0xff]
    %v4691 = vld [vmem:[%s4687 + $0x18] sm:$0xff]
    %v4692 = vld [vmem:[%s4687 + $0x20] sm:$0xff]
    %v4693 = vld [vmem:[%s4687 + $0x28] sm:$0xff]
    %v4694 = vld [vmem:[%s4687 + $0x30] sm:$0xff]
    %v4695 = vld [vmem:[%s4687 + $0x38] sm:$0xff]
    %v4696 = vrot.slane %v4269, 3
    %v4705 = vunpack.c.l.b16 %v4688
    %v4706 = vunpack.c.h.b16 %v4688
    %v4707 = vunpack.c.l.b16 %v4689
    %v4708 = vunpack.c.h.b16 %v4689
    %v4709 = vunpack.c.l.b16 %v4690
    %v4710 = vunpack.c.h.b16 %v4690
    %v4711 = vunpack.c.l.b16 %v4691
    %v4712 = vunpack.c.h.b16 %v4691
    %v4713 = vunpack.c.l.b16 %v4692
    %v4714 = vunpack.c.h.b16 %v4692
    %v4715 = vunpack.c.l.b16 %v4693
    %v4716 = vunpack.c.h.b16 %v4693
    %v4717 = vunpack.c.l.b16 %v4694
    %v4718 = vunpack.c.h.b16 %v4694
    %v4719 = vunpack.c.l.b16 %v4695
    %v4720 = vunpack.c.h.b16 %v4695
    %v4721 = vpack.c.b16 %v4709, %v4705
    %v4722 = vpack.c.b16 %v4710, %v4706
    %v4723 = vpack.c.b16 %v4711, %v4707
    %v4724 = vpack.c.b16 %v4712, %v4708
    %v4725 = vpack.c.b16 %v4717, %v4713
    %v4726 = vpack.c.b16 %v4718, %v4714
    %v4727 = vpack.c.b16 %v4719, %v4715
    %v4728 = vpack.c.b16 %v4720, %v4716
    %v4738 = vsel %vm574, %v4696, 0
    %4740 = vmatprep.subr.bf16.mxu0 %v4722
    %4741 = vmatpush1.bf16.msra.mxu0 %v4721
    %4742 = vmatprep.subr.bf16.mxu0 %v4726
    %4743 = vmatpush1.bf16.msra.mxu0 %v4725
    %4744 = vmatprep.subr.bf16.mxu0 0
    %4745 = vmatpush1.bf16.msra.mxu0 0
    %4746 = vmatprep.subr.bf16.mxu0 0
    %4747 = vmatpush1.bf16.msra.mxu0 0
    %4748 = vmatprep.subr.bf16.mxu0 0
    %4749 = vmatpush1.bf16.msra.mxu0 0
    %4750 = vmatprep.subr.bf16.mxu0 0
    %4751 = vmatpush1.bf16.msra.mxu0 0
    %4752 = vmatprep.subr.bf16.mxu0 0
    %4753 = vmatpush1.bf16.msra.mxu0 0
    %4754 = vmatprep.subr.bf16.mxu0 0
    %4755 = vmatpush1.bf16.msra.mxu0 0
    %4756 = vmatprep.subr.bf16.mxu0 0
    %4757 = vmatpush1.bf16.msra.mxu0 0
    %4758 = vmatprep.subr.bf16.mxu0 0
    %4759 = vmatpush1.bf16.msra.mxu0 0
    %4760 = vmatprep.subr.bf16.mxu0 0
    %4761 = vmatpush1.bf16.msra.mxu0 0
    %4762 = vmatprep.subr.bf16.mxu0 0
    %4763 = vmatpush1.bf16.msra.mxu0 0
    %4764 = vmatprep.subr.bf16.mxu0 0
    %4765 = vmatpush1.bf16.msra.mxu0 0
    %4766 = vmatprep.subr.bf16.mxu0 0
    %4767 = vmatpush1.bf16.msra.mxu0 0
    %4768 = vmatprep.subr.bf16.mxu0 0
    %4769 = vmatpush1.bf16.msra.mxu0 0
    %4770 = vmatprep.subr.bf16.mxu0 0
    %4771 = vmatpush1.bf16.msra.mxu0 0
    %4772 = vmatprep.mubr.bf16.mxu0 0
    %4773 = vmatmul.mubr.bf16.gmra.mrb[0].mxu0 %v4738
    %v4774 = vpop.f32.mrb[0].mxu0
    %v4775 = vadd.f32 0.0, %v4774
    %v4776 = vpop.f32.mrb[0].mxu0
    %v4777 = vadd.f32 0.0, %v4776
    %v4778 = vpop.f32.mrb[0].mxu0
    %v4779 = vpop.f32.mrb[0].mxu0
    %4780 = vdwg.mxu0
    %4781 = vmatprep.subr.bf16.mxu0 %v4724
    %4782 = vmatpush1.bf16.msra.mxu0 %v4723
    %4783 = vmatprep.subr.bf16.mxu0 %v4728
    %4784 = vmatpush1.bf16.msra.mxu0 %v4727
    %4785 = vmatprep.subr.bf16.mxu0 0
    %4786 = vmatpush1.bf16.msra.mxu0 0
    %4787 = vmatprep.subr.bf16.mxu0 0
    %4788 = vmatpush1.bf16.msra.mxu0 0
    %4789 = vmatprep.subr.bf16.mxu0 0
    %4790 = vmatpush1.bf16.msra.mxu0 0
    %4791 = vmatprep.subr.bf16.mxu0 0
    %4792 = vmatpush1.bf16.msra.mxu0 0
    %4793 = vmatprep.subr.bf16.mxu0 0
    %4794 = vmatpush1.bf16.msra.mxu0 0
    %4795 = vmatprep.subr.bf16.mxu0 0
    %4796 = vmatpush1.bf16.msra.mxu0 0
    %4797 = vmatprep.subr.bf16.mxu0 0
    %4798 = vmatpush1.bf16.msra.mxu0 0
    %4799 = vmatprep.subr.bf16.mxu0 0
    %4800 = vmatpush1.bf16.msra.mxu0 0
    %4801 = vmatprep.subr.bf16.mxu0 0
    %4802 = vmatpush1.bf16.msra.mxu0 0
    %4803 = vmatprep.subr.bf16.mxu0 0
    %4804 = vmatpush1.bf16.msra.mxu0 0
    %4805 = vmatprep.subr.bf16.mxu0 0
    %4806 = vmatpush1.bf16.msra.mxu0 0
    %4807 = vmatprep.subr.bf16.mxu0 0
    %4808 = vmatpush1.bf16.msra.mxu0 0
    %4809 = vmatprep.subr.bf16.mxu0 0
    %4810 = vmatpush1.bf16.msra.mxu0 0
    %4811 = vmatprep.subr.bf16.mxu0 0
    %4812 = vmatpush1.bf16.msra.mxu0 0
    %4813 = vmatprep.mubr.bf16.mxu0 0
    %4814 = vmatmul.mubr.bf16.gmra.mrb[0].mxu0 %v4738
    %v4815 = vpop.f32.mrb[0].mxu0
    %v4816 = vadd.f32 0.0, %v4815
    %v4817 = vpop.f32.mrb[0].mxu0
    %v4818 = vadd.f32 0.0, %v4817
    %v4819 = vpop.f32.mrb[0].mxu0
    %v4820 = vpop.f32.mrb[0].mxu0
    %4821 = vdwg.mxu0
    %v4822 = vadd.f32 %v4683, %v4775
    %v4823 = vadd.f32 %v4684, %v4777
    %v4824 = vadd.f32 %v4685, %v4816
    %v4825 = vadd.f32 %v4686, %v4818
    %v4826 = vpack.c.bf16 %v2040, %v2040
    %s4827 = scalar_lea.vmem [#allocation13], 1280
    %v4828 = vld [vmem:[%s4827] sm:$0xff]
    %v4829 = vld [vmem:[%s4827 + $0x8] sm:$0xff]
    %v4830 = vld [vmem:[%s4827 + $0x10] sm:$0xff]
    %v4831 = vld [vmem:[%s4827 + $0x18] sm:$0xff]
    %v4832 = vld [vmem:[%s4827 + $0x20] sm:$0xff]
    %v4833 = vld [vmem:[%s4827 + $0x28] sm:$0xff]
    %v4834 = vld [vmem:[%s4827 + $0x30] sm:$0xff]
    %v4835 = vld [vmem:[%s4827 + $0x38] sm:$0xff]
    %v4844 = vunpack.c.l.b16 %v4828
    %v4845 = vunpack.c.h.b16 %v4828
    %v4846 = vunpack.c.l.b16 %v4829
    %v4847 = vunpack.c.h.b16 %v4829
    %v4848 = vunpack.c.l.b16 %v4830
    %v4849 = vunpack.c.h.b16 %v4830
    %v4850 = vunpack.c.l.b16 %v4831
    %v4851 = vunpack.c.h.b16 %v4831
    %v4852 = vunpack.c.l.b16 %v4832
    %v4853 = vunpack.c.h.b16 %v4832
    %v4854 = vunpack.c.l.b16 %v4833
    %v4855 = vunpack.c.h.b16 %v4833
    %v4856 = vunpack.c.l.b16 %v4834
    %v4857 = vunpack.c.h.b16 %v4834
    %v4858 = vunpack.c.l.b16 %v4835
    %v4859 = vunpack.c.h.b16 %v4835
    %v4860 = vpack.c.b16 %v4848, %v4844
    %v4861 = vpack.c.b16 %v4849, %v4845
    %v4862 = vpack.c.b16 %v4850, %v4846
    %v4863 = vpack.c.b16 %v4851, %v4847
    %v4864 = vpack.c.b16 %v4856, %v4852
    %v4865 = vpack.c.b16 %v4857, %v4853
    %v4866 = vpack.c.b16 %v4858, %v4854
    %v4867 = vpack.c.b16 %v4859, %v4855
    %v4877 = vsel %vm574, %v4826, 0
    %4879 = vmatprep.subr.bf16.mxu0 %v4861
    %4880 = vmatpush1.bf16.msra.mxu0 %v4860
    %4881 = vmatprep.subr.bf16.mxu0 %v4865
    %4882 = vmatpush1.bf16.msra.mxu0 %v4864
    %4883 = vmatprep.subr.bf16.mxu0 0
    %4884 = vmatpush1.bf16.msra.mxu0 0
    %4885 = vmatprep.subr.bf16.mxu0 0
    %4886 = vmatpush1.bf16.msra.mxu0 0
    %4887 = vmatprep.subr.bf16.mxu0 0
    %4888 = vmatpush1.bf16.msra.mxu0 0
    %4889 = vmatprep.subr.bf16.mxu0 0
    %4890 = vmatpush1.bf16.msra.mxu0 0
    %4891 = vmatprep.subr.bf16.mxu0 0
    %4892 = vmatpush1.bf16.msra.mxu0 0
    %4893 = vmatprep.subr.bf16.mxu0 0
    %4894 = vmatpush1.bf16.msra.mxu0 0
    %4895 = vmatprep.subr.bf16.mxu0 0
    %4896 = vmatpush1.bf16.msra.mxu0 0
    %4897 = vmatprep.subr.bf16.mxu0 0
    %4898 = vmatpush1.bf16.msra.mxu0 0
    %4899 = vmatprep.subr.bf16.mxu0 0
    %4900 = vmatpush1.bf16.msra.mxu0 0
    %4901 = vmatprep.subr.bf16.mxu0 0
    %4902 = vmatpush1.bf16.msra.mxu0 0
    %4903 = vmatprep.subr.bf16.mxu0 0
    %4904 = vmatpush1.bf16.msra.mxu0 0
    %4905 = vmatprep.subr.bf16.mxu0 0
    %4906 = vmatpush1.bf16.msra.mxu0 0
    %4907 = vmatprep.subr.bf16.mxu0 0
    %4908 = vmatpush1.bf16.msra.mxu0 0
    %4909 = vmatprep.subr.bf16.mxu0 0
    %4910 = vmatpush1.bf16.msra.mxu0 0
    %4911 = vmatprep.mubr.bf16.mxu0 0
    %4912 = vmatmul.mubr.bf16.gmra.mrb[0].mxu0 %v4877
    %v4913 = vpop.f32.mrb[0].mxu0
    %v4914 = vadd.f32 0.0, %v4913
    %v4915 = vpop.f32.mrb[0].mxu0
    %v4916 = vadd.f32 0.0, %v4915
    %v4917 = vpop.f32.mrb[0].mxu0
    %v4918 = vpop.f32.mrb[0].mxu0
    %4919 = vdwg.mxu0
    %4920 = vmatprep.subr.bf16.mxu0 %v4863
    %4921 = vmatpush1.bf16.msra.mxu0 %v4862
    %4922 = vmatprep.subr.bf16.mxu0 %v4867
    %4923 = vmatpush1.bf16.msra.mxu0 %v4866
    %4924 = vmatprep.subr.bf16.mxu0 0
    %4925 = vmatpush1.bf16.msra.mxu0 0
    %4926 = vmatprep.subr.bf16.mxu0 0
    %4927 = vmatpush1.bf16.msra.mxu0 0
    %4928 = vmatprep.subr.bf16.mxu0 0
    %4929 = vmatpush1.bf16.msra.mxu0 0
    %4930 = vmatprep.subr.bf16.mxu0 0
    %4931 = vmatpush1.bf16.msra.mxu0 0
    %4932 = vmatprep.subr.bf16.mxu0 0
    %4933 = vmatpush1.bf16.msra.mxu0 0
    %4934 = vmatprep.subr.bf16.mxu0 0
    %4935 = vmatpush1.bf16.msra.mxu0 0
    %4936 = vmatprep.subr.bf16.mxu0 0
    %4937 = vmatpush1.bf16.msra.mxu0 0
    %4938 = vmatprep.subr.bf16.mxu0 0
    %4939 = vmatpush1.bf16.msra.mxu0 0
    %4940 = vmatprep.subr.bf16.mxu0 0
    %4941 = vmatpush1.bf16.msra.mxu0 0
    %4942 = vmatprep.subr.bf16.mxu0 0
    %4943 = vmatpush1.bf16.msra.mxu0 0
    %4944 = vmatprep.subr.bf16.mxu0 0
    %4945 = vmatpush1.bf16.msra.mxu0 0
    %4946 = vmatprep.subr.bf16.mxu0 0
    %4947 = vmatpush1.bf16.msra.mxu0 0
    %4948 = vmatprep.subr.bf16.mxu0 0
    %4949 = vmatpush1.bf16.msra.mxu0 0
    %4950 = vmatprep.subr.bf16.mxu0 0
    %4951 = vmatpush1.bf16.msra.mxu0 0
    %4952 = vmatprep.mubr.bf16.mxu0 0
    %4953 = vmatmul.mubr.bf16.gmra.mrb[0].mxu0 %v4877
    %v4954 = vpop.f32.mrb[0].mxu0
    %v4955 = vadd.f32 0.0, %v4954
    %v4956 = vpop.f32.mrb[0].mxu0
    %v4957 = vadd.f32 0.0, %v4956
    %v4958 = vpop.f32.mrb[0].mxu0
    %v4959 = vpop.f32.mrb[0].mxu0
    %4960 = vdwg.mxu0
    %v4961 = vadd.f32 %v4822, %v4914
    %v4962 = vadd.f32 %v4823, %v4916
    %v4963 = vadd.f32 %v4824, %v4955
    %v4964 = vadd.f32 %v4825, %v4957
    %s4965 = scalar_lea.vmem [#allocation13], 1344
    %v4966 = vld [vmem:[%s4965] sm:$0xff]
    %v4967 = vld [vmem:[%s4965 + $0x8] sm:$0xff]
    %v4968 = vld [vmem:[%s4965 + $0x10] sm:$0xff]
    %v4969 = vld [vmem:[%s4965 + $0x18] sm:$0xff]
    %v4970 = vld [vmem:[%s4965 + $0x20] sm:$0xff]
    %v4971 = vld [vmem:[%s4965 + $0x28] sm:$0xff]
    %v4972 = vld [vmem:[%s4965 + $0x30] sm:$0xff]
    %v4973 = vld [vmem:[%s4965 + $0x38] sm:$0xff]
    %v4975 = vrot.slane %v4826, 1
    %v4984 = vunpack.c.l.b16 %v4966
    %v4985 = vunpack.c.h.b16 %v4966
    %v4986 = vunpack.c.l.b16 %v4967
    %v4987 = vunpack.c.h.b16 %v4967
    %v4988 = vunpack.c.l.b16 %v4968
    %v4989 = vunpack.c.h.b16 %v4968
    %v4990 = vunpack.c.l.b16 %v4969
    %v4991 = vunpack.c.h.b16 %v4969
    %v4992 = vunpack.c.l.b16 %v4970
    %v4993 = vunpack.c.h.b16 %v4970
    %v4994 = vunpack.c.l.b16 %v4971
    %v4995 = vunpack.c.h.b16 %v4971
    %v4996 = vunpack.c.l.b16 %v4972
    %v4997 = vunpack.c.h.b16 %v4972
    %v4998 = vunpack.c.l.b16 %v4973
    %v4999 = vunpack.c.h.b16 %v4973
    %v5000 = vpack.c.b16 %v4988, %v4984
    %v5001 = vpack.c.b16 %v4989, %v4985
    %v5002 = vpack.c.b16 %v4990, %v4986
    %v5003 = vpack.c.b16 %v4991, %v4987
    %v5004 = vpack.c.b16 %v4996, %v4992
    %v5005 = vpack.c.b16 %v4997, %v4993
    %v5006 = vpack.c.b16 %v4998, %v4994
    %v5007 = vpack.c.b16 %v4999, %v4995
    %v5017 = vsel %vm574, %v4975, 0
    %5019 = vmatprep.subr.bf16.mxu0 %v5001
    %5020 = vmatpush1.bf16.msra.mxu0 %v5000
    %5021 = vmatprep.subr.bf16.mxu0 %v5005
    %5022 = vmatpush1.bf16.msra.mxu0 %v5004
    %5023 = vmatprep.subr.bf16.mxu0 0
    %5024 = vmatpush1.bf16.msra.mxu0 0
    %5025 = vmatprep.subr.bf16.mxu0 0
    %5026 = vmatpush1.bf16.msra.mxu0 0
    %5027 = vmatprep.subr.bf16.mxu0 0
    %5028 = vmatpush1.bf16.msra.mxu0 0
    %5029 = vmatprep.subr.bf16.mxu0 0
    %5030 = vmatpush1.bf16.msra.mxu0 0
    %5031 = vmatprep.subr.bf16.mxu0 0
    %5032 = vmatpush1.bf16.msra.mxu0 0
    %5033 = vmatprep.subr.bf16.mxu0 0
    %5034 = vmatpush1.bf16.msra.mxu0 0
    %5035 = vmatprep.subr.bf16.mxu0 0
    %5036 = vmatpush1.bf16.msra.mxu0 0
    %5037 = vmatprep.subr.bf16.mxu0 0
    %5038 = vmatpush1.bf16.msra.mxu0 0
    %5039 = vmatprep.subr.bf16.mxu0 0
    %5040 = vmatpush1.bf16.msra.mxu0 0
    %5041 = vmatprep.subr.bf16.mxu0 0
    %5042 = vmatpush1.bf16.msra.mxu0 0
    %5043 = vmatprep.subr.bf16.mxu0 0
    %5044 = vmatpush1.bf16.msra.mxu0 0
    %5045 = vmatprep.subr.bf16.mxu0 0
    %5046 = vmatpush1.bf16.msra.mxu0 0
    %5047 = vmatprep.subr.bf16.mxu0 0
    %5048 = vmatpush1.bf16.msra.mxu0 0
    %5049 = vmatprep.subr.bf16.mxu0 0
    %5050 = vmatpush1.bf16.msra.mxu0 0
    %5051 = vmatprep.mubr.bf16.mxu0 0
    %5052 = vmatmul.mubr.bf16.gmra.mrb[0].mxu0 %v5017
    %v5053 = vpop.f32.mrb[0].mxu0
    %v5054 = vadd.f32 0.0, %v5053
    %v5055 = vpop.f32.mrb[0].mxu0
    %v5056 = vadd.f32 0.0, %v5055
    %v5057 = vpop.f32.mrb[0].mxu0
    %v5058 = vpop.f32.mrb[0].mxu0
    %5059 = vdwg.mxu0
    %5060 = vmatprep.subr.bf16.mxu0 %v5003
    %5061 = vmatpush1.bf16.msra.mxu0 %v5002
    %5062 = vmatprep.subr.bf16.mxu0 %v5007
    %5063 = vmatpush1.bf16.msra.mxu0 %v5006
    %5064 = vmatprep.subr.bf16.mxu0 0
    %5065 = vmatpush1.bf16.msra.mxu0 0
    %5066 = vmatprep.subr.bf16.mxu0 0
    %5067 = vmatpush1.bf16.msra.mxu0 0
    %5068 = vmatprep.subr.bf16.mxu0 0
    %5069 = vmatpush1.bf16.msra.mxu0 0
    %5070 = vmatprep.subr.bf16.mxu0 0
    %5071 = vmatpush1.bf16.msra.mxu0 0
    %5072 = vmatprep.subr.bf16.mxu0 0
    %5073 = vmatpush1.bf16.msra.mxu0 0
    %5074 = vmatprep.subr.bf16.mxu0 0
    %5075 = vmatpush1.bf16.msra.mxu0 0
    %5076 = vmatprep.subr.bf16.mxu0 0
    %5077 = vmatpush1.bf16.msra.mxu0 0
    %5078 = vmatprep.subr.bf16.mxu0 0
    %5079 = vmatpush1.bf16.msra.mxu0 0
    %5080 = vmatprep.subr.bf16.mxu0 0
    %5081 = vmatpush1.bf16.msra.mxu0 0
    %5082 = vmatprep.subr.bf16.mxu0 0
    %5083 = vmatpush1.bf16.msra.mxu0 0
    %5084 = vmatprep.subr.bf16.mxu0 0
    %5085 = vmatpush1.bf16.msra.mxu0 0
    %5086 = vmatprep.subr.bf16.mxu0 0
    %5087 = vmatpush1.bf16.msra.mxu0 0
    %5088 = vmatprep.subr.bf16.mxu0 0
    %5089 = vmatpush1.bf16.msra.mxu0 0
    %5090 = vmatprep.subr.bf16.mxu0 0
    %5091 = vmatpush1.bf16.msra.mxu0 0
    %5092 = vmatprep.mubr.bf16.mxu0 0
    %5093 = vmatmul.mubr.bf16.gmra.mrb[0].mxu0 %v5017
    %v5094 = vpop.f32.mrb[0].mxu0
    %v5095 = vadd.f32 0.0, %v5094
    %v5096 = vpop.f32.mrb[0].mxu0
    %v5097 = vadd.f32 0.0, %v5096
    %v5098 = vpop.f32.mrb[0].mxu0
    %v5099 = vpop.f32.mrb[0].mxu0
    %5100 = vdwg.mxu0
    %v5101 = vadd.f32 %v4961, %v5054
    %v5102 = vadd.f32 %v4962, %v5056
    %v5103 = vadd.f32 %v4963, %v5095
    %v5104 = vadd.f32 %v4964, %v5097
    %s5105 = scalar_lea.vmem [#allocation13], 1408
    %v5106 = vld [vmem:[%s5105] sm:$0xff]
    %v5107 = vld [vmem:[%s5105 + $0x8] sm:$0xff]
    %v5108 = vld [vmem:[%s5105 + $0x10] sm:$0xff]
    %v5109 = vld [vmem:[%s5105 + $0x18] sm:$0xff]
    %v5110 = vld [vmem:[%s5105 + $0x20] sm:$0xff]
    %v5111 = vld [vmem:[%s5105 + $0x28] sm:$0xff]
    %v5112 = vld [vmem:[%s5105 + $0x30] sm:$0xff]
    %v5113 = vld [vmem:[%s5105 + $0x38] sm:$0xff]
    %v5114 = vrot.slane %v4826, 2
    %v5123 = vunpack.c.l.b16 %v5106
    %v5124 = vunpack.c.h.b16 %v5106
    %v5125 = vunpack.c.l.b16 %v5107
    %v5126 = vunpack.c.h.b16 %v5107
    %v5127 = vunpack.c.l.b16 %v5108
    %v5128 = vunpack.c.h.b16 %v5108
    %v5129 = vunpack.c.l.b16 %v5109
    %v5130 = vunpack.c.h.b16 %v5109
    %v5131 = vunpack.c.l.b16 %v5110
    %v5132 = vunpack.c.h.b16 %v5110
    %v5133 = vunpack.c.l.b16 %v5111
    %v5134 = vunpack.c.h.b16 %v5111
    %v5135 = vunpack.c.l.b16 %v5112
    %v5136 = vunpack.c.h.b16 %v5112
    %v5137 = vunpack.c.l.b16 %v5113
    %v5138 = vunpack.c.h.b16 %v5113
    %v5139 = vpack.c.b16 %v5127, %v5123
    %v5140 = vpack.c.b16 %v5128, %v5124
    %v5141 = vpack.c.b16 %v5129, %v5125
    %v5142 = vpack.c.b16 %v5130, %v5126
    %v5143 = vpack.c.b16 %v5135, %v5131
    %v5144 = vpack.c.b16 %v5136, %v5132
    %v5145 = vpack.c.b16 %v5137, %v5133
    %v5146 = vpack.c.b16 %v5138, %v5134
    %v5156 = vsel %vm574, %v5114, 0
    %5158 = vmatprep.subr.bf16.mxu0 %v5140
    %5159 = vmatpush1.bf16.msra.mxu0 %v5139
    %5160 = vmatprep.subr.bf16.mxu0 %v5144
    %5161 = vmatpush1.bf16.msra.mxu0 %v5143
    %5162 = vmatprep.subr.bf16.mxu0 0
    %5163 = vmatpush1.bf16.msra.mxu0 0
    %5164 = vmatprep.subr.bf16.mxu0 0
    %5165 = vmatpush1.bf16.msra.mxu0 0
    %5166 = vmatprep.subr.bf16.mxu0 0
    %5167 = vmatpush1.bf16.msra.mxu0 0
    %5168 = vmatprep.subr.bf16.mxu0 0
    %5169 = vmatpush1.bf16.msra.mxu0 0
    %5170 = vmatprep.subr.bf16.mxu0 0
    %5171 = vmatpush1.bf16.msra.mxu0 0
    %5172 = vmatprep.subr.bf16.mxu0 0
    %5173 = vmatpush1.bf16.msra.mxu0 0
    %5174 = vmatprep.subr.bf16.mxu0 0
    %5175 = vmatpush1.bf16.msra.mxu0 0
    %5176 = vmatprep.subr.bf16.mxu0 0
    %5177 = vmatpush1.bf16.msra.mxu0 0
    %5178 = vmatprep.subr.bf16.mxu0 0
    %5179 = vmatpush1.bf16.msra.mxu0 0
    %5180 = vmatprep.subr.bf16.mxu0 0
    %5181 = vmatpush1.bf16.msra.mxu0 0
    %5182 = vmatprep.subr.bf16.mxu0 0
    %5183 = vmatpush1.bf16.msra.mxu0 0
    %5184 = vmatprep.subr.bf16.mxu0 0
    %5185 = vmatpush1.bf16.msra.mxu0 0
    %5186 = vmatprep.subr.bf16.mxu0 0
    %5187 = vmatpush1.bf16.msra.mxu0 0
    %5188 = vmatprep.subr.bf16.mxu0 0
    %5189 = vmatpush1.bf16.msra.mxu0 0
    %5190 = vmatprep.mubr.bf16.mxu0 0
    %5191 = vmatmul.mubr.bf16.gmra.mrb[0].mxu0 %v5156
    %v5192 = vpop.f32.mrb[0].mxu0
    %v5193 = vadd.f32 0.0, %v5192
    %v5194 = vpop.f32.mrb[0].mxu0
    %v5195 = vadd.f32 0.0, %v5194
    %v5196 = vpop.f32.mrb[0].mxu0
    %v5197 = vpop.f32.mrb[0].mxu0
    %5198 = vdwg.mxu0
    %5199 = vmatprep.subr.bf16.mxu0 %v5142
    %5200 = vmatpush1.bf16.msra.mxu0 %v5141
    %5201 = vmatprep.subr.bf16.mxu0 %v5146
    %5202 = vmatpush1.bf16.msra.mxu0 %v5145
    %5203 = vmatprep.subr.bf16.mxu0 0
    %5204 = vmatpush1.bf16.msra.mxu0 0
    %5205 = vmatprep.subr.bf16.mxu0 0
    %5206 = vmatpush1.bf16.msra.mxu0 0
    %5207 = vmatprep.subr.bf16.mxu0 0
    %5208 = vmatpush1.bf16.msra.mxu0 0
    %5209 = vmatprep.subr.bf16.mxu0 0
    %5210 = vmatpush1.bf16.msra.mxu0 0
    %5211 = vmatprep.subr.bf16.mxu0 0
    %5212 = vmatpush1.bf16.msra.mxu0 0
    %5213 = vmatprep.subr.bf16.mxu0 0
    %5214 = vmatpush1.bf16.msra.mxu0 0
    %5215 = vmatprep.subr.bf16.mxu0 0
    %5216 = vmatpush1.bf16.msra.mxu0 0
    %5217 = vmatprep.subr.bf16.mxu0 0
    %5218 = vmatpush1.bf16.msra.mxu0 0
    %5219 = vmatprep.subr.bf16.mxu0 0
    %5220 = vmatpush1.bf16.msra.mxu0 0
    %5221 = vmatprep.subr.bf16.mxu0 0
    %5222 = vmatpush1.bf16.msra.mxu0 0
    %5223 = vmatprep.subr.bf16.mxu0 0
    %5224 = vmatpush1.bf16.msra.mxu0 0
    %5225 = vmatprep.subr.bf16.mxu0 0
    %5226 = vmatpush1.bf16.msra.mxu0 0
    %5227 = vmatprep.subr.bf16.mxu0 0
    %5228 = vmatpush1.bf16.msra.mxu0 0
    %5229 = vmatprep.subr.bf16.mxu0 0
    %5230 = vmatpush1.bf16.msra.mxu0 0
    %5231 = vmatprep.mubr.bf16.mxu0 0
    %5232 = vmatmul.mubr.bf16.gmra.mrb[0].mxu0 %v5156
    %v5233 = vpop.f32.mrb[0].mxu0
    %v5234 = vadd.f32 0.0, %v5233
    %v5235 = vpop.f32.mrb[0].mxu0
    %v5236 = vadd.f32 0.0, %v5235
    %v5237 = vpop.f32.mrb[0].mxu0
    %v5238 = vpop.f32.mrb[0].mxu0
    %5239 = vdwg.mxu0
    %v5240 = vadd.f32 %v5101, %v5193
    %v5241 = vadd.f32 %v5102, %v5195
    %v5242 = vadd.f32 %v5103, %v5234
    %v5243 = vadd.f32 %v5104, %v5236
    %s5244 = scalar_lea.vmem [#allocation13], 1472
    %v5245 = vld [vmem:[%s5244] sm:$0xff]
    %v5246 = vld [vmem:[%s5244 + $0x8] sm:$0xff]
    %v5247 = vld [vmem:[%s5244 + $0x10] sm:$0xff]
    %v5248 = vld [vmem:[%s5244 + $0x18] sm:$0xff]
    %v5249 = vld [vmem:[%s5244 + $0x20] sm:$0xff]
    %v5250 = vld [vmem:[%s5244 + $0x28] sm:$0xff]
    %v5251 = vld [vmem:[%s5244 + $0x30] sm:$0xff]
    %v5252 = vld [vmem:[%s5244 + $0x38] sm:$0xff]
    %v5253 = vrot.slane %v4826, 3
    %v5262 = vunpack.c.l.b16 %v5245
    %v5263 = vunpack.c.h.b16 %v5245
    %v5264 = vunpack.c.l.b16 %v5246
    %v5265 = vunpack.c.h.b16 %v5246
    %v5266 = vunpack.c.l.b16 %v5247
    %v5267 = vunpack.c.h.b16 %v5247
    %v5268 = vunpack.c.l.b16 %v5248
    %v5269 = vunpack.c.h.b16 %v5248
    %v5270 = vunpack.c.l.b16 %v5249
    %v5271 = vunpack.c.h.b16 %v5249
    %v5272 = vunpack.c.l.b16 %v5250
    %v5273 = vunpack.c.h.b16 %v5250
    %v5274 = vunpack.c.l.b16 %v5251
    %v5275 = vunpack.c.h.b16 %v5251
    %v5276 = vunpack.c.l.b16 %v5252
    %v5277 = vunpack.c.h.b16 %v5252
    %v5278 = vpack.c.b16 %v5266, %v5262
    %v5279 = vpack.c.b16 %v5267, %v5263
    %v5280 = vpack.c.b16 %v5268, %v5264
    %v5281 = vpack.c.b16 %v5269, %v5265
    %v5282 = vpack.c.b16 %v5274, %v5270
    %v5283 = vpack.c.b16 %v5275, %v5271
    %v5284 = vpack.c.b16 %v5276, %v5272
    %v5285 = vpack.c.b16 %v5277, %v5273
    %v5295 = vsel %vm574, %v5253, 0
    %5297 = vmatprep.subr.bf16.mxu0 %v5279
    %5298 = vmatpush1.bf16.msra.mxu0 %v5278
    %5299 = vmatprep.subr.bf16.mxu0 %v5283
    %5300 = vmatpush1.bf16.msra.mxu0 %v5282
    %5301 = vmatprep.subr.bf16.mxu0 0
    %5302 = vmatpush1.bf16.msra.mxu0 0
    %5303 = vmatprep.subr.bf16.mxu0 0
    %5304 = vmatpush1.bf16.msra.mxu0 0
    %5305 = vmatprep.subr.bf16.mxu0 0
    %5306 = vmatpush1.bf16.msra.mxu0 0
    %5307 = vmatprep.subr.bf16.mxu0 0
    %5308 = vmatpush1.bf16.msra.mxu0 0
    %5309 = vmatprep.subr.bf16.mxu0 0
    %5310 = vmatpush1.bf16.msra.mxu0 0
    %5311 = vmatprep.subr.bf16.mxu0 0
    %5312 = vmatpush1.bf16.msra.mxu0 0
    %5313 = vmatprep.subr.bf16.mxu0 0
    %5314 = vmatpush1.bf16.msra.mxu0 0
    %5315 = vmatprep.subr.bf16.mxu0 0
    %5316 = vmatpush1.bf16.msra.mxu0 0
    %5317 = vmatprep.subr.bf16.mxu0 0
    %5318 = vmatpush1.bf16.msra.mxu0 0
    %5319 = vmatprep.subr.bf16.mxu0 0
    %5320 = vmatpush1.bf16.msra.mxu0 0
    %5321 = vmatprep.subr.bf16.mxu0 0
    %5322 = vmatpush1.bf16.msra.mxu0 0
    %5323 = vmatprep.subr.bf16.mxu0 0
    %5324 = vmatpush1.bf16.msra.mxu0 0
    %5325 = vmatprep.subr.bf16.mxu0 0
    %5326 = vmatpush1.bf16.msra.mxu0 0
    %5327 = vmatprep.subr.bf16.mxu0 0
    %5328 = vmatpush1.bf16.msra.mxu0 0
    %5329 = vmatprep.mubr.bf16.mxu0 0
    %5330 = vmatmul.mubr.bf16.gmra.mrb[0].mxu0 %v5295
    %v5331 = vpop.f32.mrb[0].mxu0
    %v5332 = vadd.f32 0.0, %v5331
    %v5333 = vpop.f32.mrb[0].mxu0
    %v5334 = vadd.f32 0.0, %v5333
    %v5335 = vpop.f32.mrb[0].mxu0
    %v5336 = vpop.f32.mrb[0].mxu0
    %5337 = vdwg.mxu0
    %5338 = vmatprep.subr.bf16.mxu0 %v5281
    %5339 = vmatpush1.bf16.msra.mxu0 %v5280
    %5340 = vmatprep.subr.bf16.mxu0 %v5285
    %5341 = vmatpush1.bf16.msra.mxu0 %v5284
    %5342 = vmatprep.subr.bf16.mxu0 0
    %5343 = vmatpush1.bf16.msra.mxu0 0
    %5344 = vmatprep.subr.bf16.mxu0 0
    %5345 = vmatpush1.bf16.msra.mxu0 0
    %5346 = vmatprep.subr.bf16.mxu0 0
    %5347 = vmatpush1.bf16.msra.mxu0 0
    %5348 = vmatprep.subr.bf16.mxu0 0
    %5349 = vmatpush1.bf16.msra.mxu0 0
    %5350 = vmatprep.subr.bf16.mxu0 0
    %5351 = vmatpush1.bf16.msra.mxu0 0
    %5352 = vmatprep.subr.bf16.mxu0 0
    %5353 = vmatpush1.bf16.msra.mxu0 0
    %5354 = vmatprep.subr.bf16.mxu0 0
    %5355 = vmatpush1.bf16.msra.mxu0 0
    %5356 = vmatprep.subr.bf16.mxu0 0
    %5357 = vmatpush1.bf16.msra.mxu0 0
    %5358 = vmatprep.subr.bf16.mxu0 0
    %5359 = vmatpush1.bf16.msra.mxu0 0
    %5360 = vmatprep.subr.bf16.mxu0 0
    %5361 = vmatpush1.bf16.msra.mxu0 0
    %5362 = vmatprep.subr.bf16.mxu0 0
    %5363 = vmatpush1.bf16.msra.mxu0 0
    %5364 = vmatprep.subr.bf16.mxu0 0
    %5365 = vmatpush1.bf16.msra.mxu0 0
    %5366 = vmatprep.subr.bf16.mxu0 0
    %5367 = vmatpush1.bf16.msra.mxu0 0
    %5368 = vmatprep.subr.bf16.mxu0 0
    %5369 = vmatpush1.bf16.msra.mxu0 0
    %5370 = vmatprep.mubr.bf16.mxu0 0
    %5371 = vmatmul.mubr.bf16.gmra.mrb[0].mxu0 %v5295
    %v5372 = vpop.f32.mrb[0].mxu0
    %v5373 = vadd.f32 0.0, %v5372
    %v5374 = vpop.f32.mrb[0].mxu0
    %v5375 = vadd.f32 0.0, %v5374
    %v5376 = vpop.f32.mrb[0].mxu0
    %v5377 = vpop.f32.mrb[0].mxu0
    %5378 = vdwg.mxu0
    %v5379 = vadd.f32 %v5240, %v5332
    %v5380 = vadd.f32 %v5241, %v5334
    %v5381 = vadd.f32 %v5242, %v5373
    %v5382 = vadd.f32 %v5243, %v5375
    %v5383 = vpack.c.bf16 %v2041, %v2041
    %s5384 = scalar_lea.vmem [#allocation13], 1536
    %v5385 = vld [vmem:[%s5384] sm:$0xff]
    %v5386 = vld [vmem:[%s5384 + $0x8] sm:$0xff]
    %v5387 = vld [vmem:[%s5384 + $0x10] sm:$0xff]
    %v5388 = vld [vmem:[%s5384 + $0x18] sm:$0xff]
    %v5389 = vld [vmem:[%s5384 + $0x20] sm:$0xff]
    %v5390 = vld [vmem:[%s5384 + $0x28] sm:$0xff]
    %v5391 = vld [vmem:[%s5384 + $0x30] sm:$0xff]
    %v5392 = vld [vmem:[%s5384 + $0x38] sm:$0xff]
    %v5401 = vunpack.c.l.b16 %v5385
    %v5402 = vunpack.c.h.b16 %v5385
    %v5403 = vunpack.c.l.b16 %v5386
    %v5404 = vunpack.c.h.b16 %v5386
    %v5405 = vunpack.c.l.b16 %v5387
    %v5406 = vunpack.c.h.b16 %v5387
    %v5407 = vunpack.c.l.b16 %v5388
    %v5408 = vunpack.c.h.b16 %v5388
    %v5409 = vunpack.c.l.b16 %v5389
    %v5410 = vunpack.c.h.b16 %v5389
    %v5411 = vunpack.c.l.b16 %v5390
    %v5412 = vunpack.c.h.b16 %v5390
    %v5413 = vunpack.c.l.b16 %v5391
    %v5414 = vunpack.c.h.b16 %v5391
    %v5415 = vunpack.c.l.b16 %v5392
    %v5416 = vunpack.c.h.b16 %v5392
    %v5417 = vpack.c.b16 %v5405, %v5401
    %v5418 = vpack.c.b16 %v5406, %v5402
    %v5419 = vpack.c.b16 %v5407, %v5403
    %v5420 = vpack.c.b16 %v5408, %v5404
    %v5421 = vpack.c.b16 %v5413, %v5409
    %v5422 = vpack.c.b16 %v5414, %v5410
    %v5423 = vpack.c.b16 %v5415, %v5411
    %v5424 = vpack.c.b16 %v5416, %v5412
    %v5434 = vsel %vm574, %v5383, 0
    %5436 = vmatprep.subr.bf16.mxu0 %v5418
    %5437 = vmatpush1.bf16.msra.mxu0 %v5417
    %5438 = vmatprep.subr.bf16.mxu0 %v5422
    %5439 = vmatpush1.bf16.msra.mxu0 %v5421
    %5440 = vmatprep.subr.bf16.mxu0 0
    %5441 = vmatpush1.bf16.msra.mxu0 0
    %5442 = vmatprep.subr.bf16.mxu0 0
    %5443 = vmatpush1.bf16.msra.mxu0 0
    %5444 = vmatprep.subr.bf16.mxu0 0
    %5445 = vmatpush1.bf16.msra.mxu0 0
    %5446 = vmatprep.subr.bf16.mxu0 0
    %5447 = vmatpush1.bf16.msra.mxu0 0
    %5448 = vmatprep.subr.bf16.mxu0 0
    %5449 = vmatpush1.bf16.msra.mxu0 0
    %5450 = vmatprep.subr.bf16.mxu0 0
    %5451 = vmatpush1.bf16.msra.mxu0 0
    %5452 = vmatprep.subr.bf16.mxu0 0
    %5453 = vmatpush1.bf16.msra.mxu0 0
    %5454 = vmatprep.subr.bf16.mxu0 0
    %5455 = vmatpush1.bf16.msra.mxu0 0
    %5456 = vmatprep.subr.bf16.mxu0 0
    %5457 = vmatpush1.bf16.msra.mxu0 0
    %5458 = vmatprep.subr.bf16.mxu0 0
    %5459 = vmatpush1.bf16.msra.mxu0 0
    %5460 = vmatprep.subr.bf16.mxu0 0
    %5461 = vmatpush1.bf16.msra.mxu0 0
    %5462 = vmatprep.subr.bf16.mxu0 0
    %5463 = vmatpush1.bf16.msra.mxu0 0
    %5464 = vmatprep.subr.bf16.mxu0 0
    %5465 = vmatpush1.bf16.msra.mxu0 0
    %5466 = vmatprep.subr.bf16.mxu0 0
    %5467 = vmatpush1.bf16.msra.mxu0 0
    %5468 = vmatprep.mubr.bf16.mxu0 0
    %5469 = vmatmul.mubr.bf16.gmra.mrb[0].mxu0 %v5434
    %v5470 = vpop.f32.mrb[0].mxu0
    %v5471 = vadd.f32 0.0, %v5470
    %v5472 = vpop.f32.mrb[0].mxu0
    %v5473 = vadd.f32 0.0, %v5472
    %v5474 = vpop.f32.mrb[0].mxu0
    %v5475 = vpop.f32.mrb[0].mxu0
    %5476 = vdwg.mxu0
    %5477 = vmatprep.subr.bf16.mxu0 %v5420
    %5478 = vmatpush1.bf16.msra.mxu0 %v5419
    %5479 = vmatprep.subr.bf16.mxu0 %v5424
    %5480 = vmatpush1.bf16.msra.mxu0 %v5423
    %5481 = vmatprep.subr.bf16.mxu0 0
    %5482 = vmatpush1.bf16.msra.mxu0 0
    %5483 = vmatprep.subr.bf16.mxu0 0
    %5484 = vmatpush1.bf16.msra.mxu0 0
    %5485 = vmatprep.subr.bf16.mxu0 0
    %5486 = vmatpush1.bf16.msra.mxu0 0
    %5487 = vmatprep.subr.bf16.mxu0 0
    %5488 = vmatpush1.bf16.msra.mxu0 0
    %5489 = vmatprep.subr.bf16.mxu0 0
    %5490 = vmatpush1.bf16.msra.mxu0 0
    %5491 = vmatprep.subr.bf16.mxu0 0
    %5492 = vmatpush1.bf16.msra.mxu0 0
    %5493 = vmatprep.subr.bf16.mxu0 0
    %5494 = vmatpush1.bf16.msra.mxu0 0
    %5495 = vmatprep.subr.bf16.mxu0 0
    %5496 = vmatpush1.bf16.msra.mxu0 0
    %5497 = vmatprep.subr.bf16.mxu0 0
    %5498 = vmatpush1.bf16.msra.mxu0 0
    %5499 = vmatprep.subr.bf16.mxu0 0
    %5500 = vmatpush1.bf16.msra.mxu0 0
    %5501 = vmatprep.subr.bf16.mxu0 0
    %5502 = vmatpush1.bf16.msra.mxu0 0
    %5503 = vmatprep.subr.bf16.mxu0 0
    %5504 = vmatpush1.bf16.msra.mxu0 0
    %5505 = vmatprep.subr.bf16.mxu0 0
    %5506 = vmatpush1.bf16.msra.mxu0 0
    %5507 = vmatprep.subr.bf16.mxu0 0
    %5508 = vmatpush1.bf16.msra.mxu0 0
    %5509 = vmatprep.mubr.bf16.mxu0 0
    %5510 = vmatmul.mubr.bf16.gmra.mrb[0].mxu0 %v5434
    %v5511 = vpop.f32.mrb[0].mxu0
    %v5512 = vadd.f32 0.0, %v5511
    %v5513 = vpop.f32.mrb[0].mxu0
    %v5514 = vadd.f32 0.0, %v5513
    %v5515 = vpop.f32.mrb[0].mxu0
    %v5516 = vpop.f32.mrb[0].mxu0
    %5517 = vdwg.mxu0
    %v5518 = vadd.f32 %v5379, %v5471
    %v5519 = vadd.f32 %v5380, %v5473
    %v5520 = vadd.f32 %v5381, %v5512
    %v5521 = vadd.f32 %v5382, %v5514
    %s5522 = scalar_lea.vmem [#allocation13], 1600
    %v5523 = vld [vmem:[%s5522] sm:$0xff]
    %v5524 = vld [vmem:[%s5522 + $0x8] sm:$0xff]
    %v5525 = vld [vmem:[%s5522 + $0x10] sm:$0xff]
    %v5526 = vld [vmem:[%s5522 + $0x18] sm:$0xff]
    %v5527 = vld [vmem:[%s5522 + $0x20] sm:$0xff]
    %v5528 = vld [vmem:[%s5522 + $0x28] sm:$0xff]
    %v5529 = vld [vmem:[%s5522 + $0x30] sm:$0xff]
    %v5530 = vld [vmem:[%s5522 + $0x38] sm:$0xff]
    %v5532 = vrot.slane %v5383, 1
    %v5541 = vunpack.c.l.b16 %v5523
    %v5542 = vunpack.c.h.b16 %v5523
    %v5543 = vunpack.c.l.b16 %v5524
    %v5544 = vunpack.c.h.b16 %v5524
    %v5545 = vunpack.c.l.b16 %v5525
    %v5546 = vunpack.c.h.b16 %v5525
    %v5547 = vunpack.c.l.b16 %v5526
    %v5548 = vunpack.c.h.b16 %v5526
    %v5549 = vunpack.c.l.b16 %v5527
    %v5550 = vunpack.c.h.b16 %v5527
    %v5551 = vunpack.c.l.b16 %v5528
    %v5552 = vunpack.c.h.b16 %v5528
    %v5553 = vunpack.c.l.b16 %v5529
    %v5554 = vunpack.c.h.b16 %v5529
    %v5555 = vunpack.c.l.b16 %v5530
    %v5556 = vunpack.c.h.b16 %v5530
    %v5557 = vpack.c.b16 %v5545, %v5541
    %v5558 = vpack.c.b16 %v5546, %v5542
    %v5559 = vpack.c.b16 %v5547, %v5543
    %v5560 = vpack.c.b16 %v5548, %v5544
    %v5561 = vpack.c.b16 %v5553, %v5549
    %v5562 = vpack.c.b16 %v5554, %v5550
    %v5563 = vpack.c.b16 %v5555, %v5551
    %v5564 = vpack.c.b16 %v5556, %v5552
    %v5574 = vsel %vm574, %v5532, 0
    %5576 = vmatprep.subr.bf16.mxu0 %v5558
    %5577 = vmatpush1.bf16.msra.mxu0 %v5557
    %5578 = vmatprep.subr.bf16.mxu0 %v5562
    %5579 = vmatpush1.bf16.msra.mxu0 %v5561
    %5580 = vmatprep.subr.bf16.mxu0 0
    %5581 = vmatpush1.bf16.msra.mxu0 0
    %5582 = vmatprep.subr.bf16.mxu0 0
    %5583 = vmatpush1.bf16.msra.mxu0 0
    %5584 = vmatprep.subr.bf16.mxu0 0
    %5585 = vmatpush1.bf16.msra.mxu0 0
    %5586 = vmatprep.subr.bf16.mxu0 0
    %5587 = vmatpush1.bf16.msra.mxu0 0
    %5588 = vmatprep.subr.bf16.mxu0 0
    %5589 = vmatpush1.bf16.msra.mxu0 0
    %5590 = vmatprep.subr.bf16.mxu0 0
    %5591 = vmatpush1.bf16.msra.mxu0 0
    %5592 = vmatprep.subr.bf16.mxu0 0
    %5593 = vmatpush1.bf16.msra.mxu0 0
    %5594 = vmatprep.subr.bf16.mxu0 0
    %5595 = vmatpush1.bf16.msra.mxu0 0
    %5596 = vmatprep.subr.bf16.mxu0 0
    %5597 = vmatpush1.bf16.msra.mxu0 0
    %5598 = vmatprep.subr.bf16.mxu0 0
    %5599 = vmatpush1.bf16.msra.mxu0 0
    %5600 = vmatprep.subr.bf16.mxu0 0
    %5601 = vmatpush1.bf16.msra.mxu0 0
    %5602 = vmatprep.subr.bf16.mxu0 0
    %5603 = vmatpush1.bf16.msra.mxu0 0
    %5604 = vmatprep.subr.bf16.mxu0 0
    %5605 = vmatpush1.bf16.msra.mxu0 0
    %5606 = vmatprep.subr.bf16.mxu0 0
    %5607 = vmatpush1.bf16.msra.mxu0 0
    %5608 = vmatprep.mubr.bf16.mxu0 0
    %5609 = vmatmul.mubr.bf16.gmra.mrb[0].mxu0 %v5574
    %v5610 = vpop.f32.mrb[0].mxu0
    %v5611 = vadd.f32 0.0, %v5610
    %v5612 = vpop.f32.mrb[0].mxu0
    %v5613 = vadd.f32 0.0, %v5612
    %v5614 = vpop.f32.mrb[0].mxu0
    %v5615 = vpop.f32.mrb[0].mxu0
    %5616 = vdwg.mxu0
    %5617 = vmatprep.subr.bf16.mxu0 %v5560
    %5618 = vmatpush1.bf16.msra.mxu0 %v5559
    %5619 = vmatprep.subr.bf16.mxu0 %v5564
    %5620 = vmatpush1.bf16.msra.mxu0 %v5563
    %5621 = vmatprep.subr.bf16.mxu0 0
    %5622 = vmatpush1.bf16.msra.mxu0 0
    %5623 = vmatprep.subr.bf16.mxu0 0
    %5624 = vmatpush1.bf16.msra.mxu0 0
    %5625 = vmatprep.subr.bf16.mxu0 0
    %5626 = vmatpush1.bf16.msra.mxu0 0
    %5627 = vmatprep.subr.bf16.mxu0 0
    %5628 = vmatpush1.bf16.msra.mxu0 0
    %5629 = vmatprep.subr.bf16.mxu0 0
    %5630 = vmatpush1.bf16.msra.mxu0 0
    %5631 = vmatprep.subr.bf16.mxu0 0
    %5632 = vmatpush1.bf16.msra.mxu0 0
    %5633 = vmatprep.subr.bf16.mxu0 0
    %5634 = vmatpush1.bf16.msra.mxu0 0
    %5635 = vmatprep.subr.bf16.mxu0 0
    %5636 = vmatpush1.bf16.msra.mxu0 0
    %5637 = vmatprep.subr.bf16.mxu0 0
    %5638 = vmatpush1.bf16.msra.mxu0 0
    %5639 = vmatprep.subr.bf16.mxu0 0
    %5640 = vmatpush1.bf16.msra.mxu0 0
    %5641 = vmatprep.subr.bf16.mxu0 0
    %5642 = vmatpush1.bf16.msra.mxu0 0
    %5643 = vmatprep.subr.bf16.mxu0 0
    %5644 = vmatpush1.bf16.msra.mxu0 0
    %5645 = vmatprep.subr.bf16.mxu0 0
    %5646 = vmatpush1.bf16.msra.mxu0 0
    %5647 = vmatprep.subr.bf16.mxu0 0
    %5648 = vmatpush1.bf16.msra.mxu0 0
    %5649 = vmatprep.mubr.bf16.mxu0 0
    %5650 = vmatmul.mubr.bf16.gmra.mrb[0].mxu0 %v5574
    %v5651 = vpop.f32.mrb[0].mxu0
    %v5652 = vadd.f32 0.0, %v5651
    %v5653 = vpop.f32.mrb[0].mxu0
    %v5654 = vadd.f32 0.0, %v5653
    %v5655 = vpop.f32.mrb[0].mxu0
    %v5656 = vpop.f32.mrb[0].mxu0
    %5657 = vdwg.mxu0
    %v5658 = vadd.f32 %v5518, %v5611
    %v5659 = vadd.f32 %v5519, %v5613
    %v5660 = vadd.f32 %v5520, %v5652
    %v5661 = vadd.f32 %v5521, %v5654
    %s5662 = scalar_lea.vmem [#allocation13], 1664
    %v5663 = vld [vmem:[%s5662] sm:$0xff]
    %v5664 = vld [vmem:[%s5662 + $0x8] sm:$0xff]
    %v5665 = vld [vmem:[%s5662 + $0x10] sm:$0xff]
    %v5666 = vld [vmem:[%s5662 + $0x18] sm:$0xff]
    %v5667 = vld [vmem:[%s5662 + $0x20] sm:$0xff]
    %v5668 = vld [vmem:[%s5662 + $0x28] sm:$0xff]
    %v5669 = vld [vmem:[%s5662 + $0x30] sm:$0xff]
    %v5670 = vld [vmem:[%s5662 + $0x38] sm:$0xff]
    %v5671 = vrot.slane %v5383, 2
    %v5680 = vunpack.c.l.b16 %v5663
    %v5681 = vunpack.c.h.b16 %v5663
    %v5682 = vunpack.c.l.b16 %v5664
    %v5683 = vunpack.c.h.b16 %v5664
    %v5684 = vunpack.c.l.b16 %v5665
    %v5685 = vunpack.c.h.b16 %v5665
    %v5686 = vunpack.c.l.b16 %v5666
    %v5687 = vunpack.c.h.b16 %v5666
    %v5688 = vunpack.c.l.b16 %v5667
    %v5689 = vunpack.c.h.b16 %v5667
    %v5690 = vunpack.c.l.b16 %v5668
    %v5691 = vunpack.c.h.b16 %v5668
    %v5692 = vunpack.c.l.b16 %v5669
    %v5693 = vunpack.c.h.b16 %v5669
    %v5694 = vunpack.c.l.b16 %v5670
    %v5695 = vunpack.c.h.b16 %v5670
    %v5696 = vpack.c.b16 %v5684, %v5680
    %v5697 = vpack.c.b16 %v5685, %v5681
    %v5698 = vpack.c.b16 %v5686, %v5682
    %v5699 = vpack.c.b16 %v5687, %v5683
    %v5700 = vpack.c.b16 %v5692, %v5688
    %v5701 = vpack.c.b16 %v5693, %v5689
    %v5702 = vpack.c.b16 %v5694, %v5690
    %v5703 = vpack.c.b16 %v5695, %v5691
    %v5713 = vsel %vm574, %v5671, 0
    %5715 = vmatprep.subr.bf16.mxu0 %v5697
    %5716 = vmatpush1.bf16.msra.mxu0 %v5696
    %5717 = vmatprep.subr.bf16.mxu0 %v5701
    %5718 = vmatpush1.bf16.msra.mxu0 %v5700
    %5719 = vmatprep.subr.bf16.mxu0 0
    %5720 = vmatpush1.bf16.msra.mxu0 0
    %5721 = vmatprep.subr.bf16.mxu0 0
    %5722 = vmatpush1.bf16.msra.mxu0 0
    %5723 = vmatprep.subr.bf16.mxu0 0
    %5724 = vmatpush1.bf16.msra.mxu0 0
    %5725 = vmatprep.subr.bf16.mxu0 0
    %5726 = vmatpush1.bf16.msra.mxu0 0
    %5727 = vmatprep.subr.bf16.mxu0 0
    %5728 = vmatpush1.bf16.msra.mxu0 0
    %5729 = vmatprep.subr.bf16.mxu0 0
    %5730 = vmatpush1.bf16.msra.mxu0 0
    %5731 = vmatprep.subr.bf16.mxu0 0
    %5732 = vmatpush1.bf16.msra.mxu0 0
    %5733 = vmatprep.subr.bf16.mxu0 0
    %5734 = vmatpush1.bf16.msra.mxu0 0
    %5735 = vmatprep.subr.bf16.mxu0 0
    %5736 = vmatpush1.bf16.msra.mxu0 0
    %5737 = vmatprep.subr.bf16.mxu0 0
    %5738 = vmatpush1.bf16.msra.mxu0 0
    %5739 = vmatprep.subr.bf16.mxu0 0
    %5740 = vmatpush1.bf16.msra.mxu0 0
    %5741 = vmatprep.subr.bf16.mxu0 0
    %5742 = vmatpush1.bf16.msra.mxu0 0
    %5743 = vmatprep.subr.bf16.mxu0 0
    %5744 = vmatpush1.bf16.msra.mxu0 0
    %5745 = vmatprep.subr.bf16.mxu0 0
    %5746 = vmatpush1.bf16.msra.mxu0 0
    %5747 = vmatprep.mubr.bf16.mxu0 0
    %5748 = vmatmul.mubr.bf16.gmra.mrb[0].mxu0 %v5713
    %v5749 = vpop.f32.mrb[0].mxu0
    %v5750 = vadd.f32 0.0, %v5749
    %v5751 = vpop.f32.mrb[0].mxu0
    %v5752 = vadd.f32 0.0, %v5751
    %v5753 = vpop.f32.mrb[0].mxu0
    %v5754 = vpop.f32.mrb[0].mxu0
    %5755 = vdwg.mxu0
    %5756 = vmatprep.subr.bf16.mxu0 %v5699
    %5757 = vmatpush1.bf16.msra.mxu0 %v5698
    %5758 = vmatprep.subr.bf16.mxu0 %v5703
    %5759 = vmatpush1.bf16.msra.mxu0 %v5702
    %5760 = vmatprep.subr.bf16.mxu0 0
    %5761 = vmatpush1.bf16.msra.mxu0 0
    %5762 = vmatprep.subr.bf16.mxu0 0
    %5763 = vmatpush1.bf16.msra.mxu0 0
    %5764 = vmatprep.subr.bf16.mxu0 0
    %5765 = vmatpush1.bf16.msra.mxu0 0
    %5766 = vmatprep.subr.bf16.mxu0 0
    %5767 = vmatpush1.bf16.msra.mxu0 0
    %5768 = vmatprep.subr.bf16.mxu0 0
    %5769 = vmatpush1.bf16.msra.mxu0 0
    %5770 = vmatprep.subr.bf16.mxu0 0
    %5771 = vmatpush1.bf16.msra.mxu0 0
    %5772 = vmatprep.subr.bf16.mxu0 0
    %5773 = vmatpush1.bf16.msra.mxu0 0
    %5774 = vmatprep.subr.bf16.mxu0 0
    %5775 = vmatpush1.bf16.msra.mxu0 0
    %5776 = vmatprep.subr.bf16.mxu0 0
    %5777 = vmatpush1.bf16.msra.mxu0 0
    %5778 = vmatprep.subr.bf16.mxu0 0
    %5779 = vmatpush1.bf16.msra.mxu0 0
    %5780 = vmatprep.subr.bf16.mxu0 0
    %5781 = vmatpush1.bf16.msra.mxu0 0
    %5782 = vmatprep.subr.bf16.mxu0 0
    %5783 = vmatpush1.bf16.msra.mxu0 0
    %5784 = vmatprep.subr.bf16.mxu0 0
    %5785 = vmatpush1.bf16.msra.mxu0 0
    %5786 = vmatprep.subr.bf16.mxu0 0
    %5787 = vmatpush1.bf16.msra.mxu0 0
    %5788 = vmatprep.mubr.bf16.mxu0 0
    %5789 = vmatmul.mubr.bf16.gmra.mrb[0].mxu0 %v5713
    %v5790 = vpop.f32.mrb[0].mxu0
    %v5791 = vadd.f32 0.0, %v5790
    %v5792 = vpop.f32.mrb[0].mxu0
    %v5793 = vadd.f32 0.0, %v5792
    %v5794 = vpop.f32.mrb[0].mxu0
    %v5795 = vpop.f32.mrb[0].mxu0
    %5796 = vdwg.mxu0
    %v5797 = vadd.f32 %v5658, %v5750
    %v5798 = vadd.f32 %v5659, %v5752
    %v5799 = vadd.f32 %v5660, %v5791
    %v5800 = vadd.f32 %v5661, %v5793
    %s5801 = scalar_lea.vmem [#allocation13], 1728
    %v5802 = vld [vmem:[%s5801] sm:$0xff]
    %v5803 = vld [vmem:[%s5801 + $0x8] sm:$0xff]
    %v5804 = vld [vmem:[%s5801 + $0x10] sm:$0xff]
    %v5805 = vld [vmem:[%s5801 + $0x18] sm:$0xff]
    %v5806 = vld [vmem:[%s5801 + $0x20] sm:$0xff]
    %v5807 = vld [vmem:[%s5801 + $0x28] sm:$0xff]
    %v5808 = vld [vmem:[%s5801 + $0x30] sm:$0xff]
    %v5809 = vld [vmem:[%s5801 + $0x38] sm:$0xff]
    %v5810 = vrot.slane %v5383, 3
    %v5819 = vunpack.c.l.b16 %v5802
    %v5820 = vunpack.c.h.b16 %v5802
    %v5821 = vunpack.c.l.b16 %v5803
    %v5822 = vunpack.c.h.b16 %v5803
    %v5823 = vunpack.c.l.b16 %v5804
    %v5824 = vunpack.c.h.b16 %v5804
    %v5825 = vunpack.c.l.b16 %v5805
    %v5826 = vunpack.c.h.b16 %v5805
    %v5827 = vunpack.c.l.b16 %v5806
    %v5828 = vunpack.c.h.b16 %v5806
    %v5829 = vunpack.c.l.b16 %v5807
    %v5830 = vunpack.c.h.b16 %v5807
    %v5831 = vunpack.c.l.b16 %v5808
    %v5832 = vunpack.c.h.b16 %v5808
    %v5833 = vunpack.c.l.b16 %v5809
    %v5834 = vunpack.c.h.b16 %v5809
    %v5835 = vpack.c.b16 %v5823, %v5819
    %v5836 = vpack.c.b16 %v5824, %v5820
    %v5837 = vpack.c.b16 %v5825, %v5821
    %v5838 = vpack.c.b16 %v5826, %v5822
    %v5839 = vpack.c.b16 %v5831, %v5827
    %v5840 = vpack.c.b16 %v5832, %v5828
    %v5841 = vpack.c.b16 %v5833, %v5829
    %v5842 = vpack.c.b16 %v5834, %v5830
    %v5852 = vsel %vm574, %v5810, 0
    %5854 = vmatprep.subr.bf16.mxu0 %v5836
    %5855 = vmatpush1.bf16.msra.mxu0 %v5835
    %5856 = vmatprep.subr.bf16.mxu0 %v5840
    %5857 = vmatpush1.bf16.msra.mxu0 %v5839
    %5858 = vmatprep.subr.bf16.mxu0 0
    %5859 = vmatpush1.bf16.msra.mxu0 0
    %5860 = vmatprep.subr.bf16.mxu0 0
    %5861 = vmatpush1.bf16.msra.mxu0 0
    %5862 = vmatprep.subr.bf16.mxu0 0
    %5863 = vmatpush1.bf16.msra.mxu0 0
    %5864 = vmatprep.subr.bf16.mxu0 0
    %5865 = vmatpush1.bf16.msra.mxu0 0
    %5866 = vmatprep.subr.bf16.mxu0 0
    %5867 = vmatpush1.bf16.msra.mxu0 0
    %5868 = vmatprep.subr.bf16.mxu0 0
    %5869 = vmatpush1.bf16.msra.mxu0 0
    %5870 = vmatprep.subr.bf16.mxu0 0
    %5871 = vmatpush1.bf16.msra.mxu0 0
    %5872 = vmatprep.subr.bf16.mxu0 0
    %5873 = vmatpush1.bf16.msra.mxu0 0
    %5874 = vmatprep.subr.bf16.mxu0 0
    %5875 = vmatpush1.bf16.msra.mxu0 0
    %5876 = vmatprep.subr.bf16.mxu0 0
    %5877 = vmatpush1.bf16.msra.mxu0 0
    %5878 = vmatprep.subr.bf16.mxu0 0
    %5879 = vmatpush1.bf16.msra.mxu0 0
    %5880 = vmatprep.subr.bf16.mxu0 0
    %5881 = vmatpush1.bf16.msra.mxu0 0
    %5882 = vmatprep.subr.bf16.mxu0 0
    %5883 = vmatpush1.bf16.msra.mxu0 0
    %5884 = vmatprep.subr.bf16.mxu0 0
    %5885 = vmatpush1.bf16.msra.mxu0 0
    %5886 = vmatprep.mubr.bf16.mxu0 0
    %5887 = vmatmul.mubr.bf16.gmra.mrb[0].mxu0 %v5852
    %v5888 = vpop.f32.mrb[0].mxu0
    %v5889 = vadd.f32 0.0, %v5888
    %v5890 = vpop.f32.mrb[0].mxu0
    %v5891 = vadd.f32 0.0, %v5890
    %v5892 = vpop.f32.mrb[0].mxu0
    %v5893 = vpop.f32.mrb[0].mxu0
    %5894 = vdwg.mxu0
    %5895 = vmatprep.subr.bf16.mxu0 %v5838
    %5896 = vmatpush1.bf16.msra.mxu0 %v5837
    %5897 = vmatprep.subr.bf16.mxu0 %v5842
    %5898 = vmatpush1.bf16.msra.mxu0 %v5841
    %5899 = vmatprep.subr.bf16.mxu0 0
    %5900 = vmatpush1.bf16.msra.mxu0 0
    %5901 = vmatprep.subr.bf16.mxu0 0
    %5902 = vmatpush1.bf16.msra.mxu0 0
    %5903 = vmatprep.subr.bf16.mxu0 0
    %5904 = vmatpush1.bf16.msra.mxu0 0
    %5905 = vmatprep.subr.bf16.mxu0 0
    %5906 = vmatpush1.bf16.msra.mxu0 0
    %5907 = vmatprep.subr.bf16.mxu0 0
    %5908 = vmatpush1.bf16.msra.mxu0 0
    %5909 = vmatprep.subr.bf16.mxu0 0
    %5910 = vmatpush1.bf16.msra.mxu0 0
    %5911 = vmatprep.subr.bf16.mxu0 0
    %5912 = vmatpush1.bf16.msra.mxu0 0
    %5913 = vmatprep.subr.bf16.mxu0 0
    %5914 = vmatpush1.bf16.msra.mxu0 0
    %5915 = vmatprep.subr.bf16.mxu0 0
    %5916 = vmatpush1.bf16.msra.mxu0 0
    %5917 = vmatprep.subr.bf16.mxu0 0
    %5918 = vmatpush1.bf16.msra.mxu0 0
    %5919 = vmatprep.subr.bf16.mxu0 0
    %5920 = vmatpush1.bf16.msra.mxu0 0
    %5921 = vmatprep.subr.bf16.mxu0 0
    %5922 = vmatpush1.bf16.msra.mxu0 0
    %5923 = vmatprep.subr.bf16.mxu0 0
    %5924 = vmatpush1.bf16.msra.mxu0 0
    %5925 = vmatprep.subr.bf16.mxu0 0
    %5926 = vmatpush1.bf16.msra.mxu0 0
    %5927 = vmatprep.mubr.bf16.mxu0 0
    %5928 = vmatmul.mubr.bf16.gmra.mrb[0].mxu0 %v5852
    %v5929 = vpop.f32.mrb[0].mxu0
    %v5930 = vadd.f32 0.0, %v5929
    %v5931 = vpop.f32.mrb[0].mxu0
    %v5932 = vadd.f32 0.0, %v5931
    %v5933 = vpop.f32.mrb[0].mxu0
    %v5934 = vpop.f32.mrb[0].mxu0
    %5935 = vdwg.mxu0
    %v5936 = vadd.f32 %v5797, %v5889
    %v5937 = vadd.f32 %v5798, %v5891
    %v5938 = vadd.f32 %v5799, %v5930
    %v5939 = vadd.f32 %v5800, %v5932
    %v5940 = vpack.c.bf16 %v2042, %v2042
    %s5941 = scalar_lea.vmem [#allocation13], 1792
    %v5942 = vld [vmem:[%s5941] sm:$0xff]
    %v5943 = vld [vmem:[%s5941 + $0x8] sm:$0xff]
    %v5944 = vld [vmem:[%s5941 + $0x10] sm:$0xff]
    %v5945 = vld [vmem:[%s5941 + $0x18] sm:$0xff]
    %v5946 = vld [vmem:[%s5941 + $0x20] sm:$0xff]
    %v5947 = vld [vmem:[%s5941 + $0x28] sm:$0xff]
    %v5948 = vld [vmem:[%s5941 + $0x30] sm:$0xff]
    %v5949 = vld [vmem:[%s5941 + $0x38] sm:$0xff]
    %v5958 = vunpack.c.l.b16 %v5942
    %v5959 = vunpack.c.h.b16 %v5942
    %v5960 = vunpack.c.l.b16 %v5943
    %v5961 = vunpack.c.h.b16 %v5943
    %v5962 = vunpack.c.l.b16 %v5944
    %v5963 = vunpack.c.h.b16 %v5944
    %v5964 = vunpack.c.l.b16 %v5945
    %v5965 = vunpack.c.h.b16 %v5945
    %v5966 = vunpack.c.l.b16 %v5946
    %v5967 = vunpack.c.h.b16 %v5946
    %v5968 = vunpack.c.l.b16 %v5947
    %v5969 = vunpack.c.h.b16 %v5947
    %v5970 = vunpack.c.l.b16 %v5948
    %v5971 = vunpack.c.h.b16 %v5948
    %v5972 = vunpack.c.l.b16 %v5949
    %v5973 = vunpack.c.h.b16 %v5949
    %v5974 = vpack.c.b16 %v5962, %v5958
    %v5975 = vpack.c.b16 %v5963, %v5959
    %v5976 = vpack.c.b16 %v5964, %v5960
    %v5977 = vpack.c.b16 %v5965, %v5961
    %v5978 = vpack.c.b16 %v5970, %v5966
    %v5979 = vpack.c.b16 %v5971, %v5967
    %v5980 = vpack.c.b16 %v5972, %v5968
    %v5981 = vpack.c.b16 %v5973, %v5969
    %v5991 = vsel %vm574, %v5940, 0
    %5993 = vmatprep.subr.bf16.mxu0 %v5975
    %5994 = vmatpush1.bf16.msra.mxu0 %v5974
    %5995 = vmatprep.subr.bf16.mxu0 %v5979
    %5996 = vmatpush1.bf16.msra.mxu0 %v5978
    %5997 = vmatprep.subr.bf16.mxu0 0
    %5998 = vmatpush1.bf16.msra.mxu0 0
    %5999 = vmatprep.subr.bf16.mxu0 0
    %6000 = vmatpush1.bf16.msra.mxu0 0
    %6001 = vmatprep.subr.bf16.mxu0 0
    %6002 = vmatpush1.bf16.msra.mxu0 0
    %6003 = vmatprep.subr.bf16.mxu0 0
    %6004 = vmatpush1.bf16.msra.mxu0 0
    %6005 = vmatprep.subr.bf16.mxu0 0
    %6006 = vmatpush1.bf16.msra.mxu0 0
    %6007 = vmatprep.subr.bf16.mxu0 0
    %6008 = vmatpush1.bf16.msra.mxu0 0
    %6009 = vmatprep.subr.bf16.mxu0 0
    %6010 = vmatpush1.bf16.msra.mxu0 0
    %6011 = vmatprep.subr.bf16.mxu0 0
    %6012 = vmatpush1.bf16.msra.mxu0 0
    %6013 = vmatprep.subr.bf16.mxu0 0
    %6014 = vmatpush1.bf16.msra.mxu0 0
    %6015 = vmatprep.subr.bf16.mxu0 0
    %6016 = vmatpush1.bf16.msra.mxu0 0
    %6017 = vmatprep.subr.bf16.mxu0 0
    %6018 = vmatpush1.bf16.msra.mxu0 0
    %6019 = vmatprep.subr.bf16.mxu0 0
    %6020 = vmatpush1.bf16.msra.mxu0 0
    %6021 = vmatprep.subr.bf16.mxu0 0
    %6022 = vmatpush1.bf16.msra.mxu0 0
    %6023 = vmatprep.subr.bf16.mxu0 0
    %6024 = vmatpush1.bf16.msra.mxu0 0
    %6025 = vmatprep.mubr.bf16.mxu0 0
    %6026 = vmatmul.mubr.bf16.gmra.mrb[0].mxu0 %v5991
    %v6027 = vpop.f32.mrb[0].mxu0
    %v6028 = vadd.f32 0.0, %v6027
    %v6029 = vpop.f32.mrb[0].mxu0
    %v6030 = vadd.f32 0.0, %v6029
    %v6031 = vpop.f32.mrb[0].mxu0
    %v6032 = vpop.f32.mrb[0].mxu0
    %6033 = vdwg.mxu0
    %6034 = vmatprep.subr.bf16.mxu0 %v5977
    %6035 = vmatpush1.bf16.msra.mxu0 %v5976
    %6036 = vmatprep.subr.bf16.mxu0 %v5981
    %6037 = vmatpush1.bf16.msra.mxu0 %v5980
    %6038 = vmatprep.subr.bf16.mxu0 0
    %6039 = vmatpush1.bf16.msra.mxu0 0
    %6040 = vmatprep.subr.bf16.mxu0 0
    %6041 = vmatpush1.bf16.msra.mxu0 0
    %6042 = vmatprep.subr.bf16.mxu0 0
    %6043 = vmatpush1.bf16.msra.mxu0 0
    %6044 = vmatprep.subr.bf16.mxu0 0
    %6045 = vmatpush1.bf16.msra.mxu0 0
    %6046 = vmatprep.subr.bf16.mxu0 0
    %6047 = vmatpush1.bf16.msra.mxu0 0
    %6048 = vmatprep.subr.bf16.mxu0 0
    %6049 = vmatpush1.bf16.msra.mxu0 0
    %6050 = vmatprep.subr.bf16.mxu0 0
    %6051 = vmatpush1.bf16.msra.mxu0 0
    %6052 = vmatprep.subr.bf16.mxu0 0
    %6053 = vmatpush1.bf16.msra.mxu0 0
    %6054 = vmatprep.subr.bf16.mxu0 0
    %6055 = vmatpush1.bf16.msra.mxu0 0
    %6056 = vmatprep.subr.bf16.mxu0 0
    %6057 = vmatpush1.bf16.msra.mxu0 0
    %6058 = vmatprep.subr.bf16.mxu0 0
    %6059 = vmatpush1.bf16.msra.mxu0 0
    %6060 = vmatprep.subr.bf16.mxu0 0
    %6061 = vmatpush1.bf16.msra.mxu0 0
    %6062 = vmatprep.subr.bf16.mxu0 0
    %6063 = vmatpush1.bf16.msra.mxu0 0
    %6064 = vmatprep.subr.bf16.mxu0 0
    %6065 = vmatpush1.bf16.msra.mxu0 0
    %6066 = vmatprep.mubr.bf16.mxu0 0
    %6067 = vmatmul.mubr.bf16.gmra.mrb[0].mxu0 %v5991
    %v6068 = vpop.f32.mrb[0].mxu0
    %v6069 = vadd.f32 0.0, %v6068
    %v6070 = vpop.f32.mrb[0].mxu0
    %v6071 = vadd.f32 0.0, %v6070
    %v6072 = vpop.f32.mrb[0].mxu0
    %v6073 = vpop.f32.mrb[0].mxu0
    %6074 = vdwg.mxu0
    %v6075 = vadd.f32 %v5936, %v6028
    %v6076 = vadd.f32 %v5937, %v6030
    %v6077 = vadd.f32 %v5938, %v6069
    %v6078 = vadd.f32 %v5939, %v6071
    %s6079 = scalar_lea.vmem [#allocation13], 1856
    %v6080 = vld [vmem:[%s6079] sm:$0xff]
    %v6081 = vld [vmem:[%s6079 + $0x8] sm:$0xff]
    %v6082 = vld [vmem:[%s6079 + $0x10] sm:$0xff]
    %v6083 = vld [vmem:[%s6079 + $0x18] sm:$0xff]
    %v6084 = vld [vmem:[%s6079 + $0x20] sm:$0xff]
    %v6085 = vld [vmem:[%s6079 + $0x28] sm:$0xff]
    %v6086 = vld [vmem:[%s6079 + $0x30] sm:$0xff]
    %v6087 = vld [vmem:[%s6079 + $0x38] sm:$0xff]
    %v6089 = vrot.slane %v5940, 1
    %v6098 = vunpack.c.l.b16 %v6080
    %v6099 = vunpack.c.h.b16 %v6080
    %v6100 = vunpack.c.l.b16 %v6081
    %v6101 = vunpack.c.h.b16 %v6081
    %v6102 = vunpack.c.l.b16 %v6082
    %v6103 = vunpack.c.h.b16 %v6082
    %v6104 = vunpack.c.l.b16 %v6083
    %v6105 = vunpack.c.h.b16 %v6083
    %v6106 = vunpack.c.l.b16 %v6084
    %v6107 = vunpack.c.h.b16 %v6084
    %v6108 = vunpack.c.l.b16 %v6085
    %v6109 = vunpack.c.h.b16 %v6085
    %v6110 = vunpack.c.l.b16 %v6086
    %v6111 = vunpack.c.h.b16 %v6086
    %v6112 = vunpack.c.l.b16 %v6087
    %v6113 = vunpack.c.h.b16 %v6087
    %v6114 = vpack.c.b16 %v6102, %v6098
    %v6115 = vpack.c.b16 %v6103, %v6099
    %v6116 = vpack.c.b16 %v6104, %v6100
    %v6117 = vpack.c.b16 %v6105, %v6101
    %v6118 = vpack.c.b16 %v6110, %v6106
    %v6119 = vpack.c.b16 %v6111, %v6107
    %v6120 = vpack.c.b16 %v6112, %v6108
    %v6121 = vpack.c.b16 %v6113, %v6109
    %v6131 = vsel %vm574, %v6089, 0
    %6133 = vmatprep.subr.bf16.mxu0 %v6115
    %6134 = vmatpush1.bf16.msra.mxu0 %v6114
    %6135 = vmatprep.subr.bf16.mxu0 %v6119
    %6136 = vmatpush1.bf16.msra.mxu0 %v6118
    %6137 = vmatprep.subr.bf16.mxu0 0
    %6138 = vmatpush1.bf16.msra.mxu0 0
    %6139 = vmatprep.subr.bf16.mxu0 0
    %6140 = vmatpush1.bf16.msra.mxu0 0
    %6141 = vmatprep.subr.bf16.mxu0 0
    %6142 = vmatpush1.bf16.msra.mxu0 0
    %6143 = vmatprep.subr.bf16.mxu0 0
    %6144 = vmatpush1.bf16.msra.mxu0 0
    %6145 = vmatprep.subr.bf16.mxu0 0
    %6146 = vmatpush1.bf16.msra.mxu0 0
    %6147 = vmatprep.subr.bf16.mxu0 0
    %6148 = vmatpush1.bf16.msra.mxu0 0
    %6149 = vmatprep.subr.bf16.mxu0 0
    %6150 = vmatpush1.bf16.msra.mxu0 0
    %6151 = vmatprep.subr.bf16.mxu0 0
    %6152 = vmatpush1.bf16.msra.mxu0 0
    %6153 = vmatprep.subr.bf16.mxu0 0
    %6154 = vmatpush1.bf16.msra.mxu0 0
    %6155 = vmatprep.subr.bf16.mxu0 0
    %6156 = vmatpush1.bf16.msra.mxu0 0
    %6157 = vmatprep.subr.bf16.mxu0 0
    %6158 = vmatpush1.bf16.msra.mxu0 0
    %6159 = vmatprep.subr.bf16.mxu0 0
    %6160 = vmatpush1.bf16.msra.mxu0 0
    %6161 = vmatprep.subr.bf16.mxu0 0
    %6162 = vmatpush1.bf16.msra.mxu0 0
    %6163 = vmatprep.subr.bf16.mxu0 0
    %6164 = vmatpush1.bf16.msra.mxu0 0
    %6165 = vmatprep.mubr.bf16.mxu0 0
    %6166 = vmatmul.mubr.bf16.gmra.mrb[0].mxu0 %v6131
    %v6167 = vpop.f32.mrb[0].mxu0
    %v6168 = vadd.f32 0.0, %v6167
    %v6169 = vpop.f32.mrb[0].mxu0
    %v6170 = vadd.f32 0.0, %v6169
    %v6171 = vpop.f32.mrb[0].mxu0
    %v6172 = vpop.f32.mrb[0].mxu0
    %6173 = vdwg.mxu0
    %6174 = vmatprep.subr.bf16.mxu0 %v6117
    %6175 = vmatpush1.bf16.msra.mxu0 %v6116
    %6176 = vmatprep.subr.bf16.mxu0 %v6121
    %6177 = vmatpush1.bf16.msra.mxu0 %v6120
    %6178 = vmatprep.subr.bf16.mxu0 0
    %6179 = vmatpush1.bf16.msra.mxu0 0
    %6180 = vmatprep.subr.bf16.mxu0 0
    %6181 = vmatpush1.bf16.msra.mxu0 0
    %6182 = vmatprep.subr.bf16.mxu0 0
    %6183 = vmatpush1.bf16.msra.mxu0 0
    %6184 = vmatprep.subr.bf16.mxu0 0
    %6185 = vmatpush1.bf16.msra.mxu0 0
    %6186 = vmatprep.subr.bf16.mxu0 0
    %6187 = vmatpush1.bf16.msra.mxu0 0
    %6188 = vmatprep.subr.bf16.mxu0 0
    %6189 = vmatpush1.bf16.msra.mxu0 0
    %6190 = vmatprep.subr.bf16.mxu0 0
    %6191 = vmatpush1.bf16.msra.mxu0 0
    %6192 = vmatprep.subr.bf16.mxu0 0
    %6193 = vmatpush1.bf16.msra.mxu0 0
    %6194 = vmatprep.subr.bf16.mxu0 0
    %6195 = vmatpush1.bf16.msra.mxu0 0
    %6196 = vmatprep.subr.bf16.mxu0 0
    %6197 = vmatpush1.bf16.msra.mxu0 0
    %6198 = vmatprep.subr.bf16.mxu0 0
    %6199 = vmatpush1.bf16.msra.mxu0 0
    %6200 = vmatprep.subr.bf16.mxu0 0
    %6201 = vmatpush1.bf16.msra.mxu0 0
    %6202 = vmatprep.subr.bf16.mxu0 0
    %6203 = vmatpush1.bf16.msra.mxu0 0
    %6204 = vmatprep.subr.bf16.mxu0 0
    %6205 = vmatpush1.bf16.msra.mxu0 0
    %6206 = vmatprep.mubr.bf16.mxu0 0
    %6207 = vmatmul.mubr.bf16.gmra.mrb[0].mxu0 %v6131
    %v6208 = vpop.f32.mrb[0].mxu0
    %v6209 = vadd.f32 0.0, %v6208
    %v6210 = vpop.f32.mrb[0].mxu0
    %v6211 = vadd.f32 0.0, %v6210
    %v6212 = vpop.f32.mrb[0].mxu0
    %v6213 = vpop.f32.mrb[0].mxu0
    %6214 = vdwg.mxu0
    %v6215 = vadd.f32 %v6075, %v6168
    %v6216 = vadd.f32 %v6076, %v6170
    %v6217 = vadd.f32 %v6077, %v6209
    %v6218 = vadd.f32 %v6078, %v6211
    %s6219 = scalar_lea.vmem [#allocation13], 1920
    %v6220 = vld [vmem:[%s6219] sm:$0xff]
    %v6221 = vld [vmem:[%s6219 + $0x8] sm:$0xff]
    %v6222 = vld [vmem:[%s6219 + $0x10] sm:$0xff]
    %v6223 = vld [vmem:[%s6219 + $0x18] sm:$0xff]
    %v6224 = vld [vmem:[%s6219 + $0x20] sm:$0xff]
    %v6225 = vld [vmem:[%s6219 + $0x28] sm:$0xff]
    %v6226 = vld [vmem:[%s6219 + $0x30] sm:$0xff]
    %v6227 = vld [vmem:[%s6219 + $0x38] sm:$0xff]
    %v6228 = vrot.slane %v5940, 2
    %v6237 = vunpack.c.l.b16 %v6220
    %v6238 = vunpack.c.h.b16 %v6220
    %v6239 = vunpack.c.l.b16 %v6221
    %v6240 = vunpack.c.h.b16 %v6221
    %v6241 = vunpack.c.l.b16 %v6222
    %v6242 = vunpack.c.h.b16 %v6222
    %v6243 = vunpack.c.l.b16 %v6223
    %v6244 = vunpack.c.h.b16 %v6223
    %v6245 = vunpack.c.l.b16 %v6224
    %v6246 = vunpack.c.h.b16 %v6224
    %v6247 = vunpack.c.l.b16 %v6225
    %v6248 = vunpack.c.h.b16 %v6225
    %v6249 = vunpack.c.l.b16 %v6226
    %v6250 = vunpack.c.h.b16 %v6226
    %v6251 = vunpack.c.l.b16 %v6227
    %v6252 = vunpack.c.h.b16 %v6227
    %v6253 = vpack.c.b16 %v6241, %v6237
    %v6254 = vpack.c.b16 %v6242, %v6238
    %v6255 = vpack.c.b16 %v6243, %v6239
    %v6256 = vpack.c.b16 %v6244, %v6240
    %v6257 = vpack.c.b16 %v6249, %v6245
    %v6258 = vpack.c.b16 %v6250, %v6246
    %v6259 = vpack.c.b16 %v6251, %v6247
    %v6260 = vpack.c.b16 %v6252, %v6248
    %v6270 = vsel %vm574, %v6228, 0
    %6272 = vmatprep.subr.bf16.mxu0 %v6254
    %6273 = vmatpush1.bf16.msra.mxu0 %v6253
    %6274 = vmatprep.subr.bf16.mxu0 %v6258
    %6275 = vmatpush1.bf16.msra.mxu0 %v6257
    %6276 = vmatprep.subr.bf16.mxu0 0
    %6277 = vmatpush1.bf16.msra.mxu0 0
    %6278 = vmatprep.subr.bf16.mxu0 0
    %6279 = vmatpush1.bf16.msra.mxu0 0
    %6280 = vmatprep.subr.bf16.mxu0 0
    %6281 = vmatpush1.bf16.msra.mxu0 0
    %6282 = vmatprep.subr.bf16.mxu0 0
    %6283 = vmatpush1.bf16.msra.mxu0 0
    %6284 = vmatprep.subr.bf16.mxu0 0
    %6285 = vmatpush1.bf16.msra.mxu0 0
    %6286 = vmatprep.subr.bf16.mxu0 0
    %6287 = vmatpush1.bf16.msra.mxu0 0
    %6288 = vmatprep.subr.bf16.mxu0 0
    %6289 = vmatpush1.bf16.msra.mxu0 0
    %6290 = vmatprep.subr.bf16.mxu0 0
    %6291 = vmatpush1.bf16.msra.mxu0 0
    %6292 = vmatprep.subr.bf16.mxu0 0
    %6293 = vmatpush1.bf16.msra.mxu0 0
    %6294 = vmatprep.subr.bf16.mxu0 0
    %6295 = vmatpush1.bf16.msra.mxu0 0
    %6296 = vmatprep.subr.bf16.mxu0 0
    %6297 = vmatpush1.bf16.msra.mxu0 0
    %6298 = vmatprep.subr.bf16.mxu0 0
    %6299 = vmatpush1.bf16.msra.mxu0 0
    %6300 = vmatprep.subr.bf16.mxu0 0
    %6301 = vmatpush1.bf16.msra.mxu0 0
    %6302 = vmatprep.subr.bf16.mxu0 0
    %6303 = vmatpush1.bf16.msra.mxu0 0
    %6304 = vmatprep.mubr.bf16.mxu0 0
    %6305 = vmatmul.mubr.bf16.gmra.mrb[0].mxu0 %v6270
    %v6306 = vpop.f32.mrb[0].mxu0
    %v6307 = vadd.f32 0.0, %v6306
    %v6308 = vpop.f32.mrb[0].mxu0
    %v6309 = vadd.f32 0.0, %v6308
    %v6310 = vpop.f32.mrb[0].mxu0
    %v6311 = vpop.f32.mrb[0].mxu0
    %6312 = vdwg.mxu0
    %6313 = vmatprep.subr.bf16.mxu0 %v6256
    %6314 = vmatpush1.bf16.msra.mxu0 %v6255
    %6315 = vmatprep.subr.bf16.mxu0 %v6260
    %6316 = vmatpush1.bf16.msra.mxu0 %v6259
    %6317 = vmatprep.subr.bf16.mxu0 0
    %6318 = vmatpush1.bf16.msra.mxu0 0
    %6319 = vmatprep.subr.bf16.mxu0 0
    %6320 = vmatpush1.bf16.msra.mxu0 0
    %6321 = vmatprep.subr.bf16.mxu0 0
    %6322 = vmatpush1.bf16.msra.mxu0 0
    %6323 = vmatprep.subr.bf16.mxu0 0
    %6324 = vmatpush1.bf16.msra.mxu0 0
    %6325 = vmatprep.subr.bf16.mxu0 0
    %6326 = vmatpush1.bf16.msra.mxu0 0
    %6327 = vmatprep.subr.bf16.mxu0 0
    %6328 = vmatpush1.bf16.msra.mxu0 0
    %6329 = vmatprep.subr.bf16.mxu0 0
    %6330 = vmatpush1.bf16.msra.mxu0 0
    %6331 = vmatprep.subr.bf16.mxu0 0
    %6332 = vmatpush1.bf16.msra.mxu0 0
    %6333 = vmatprep.subr.bf16.mxu0 0
    %6334 = vmatpush1.bf16.msra.mxu0 0
    %6335 = vmatprep.subr.bf16.mxu0 0
    %6336 = vmatpush1.bf16.msra.mxu0 0
    %6337 = vmatprep.subr.bf16.mxu0 0
    %6338 = vmatpush1.bf16.msra.mxu0 0
    %6339 = vmatprep.subr.bf16.mxu0 0
    %6340 = vmatpush1.bf16.msra.mxu0 0
    %6341 = vmatprep.subr.bf16.mxu0 0
    %6342 = vmatpush1.bf16.msra.mxu0 0
    %6343 = vmatprep.subr.bf16.mxu0 0
    %6344 = vmatpush1.bf16.msra.mxu0 0
    %6345 = vmatprep.mubr.bf16.mxu0 0
    %6346 = vmatmul.mubr.bf16.gmra.mrb[0].mxu0 %v6270
    %v6347 = vpop.f32.mrb[0].mxu0
    %v6348 = vadd.f32 0.0, %v6347
    %v6349 = vpop.f32.mrb[0].mxu0
    %v6350 = vadd.f32 0.0, %v6349
    %v6351 = vpop.f32.mrb[0].mxu0
    %v6352 = vpop.f32.mrb[0].mxu0
    %6353 = vdwg.mxu0
    %v6354 = vadd.f32 %v6215, %v6307
    %v6355 = vadd.f32 %v6216, %v6309
    %v6356 = vadd.f32 %v6217, %v6348
    %v6357 = vadd.f32 %v6218, %v6350
    %s6358 = scalar_lea.vmem [#allocation13], 1984
    %v6359 = vld [vmem:[%s6358] sm:$0xff]
    %v6360 = vld [vmem:[%s6358 + $0x8] sm:$0xff]
    %v6361 = vld [vmem:[%s6358 + $0x10] sm:$0xff]
    %v6362 = vld [vmem:[%s6358 + $0x18] sm:$0xff]
    %v6363 = vld [vmem:[%s6358 + $0x20] sm:$0xff]
    %v6364 = vld [vmem:[%s6358 + $0x28] sm:$0xff]
    %v6365 = vld [vmem:[%s6358 + $0x30] sm:$0xff]
    %v6366 = vld [vmem:[%s6358 + $0x38] sm:$0xff]
    %v6367 = vrot.slane %v5940, 3
    %v6376 = vunpack.c.l.b16 %v6359
    %v6377 = vunpack.c.h.b16 %v6359
    %v6378 = vunpack.c.l.b16 %v6360
    %v6379 = vunpack.c.h.b16 %v6360
    %v6380 = vunpack.c.l.b16 %v6361
    %v6381 = vunpack.c.h.b16 %v6361
    %v6382 = vunpack.c.l.b16 %v6362
    %v6383 = vunpack.c.h.b16 %v6362
    %v6384 = vunpack.c.l.b16 %v6363
    %v6385 = vunpack.c.h.b16 %v6363
    %v6386 = vunpack.c.l.b16 %v6364
    %v6387 = vunpack.c.h.b16 %v6364
    %v6388 = vunpack.c.l.b16 %v6365
    %v6389 = vunpack.c.h.b16 %v6365
    %v6390 = vunpack.c.l.b16 %v6366
    %v6391 = vunpack.c.h.b16 %v6366
    %v6392 = vpack.c.b16 %v6380, %v6376
    %v6393 = vpack.c.b16 %v6381, %v6377
    %v6394 = vpack.c.b16 %v6382, %v6378
    %v6395 = vpack.c.b16 %v6383, %v6379
    %v6396 = vpack.c.b16 %v6388, %v6384
    %v6397 = vpack.c.b16 %v6389, %v6385
    %v6398 = vpack.c.b16 %v6390, %v6386
    %v6399 = vpack.c.b16 %v6391, %v6387
    %v6409 = vsel %vm574, %v6367, 0
    %6411 = vmatprep.subr.bf16.mxu0 %v6393
    %6412 = vmatpush1.bf16.msra.mxu0 %v6392
    %6413 = vmatprep.subr.bf16.mxu0 %v6397
    %6414 = vmatpush1.bf16.msra.mxu0 %v6396
    %6415 = vmatprep.subr.bf16.mxu0 0
    %6416 = vmatpush1.bf16.msra.mxu0 0
    %6417 = vmatprep.subr.bf16.mxu0 0
    %6418 = vmatpush1.bf16.msra.mxu0 0
    %6419 = vmatprep.subr.bf16.mxu0 0
    %6420 = vmatpush1.bf16.msra.mxu0 0
    %6421 = vmatprep.subr.bf16.mxu0 0
    %6422 = vmatpush1.bf16.msra.mxu0 0
    %6423 = vmatprep.subr.bf16.mxu0 0
    %6424 = vmatpush1.bf16.msra.mxu0 0
    %6425 = vmatprep.subr.bf16.mxu0 0
    %6426 = vmatpush1.bf16.msra.mxu0 0
    %6427 = vmatprep.subr.bf16.mxu0 0
    %6428 = vmatpush1.bf16.msra.mxu0 0
    %6429 = vmatprep.subr.bf16.mxu0 0
    %6430 = vmatpush1.bf16.msra.mxu0 0
    %6431 = vmatprep.subr.bf16.mxu0 0
    %6432 = vmatpush1.bf16.msra.mxu0 0
    %6433 = vmatprep.subr.bf16.mxu0 0
    %6434 = vmatpush1.bf16.msra.mxu0 0
    %6435 = vmatprep.subr.bf16.mxu0 0
    %6436 = vmatpush1.bf16.msra.mxu0 0
    %6437 = vmatprep.subr.bf16.mxu0 0
    %6438 = vmatpush1.bf16.msra.mxu0 0
    %6439 = vmatprep.subr.bf16.mxu0 0
    %6440 = vmatpush1.bf16.msra.mxu0 0
    %6441 = vmatprep.subr.bf16.mxu0 0
    %6442 = vmatpush1.bf16.msra.mxu0 0
    %6443 = vmatprep.mubr.bf16.mxu0 0
    %6444 = vmatmul.mubr.bf16.gmra.mrb[0].mxu0 %v6409
    %v6445 = vpop.f32.mrb[0].mxu0
    %v6446 = vadd.f32 0.0, %v6445
    %v6447 = vpop.f32.mrb[0].mxu0
    %v6448 = vadd.f32 0.0, %v6447
    %v6449 = vpop.f32.mrb[0].mxu0
    %v6450 = vpop.f32.mrb[0].mxu0
    %6451 = vdwg.mxu0
    %6452 = vmatprep.subr.bf16.mxu0 %v6395
    %6453 = vmatpush1.bf16.msra.mxu0 %v6394
    %6454 = vmatprep.subr.bf16.mxu0 %v6399
    %6455 = vmatpush1.bf16.msra.mxu0 %v6398
    %6456 = vmatprep.subr.bf16.mxu0 0
    %6457 = vmatpush1.bf16.msra.mxu0 0
    %6458 = vmatprep.subr.bf16.mxu0 0
    %6459 = vmatpush1.bf16.msra.mxu0 0
    %6460 = vmatprep.subr.bf16.mxu0 0
    %6461 = vmatpush1.bf16.msra.mxu0 0
    %6462 = vmatprep.subr.bf16.mxu0 0
    %6463 = vmatpush1.bf16.msra.mxu0 0
    %6464 = vmatprep.subr.bf16.mxu0 0
    %6465 = vmatpush1.bf16.msra.mxu0 0
    %6466 = vmatprep.subr.bf16.mxu0 0
    %6467 = vmatpush1.bf16.msra.mxu0 0
    %6468 = vmatprep.subr.bf16.mxu0 0
    %6469 = vmatpush1.bf16.msra.mxu0 0
    %6470 = vmatprep.subr.bf16.mxu0 0
    %6471 = vmatpush1.bf16.msra.mxu0 0
    %6472 = vmatprep.subr.bf16.mxu0 0
    %6473 = vmatpush1.bf16.msra.mxu0 0
    %6474 = vmatprep.subr.bf16.mxu0 0
    %6475 = vmatpush1.bf16.msra.mxu0 0
    %6476 = vmatprep.subr.bf16.mxu0 0
    %6477 = vmatpush1.bf16.msra.mxu0 0
    %6478 = vmatprep.subr.bf16.mxu0 0
    %6479 = vmatpush1.bf16.msra.mxu0 0
    %6480 = vmatprep.subr.bf16.mxu0 0
    %6481 = vmatpush1.bf16.msra.mxu0 0
    %6482 = vmatprep.subr.bf16.mxu0 0
    %6483 = vmatpush1.bf16.msra.mxu0 0
    %6484 = vmatprep.mubr.bf16.mxu0 0
    %6485 = vmatmul.mubr.bf16.gmra.mrb[0].mxu0 %v6409
    %v6486 = vpop.f32.mrb[0].mxu0
    %v6487 = vadd.f32 0.0, %v6486
    %v6488 = vpop.f32.mrb[0].mxu0
    %v6489 = vadd.f32 0.0, %v6488
    %v6490 = vpop.f32.mrb[0].mxu0
    %v6491 = vpop.f32.mrb[0].mxu0
    %6492 = vdwg.mxu0
    %v6493 = vadd.f32 %v6354, %v6446
    %v6494 = vadd.f32 %v6355, %v6448
    %v6495 = vadd.f32 %v6356, %v6487
    %v6496 = vadd.f32 %v6357, %v6489
    %v6497 = vpack.c.bf16 %v2043, %v2043
    %s6498 = scalar_lea.vmem [#allocation13], 2048
    %v6499 = vld [vmem:[%s6498] sm:$0xff]
    %v6500 = vld [vmem:[%s6498 + $0x8] sm:$0xff]
    %v6501 = vld [vmem:[%s6498 + $0x10] sm:$0xff]
    %v6502 = vld [vmem:[%s6498 + $0x18] sm:$0xff]
    %v6503 = vld [vmem:[%s6498 + $0x20] sm:$0xff]
    %v6504 = vld [vmem:[%s6498 + $0x28] sm:$0xff]
    %v6505 = vld [vmem:[%s6498 + $0x30] sm:$0xff]
    %v6506 = vld [vmem:[%s6498 + $0x38] sm:$0xff]
    %v6515 = vunpack.c.l.b16 %v6499
    %v6516 = vunpack.c.h.b16 %v6499
    %v6517 = vunpack.c.l.b16 %v6500
    %v6518 = vunpack.c.h.b16 %v6500
    %v6519 = vunpack.c.l.b16 %v6501
    %v6520 = vunpack.c.h.b16 %v6501
    %v6521 = vunpack.c.l.b16 %v6502
    %v6522 = vunpack.c.h.b16 %v6502
    %v6523 = vunpack.c.l.b16 %v6503
    %v6524 = vunpack.c.h.b16 %v6503
    %v6525 = vunpack.c.l.b16 %v6504
    %v6526 = vunpack.c.h.b16 %v6504
    %v6527 = vunpack.c.l.b16 %v6505
    %v6528 = vunpack.c.h.b16 %v6505
    %v6529 = vunpack.c.l.b16 %v6506
    %v6530 = vunpack.c.h.b16 %v6506
    %v6531 = vpack.c.b16 %v6519, %v6515
    %v6532 = vpack.c.b16 %v6520, %v6516
    %v6533 = vpack.c.b16 %v6521, %v6517
    %v6534 = vpack.c.b16 %v6522, %v6518
    %v6535 = vpack.c.b16 %v6527, %v6523
    %v6536 = vpack.c.b16 %v6528, %v6524
    %v6537 = vpack.c.b16 %v6529, %v6525
    %v6538 = vpack.c.b16 %v6530, %v6526
    %v6548 = vsel %vm574, %v6497, 0
    %6550 = vmatprep.subr.bf16.mxu0 %v6532
    %6551 = vmatpush1.bf16.msra.mxu0 %v6531
    %6552 = vmatprep.subr.bf16.mxu0 %v6536
    %6553 = vmatpush1.bf16.msra.mxu0 %v6535
    %6554 = vmatprep.subr.bf16.mxu0 0
    %6555 = vmatpush1.bf16.msra.mxu0 0
    %6556 = vmatprep.subr.bf16.mxu0 0
    %6557 = vmatpush1.bf16.msra.mxu0 0
    %6558 = vmatprep.subr.bf16.mxu0 0
    %6559 = vmatpush1.bf16.msra.mxu0 0
    %6560 = vmatprep.subr.bf16.mxu0 0
    %6561 = vmatpush1.bf16.msra.mxu0 0
    %6562 = vmatprep.subr.bf16.mxu0 0
    %6563 = vmatpush1.bf16.msra.mxu0 0
    %6564 = vmatprep.subr.bf16.mxu0 0
    %6565 = vmatpush1.bf16.msra.mxu0 0
    %6566 = vmatprep.subr.bf16.mxu0 0
    %6567 = vmatpush1.bf16.msra.mxu0 0
    %6568 = vmatprep.subr.bf16.mxu0 0
    %6569 = vmatpush1.bf16.msra.mxu0 0
    %6570 = vmatprep.subr.bf16.mxu0 0
    %6571 = vmatpush1.bf16.msra.mxu0 0
    %6572 = vmatprep.subr.bf16.mxu0 0
    %6573 = vmatpush1.bf16.msra.mxu0 0
    %6574 = vmatprep.subr.bf16.mxu0 0
    %6575 = vmatpush1.bf16.msra.mxu0 0
    %6576 = vmatprep.subr.bf16.mxu0 0
    %6577 = vmatpush1.bf16.msra.mxu0 0
    %6578 = vmatprep.subr.bf16.mxu0 0
    %6579 = vmatpush1.bf16.msra.mxu0 0
    %6580 = vmatprep.subr.bf16.mxu0 0
    %6581 = vmatpush1.bf16.msra.mxu0 0
    %6582 = vmatprep.mubr.bf16.mxu0 0
    %6583 = vmatmul.mubr.bf16.gmra.mrb[0].mxu0 %v6548
    %v6584 = vpop.f32.mrb[0].mxu0
    %v6585 = vadd.f32 0.0, %v6584
    %v6586 = vpop.f32.mrb[0].mxu0
    %v6587 = vadd.f32 0.0, %v6586
    %v6588 = vpop.f32.mrb[0].mxu0
    %v6589 = vpop.f32.mrb[0].mxu0
    %6590 = vdwg.mxu0
    %6591 = vmatprep.subr.bf16.mxu0 %v6534
    %6592 = vmatpush1.bf16.msra.mxu0 %v6533
    %6593 = vmatprep.subr.bf16.mxu0 %v6538
    %6594 = vmatpush1.bf16.msra.mxu0 %v6537
    %6595 = vmatprep.subr.bf16.mxu0 0
    %6596 = vmatpush1.bf16.msra.mxu0 0
    %6597 = vmatprep.subr.bf16.mxu0 0
    %6598 = vmatpush1.bf16.msra.mxu0 0
    %6599 = vmatprep.subr.bf16.mxu0 0
    %6600 = vmatpush1.bf16.msra.mxu0 0
    %6601 = vmatprep.subr.bf16.mxu0 0
    %6602 = vmatpush1.bf16.msra.mxu0 0
    %6603 = vmatprep.subr.bf16.mxu0 0
    %6604 = vmatpush1.bf16.msra.mxu0 0
    %6605 = vmatprep.subr.bf16.mxu0 0
    %6606 = vmatpush1.bf16.msra.mxu0 0
    %6607 = vmatprep.subr.bf16.mxu0 0
    %6608 = vmatpush1.bf16.msra.mxu0 0
    %6609 = vmatprep.subr.bf16.mxu0 0
    %6610 = vmatpush1.bf16.msra.mxu0 0
    %6611 = vmatprep.subr.bf16.mxu0 0
    %6612 = vmatpush1.bf16.msra.mxu0 0
    %6613 = vmatprep.subr.bf16.mxu0 0
    %6614 = vmatpush1.bf16.msra.mxu0 0
    %6615 = vmatprep.subr.bf16.mxu0 0
    %6616 = vmatpush1.bf16.msra.mxu0 0
    %6617 = vmatprep.subr.bf16.mxu0 0
    %6618 = vmatpush1.bf16.msra.mxu0 0
    %6619 = vmatprep.subr.bf16.mxu0 0
    %6620 = vmatpush1.bf16.msra.mxu0 0
    %6621 = vmatprep.subr.bf16.mxu0 0
    %6622 = vmatpush1.bf16.msra.mxu0 0
    %6623 = vmatprep.mubr.bf16.mxu0 0
    %6624 = vmatmul.mubr.bf16.gmra.mrb[0].mxu0 %v6548
    %v6625 = vpop.f32.mrb[0].mxu0
    %v6626 = vadd.f32 0.0, %v6625
    %v6627 = vpop.f32.mrb[0].mxu0
    %v6628 = vadd.f32 0.0, %v6627
    %v6629 = vpop.f32.mrb[0].mxu0
    %v6630 = vpop.f32.mrb[0].mxu0
    %6631 = vdwg.mxu0
    %v6632 = vadd.f32 %v6493, %v6585
    %v6633 = vadd.f32 %v6494, %v6587
    %v6634 = vadd.f32 %v6495, %v6626
    %v6635 = vadd.f32 %v6496, %v6628
    %s6636 = scalar_lea.vmem [#allocation13], 2112
    %v6637 = vld [vmem:[%s6636] sm:$0xff]
    %v6638 = vld [vmem:[%s6636 + $0x8] sm:$0xff]
    %v6639 = vld [vmem:[%s6636 + $0x10] sm:$0xff]
    %v6640 = vld [vmem:[%s6636 + $0x18] sm:$0xff]
    %v6641 = vld [vmem:[%s6636 + $0x20] sm:$0xff]
    %v6642 = vld [vmem:[%s6636 + $0x28] sm:$0xff]
    %v6643 = vld [vmem:[%s6636 + $0x30] sm:$0xff]
    %v6644 = vld [vmem:[%s6636 + $0x38] sm:$0xff]
    %v6646 = vrot.slane %v6497, 1
    %v6655 = vunpack.c.l.b16 %v6637
    %v6656 = vunpack.c.h.b16 %v6637
    %v6657 = vunpack.c.l.b16 %v6638
    %v6658 = vunpack.c.h.b16 %v6638
    %v6659 = vunpack.c.l.b16 %v6639
    %v6660 = vunpack.c.h.b16 %v6639
    %v6661 = vunpack.c.l.b16 %v6640
    %v6662 = vunpack.c.h.b16 %v6640
    %v6663 = vunpack.c.l.b16 %v6641
    %v6664 = vunpack.c.h.b16 %v6641
    %v6665 = vunpack.c.l.b16 %v6642
    %v6666 = vunpack.c.h.b16 %v6642
    %v6667 = vunpack.c.l.b16 %v6643
    %v6668 = vunpack.c.h.b16 %v6643
    %v6669 = vunpack.c.l.b16 %v6644
    %v6670 = vunpack.c.h.b16 %v6644
    %v6671 = vpack.c.b16 %v6659, %v6655
    %v6672 = vpack.c.b16 %v6660, %v6656
    %v6673 = vpack.c.b16 %v6661, %v6657
    %v6674 = vpack.c.b16 %v6662, %v6658
    %v6675 = vpack.c.b16 %v6667, %v6663
    %v6676 = vpack.c.b16 %v6668, %v6664
    %v6677 = vpack.c.b16 %v6669, %v6665
    %v6678 = vpack.c.b16 %v6670, %v6666
    %v6688 = vsel %vm574, %v6646, 0
    %6690 = vmatprep.subr.bf16.mxu0 %v6672
    %6691 = vmatpush1.bf16.msra.mxu0 %v6671
    %6692 = vmatprep.subr.bf16.mxu0 %v6676
    %6693 = vmatpush1.bf16.msra.mxu0 %v6675
    %6694 = vmatprep.subr.bf16.mxu0 0
    %6695 = vmatpush1.bf16.msra.mxu0 0
    %6696 = vmatprep.subr.bf16.mxu0 0
    %6697 = vmatpush1.bf16.msra.mxu0 0
    %6698 = vmatprep.subr.bf16.mxu0 0
    %6699 = vmatpush1.bf16.msra.mxu0 0
    %6700 = vmatprep.subr.bf16.mxu0 0
    %6701 = vmatpush1.bf16.msra.mxu0 0
    %6702 = vmatprep.subr.bf16.mxu0 0
    %6703 = vmatpush1.bf16.msra.mxu0 0
    %6704 = vmatprep.subr.bf16.mxu0 0
    %6705 = vmatpush1.bf16.msra.mxu0 0
    %6706 = vmatprep.subr.bf16.mxu0 0
    %6707 = vmatpush1.bf16.msra.mxu0 0
    %6708 = vmatprep.subr.bf16.mxu0 0
    %6709 = vmatpush1.bf16.msra.mxu0 0
    %6710 = vmatprep.subr.bf16.mxu0 0
    %6711 = vmatpush1.bf16.msra.mxu0 0
    %6712 = vmatprep.subr.bf16.mxu0 0
    %6713 = vmatpush1.bf16.msra.mxu0 0
    %6714 = vmatprep.subr.bf16.mxu0 0
    %6715 = vmatpush1.bf16.msra.mxu0 0
    %6716 = vmatprep.subr.bf16.mxu0 0
    %6717 = vmatpush1.bf16.msra.mxu0 0
    %6718 = vmatprep.subr.bf16.mxu0 0
    %6719 = vmatpush1.bf16.msra.mxu0 0
    %6720 = vmatprep.subr.bf16.mxu0 0
    %6721 = vmatpush1.bf16.msra.mxu0 0
    %6722 = vmatprep.mubr.bf16.mxu0 0
    %6723 = vmatmul.mubr.bf16.gmra.mrb[0].mxu0 %v6688
    %v6724 = vpop.f32.mrb[0].mxu0
    %v6725 = vadd.f32 0.0, %v6724
    %v6726 = vpop.f32.mrb[0].mxu0
    %v6727 = vadd.f32 0.0, %v6726
    %v6728 = vpop.f32.mrb[0].mxu0
    %v6729 = vpop.f32.mrb[0].mxu0
    %6730 = vdwg.mxu0
    %6731 = vmatprep.subr.bf16.mxu0 %v6674
    %6732 = vmatpush1.bf16.msra.mxu0 %v6673
    %6733 = vmatprep.subr.bf16.mxu0 %v6678
    %6734 = vmatpush1.bf16.msra.mxu0 %v6677
    %6735 = vmatprep.subr.bf16.mxu0 0
    %6736 = vmatpush1.bf16.msra.mxu0 0
    %6737 = vmatprep.subr.bf16.mxu0 0
    %6738 = vmatpush1.bf16.msra.mxu0 0
    %6739 = vmatprep.subr.bf16.mxu0 0
    %6740 = vmatpush1.bf16.msra.mxu0 0
    %6741 = vmatprep.subr.bf16.mxu0 0
    %6742 = vmatpush1.bf16.msra.mxu0 0
    %6743 = vmatprep.subr.bf16.mxu0 0
    %6744 = vmatpush1.bf16.msra.mxu0 0
    %6745 = vmatprep.subr.bf16.mxu0 0
    %6746 = vmatpush1.bf16.msra.mxu0 0
    %6747 = vmatprep.subr.bf16.mxu0 0
    %6748 = vmatpush1.bf16.msra.mxu0 0
    %6749 = vmatprep.subr.bf16.mxu0 0
    %6750 = vmatpush1.bf16.msra.mxu0 0
    %6751 = vmatprep.subr.bf16.mxu0 0
    %6752 = vmatpush1.bf16.msra.mxu0 0
    %6753 = vmatprep.subr.bf16.mxu0 0
    %6754 = vmatpush1.bf16.msra.mxu0 0
    %6755 = vmatprep.subr.bf16.mxu0 0
    %6756 = vmatpush1.bf16.msra.mxu0 0
    %6757 = vmatprep.subr.bf16.mxu0 0
    %6758 = vmatpush1.bf16.msra.mxu0 0
    %6759 = vmatprep.subr.bf16.mxu0 0
    %6760 = vmatpush1.bf16.msra.mxu0 0
    %6761 = vmatprep.subr.bf16.mxu0 0
    %6762 = vmatpush1.bf16.msra.mxu0 0
    %6763 = vmatprep.mubr.bf16.mxu0 0
    %6764 = vmatmul.mubr.bf16.gmra.mrb[0].mxu0 %v6688
    %v6765 = vpop.f32.mrb[0].mxu0
    %v6766 = vadd.f32 0.0, %v6765
    %v6767 = vpop.f32.mrb[0].mxu0
    %v6768 = vadd.f32 0.0, %v6767
    %v6769 = vpop.f32.mrb[0].mxu0
    %v6770 = vpop.f32.mrb[0].mxu0
    %6771 = vdwg.mxu0
    %v6772 = vadd.f32 %v6632, %v6725
    %v6773 = vadd.f32 %v6633, %v6727
    %v6774 = vadd.f32 %v6634, %v6766
    %v6775 = vadd.f32 %v6635, %v6768
    %s6776 = scalar_lea.vmem [#allocation13], 2176
    %v6777 = vld [vmem:[%s6776] sm:$0xff]
    %v6778 = vld [vmem:[%s6776 + $0x8] sm:$0xff]
    %v6779 = vld [vmem:[%s6776 + $0x10] sm:$0xff]
    %v6780 = vld [vmem:[%s6776 + $0x18] sm:$0xff]
    %v6781 = vld [vmem:[%s6776 + $0x20] sm:$0xff]
    %v6782 = vld [vmem:[%s6776 + $0x28] sm:$0xff]
    %v6783 = vld [vmem:[%s6776 + $0x30] sm:$0xff]
    %v6784 = vld [vmem:[%s6776 + $0x38] sm:$0xff]
    %v6785 = vrot.slane %v6497, 2
    %v6794 = vunpack.c.l.b16 %v6777
    %v6795 = vunpack.c.h.b16 %v6777
    %v6796 = vunpack.c.l.b16 %v6778
    %v6797 = vunpack.c.h.b16 %v6778
    %v6798 = vunpack.c.l.b16 %v6779
    %v6799 = vunpack.c.h.b16 %v6779
    %v6800 = vunpack.c.l.b16 %v6780
    %v6801 = vunpack.c.h.b16 %v6780
    %v6802 = vunpack.c.l.b16 %v6781
    %v6803 = vunpack.c.h.b16 %v6781
    %v6804 = vunpack.c.l.b16 %v6782
    %v6805 = vunpack.c.h.b16 %v6782
    %v6806 = vunpack.c.l.b16 %v6783
    %v6807 = vunpack.c.h.b16 %v6783
    %v6808 = vunpack.c.l.b16 %v6784
    %v6809 = vunpack.c.h.b16 %v6784
    %v6810 = vpack.c.b16 %v6798, %v6794
    %v6811 = vpack.c.b16 %v6799, %v6795
    %v6812 = vpack.c.b16 %v6800, %v6796
    %v6813 = vpack.c.b16 %v6801, %v6797
    %v6814 = vpack.c.b16 %v6806, %v6802
    %v6815 = vpack.c.b16 %v6807, %v6803
    %v6816 = vpack.c.b16 %v6808, %v6804
    %v6817 = vpack.c.b16 %v6809, %v6805
    %v6827 = vsel %vm574, %v6785, 0
    %6829 = vmatprep.subr.bf16.mxu0 %v6811
    %6830 = vmatpush1.bf16.msra.mxu0 %v6810
    %6831 = vmatprep.subr.bf16.mxu0 %v6815
    %6832 = vmatpush1.bf16.msra.mxu0 %v6814
    %6833 = vmatprep.subr.bf16.mxu0 0
    %6834 = vmatpush1.bf16.msra.mxu0 0
    %6835 = vmatprep.subr.bf16.mxu0 0
    %6836 = vmatpush1.bf16.msra.mxu0 0
    %6837 = vmatprep.subr.bf16.mxu0 0
    %6838 = vmatpush1.bf16.msra.mxu0 0
    %6839 = vmatprep.subr.bf16.mxu0 0
    %6840 = vmatpush1.bf16.msra.mxu0 0
    %6841 = vmatprep.subr.bf16.mxu0 0
    %6842 = vmatpush1.bf16.msra.mxu0 0
    %6843 = vmatprep.subr.bf16.mxu0 0
    %6844 = vmatpush1.bf16.msra.mxu0 0
    %6845 = vmatprep.subr.bf16.mxu0 0
    %6846 = vmatpush1.bf16.msra.mxu0 0
    %6847 = vmatprep.subr.bf16.mxu0 0
    %6848 = vmatpush1.bf16.msra.mxu0 0
    %6849 = vmatprep.subr.bf16.mxu0 0
    %6850 = vmatpush1.bf16.msra.mxu0 0
    %6851 = vmatprep.subr.bf16.mxu0 0
    %6852 = vmatpush1.bf16.msra.mxu0 0
    %6853 = vmatprep.subr.bf16.mxu0 0
    %6854 = vmatpush1.bf16.msra.mxu0 0
    %6855 = vmatprep.subr.bf16.mxu0 0
    %6856 = vmatpush1.bf16.msra.mxu0 0
    %6857 = vmatprep.subr.bf16.mxu0 0
    %6858 = vmatpush1.bf16.msra.mxu0 0
    %6859 = vmatprep.subr.bf16.mxu0 0
    %6860 = vmatpush1.bf16.msra.mxu0 0
    %6861 = vmatprep.mubr.bf16.mxu0 0
    %6862 = vmatmul.mubr.bf16.gmra.mrb[0].mxu0 %v6827
    %v6863 = vpop.f32.mrb[0].mxu0
    %v6864 = vadd.f32 0.0, %v6863
    %v6865 = vpop.f32.mrb[0].mxu0
    %v6866 = vadd.f32 0.0, %v6865
    %v6867 = vpop.f32.mrb[0].mxu0
    %v6868 = vpop.f32.mrb[0].mxu0
    %6869 = vdwg.mxu0
    %6870 = vmatprep.subr.bf16.mxu0 %v6813
    %6871 = vmatpush1.bf16.msra.mxu0 %v6812
    %6872 = vmatprep.subr.bf16.mxu0 %v6817
    %6873 = vmatpush1.bf16.msra.mxu0 %v6816
    %6874 = vmatprep.subr.bf16.mxu0 0
    %6875 = vmatpush1.bf16.msra.mxu0 0
    %6876 = vmatprep.subr.bf16.mxu0 0
    %6877 = vmatpush1.bf16.msra.mxu0 0
    %6878 = vmatprep.subr.bf16.mxu0 0
    %6879 = vmatpush1.bf16.msra.mxu0 0
    %6880 = vmatprep.subr.bf16.mxu0 0
    %6881 = vmatpush1.bf16.msra.mxu0 0
    %6882 = vmatprep.subr.bf16.mxu0 0
    %6883 = vmatpush1.bf16.msra.mxu0 0
    %6884 = vmatprep.subr.bf16.mxu0 0
    %6885 = vmatpush1.bf16.msra.mxu0 0
    %6886 = vmatprep.subr.bf16.mxu0 0
    %6887 = vmatpush1.bf16.msra.mxu0 0
    %6888 = vmatprep.subr.bf16.mxu0 0
    %6889 = vmatpush1.bf16.msra.mxu0 0
    %6890 = vmatprep.subr.bf16.mxu0 0
    %6891 = vmatpush1.bf16.msra.mxu0 0
    %6892 = vmatprep.subr.bf16.mxu0 0
    %6893 = vmatpush1.bf16.msra.mxu0 0
    %6894 = vmatprep.subr.bf16.mxu0 0
    %6895 = vmatpush1.bf16.msra.mxu0 0
    %6896 = vmatprep.subr.bf16.mxu0 0
    %6897 = vmatpush1.bf16.msra.mxu0 0
    %6898 = vmatprep.subr.bf16.mxu0 0
    %6899 = vmatpush1.bf16.msra.mxu0 0
    %6900 = vmatprep.subr.bf16.mxu0 0
    %6901 = vmatpush1.bf16.msra.mxu0 0
    %6902 = vmatprep.mubr.bf16.mxu0 0
    %6903 = vmatmul.mubr.bf16.gmra.mrb[0].mxu0 %v6827
    %v6904 = vpop.f32.mrb[0].mxu0
    %v6905 = vadd.f32 0.0, %v6904
    %v6906 = vpop.f32.mrb[0].mxu0
    %v6907 = vadd.f32 0.0, %v6906
    %v6908 = vpop.f32.mrb[0].mxu0
    %v6909 = vpop.f32.mrb[0].mxu0
    %6910 = vdwg.mxu0
    %v6911 = vadd.f32 %v6772, %v6864
    %v6912 = vadd.f32 %v6773, %v6866
    %v6913 = vadd.f32 %v6774, %v6905
    %v6914 = vadd.f32 %v6775, %v6907
    %s6915 = scalar_lea.vmem [#allocation13], 2240
    %v6916 = vld [vmem:[%s6915] sm:$0xff]
    %v6917 = vld [vmem:[%s6915 + $0x8] sm:$0xff]
    %v6918 = vld [vmem:[%s6915 + $0x10] sm:$0xff]
    %v6919 = vld [vmem:[%s6915 + $0x18] sm:$0xff]
    %v6920 = vld [vmem:[%s6915 + $0x20] sm:$0xff]
    %v6921 = vld [vmem:[%s6915 + $0x28] sm:$0xff]
    %v6922 = vld [vmem:[%s6915 + $0x30] sm:$0xff]
    %v6923 = vld [vmem:[%s6915 + $0x38] sm:$0xff]
    %v6924 = vrot.slane %v6497, 3
    %v6933 = vunpack.c.l.b16 %v6916
    %v6934 = vunpack.c.h.b16 %v6916
    %v6935 = vunpack.c.l.b16 %v6917
    %v6936 = vunpack.c.h.b16 %v6917
    %v6937 = vunpack.c.l.b16 %v6918
    %v6938 = vunpack.c.h.b16 %v6918
    %v6939 = vunpack.c.l.b16 %v6919
    %v6940 = vunpack.c.h.b16 %v6919
    %v6941 = vunpack.c.l.b16 %v6920
    %v6942 = vunpack.c.h.b16 %v6920
    %v6943 = vunpack.c.l.b16 %v6921
    %v6944 = vunpack.c.h.b16 %v6921
    %v6945 = vunpack.c.l.b16 %v6922
    %v6946 = vunpack.c.h.b16 %v6922
    %v6947 = vunpack.c.l.b16 %v6923
    %v6948 = vunpack.c.h.b16 %v6923
    %v6949 = vpack.c.b16 %v6937, %v6933
    %v6950 = vpack.c.b16 %v6938, %v6934
    %v6951 = vpack.c.b16 %v6939, %v6935
    %v6952 = vpack.c.b16 %v6940, %v6936
    %v6953 = vpack.c.b16 %v6945, %v6941
    %v6954 = vpack.c.b16 %v6946, %v6942
    %v6955 = vpack.c.b16 %v6947, %v6943
    %v6956 = vpack.c.b16 %v6948, %v6944
    %v6966 = vsel %vm574, %v6924, 0
    %6968 = vmatprep.subr.bf16.mxu0 %v6950
    %6969 = vmatpush1.bf16.msra.mxu0 %v6949
    %6970 = vmatprep.subr.bf16.mxu0 %v6954
    %6971 = vmatpush1.bf16.msra.mxu0 %v6953
    %6972 = vmatprep.subr.bf16.mxu0 0
    %6973 = vmatpush1.bf16.msra.mxu0 0
    %6974 = vmatprep.subr.bf16.mxu0 0
    %6975 = vmatpush1.bf16.msra.mxu0 0
    %6976 = vmatprep.subr.bf16.mxu0 0
    %6977 = vmatpush1.bf16.msra.mxu0 0
    %6978 = vmatprep.subr.bf16.mxu0 0
    %6979 = vmatpush1.bf16.msra.mxu0 0
    %6980 = vmatprep.subr.bf16.mxu0 0
    %6981 = vmatpush1.bf16.msra.mxu0 0
    %6982 = vmatprep.subr.bf16.mxu0 0
    %6983 = vmatpush1.bf16.msra.mxu0 0
    %6984 = vmatprep.subr.bf16.mxu0 0
    %6985 = vmatpush1.bf16.msra.mxu0 0
    %6986 = vmatprep.subr.bf16.mxu0 0
    %6987 = vmatpush1.bf16.msra.mxu0 0
    %6988 = vmatprep.subr.bf16.mxu0 0
    %6989 = vmatpush1.bf16.msra.mxu0 0
    %6990 = vmatprep.subr.bf16.mxu0 0
    %6991 = vmatpush1.bf16.msra.mxu0 0
    %6992 = vmatprep.subr.bf16.mxu0 0
    %6993 = vmatpush1.bf16.msra.mxu0 0
    %6994 = vmatprep.subr.bf16.mxu0 0
    %6995 = vmatpush1.bf16.msra.mxu0 0
    %6996 = vmatprep.subr.bf16.mxu0 0
    %6997 = vmatpush1.bf16.msra.mxu0 0
    %6998 = vmatprep.subr.bf16.mxu0 0
    %6999 = vmatpush1.bf16.msra.mxu0 0
    %7000 = vmatprep.mubr.bf16.mxu0 0
    %7001 = vmatmul.mubr.bf16.gmra.mrb[0].mxu0 %v6966
    %v7002 = vpop.f32.mrb[0].mxu0
    %v7003 = vadd.f32 0.0, %v7002
    %v7004 = vpop.f32.mrb[0].mxu0
    %v7005 = vadd.f32 0.0, %v7004
    %v7006 = vpop.f32.mrb[0].mxu0
    %v7007 = vpop.f32.mrb[0].mxu0
    %7008 = vdwg.mxu0
    %7009 = vmatprep.subr.bf16.mxu0 %v6952
    %7010 = vmatpush1.bf16.msra.mxu0 %v6951
    %7011 = vmatprep.subr.bf16.mxu0 %v6956
    %7012 = vmatpush1.bf16.msra.mxu0 %v6955
    %7013 = vmatprep.subr.bf16.mxu0 0
    %7014 = vmatpush1.bf16.msra.mxu0 0
    %7015 = vmatprep.subr.bf16.mxu0 0
    %7016 = vmatpush1.bf16.msra.mxu0 0
    %7017 = vmatprep.subr.bf16.mxu0 0
    %7018 = vmatpush1.bf16.msra.mxu0 0
    %7019 = vmatprep.subr.bf16.mxu0 0
    %7020 = vmatpush1.bf16.msra.mxu0 0
    %7021 = vmatprep.subr.bf16.mxu0 0
    %7022 = vmatpush1.bf16.msra.mxu0 0
    %7023 = vmatprep.subr.bf16.mxu0 0
    %7024 = vmatpush1.bf16.msra.mxu0 0
    %7025 = vmatprep.subr.bf16.mxu0 0
    %7026 = vmatpush1.bf16.msra.mxu0 0
    %7027 = vmatprep.subr.bf16.mxu0 0
    %7028 = vmatpush1.bf16.msra.mxu0 0
    %7029 = vmatprep.subr.bf16.mxu0 0
    %7030 = vmatpush1.bf16.msra.mxu0 0
    %7031 = vmatprep.subr.bf16.mxu0 0
    %7032 = vmatpush1.bf16.msra.mxu0 0
    %7033 = vmatprep.subr.bf16.mxu0 0
    %7034 = vmatpush1.bf16.msra.mxu0 0
    %7035 = vmatprep.subr.bf16.mxu0 0
    %7036 = vmatpush1.bf16.msra.mxu0 0
    %7037 = vmatprep.subr.bf16.mxu0 0
    %7038 = vmatpush1.bf16.msra.mxu0 0
    %7039 = vmatprep.subr.bf16.mxu0 0
    %7040 = vmatpush1.bf16.msra.mxu0 0
    %7041 = vmatprep.mubr.bf16.mxu0 0
    %7042 = vmatmul.mubr.bf16.gmra.mrb[0].mxu0 %v6966
    %v7043 = vpop.f32.mrb[0].mxu0
    %v7044 = vadd.f32 0.0, %v7043
    %v7045 = vpop.f32.mrb[0].mxu0
    %v7046 = vadd.f32 0.0, %v7045
    %v7047 = vpop.f32.mrb[0].mxu0
    %v7048 = vpop.f32.mrb[0].mxu0
    %7049 = vdwg.mxu0
    %v7050 = vadd.f32 %v6911, %v7003
    %v7051 = vadd.f32 %v6912, %v7005
    %v7052 = vadd.f32 %v6913, %v7044
    %v7053 = vadd.f32 %v6914, %v7046
    %v7054 = vpack.c.bf16 %v2044, %v2044
    %s7055 = scalar_lea.vmem [#allocation13], 2304
    %v7056 = vld [vmem:[%s7055] sm:$0xff]
    %v7057 = vld [vmem:[%s7055 + $0x8] sm:$0xff]
    %v7058 = vld [vmem:[%s7055 + $0x10] sm:$0xff]
    %v7059 = vld [vmem:[%s7055 + $0x18] sm:$0xff]
    %v7060 = vld [vmem:[%s7055 + $0x20] sm:$0xff]
    %v7061 = vld [vmem:[%s7055 + $0x28] sm:$0xff]
    %v7062 = vld [vmem:[%s7055 + $0x30] sm:$0xff]
    %v7063 = vld [vmem:[%s7055 + $0x38] sm:$0xff]
    %v7072 = vunpack.c.l.b16 %v7056
    %v7073 = vunpack.c.h.b16 %v7056
    %v7074 = vunpack.c.l.b16 %v7057
    %v7075 = vunpack.c.h.b16 %v7057
    %v7076 = vunpack.c.l.b16 %v7058
    %v7077 = vunpack.c.h.b16 %v7058
    %v7078 = vunpack.c.l.b16 %v7059
    %v7079 = vunpack.c.h.b16 %v7059
    %v7080 = vunpack.c.l.b16 %v7060
    %v7081 = vunpack.c.h.b16 %v7060
    %v7082 = vunpack.c.l.b16 %v7061
    %v7083 = vunpack.c.h.b16 %v7061
    %v7084 = vunpack.c.l.b16 %v7062
    %v7085 = vunpack.c.h.b16 %v7062
    %v7086 = vunpack.c.l.b16 %v7063
    %v7087 = vunpack.c.h.b16 %v7063
    %v7088 = vpack.c.b16 %v7076, %v7072
    %v7089 = vpack.c.b16 %v7077, %v7073
    %v7090 = vpack.c.b16 %v7078, %v7074
    %v7091 = vpack.c.b16 %v7079, %v7075
    %v7092 = vpack.c.b16 %v7084, %v7080
    %v7093 = vpack.c.b16 %v7085, %v7081
    %v7094 = vpack.c.b16 %v7086, %v7082
    %v7095 = vpack.c.b16 %v7087, %v7083
    %v7105 = vsel %vm574, %v7054, 0
    %7107 = vmatprep.subr.bf16.mxu0 %v7089
    %7108 = vmatpush1.bf16.msra.mxu0 %v7088
    %7109 = vmatprep.subr.bf16.mxu0 %v7093
    %7110 = vmatpush1.bf16.msra.mxu0 %v7092
    %7111 = vmatprep.subr.bf16.mxu0 0
    %7112 = vmatpush1.bf16.msra.mxu0 0
    %7113 = vmatprep.subr.bf16.mxu0 0
    %7114 = vmatpush1.bf16.msra.mxu0 0
    %7115 = vmatprep.subr.bf16.mxu0 0
    %7116 = vmatpush1.bf16.msra.mxu0 0
    %7117 = vmatprep.subr.bf16.mxu0 0
    %7118 = vmatpush1.bf16.msra.mxu0 0
    %7119 = vmatprep.subr.bf16.mxu0 0
    %7120 = vmatpush1.bf16.msra.mxu0 0
    %7121 = vmatprep.subr.bf16.mxu0 0
    %7122 = vmatpush1.bf16.msra.mxu0 0
    %7123 = vmatprep.subr.bf16.mxu0 0
    %7124 = vmatpush1.bf16.msra.mxu0 0
    %7125 = vmatprep.subr.bf16.mxu0 0
    %7126 = vmatpush1.bf16.msra.mxu0 0
    %7127 = vmatprep.subr.bf16.mxu0 0
    %7128 = vmatpush1.bf16.msra.mxu0 0
    %7129 = vmatprep.subr.bf16.mxu0 0
    %7130 = vmatpush1.bf16.msra.mxu0 0
    %7131 = vmatprep.subr.bf16.mxu0 0
    %7132 = vmatpush1.bf16.msra.mxu0 0
    %7133 = vmatprep.subr.bf16.mxu0 0
    %7134 = vmatpush1.bf16.msra.mxu0 0
    %7135 = vmatprep.subr.bf16.mxu0 0
    %7136 = vmatpush1.bf16.msra.mxu0 0
    %7137 = vmatprep.subr.bf16.mxu0 0
    %7138 = vmatpush1.bf16.msra.mxu0 0
    %7139 = vmatprep.mubr.bf16.mxu0 0
    %7140 = vmatmul.mubr.bf16.gmra.mrb[0].mxu0 %v7105
    %v7141 = vpop.f32.mrb[0].mxu0
    %v7142 = vadd.f32 0.0, %v7141
    %v7143 = vpop.f32.mrb[0].mxu0
    %v7144 = vadd.f32 0.0, %v7143
    %v7145 = vpop.f32.mrb[0].mxu0
    %v7146 = vpop.f32.mrb[0].mxu0
    %7147 = vdwg.mxu0
    %7148 = vmatprep.subr.bf16.mxu0 %v7091
    %7149 = vmatpush1.bf16.msra.mxu0 %v7090
    %7150 = vmatprep.subr.bf16.mxu0 %v7095
    %7151 = vmatpush1.bf16.msra.mxu0 %v7094
    %7152 = vmatprep.subr.bf16.mxu0 0
    %7153 = vmatpush1.bf16.msra.mxu0 0
    %7154 = vmatprep.subr.bf16.mxu0 0
    %7155 = vmatpush1.bf16.msra.mxu0 0
    %7156 = vmatprep.subr.bf16.mxu0 0
    %7157 = vmatpush1.bf16.msra.mxu0 0
    %7158 = vmatprep.subr.bf16.mxu0 0
    %7159 = vmatpush1.bf16.msra.mxu0 0
    %7160 = vmatprep.subr.bf16.mxu0 0
    %7161 = vmatpush1.bf16.msra.mxu0 0
    %7162 = vmatprep.subr.bf16.mxu0 0
    %7163 = vmatpush1.bf16.msra.mxu0 0
    %7164 = vmatprep.subr.bf16.mxu0 0
    %7165 = vmatpush1.bf16.msra.mxu0 0
    %7166 = vmatprep.subr.bf16.mxu0 0
    %7167 = vmatpush1.bf16.msra.mxu0 0
    %7168 = vmatprep.subr.bf16.mxu0 0
    %7169 = vmatpush1.bf16.msra.mxu0 0
    %7170 = vmatprep.subr.bf16.mxu0 0
    %7171 = vmatpush1.bf16.msra.mxu0 0
    %7172 = vmatprep.subr.bf16.mxu0 0
    %7173 = vmatpush1.bf16.msra.mxu0 0
    %7174 = vmatprep.subr.bf16.mxu0 0
    %7175 = vmatpush1.bf16.msra.mxu0 0
    %7176 = vmatprep.subr.bf16.mxu0 0
    %7177 = vmatpush1.bf16.msra.mxu0 0
    %7178 = vmatprep.subr.bf16.mxu0 0
    %7179 = vmatpush1.bf16.msra.mxu0 0
    %7180 = vmatprep.mubr.bf16.mxu0 0
    %7181 = vmatmul.mubr.bf16.gmra.mrb[0].mxu0 %v7105
    %v7182 = vpop.f32.mrb[0].mxu0
    %v7183 = vadd.f32 0.0, %v7182
    %v7184 = vpop.f32.mrb[0].mxu0
    %v7185 = vadd.f32 0.0, %v7184
    %v7186 = vpop.f32.mrb[0].mxu0
    %v7187 = vpop.f32.mrb[0].mxu0
    %7188 = vdwg.mxu0
    %v7189 = vadd.f32 %v7050, %v7142
    %v7190 = vadd.f32 %v7051, %v7144
    %v7191 = vadd.f32 %v7052, %v7183
    %v7192 = vadd.f32 %v7053, %v7185
    %s7193 = scalar_lea.vmem [#allocation13], 2368
    %v7194 = vld [vmem:[%s7193] sm:$0xff]
    %v7195 = vld [vmem:[%s7193 + $0x8] sm:$0xff]
    %v7196 = vld [vmem:[%s7193 + $0x10] sm:$0xff]
    %v7197 = vld [vmem:[%s7193 + $0x18] sm:$0xff]
    %v7198 = vld [vmem:[%s7193 + $0x20] sm:$0xff]
    %v7199 = vld [vmem:[%s7193 + $0x28] sm:$0xff]
    %v7200 = vld [vmem:[%s7193 + $0x30] sm:$0xff]
    %v7201 = vld [vmem:[%s7193 + $0x38] sm:$0xff]
    %v7203 = vrot.slane %v7054, 1
    %v7212 = vunpack.c.l.b16 %v7194
    %v7213 = vunpack.c.h.b16 %v7194
    %v7214 = vunpack.c.l.b16 %v7195
    %v7215 = vunpack.c.h.b16 %v7195
    %v7216 = vunpack.c.l.b16 %v7196
    %v7217 = vunpack.c.h.b16 %v7196
    %v7218 = vunpack.c.l.b16 %v7197
    %v7219 = vunpack.c.h.b16 %v7197
    %v7220 = vunpack.c.l.b16 %v7198
    %v7221 = vunpack.c.h.b16 %v7198
    %v7222 = vunpack.c.l.b16 %v7199
    %v7223 = vunpack.c.h.b16 %v7199
    %v7224 = vunpack.c.l.b16 %v7200
    %v7225 = vunpack.c.h.b16 %v7200
    %v7226 = vunpack.c.l.b16 %v7201
    %v7227 = vunpack.c.h.b16 %v7201
    %v7228 = vpack.c.b16 %v7216, %v7212
    %v7229 = vpack.c.b16 %v7217, %v7213
    %v7230 = vpack.c.b16 %v7218, %v7214
    %v7231 = vpack.c.b16 %v7219, %v7215
    %v7232 = vpack.c.b16 %v7224, %v7220
    %v7233 = vpack.c.b16 %v7225, %v7221
    %v7234 = vpack.c.b16 %v7226, %v7222
    %v7235 = vpack.c.b16 %v7227, %v7223
    %v7245 = vsel %vm574, %v7203, 0
    %7247 = vmatprep.subr.bf16.mxu0 %v7229
    %7248 = vmatpush1.bf16.msra.mxu0 %v7228
    %7249 = vmatprep.subr.bf16.mxu0 %v7233
    %7250 = vmatpush1.bf16.msra.mxu0 %v7232
    %7251 = vmatprep.subr.bf16.mxu0 0
    %7252 = vmatpush1.bf16.msra.mxu0 0
    %7253 = vmatprep.subr.bf16.mxu0 0
    %7254 = vmatpush1.bf16.msra.mxu0 0
    %7255 = vmatprep.subr.bf16.mxu0 0
    %7256 = vmatpush1.bf16.msra.mxu0 0
    %7257 = vmatprep.subr.bf16.mxu0 0
    %7258 = vmatpush1.bf16.msra.mxu0 0
    %7259 = vmatprep.subr.bf16.mxu0 0
    %7260 = vmatpush1.bf16.msra.mxu0 0
    %7261 = vmatprep.subr.bf16.mxu0 0
    %7262 = vmatpush1.bf16.msra.mxu0 0
    %7263 = vmatprep.subr.bf16.mxu0 0
    %7264 = vmatpush1.bf16.msra.mxu0 0
    %7265 = vmatprep.subr.bf16.mxu0 0
    %7266 = vmatpush1.bf16.msra.mxu0 0
    %7267 = vmatprep.subr.bf16.mxu0 0
    %7268 = vmatpush1.bf16.msra.mxu0 0
    %7269 = vmatprep.subr.bf16.mxu0 0
    %7270 = vmatpush1.bf16.msra.mxu0 0
    %7271 = vmatprep.subr.bf16.mxu0 0
    %7272 = vmatpush1.bf16.msra.mxu0 0
    %7273 = vmatprep.subr.bf16.mxu0 0
    %7274 = vmatpush1.bf16.msra.mxu0 0
    %7275 = vmatprep.subr.bf16.mxu0 0
    %7276 = vmatpush1.bf16.msra.mxu0 0
    %7277 = vmatprep.subr.bf16.mxu0 0
    %7278 = vmatpush1.bf16.msra.mxu0 0
    %7279 = vmatprep.mubr.bf16.mxu0 0
    %7280 = vmatmul.mubr.bf16.gmra.mrb[0].mxu0 %v7245
    %v7281 = vpop.f32.mrb[0].mxu0
    %v7282 = vadd.f32 0.0, %v7281
    %v7283 = vpop.f32.mrb[0].mxu0
    %v7284 = vadd.f32 0.0, %v7283
    %v7285 = vpop.f32.mrb[0].mxu0
    %v7286 = vpop.f32.mrb[0].mxu0
    %7287 = vdwg.mxu0
    %7288 = vmatprep.subr.bf16.mxu0 %v7231
    %7289 = vmatpush1.bf16.msra.mxu0 %v7230
    %7290 = vmatprep.subr.bf16.mxu0 %v7235
    %7291 = vmatpush1.bf16.msra.mxu0 %v7234
    %7292 = vmatprep.subr.bf16.mxu0 0
    %7293 = vmatpush1.bf16.msra.mxu0 0
    %7294 = vmatprep.subr.bf16.mxu0 0
    %7295 = vmatpush1.bf16.msra.mxu0 0
    %7296 = vmatprep.subr.bf16.mxu0 0
    %7297 = vmatpush1.bf16.msra.mxu0 0
    %7298 = vmatprep.subr.bf16.mxu0 0
    %7299 = vmatpush1.bf16.msra.mxu0 0
    %7300 = vmatprep.subr.bf16.mxu0 0
    %7301 = vmatpush1.bf16.msra.mxu0 0
    %7302 = vmatprep.subr.bf16.mxu0 0
    %7303 = vmatpush1.bf16.msra.mxu0 0
    %7304 = vmatprep.subr.bf16.mxu0 0
    %7305 = vmatpush1.bf16.msra.mxu0 0
    %7306 = vmatprep.subr.bf16.mxu0 0
    %7307 = vmatpush1.bf16.msra.mxu0 0
    %7308 = vmatprep.subr.bf16.mxu0 0
    %7309 = vmatpush1.bf16.msra.mxu0 0
    %7310 = vmatprep.subr.bf16.mxu0 0
    %7311 = vmatpush1.bf16.msra.mxu0 0
    %7312 = vmatprep.subr.bf16.mxu0 0
    %7313 = vmatpush1.bf16.msra.mxu0 0
    %7314 = vmatprep.subr.bf16.mxu0 0
    %7315 = vmatpush1.bf16.msra.mxu0 0
    %7316 = vmatprep.subr.bf16.mxu0 0
    %7317 = vmatpush1.bf16.msra.mxu0 0
    %7318 = vmatprep.subr.bf16.mxu0 0
    %7319 = vmatpush1.bf16.msra.mxu0 0
    %7320 = vmatprep.mubr.bf16.mxu0 0
    %7321 = vmatmul.mubr.bf16.gmra.mrb[0].mxu0 %v7245
    %v7322 = vpop.f32.mrb[0].mxu0
    %v7323 = vadd.f32 0.0, %v7322
    %v7324 = vpop.f32.mrb[0].mxu0
    %v7325 = vadd.f32 0.0, %v7324
    %v7326 = vpop.f32.mrb[0].mxu0
    %v7327 = vpop.f32.mrb[0].mxu0
    %7328 = vdwg.mxu0
    %v7329 = vadd.f32 %v7189, %v7282
    %v7330 = vadd.f32 %v7190, %v7284
    %v7331 = vadd.f32 %v7191, %v7323
    %v7332 = vadd.f32 %v7192, %v7325
    %s7333 = scalar_lea.vmem [#allocation13], 2432
    %v7334 = vld [vmem:[%s7333] sm:$0xff]
    %v7335 = vld [vmem:[%s7333 + $0x8] sm:$0xff]
    %v7336 = vld [vmem:[%s7333 + $0x10] sm:$0xff]
    %v7337 = vld [vmem:[%s7333 + $0x18] sm:$0xff]
    %v7338 = vld [vmem:[%s7333 + $0x20] sm:$0xff]
    %v7339 = vld [vmem:[%s7333 + $0x28] sm:$0xff]
    %v7340 = vld [vmem:[%s7333 + $0x30] sm:$0xff]
    %v7341 = vld [vmem:[%s7333 + $0x38] sm:$0xff]
    %v7342 = vrot.slane %v7054, 2
    %v7351 = vunpack.c.l.b16 %v7334
    %v7352 = vunpack.c.h.b16 %v7334
    %v7353 = vunpack.c.l.b16 %v7335
    %v7354 = vunpack.c.h.b16 %v7335
    %v7355 = vunpack.c.l.b16 %v7336
    %v7356 = vunpack.c.h.b16 %v7336
    %v7357 = vunpack.c.l.b16 %v7337
    %v7358 = vunpack.c.h.b16 %v7337
    %v7359 = vunpack.c.l.b16 %v7338
    %v7360 = vunpack.c.h.b16 %v7338
    %v7361 = vunpack.c.l.b16 %v7339
    %v7362 = vunpack.c.h.b16 %v7339
    %v7363 = vunpack.c.l.b16 %v7340
    %v7364 = vunpack.c.h.b16 %v7340
    %v7365 = vunpack.c.l.b16 %v7341
    %v7366 = vunpack.c.h.b16 %v7341
    %v7367 = vpack.c.b16 %v7355, %v7351
    %v7368 = vpack.c.b16 %v7356, %v7352
    %v7369 = vpack.c.b16 %v7357, %v7353
    %v7370 = vpack.c.b16 %v7358, %v7354
    %v7371 = vpack.c.b16 %v7363, %v7359
    %v7372 = vpack.c.b16 %v7364, %v7360
    %v7373 = vpack.c.b16 %v7365, %v7361
    %v7374 = vpack.c.b16 %v7366, %v7362
    %v7384 = vsel %vm574, %v7342, 0
    %7386 = vmatprep.subr.bf16.mxu0 %v7368
    %7387 = vmatpush1.bf16.msra.mxu0 %v7367
    %7388 = vmatprep.subr.bf16.mxu0 %v7372
    %7389 = vmatpush1.bf16.msra.mxu0 %v7371
    %7390 = vmatprep.subr.bf16.mxu0 0
    %7391 = vmatpush1.bf16.msra.mxu0 0
    %7392 = vmatprep.subr.bf16.mxu0 0
    %7393 = vmatpush1.bf16.msra.mxu0 0
    %7394 = vmatprep.subr.bf16.mxu0 0
    %7395 = vmatpush1.bf16.msra.mxu0 0
    %7396 = vmatprep.subr.bf16.mxu0 0
    %7397 = vmatpush1.bf16.msra.mxu0 0
    %7398 = vmatprep.subr.bf16.mxu0 0
    %7399 = vmatpush1.bf16.msra.mxu0 0
    %7400 = vmatprep.subr.bf16.mxu0 0
    %7401 = vmatpush1.bf16.msra.mxu0 0
    %7402 = vmatprep.subr.bf16.mxu0 0
    %7403 = vmatpush1.bf16.msra.mxu0 0
    %7404 = vmatprep.subr.bf16.mxu0 0
    %7405 = vmatpush1.bf16.msra.mxu0 0
    %7406 = vmatprep.subr.bf16.mxu0 0
    %7407 = vmatpush1.bf16.msra.mxu0 0
    %7408 = vmatprep.subr.bf16.mxu0 0
    %7409 = vmatpush1.bf16.msra.mxu0 0
    %7410 = vmatprep.subr.bf16.mxu0 0
    %7411 = vmatpush1.bf16.msra.mxu0 0
    %7412 = vmatprep.subr.bf16.mxu0 0
    %7413 = vmatpush1.bf16.msra.mxu0 0
    %7414 = vmatprep.subr.bf16.mxu0 0
    %7415 = vmatpush1.bf16.msra.mxu0 0
    %7416 = vmatprep.subr.bf16.mxu0 0
    %7417 = vmatpush1.bf16.msra.mxu0 0
    %7418 = vmatprep.mubr.bf16.mxu0 0
    %7419 = vmatmul.mubr.bf16.gmra.mrb[0].mxu0 %v7384
    %v7420 = vpop.f32.mrb[0].mxu0
    %v7421 = vadd.f32 0.0, %v7420
    %v7422 = vpop.f32.mrb[0].mxu0
    %v7423 = vadd.f32 0.0, %v7422
    %v7424 = vpop.f32.mrb[0].mxu0
    %v7425 = vpop.f32.mrb[0].mxu0
    %7426 = vdwg.mxu0
    %7427 = vmatprep.subr.bf16.mxu0 %v7370
    %7428 = vmatpush1.bf16.msra.mxu0 %v7369
    %7429 = vmatprep.subr.bf16.mxu0 %v7374
    %7430 = vmatpush1.bf16.msra.mxu0 %v7373
    %7431 = vmatprep.subr.bf16.mxu0 0
    %7432 = vmatpush1.bf16.msra.mxu0 0
    %7433 = vmatprep.subr.bf16.mxu0 0
    %7434 = vmatpush1.bf16.msra.mxu0 0
    %7435 = vmatprep.subr.bf16.mxu0 0
    %7436 = vmatpush1.bf16.msra.mxu0 0
    %7437 = vmatprep.subr.bf16.mxu0 0
    %7438 = vmatpush1.bf16.msra.mxu0 0
    %7439 = vmatprep.subr.bf16.mxu0 0
    %7440 = vmatpush1.bf16.msra.mxu0 0
    %7441 = vmatprep.subr.bf16.mxu0 0
    %7442 = vmatpush1.bf16.msra.mxu0 0
    %7443 = vmatprep.subr.bf16.mxu0 0
    %7444 = vmatpush1.bf16.msra.mxu0 0
    %7445 = vmatprep.subr.bf16.mxu0 0
    %7446 = vmatpush1.bf16.msra.mxu0 0
    %7447 = vmatprep.subr.bf16.mxu0 0
    %7448 = vmatpush1.bf16.msra.mxu0 0
    %7449 = vmatprep.subr.bf16.mxu0 0
    %7450 = vmatpush1.bf16.msra.mxu0 0
    %7451 = vmatprep.subr.bf16.mxu0 0
    %7452 = vmatpush1.bf16.msra.mxu0 0
    %7453 = vmatprep.subr.bf16.mxu0 0
    %7454 = vmatpush1.bf16.msra.mxu0 0
    %7455 = vmatprep.subr.bf16.mxu0 0
    %7456 = vmatpush1.bf16.msra.mxu0 0
    %7457 = vmatprep.subr.bf16.mxu0 0
    %7458 = vmatpush1.bf16.msra.mxu0 0
    %7459 = vmatprep.mubr.bf16.mxu0 0
    %7460 = vmatmul.mubr.bf16.gmra.mrb[0].mxu0 %v7384
    %v7461 = vpop.f32.mrb[0].mxu0
    %v7462 = vadd.f32 0.0, %v7461
    %v7463 = vpop.f32.mrb[0].mxu0
    %v7464 = vadd.f32 0.0, %v7463
    %v7465 = vpop.f32.mrb[0].mxu0
    %v7466 = vpop.f32.mrb[0].mxu0
    %7467 = vdwg.mxu0
    %v7468 = vadd.f32 %v7329, %v7421
    %v7469 = vadd.f32 %v7330, %v7423
    %v7470 = vadd.f32 %v7331, %v7462
    %v7471 = vadd.f32 %v7332, %v7464
    %s7472 = scalar_lea.vmem [#allocation13], 2496
    %v7473 = vld [vmem:[%s7472] sm:$0xff]
    %v7474 = vld [vmem:[%s7472 + $0x8] sm:$0xff]
    %v7475 = vld [vmem:[%s7472 + $0x10] sm:$0xff]
    %v7476 = vld [vmem:[%s7472 + $0x18] sm:$0xff]
    %v7477 = vld [vmem:[%s7472 + $0x20] sm:$0xff]
    %v7478 = vld [vmem:[%s7472 + $0x28] sm:$0xff]
    %v7479 = vld [vmem:[%s7472 + $0x30] sm:$0xff]
    %v7480 = vld [vmem:[%s7472 + $0x38] sm:$0xff]
    %v7481 = vrot.slane %v7054, 3
    %v7490 = vunpack.c.l.b16 %v7473
    %v7491 = vunpack.c.h.b16 %v7473
    %v7492 = vunpack.c.l.b16 %v7474
    %v7493 = vunpack.c.h.b16 %v7474
    %v7494 = vunpack.c.l.b16 %v7475
    %v7495 = vunpack.c.h.b16 %v7475
    %v7496 = vunpack.c.l.b16 %v7476
    %v7497 = vunpack.c.h.b16 %v7476
    %v7498 = vunpack.c.l.b16 %v7477
    %v7499 = vunpack.c.h.b16 %v7477
    %v7500 = vunpack.c.l.b16 %v7478
    %v7501 = vunpack.c.h.b16 %v7478
    %v7502 = vunpack.c.l.b16 %v7479
    %v7503 = vunpack.c.h.b16 %v7479
    %v7504 = vunpack.c.l.b16 %v7480
    %v7505 = vunpack.c.h.b16 %v7480
    %v7506 = vpack.c.b16 %v7494, %v7490
    %v7507 = vpack.c.b16 %v7495, %v7491
    %v7508 = vpack.c.b16 %v7496, %v7492
    %v7509 = vpack.c.b16 %v7497, %v7493
    %v7510 = vpack.c.b16 %v7502, %v7498
    %v7511 = vpack.c.b16 %v7503, %v7499
    %v7512 = vpack.c.b16 %v7504, %v7500
    %v7513 = vpack.c.b16 %v7505, %v7501
    %v7523 = vsel %vm574, %v7481, 0
    %7525 = vmatprep.subr.bf16.mxu0 %v7507
    %7526 = vmatpush1.bf16.msra.mxu0 %v7506
    %7527 = vmatprep.subr.bf16.mxu0 %v7511
    %7528 = vmatpush1.bf16.msra.mxu0 %v7510
    %7529 = vmatprep.subr.bf16.mxu0 0
    %7530 = vmatpush1.bf16.msra.mxu0 0
    %7531 = vmatprep.subr.bf16.mxu0 0
    %7532 = vmatpush1.bf16.msra.mxu0 0
    %7533 = vmatprep.subr.bf16.mxu0 0
    %7534 = vmatpush1.bf16.msra.mxu0 0
    %7535 = vmatprep.subr.bf16.mxu0 0
    %7536 = vmatpush1.bf16.msra.mxu0 0
    %7537 = vmatprep.subr.bf16.mxu0 0
    %7538 = vmatpush1.bf16.msra.mxu0 0
    %7539 = vmatprep.subr.bf16.mxu0 0
    %7540 = vmatpush1.bf16.msra.mxu0 0
    %7541 = vmatprep.subr.bf16.mxu0 0
    %7542 = vmatpush1.bf16.msra.mxu0 0
    %7543 = vmatprep.subr.bf16.mxu0 0
    %7544 = vmatpush1.bf16.msra.mxu0 0
    %7545 = vmatprep.subr.bf16.mxu0 0
    %7546 = vmatpush1.bf16.msra.mxu0 0
    %7547 = vmatprep.subr.bf16.mxu0 0
    %7548 = vmatpush1.bf16.msra.mxu0 0
    %7549 = vmatprep.subr.bf16.mxu0 0
    %7550 = vmatpush1.bf16.msra.mxu0 0
    %7551 = vmatprep.subr.bf16.mxu0 0
    %7552 = vmatpush1.bf16.msra.mxu0 0
    %7553 = vmatprep.subr.bf16.mxu0 0
    %7554 = vmatpush1.bf16.msra.mxu0 0
    %7555 = vmatprep.subr.bf16.mxu0 0
    %7556 = vmatpush1.bf16.msra.mxu0 0
    %7557 = vmatprep.mubr.bf16.mxu0 0
    %7558 = vmatmul.mubr.bf16.gmra.mrb[0].mxu0 %v7523
    %v7559 = vpop.f32.mrb[0].mxu0
    %v7560 = vadd.f32 0.0, %v7559
    %v7561 = vpop.f32.mrb[0].mxu0
    %v7562 = vadd.f32 0.0, %v7561
    %v7563 = vpop.f32.mrb[0].mxu0
    %v7564 = vpop.f32.mrb[0].mxu0
    %7565 = vdwg.mxu0
    %7566 = vmatprep.subr.bf16.mxu0 %v7509
    %7567 = vmatpush1.bf16.msra.mxu0 %v7508
    %7568 = vmatprep.subr.bf16.mxu0 %v7513
    %7569 = vmatpush1.bf16.msra.mxu0 %v7512
    %7570 = vmatprep.subr.bf16.mxu0 0
    %7571 = vmatpush1.bf16.msra.mxu0 0
    %7572 = vmatprep.subr.bf16.mxu0 0
    %7573 = vmatpush1.bf16.msra.mxu0 0
    %7574 = vmatprep.subr.bf16.mxu0 0
    %7575 = vmatpush1.bf16.msra.mxu0 0
    %7576 = vmatprep.subr.bf16.mxu0 0
    %7577 = vmatpush1.bf16.msra.mxu0 0
    %7578 = vmatprep.subr.bf16.mxu0 0
    %7579 = vmatpush1.bf16.msra.mxu0 0
    %7580 = vmatprep.subr.bf16.mxu0 0
    %7581 = vmatpush1.bf16.msra.mxu0 0
    %7582 = vmatprep.subr.bf16.mxu0 0
    %7583 = vmatpush1.bf16.msra.mxu0 0
    %7584 = vmatprep.subr.bf16.mxu0 0
    %7585 = vmatpush1.bf16.msra.mxu0 0
    %7586 = vmatprep.subr.bf16.mxu0 0
    %7587 = vmatpush1.bf16.msra.mxu0 0
    %7588 = vmatprep.subr.bf16.mxu0 0
    %7589 = vmatpush1.bf16.msra.mxu0 0
    %7590 = vmatprep.subr.bf16.mxu0 0
    %7591 = vmatpush1.bf16.msra.mxu0 0
    %7592 = vmatprep.subr.bf16.mxu0 0
    %7593 = vmatpush1.bf16.msra.mxu0 0
    %7594 = vmatprep.subr.bf16.mxu0 0
    %7595 = vmatpush1.bf16.msra.mxu0 0
    %7596 = vmatprep.subr.bf16.mxu0 0
    %7597 = vmatpush1.bf16.msra.mxu0 0
    %7598 = vmatprep.mubr.bf16.mxu0 0
    %7599 = vmatmul.mubr.bf16.gmra.mrb[0].mxu0 %v7523
    %v7600 = vpop.f32.mrb[0].mxu0
    %v7601 = vadd.f32 0.0, %v7600
    %v7602 = vpop.f32.mrb[0].mxu0
    %v7603 = vadd.f32 0.0, %v7602
    %v7604 = vpop.f32.mrb[0].mxu0
    %v7605 = vpop.f32.mrb[0].mxu0
    %7606 = vdwg.mxu0
    %v7607 = vadd.f32 %v7468, %v7560
    %v7608 = vadd.f32 %v7469, %v7562
    %v7609 = vadd.f32 %v7470, %v7601
    %v7610 = vadd.f32 %v7471, %v7603
    %v7611 = vpack.c.bf16 %v2045, %v2045
    %s7612 = scalar_lea.vmem [#allocation13], 2560
    %v7613 = vld [vmem:[%s7612] sm:$0xff]
    %v7614 = vld [vmem:[%s7612 + $0x8] sm:$0xff]
    %v7615 = vld [vmem:[%s7612 + $0x10] sm:$0xff]
    %v7616 = vld [vmem:[%s7612 + $0x18] sm:$0xff]
    %v7617 = vld [vmem:[%s7612 + $0x20] sm:$0xff]
    %v7618 = vld [vmem:[%s7612 + $0x28] sm:$0xff]
    %v7619 = vld [vmem:[%s7612 + $0x30] sm:$0xff]
    %v7620 = vld [vmem:[%s7612 + $0x38] sm:$0xff]
    %v7629 = vunpack.c.l.b16 %v7613
    %v7630 = vunpack.c.h.b16 %v7613
    %v7631 = vunpack.c.l.b16 %v7614
    %v7632 = vunpack.c.h.b16 %v7614
    %v7633 = vunpack.c.l.b16 %v7615
    %v7634 = vunpack.c.h.b16 %v7615
    %v7635 = vunpack.c.l.b16 %v7616
    %v7636 = vunpack.c.h.b16 %v7616
    %v7637 = vunpack.c.l.b16 %v7617
    %v7638 = vunpack.c.h.b16 %v7617
    %v7639 = vunpack.c.l.b16 %v7618
    %v7640 = vunpack.c.h.b16 %v7618
    %v7641 = vunpack.c.l.b16 %v7619
    %v7642 = vunpack.c.h.b16 %v7619
    %v7643 = vunpack.c.l.b16 %v7620
    %v7644 = vunpack.c.h.b16 %v7620
    %v7645 = vpack.c.b16 %v7633, %v7629
    %v7646 = vpack.c.b16 %v7634, %v7630
    %v7647 = vpack.c.b16 %v7635, %v7631
    %v7648 = vpack.c.b16 %v7636, %v7632
    %v7649 = vpack.c.b16 %v7641, %v7637
    %v7650 = vpack.c.b16 %v7642, %v7638
    %v7651 = vpack.c.b16 %v7643, %v7639
    %v7652 = vpack.c.b16 %v7644, %v7640
    %v7662 = vsel %vm574, %v7611, 0
    %7664 = vmatprep.subr.bf16.mxu0 %v7646
    %7665 = vmatpush1.bf16.msra.mxu0 %v7645
    %7666 = vmatprep.subr.bf16.mxu0 %v7650
    %7667 = vmatpush1.bf16.msra.mxu0 %v7649
    %7668 = vmatprep.subr.bf16.mxu0 0
    %7669 = vmatpush1.bf16.msra.mxu0 0
    %7670 = vmatprep.subr.bf16.mxu0 0
    %7671 = vmatpush1.bf16.msra.mxu0 0
    %7672 = vmatprep.subr.bf16.mxu0 0
    %7673 = vmatpush1.bf16.msra.mxu0 0
    %7674 = vmatprep.subr.bf16.mxu0 0
    %7675 = vmatpush1.bf16.msra.mxu0 0
    %7676 = vmatprep.subr.bf16.mxu0 0
    %7677 = vmatpush1.bf16.msra.mxu0 0
    %7678 = vmatprep.subr.bf16.mxu0 0
    %7679 = vmatpush1.bf16.msra.mxu0 0
    %7680 = vmatprep.subr.bf16.mxu0 0
    %7681 = vmatpush1.bf16.msra.mxu0 0
    %7682 = vmatprep.subr.bf16.mxu0 0
    %7683 = vmatpush1.bf16.msra.mxu0 0
    %7684 = vmatprep.subr.bf16.mxu0 0
    %7685 = vmatpush1.bf16.msra.mxu0 0
    %7686 = vmatprep.subr.bf16.mxu0 0
    %7687 = vmatpush1.bf16.msra.mxu0 0
    %7688 = vmatprep.subr.bf16.mxu0 0
    %7689 = vmatpush1.bf16.msra.mxu0 0
    %7690 = vmatprep.subr.bf16.mxu0 0
    %7691 = vmatpush1.bf16.msra.mxu0 0
    %7692 = vmatprep.subr.bf16.mxu0 0
    %7693 = vmatpush1.bf16.msra.mxu0 0
    %7694 = vmatprep.subr.bf16.mxu0 0
    %7695 = vmatpush1.bf16.msra.mxu0 0
    %7696 = vmatprep.mubr.bf16.mxu0 0
    %7697 = vmatmul.mubr.bf16.gmra.mrb[0].mxu0 %v7662
    %v7698 = vpop.f32.mrb[0].mxu0
    %v7699 = vadd.f32 0.0, %v7698
    %v7700 = vpop.f32.mrb[0].mxu0
    %v7701 = vadd.f32 0.0, %v7700
    %v7702 = vpop.f32.mrb[0].mxu0
    %v7703 = vpop.f32.mrb[0].mxu0
    %7704 = vdwg.mxu0
    %7705 = vmatprep.subr.bf16.mxu0 %v7648
    %7706 = vmatpush1.bf16.msra.mxu0 %v7647
    %7707 = vmatprep.subr.bf16.mxu0 %v7652
    %7708 = vmatpush1.bf16.msra.mxu0 %v7651
    %7709 = vmatprep.subr.bf16.mxu0 0
    %7710 = vmatpush1.bf16.msra.mxu0 0
    %7711 = vmatprep.subr.bf16.mxu0 0
    %7712 = vmatpush1.bf16.msra.mxu0 0
    %7713 = vmatprep.subr.bf16.mxu0 0
    %7714 = vmatpush1.bf16.msra.mxu0 0
    %7715 = vmatprep.subr.bf16.mxu0 0
    %7716 = vmatpush1.bf16.msra.mxu0 0
    %7717 = vmatprep.subr.bf16.mxu0 0
    %7718 = vmatpush1.bf16.msra.mxu0 0
    %7719 = vmatprep.subr.bf16.mxu0 0
    %7720 = vmatpush1.bf16.msra.mxu0 0
    %7721 = vmatprep.subr.bf16.mxu0 0
    %7722 = vmatpush1.bf16.msra.mxu0 0
    %7723 = vmatprep.subr.bf16.mxu0 0
    %7724 = vmatpush1.bf16.msra.mxu0 0
    %7725 = vmatprep.subr.bf16.mxu0 0
    %7726 = vmatpush1.bf16.msra.mxu0 0
    %7727 = vmatprep.subr.bf16.mxu0 0
    %7728 = vmatpush1.bf16.msra.mxu0 0
    %7729 = vmatprep.subr.bf16.mxu0 0
    %7730 = vmatpush1.bf16.msra.mxu0 0
    %7731 = vmatprep.subr.bf16.mxu0 0
    %7732 = vmatpush1.bf16.msra.mxu0 0
    %7733 = vmatprep.subr.bf16.mxu0 0
    %7734 = vmatpush1.bf16.msra.mxu0 0
    %7735 = vmatprep.subr.bf16.mxu0 0
    %7736 = vmatpush1.bf16.msra.mxu0 0
    %7737 = vmatprep.mubr.bf16.mxu0 0
    %7738 = vmatmul.mubr.bf16.gmra.mrb[0].mxu0 %v7662
    %v7739 = vpop.f32.mrb[0].mxu0
    %v7740 = vadd.f32 0.0, %v7739
    %v7741 = vpop.f32.mrb[0].mxu0
    %v7742 = vadd.f32 0.0, %v7741
    %v7743 = vpop.f32.mrb[0].mxu0
    %v7744 = vpop.f32.mrb[0].mxu0
    %7745 = vdwg.mxu0
    %v7746 = vadd.f32 %v7607, %v7699
    %v7747 = vadd.f32 %v7608, %v7701
    %v7748 = vadd.f32 %v7609, %v7740
    %v7749 = vadd.f32 %v7610, %v7742
    %s7750 = scalar_lea.vmem [#allocation13], 2624
    %v7751 = vld [vmem:[%s7750] sm:$0xff]
    %v7752 = vld [vmem:[%s7750 + $0x8] sm:$0xff]
    %v7753 = vld [vmem:[%s7750 + $0x10] sm:$0xff]
    %v7754 = vld [vmem:[%s7750 + $0x18] sm:$0xff]
    %v7755 = vld [vmem:[%s7750 + $0x20] sm:$0xff]
    %v7756 = vld [vmem:[%s7750 + $0x28] sm:$0xff]
    %v7757 = vld [vmem:[%s7750 + $0x30] sm:$0xff]
    %v7758 = vld [vmem:[%s7750 + $0x38] sm:$0xff]
    %v7760 = vrot.slane %v7611, 1
    %v7769 = vunpack.c.l.b16 %v7751
    %v7770 = vunpack.c.h.b16 %v7751
    %v7771 = vunpack.c.l.b16 %v7752
    %v7772 = vunpack.c.h.b16 %v7752
    %v7773 = vunpack.c.l.b16 %v7753
    %v7774 = vunpack.c.h.b16 %v7753
    %v7775 = vunpack.c.l.b16 %v7754
    %v7776 = vunpack.c.h.b16 %v7754
    %v7777 = vunpack.c.l.b16 %v7755
    %v7778 = vunpack.c.h.b16 %v7755
    %v7779 = vunpack.c.l.b16 %v7756
    %v7780 = vunpack.c.h.b16 %v7756
    %v7781 = vunpack.c.l.b16 %v7757
    %v7782 = vunpack.c.h.b16 %v7757
    %v7783 = vunpack.c.l.b16 %v7758
    %v7784 = vunpack.c.h.b16 %v7758
    %v7785 = vpack.c.b16 %v7773, %v7769
    %v7786 = vpack.c.b16 %v7774, %v7770
    %v7787 = vpack.c.b16 %v7775, %v7771
    %v7788 = vpack.c.b16 %v7776, %v7772
    %v7789 = vpack.c.b16 %v7781, %v7777
    %v7790 = vpack.c.b16 %v7782, %v7778
    %v7791 = vpack.c.b16 %v7783, %v7779
    %v7792 = vpack.c.b16 %v7784, %v7780
    %v7802 = vsel %vm574, %v7760, 0
    %7804 = vmatprep.subr.bf16.mxu0 %v7786
    %7805 = vmatpush1.bf16.msra.mxu0 %v7785
    %7806 = vmatprep.subr.bf16.mxu0 %v7790
    %7807 = vmatpush1.bf16.msra.mxu0 %v7789
    %7808 = vmatprep.subr.bf16.mxu0 0
    %7809 = vmatpush1.bf16.msra.mxu0 0
    %7810 = vmatprep.subr.bf16.mxu0 0
    %7811 = vmatpush1.bf16.msra.mxu0 0
    %7812 = vmatprep.subr.bf16.mxu0 0
    %7813 = vmatpush1.bf16.msra.mxu0 0
    %7814 = vmatprep.subr.bf16.mxu0 0
    %7815 = vmatpush1.bf16.msra.mxu0 0
    %7816 = vmatprep.subr.bf16.mxu0 0
    %7817 = vmatpush1.bf16.msra.mxu0 0
    %7818 = vmatprep.subr.bf16.mxu0 0
    %7819 = vmatpush1.bf16.msra.mxu0 0
    %7820 = vmatprep.subr.bf16.mxu0 0
    %7821 = vmatpush1.bf16.msra.mxu0 0
    %7822 = vmatprep.subr.bf16.mxu0 0
    %7823 = vmatpush1.bf16.msra.mxu0 0
    %7824 = vmatprep.subr.bf16.mxu0 0
    %7825 = vmatpush1.bf16.msra.mxu0 0
    %7826 = vmatprep.subr.bf16.mxu0 0
    %7827 = vmatpush1.bf16.msra.mxu0 0
    %7828 = vmatprep.subr.bf16.mxu0 0
    %7829 = vmatpush1.bf16.msra.mxu0 0
    %7830 = vmatprep.subr.bf16.mxu0 0
    %7831 = vmatpush1.bf16.msra.mxu0 0
    %7832 = vmatprep.subr.bf16.mxu0 0
    %7833 = vmatpush1.bf16.msra.mxu0 0
    %7834 = vmatprep.subr.bf16.mxu0 0
    %7835 = vmatpush1.bf16.msra.mxu0 0
    %7836 = vmatprep.mubr.bf16.mxu0 0
    %7837 = vmatmul.mubr.bf16.gmra.mrb[0].mxu0 %v7802
    %v7838 = vpop.f32.mrb[0].mxu0
    %v7839 = vadd.f32 0.0, %v7838
    %v7840 = vpop.f32.mrb[0].mxu0
    %v7841 = vadd.f32 0.0, %v7840
    %v7842 = vpop.f32.mrb[0].mxu0
    %v7843 = vpop.f32.mrb[0].mxu0
    %7844 = vdwg.mxu0
    %7845 = vmatprep.subr.bf16.mxu0 %v7788
    %7846 = vmatpush1.bf16.msra.mxu0 %v7787
    %7847 = vmatprep.subr.bf16.mxu0 %v7792
    %7848 = vmatpush1.bf16.msra.mxu0 %v7791
    %7849 = vmatprep.subr.bf16.mxu0 0
    %7850 = vmatpush1.bf16.msra.mxu0 0
    %7851 = vmatprep.subr.bf16.mxu0 0
    %7852 = vmatpush1.bf16.msra.mxu0 0
    %7853 = vmatprep.subr.bf16.mxu0 0
    %7854 = vmatpush1.bf16.msra.mxu0 0
    %7855 = vmatprep.subr.bf16.mxu0 0
    %7856 = vmatpush1.bf16.msra.mxu0 0
    %7857 = vmatprep.subr.bf16.mxu0 0
    %7858 = vmatpush1.bf16.msra.mxu0 0
    %7859 = vmatprep.subr.bf16.mxu0 0
    %7860 = vmatpush1.bf16.msra.mxu0 0
    %7861 = vmatprep.subr.bf16.mxu0 0
    %7862 = vmatpush1.bf16.msra.mxu0 0
    %7863 = vmatprep.subr.bf16.mxu0 0
    %7864 = vmatpush1.bf16.msra.mxu0 0
    %7865 = vmatprep.subr.bf16.mxu0 0
    %7866 = vmatpush1.bf16.msra.mxu0 0
    %7867 = vmatprep.subr.bf16.mxu0 0
    %7868 = vmatpush1.bf16.msra.mxu0 0
    %7869 = vmatprep.subr.bf16.mxu0 0
    %7870 = vmatpush1.bf16.msra.mxu0 0
    %7871 = vmatprep.subr.bf16.mxu0 0
    %7872 = vmatpush1.bf16.msra.mxu0 0
    %7873 = vmatprep.subr.bf16.mxu0 0
    %7874 = vmatpush1.bf16.msra.mxu0 0
    %7875 = vmatprep.subr.bf16.mxu0 0
    %7876 = vmatpush1.bf16.msra.mxu0 0
    %7877 = vmatprep.mubr.bf16.mxu0 0
    %7878 = vmatmul.mubr.bf16.gmra.mrb[0].mxu0 %v7802
    %v7879 = vpop.f32.mrb[0].mxu0
    %v7880 = vadd.f32 0.0, %v7879
    %v7881 = vpop.f32.mrb[0].mxu0
    %v7882 = vadd.f32 0.0, %v7881
    %v7883 = vpop.f32.mrb[0].mxu0
    %v7884 = vpop.f32.mrb[0].mxu0
    %7885 = vdwg.mxu0
    %v7886 = vadd.f32 %v7746, %v7839
    %v7887 = vadd.f32 %v7747, %v7841
    %v7888 = vadd.f32 %v7748, %v7880
    %v7889 = vadd.f32 %v7749, %v7882
    %s7890 = scalar_lea.vmem [#allocation13], 2688
    %v7891 = vld [vmem:[%s7890] sm:$0xff]
    %v7892 = vld [vmem:[%s7890 + $0x8] sm:$0xff]
    %v7893 = vld [vmem:[%s7890 + $0x10] sm:$0xff]
    %v7894 = vld [vmem:[%s7890 + $0x18] sm:$0xff]
    %v7895 = vld [vmem:[%s7890 + $0x20] sm:$0xff]
    %v7896 = vld [vmem:[%s7890 + $0x28] sm:$0xff]
    %v7897 = vld [vmem:[%s7890 + $0x30] sm:$0xff]
    %v7898 = vld [vmem:[%s7890 + $0x38] sm:$0xff]
    %v7899 = vrot.slane %v7611, 2
    %v7908 = vunpack.c.l.b16 %v7891
    %v7909 = vunpack.c.h.b16 %v7891
    %v7910 = vunpack.c.l.b16 %v7892
    %v7911 = vunpack.c.h.b16 %v7892
    %v7912 = vunpack.c.l.b16 %v7893
    %v7913 = vunpack.c.h.b16 %v7893
    %v7914 = vunpack.c.l.b16 %v7894
    %v7915 = vunpack.c.h.b16 %v7894
    %v7916 = vunpack.c.l.b16 %v7895
    %v7917 = vunpack.c.h.b16 %v7895
    %v7918 = vunpack.c.l.b16 %v7896
    %v7919 = vunpack.c.h.b16 %v7896
    %v7920 = vunpack.c.l.b16 %v7897
    %v7921 = vunpack.c.h.b16 %v7897
    %v7922 = vunpack.c.l.b16 %v7898
    %v7923 = vunpack.c.h.b16 %v7898
    %v7924 = vpack.c.b16 %v7912, %v7908
    %v7925 = vpack.c.b16 %v7913, %v7909
    %v7926 = vpack.c.b16 %v7914, %v7910
    %v7927 = vpack.c.b16 %v7915, %v7911
    %v7928 = vpack.c.b16 %v7920, %v7916
    %v7929 = vpack.c.b16 %v7921, %v7917
    %v7930 = vpack.c.b16 %v7922, %v7918
    %v7931 = vpack.c.b16 %v7923, %v7919
    %v7941 = vsel %vm574, %v7899, 0
    %7943 = vmatprep.subr.bf16.mxu0 %v7925
    %7944 = vmatpush1.bf16.msra.mxu0 %v7924
    %7945 = vmatprep.subr.bf16.mxu0 %v7929
    %7946 = vmatpush1.bf16.msra.mxu0 %v7928
    %7947 = vmatprep.subr.bf16.mxu0 0
    %7948 = vmatpush1.bf16.msra.mxu0 0
    %7949 = vmatprep.subr.bf16.mxu0 0
    %7950 = vmatpush1.bf16.msra.mxu0 0
    %7951 = vmatprep.subr.bf16.mxu0 0
    %7952 = vmatpush1.bf16.msra.mxu0 0
    %7953 = vmatprep.subr.bf16.mxu0 0
    %7954 = vmatpush1.bf16.msra.mxu0 0
    %7955 = vmatprep.subr.bf16.mxu0 0
    %7956 = vmatpush1.bf16.msra.mxu0 0
    %7957 = vmatprep.subr.bf16.mxu0 0
    %7958 = vmatpush1.bf16.msra.mxu0 0
    %7959 = vmatprep.subr.bf16.mxu0 0
    %7960 = vmatpush1.bf16.msra.mxu0 0
    %7961 = vmatprep.subr.bf16.mxu0 0
    %7962 = vmatpush1.bf16.msra.mxu0 0
    %7963 = vmatprep.subr.bf16.mxu0 0
    %7964 = vmatpush1.bf16.msra.mxu0 0
    %7965 = vmatprep.subr.bf16.mxu0 0
    %7966 = vmatpush1.bf16.msra.mxu0 0
    %7967 = vmatprep.subr.bf16.mxu0 0
    %7968 = vmatpush1.bf16.msra.mxu0 0
    %7969 = vmatprep.subr.bf16.mxu0 0
    %7970 = vmatpush1.bf16.msra.mxu0 0
    %7971 = vmatprep.subr.bf16.mxu0 0
    %7972 = vmatpush1.bf16.msra.mxu0 0
    %7973 = vmatprep.subr.bf16.mxu0 0
    %7974 = vmatpush1.bf16.msra.mxu0 0
    %7975 = vmatprep.mubr.bf16.mxu0 0
    %7976 = vmatmul.mubr.bf16.gmra.mrb[0].mxu0 %v7941
    %v7977 = vpop.f32.mrb[0].mxu0
    %v7978 = vadd.f32 0.0, %v7977
    %v7979 = vpop.f32.mrb[0].mxu0
    %v7980 = vadd.f32 0.0, %v7979
    %v7981 = vpop.f32.mrb[0].mxu0
    %v7982 = vpop.f32.mrb[0].mxu0
    %7983 = vdwg.mxu0
    %7984 = vmatprep.subr.bf16.mxu0 %v7927
    %7985 = vmatpush1.bf16.msra.mxu0 %v7926
    %7986 = vmatprep.subr.bf16.mxu0 %v7931
    %7987 = vmatpush1.bf16.msra.mxu0 %v7930
    %7988 = vmatprep.subr.bf16.mxu0 0
    %7989 = vmatpush1.bf16.msra.mxu0 0
    %7990 = vmatprep.subr.bf16.mxu0 0
    %7991 = vmatpush1.bf16.msra.mxu0 0
    %7992 = vmatprep.subr.bf16.mxu0 0
    %7993 = vmatpush1.bf16.msra.mxu0 0
    %7994 = vmatprep.subr.bf16.mxu0 0
    %7995 = vmatpush1.bf16.msra.mxu0 0
    %7996 = vmatprep.subr.bf16.mxu0 0
    %7997 = vmatpush1.bf16.msra.mxu0 0
    %7998 = vmatprep.subr.bf16.mxu0 0
    %7999 = vmatpush1.bf16.msra.mxu0 0
    %8000 = vmatprep.subr.bf16.mxu0 0
    %8001 = vmatpush1.bf16.msra.mxu0 0
    %8002 = vmatprep.subr.bf16.mxu0 0
    %8003 = vmatpush1.bf16.msra.mxu0 0
    %8004 = vmatprep.subr.bf16.mxu0 0
    %8005 = vmatpush1.bf16.msra.mxu0 0
    %8006 = vmatprep.subr.bf16.mxu0 0
    %8007 = vmatpush1.bf16.msra.mxu0 0
    %8008 = vmatprep.subr.bf16.mxu0 0
    %8009 = vmatpush1.bf16.msra.mxu0 0
    %8010 = vmatprep.subr.bf16.mxu0 0
    %8011 = vmatpush1.bf16.msra.mxu0 0
    %8012 = vmatprep.subr.bf16.mxu0 0
    %8013 = vmatpush1.bf16.msra.mxu0 0
    %8014 = vmatprep.subr.bf16.mxu0 0
    %8015 = vmatpush1.bf16.msra.mxu0 0
    %8016 = vmatprep.mubr.bf16.mxu0 0
    %8017 = vmatmul.mubr.bf16.gmra.mrb[0].mxu0 %v7941
    %v8018 = vpop.f32.mrb[0].mxu0
    %v8019 = vadd.f32 0.0, %v8018
    %v8020 = vpop.f32.mrb[0].mxu0
    %v8021 = vadd.f32 0.0, %v8020
    %v8022 = vpop.f32.mrb[0].mxu0
    %v8023 = vpop.f32.mrb[0].mxu0
    %8024 = vdwg.mxu0
    %v8025 = vadd.f32 %v7886, %v7978
    %v8026 = vadd.f32 %v7887, %v7980
    %v8027 = vadd.f32 %v7888, %v8019
    %v8028 = vadd.f32 %v7889, %v8021
    %s8029 = scalar_lea.vmem [#allocation13], 2752
    %v8030 = vld [vmem:[%s8029] sm:$0xff]
    %v8031 = vld [vmem:[%s8029 + $0x8] sm:$0xff]
    %v8032 = vld [vmem:[%s8029 + $0x10] sm:$0xff]
    %v8033 = vld [vmem:[%s8029 + $0x18] sm:$0xff]
    %v8034 = vld [vmem:[%s8029 + $0x20] sm:$0xff]
    %v8035 = vld [vmem:[%s8029 + $0x28] sm:$0xff]
    %v8036 = vld [vmem:[%s8029 + $0x30] sm:$0xff]
    %v8037 = vld [vmem:[%s8029 + $0x38] sm:$0xff]
    %v8038 = vrot.slane %v7611, 3
    %v8047 = vunpack.c.l.b16 %v8030
    %v8048 = vunpack.c.h.b16 %v8030
    %v8049 = vunpack.c.l.b16 %v8031
    %v8050 = vunpack.c.h.b16 %v8031
    %v8051 = vunpack.c.l.b16 %v8032
    %v8052 = vunpack.c.h.b16 %v8032
    %v8053 = vunpack.c.l.b16 %v8033
    %v8054 = vunpack.c.h.b16 %v8033
    %v8055 = vunpack.c.l.b16 %v8034
    %v8056 = vunpack.c.h.b16 %v8034
    %v8057 = vunpack.c.l.b16 %v8035
    %v8058 = vunpack.c.h.b16 %v8035
    %v8059 = vunpack.c.l.b16 %v8036
    %v8060 = vunpack.c.h.b16 %v8036
    %v8061 = vunpack.c.l.b16 %v8037
    %v8062 = vunpack.c.h.b16 %v8037
    %v8063 = vpack.c.b16 %v8051, %v8047
    %v8064 = vpack.c.b16 %v8052, %v8048
    %v8065 = vpack.c.b16 %v8053, %v8049
    %v8066 = vpack.c.b16 %v8054, %v8050
    %v8067 = vpack.c.b16 %v8059, %v8055
    %v8068 = vpack.c.b16 %v8060, %v8056
    %v8069 = vpack.c.b16 %v8061, %v8057
    %v8070 = vpack.c.b16 %v8062, %v8058
    %v8080 = vsel %vm574, %v8038, 0
    %8082 = vmatprep.subr.bf16.mxu0 %v8064
    %8083 = vmatpush1.bf16.msra.mxu0 %v8063
    %8084 = vmatprep.subr.bf16.mxu0 %v8068
    %8085 = vmatpush1.bf16.msra.mxu0 %v8067
    %8086 = vmatprep.subr.bf16.mxu0 0
    %8087 = vmatpush1.bf16.msra.mxu0 0
    %8088 = vmatprep.subr.bf16.mxu0 0
    %8089 = vmatpush1.bf16.msra.mxu0 0
    %8090 = vmatprep.subr.bf16.mxu0 0
    %8091 = vmatpush1.bf16.msra.mxu0 0
    %8092 = vmatprep.subr.bf16.mxu0 0
    %8093 = vmatpush1.bf16.msra.mxu0 0
    %8094 = vmatprep.subr.bf16.mxu0 0
    %8095 = vmatpush1.bf16.msra.mxu0 0
    %8096 = vmatprep.subr.bf16.mxu0 0
    %8097 = vmatpush1.bf16.msra.mxu0 0
    %8098 = vmatprep.subr.bf16.mxu0 0
    %8099 = vmatpush1.bf16.msra.mxu0 0
    %8100 = vmatprep.subr.bf16.mxu0 0
    %8101 = vmatpush1.bf16.msra.mxu0 0
    %8102 = vmatprep.subr.bf16.mxu0 0
    %8103 = vmatpush1.bf16.msra.mxu0 0
    %8104 = vmatprep.subr.bf16.mxu0 0
    %8105 = vmatpush1.bf16.msra.mxu0 0
    %8106 = vmatprep.subr.bf16.mxu0 0
    %8107 = vmatpush1.bf16.msra.mxu0 0
    %8108 = vmatprep.subr.bf16.mxu0 0
    %8109 = vmatpush1.bf16.msra.mxu0 0
    %8110 = vmatprep.subr.bf16.mxu0 0
    %8111 = vmatpush1.bf16.msra.mxu0 0
    %8112 = vmatprep.subr.bf16.mxu0 0
    %8113 = vmatpush1.bf16.msra.mxu0 0
    %8114 = vmatprep.mubr.bf16.mxu0 0
    %8115 = vmatmul.mubr.bf16.gmra.mrb[0].mxu0 %v8080
    %v8116 = vpop.f32.mrb[0].mxu0
    %v8117 = vadd.f32 0.0, %v8116
    %v8118 = vpop.f32.mrb[0].mxu0
    %v8119 = vadd.f32 0.0, %v8118
    %v8120 = vpop.f32.mrb[0].mxu0
    %v8121 = vpop.f32.mrb[0].mxu0
    %8122 = vdwg.mxu0
    %8123 = vmatprep.subr.bf16.mxu0 %v8066
    %8124 = vmatpush1.bf16.msra.mxu0 %v8065
    %8125 = vmatprep.subr.bf16.mxu0 %v8070
    %8126 = vmatpush1.bf16.msra.mxu0 %v8069
    %8127 = vmatprep.subr.bf16.mxu0 0
    %8128 = vmatpush1.bf16.msra.mxu0 0
    %8129 = vmatprep.subr.bf16.mxu0 0
    %8130 = vmatpush1.bf16.msra.mxu0 0
    %8131 = vmatprep.subr.bf16.mxu0 0
    %8132 = vmatpush1.bf16.msra.mxu0 0
    %8133 = vmatprep.subr.bf16.mxu0 0
    %8134 = vmatpush1.bf16.msra.mxu0 0
    %8135 = vmatprep.subr.bf16.mxu0 0
    %8136 = vmatpush1.bf16.msra.mxu0 0
    %8137 = vmatprep.subr.bf16.mxu0 0
    %8138 = vmatpush1.bf16.msra.mxu0 0
    %8139 = vmatprep.subr.bf16.mxu0 0
    %8140 = vmatpush1.bf16.msra.mxu0 0
    %8141 = vmatprep.subr.bf16.mxu0 0
    %8142 = vmatpush1.bf16.msra.mxu0 0
    %8143 = vmatprep.subr.bf16.mxu0 0
    %8144 = vmatpush1.bf16.msra.mxu0 0
    %8145 = vmatprep.subr.bf16.mxu0 0
    %8146 = vmatpush1.bf16.msra.mxu0 0
    %8147 = vmatprep.subr.bf16.mxu0 0
    %8148 = vmatpush1.bf16.msra.mxu0 0
    %8149 = vmatprep.subr.bf16.mxu0 0
    %8150 = vmatpush1.bf16.msra.mxu0 0
    %8151 = vmatprep.subr.bf16.mxu0 0
    %8152 = vmatpush1.bf16.msra.mxu0 0
    %8153 = vmatprep.subr.bf16.mxu0 0
    %8154 = vmatpush1.bf16.msra.mxu0 0
    %8155 = vmatprep.mubr.bf16.mxu0 0
    %8156 = vmatmul.mubr.bf16.gmra.mrb[0].mxu0 %v8080
    %v8157 = vpop.f32.mrb[0].mxu0
    %v8158 = vadd.f32 0.0, %v8157
    %v8159 = vpop.f32.mrb[0].mxu0
    %v8160 = vadd.f32 0.0, %v8159
    %v8161 = vpop.f32.mrb[0].mxu0
    %v8162 = vpop.f32.mrb[0].mxu0
    %8163 = vdwg.mxu0
    %v8164 = vadd.f32 %v8025, %v8117
    %v8165 = vadd.f32 %v8026, %v8119
    %v8166 = vadd.f32 %v8027, %v8158
    %v8167 = vadd.f32 %v8028, %v8160
    %v8168 = vpack.c.bf16 %v2046, %v2046
    %s8169 = scalar_lea.vmem [#allocation13], 2816
    %v8170 = vld [vmem:[%s8169] sm:$0xff]
    %v8171 = vld [vmem:[%s8169 + $0x8] sm:$0xff]
    %v8172 = vld [vmem:[%s8169 + $0x10] sm:$0xff]
    %v8173 = vld [vmem:[%s8169 + $0x18] sm:$0xff]
    %v8174 = vld [vmem:[%s8169 + $0x20] sm:$0xff]
    %v8175 = vld [vmem:[%s8169 + $0x28] sm:$0xff]
    %v8176 = vld [vmem:[%s8169 + $0x30] sm:$0xff]
    %v8177 = vld [vmem:[%s8169 + $0x38] sm:$0xff]
    %v8186 = vunpack.c.l.b16 %v8170
    %v8187 = vunpack.c.h.b16 %v8170
    %v8188 = vunpack.c.l.b16 %v8171
    %v8189 = vunpack.c.h.b16 %v8171
    %v8190 = vunpack.c.l.b16 %v8172
    %v8191 = vunpack.c.h.b16 %v8172
    %v8192 = vunpack.c.l.b16 %v8173
    %v8193 = vunpack.c.h.b16 %v8173
    %v8194 = vunpack.c.l.b16 %v8174
    %v8195 = vunpack.c.h.b16 %v8174
    %v8196 = vunpack.c.l.b16 %v8175
    %v8197 = vunpack.c.h.b16 %v8175
    %v8198 = vunpack.c.l.b16 %v8176
    %v8199 = vunpack.c.h.b16 %v8176
    %v8200 = vunpack.c.l.b16 %v8177
    %v8201 = vunpack.c.h.b16 %v8177
    %v8202 = vpack.c.b16 %v8190, %v8186
    %v8203 = vpack.c.b16 %v8191, %v8187
    %v8204 = vpack.c.b16 %v8192, %v8188
    %v8205 = vpack.c.b16 %v8193, %v8189
    %v8206 = vpack.c.b16 %v8198, %v8194
    %v8207 = vpack.c.b16 %v8199, %v8195
    %v8208 = vpack.c.b16 %v8200, %v8196
    %v8209 = vpack.c.b16 %v8201, %v8197
    %v8219 = vsel %vm574, %v8168, 0
    %8221 = vmatprep.subr.bf16.mxu0 %v8203
    %8222 = vmatpush1.bf16.msra.mxu0 %v8202
    %8223 = vmatprep.subr.bf16.mxu0 %v8207
    %8224 = vmatpush1.bf16.msra.mxu0 %v8206
    %8225 = vmatprep.subr.bf16.mxu0 0
    %8226 = vmatpush1.bf16.msra.mxu0 0
    %8227 = vmatprep.subr.bf16.mxu0 0
    %8228 = vmatpush1.bf16.msra.mxu0 0
    %8229 = vmatprep.subr.bf16.mxu0 0
    %8230 = vmatpush1.bf16.msra.mxu0 0
    %8231 = vmatprep.subr.bf16.mxu0 0
    %8232 = vmatpush1.bf16.msra.mxu0 0
    %8233 = vmatprep.subr.bf16.mxu0 0
    %8234 = vmatpush1.bf16.msra.mxu0 0
    %8235 = vmatprep.subr.bf16.mxu0 0
    %8236 = vmatpush1.bf16.msra.mxu0 0
    %8237 = vmatprep.subr.bf16.mxu0 0
    %8238 = vmatpush1.bf16.msra.mxu0 0
    %8239 = vmatprep.subr.bf16.mxu0 0
    %8240 = vmatpush1.bf16.msra.mxu0 0
    %8241 = vmatprep.subr.bf16.mxu0 0
    %8242 = vmatpush1.bf16.msra.mxu0 0
    %8243 = vmatprep.subr.bf16.mxu0 0
    %8244 = vmatpush1.bf16.msra.mxu0 0
    %8245 = vmatprep.subr.bf16.mxu0 0
    %8246 = vmatpush1.bf16.msra.mxu0 0
    %8247 = vmatprep.subr.bf16.mxu0 0
    %8248 = vmatpush1.bf16.msra.mxu0 0
    %8249 = vmatprep.subr.bf16.mxu0 0
    %8250 = vmatpush1.bf16.msra.mxu0 0
    %8251 = vmatprep.subr.bf16.mxu0 0
    %8252 = vmatpush1.bf16.msra.mxu0 0
    %8253 = vmatprep.mubr.bf16.mxu0 0
    %8254 = vmatmul.mubr.bf16.gmra.mrb[0].mxu0 %v8219
    %v8255 = vpop.f32.mrb[0].mxu0
    %v8256 = vadd.f32 0.0, %v8255
    %v8257 = vpop.f32.mrb[0].mxu0
    %v8258 = vadd.f32 0.0, %v8257
    %v8259 = vpop.f32.mrb[0].mxu0
    %v8260 = vpop.f32.mrb[0].mxu0
    %8261 = vdwg.mxu0
    %8262 = vmatprep.subr.bf16.mxu0 %v8205
    %8263 = vmatpush1.bf16.msra.mxu0 %v8204
    %8264 = vmatprep.subr.bf16.mxu0 %v8209
    %8265 = vmatpush1.bf16.msra.mxu0 %v8208
    %8266 = vmatprep.subr.bf16.mxu0 0
    %8267 = vmatpush1.bf16.msra.mxu0 0
    %8268 = vmatprep.subr.bf16.mxu0 0
    %8269 = vmatpush1.bf16.msra.mxu0 0
    %8270 = vmatprep.subr.bf16.mxu0 0
    %8271 = vmatpush1.bf16.msra.mxu0 0
    %8272 = vmatprep.subr.bf16.mxu0 0
    %8273 = vmatpush1.bf16.msra.mxu0 0
    %8274 = vmatprep.subr.bf16.mxu0 0
    %8275 = vmatpush1.bf16.msra.mxu0 0
    %8276 = vmatprep.subr.bf16.mxu0 0
    %8277 = vmatpush1.bf16.msra.mxu0 0
    %8278 = vmatprep.subr.bf16.mxu0 0
    %8279 = vmatpush1.bf16.msra.mxu0 0
    %8280 = vmatprep.subr.bf16.mxu0 0
    %8281 = vmatpush1.bf16.msra.mxu0 0
    %8282 = vmatprep.subr.bf16.mxu0 0
    %8283 = vmatpush1.bf16.msra.mxu0 0
    %8284 = vmatprep.subr.bf16.mxu0 0
    %8285 = vmatpush1.bf16.msra.mxu0 0
    %8286 = vmatprep.subr.bf16.mxu0 0
    %8287 = vmatpush1.bf16.msra.mxu0 0
    %8288 = vmatprep.subr.bf16.mxu0 0
    %8289 = vmatpush1.bf16.msra.mxu0 0
    %8290 = vmatprep.subr.bf16.mxu0 0
    %8291 = vmatpush1.bf16.msra.mxu0 0
    %8292 = vmatprep.subr.bf16.mxu0 0
    %8293 = vmatpush1.bf16.msra.mxu0 0
    %8294 = vmatprep.mubr.bf16.mxu0 0
    %8295 = vmatmul.mubr.bf16.gmra.mrb[0].mxu0 %v8219
    %v8296 = vpop.f32.mrb[0].mxu0
    %v8297 = vadd.f32 0.0, %v8296
    %v8298 = vpop.f32.mrb[0].mxu0
    %v8299 = vadd.f32 0.0, %v8298
    %v8300 = vpop.f32.mrb[0].mxu0
    %v8301 = vpop.f32.mrb[0].mxu0
    %8302 = vdwg.mxu0
    %v8303 = vadd.f32 %v8164, %v8256
    %v8304 = vadd.f32 %v8165, %v8258
    %v8305 = vadd.f32 %v8166, %v8297
    %v8306 = vadd.f32 %v8167, %v8299
    %s8307 = scalar_lea.vmem [#allocation13], 2880
    %v8308 = vld [vmem:[%s8307] sm:$0xff]
    %v8309 = vld [vmem:[%s8307 + $0x8] sm:$0xff]
    %v8310 = vld [vmem:[%s8307 + $0x10] sm:$0xff]
    %v8311 = vld [vmem:[%s8307 + $0x18] sm:$0xff]
    %v8312 = vld [vmem:[%s8307 + $0x20] sm:$0xff]
    %v8313 = vld [vmem:[%s8307 + $0x28] sm:$0xff]
    %v8314 = vld [vmem:[%s8307 + $0x30] sm:$0xff]
    %v8315 = vld [vmem:[%s8307 + $0x38] sm:$0xff]
    %v8317 = vrot.slane %v8168, 1
    %v8326 = vunpack.c.l.b16 %v8308
    %v8327 = vunpack.c.h.b16 %v8308
    %v8328 = vunpack.c.l.b16 %v8309
    %v8329 = vunpack.c.h.b16 %v8309
    %v8330 = vunpack.c.l.b16 %v8310
    %v8331 = vunpack.c.h.b16 %v8310
    %v8332 = vunpack.c.l.b16 %v8311
    %v8333 = vunpack.c.h.b16 %v8311
    %v8334 = vunpack.c.l.b16 %v8312
    %v8335 = vunpack.c.h.b16 %v8312
    %v8336 = vunpack.c.l.b16 %v8313
    %v8337 = vunpack.c.h.b16 %v8313
    %v8338 = vunpack.c.l.b16 %v8314
    %v8339 = vunpack.c.h.b16 %v8314
    %v8340 = vunpack.c.l.b16 %v8315
    %v8341 = vunpack.c.h.b16 %v8315
    %v8342 = vpack.c.b16 %v8330, %v8326
    %v8343 = vpack.c.b16 %v8331, %v8327
    %v8344 = vpack.c.b16 %v8332, %v8328
    %v8345 = vpack.c.b16 %v8333, %v8329
    %v8346 = vpack.c.b16 %v8338, %v8334
    %v8347 = vpack.c.b16 %v8339, %v8335
    %v8348 = vpack.c.b16 %v8340, %v8336
    %v8349 = vpack.c.b16 %v8341, %v8337
    %v8359 = vsel %vm574, %v8317, 0
    %8361 = vmatprep.subr.bf16.mxu0 %v8343
    %8362 = vmatpush1.bf16.msra.mxu0 %v8342
    %8363 = vmatprep.subr.bf16.mxu0 %v8347
    %8364 = vmatpush1.bf16.msra.mxu0 %v8346
    %8365 = vmatprep.subr.bf16.mxu0 0
    %8366 = vmatpush1.bf16.msra.mxu0 0
    %8367 = vmatprep.subr.bf16.mxu0 0
    %8368 = vmatpush1.bf16.msra.mxu0 0
    %8369 = vmatprep.subr.bf16.mxu0 0
    %8370 = vmatpush1.bf16.msra.mxu0 0
    %8371 = vmatprep.subr.bf16.mxu0 0
    %8372 = vmatpush1.bf16.msra.mxu0 0
    %8373 = vmatprep.subr.bf16.mxu0 0
    %8374 = vmatpush1.bf16.msra.mxu0 0
    %8375 = vmatprep.subr.bf16.mxu0 0
    %8376 = vmatpush1.bf16.msra.mxu0 0
    %8377 = vmatprep.subr.bf16.mxu0 0
    %8378 = vmatpush1.bf16.msra.mxu0 0
    %8379 = vmatprep.subr.bf16.mxu0 0
    %8380 = vmatpush1.bf16.msra.mxu0 0
    %8381 = vmatprep.subr.bf16.mxu0 0
    %8382 = vmatpush1.bf16.msra.mxu0 0
    %8383 = vmatprep.subr.bf16.mxu0 0
    %8384 = vmatpush1.bf16.msra.mxu0 0
    %8385 = vmatprep.subr.bf16.mxu0 0
    %8386 = vmatpush1.bf16.msra.mxu0 0
    %8387 = vmatprep.subr.bf16.mxu0 0
    %8388 = vmatpush1.bf16.msra.mxu0 0
    %8389 = vmatprep.subr.bf16.mxu0 0
    %8390 = vmatpush1.bf16.msra.mxu0 0
    %8391 = vmatprep.subr.bf16.mxu0 0
    %8392 = vmatpush1.bf16.msra.mxu0 0
    %8393 = vmatprep.mubr.bf16.mxu0 0
    %8394 = vmatmul.mubr.bf16.gmra.mrb[0].mxu0 %v8359
    %v8395 = vpop.f32.mrb[0].mxu0
    %v8396 = vadd.f32 0.0, %v8395
    %v8397 = vpop.f32.mrb[0].mxu0
    %v8398 = vadd.f32 0.0, %v8397
    %v8399 = vpop.f32.mrb[0].mxu0
    %v8400 = vpop.f32.mrb[0].mxu0
    %8401 = vdwg.mxu0
    %8402 = vmatprep.subr.bf16.mxu0 %v8345
    %8403 = vmatpush1.bf16.msra.mxu0 %v8344
    %8404 = vmatprep.subr.bf16.mxu0 %v8349
    %8405 = vmatpush1.bf16.msra.mxu0 %v8348
    %8406 = vmatprep.subr.bf16.mxu0 0
    %8407 = vmatpush1.bf16.msra.mxu0 0
    %8408 = vmatprep.subr.bf16.mxu0 0
    %8409 = vmatpush1.bf16.msra.mxu0 0
    %8410 = vmatprep.subr.bf16.mxu0 0
    %8411 = vmatpush1.bf16.msra.mxu0 0
    %8412 = vmatprep.subr.bf16.mxu0 0
    %8413 = vmatpush1.bf16.msra.mxu0 0
    %8414 = vmatprep.subr.bf16.mxu0 0
    %8415 = vmatpush1.bf16.msra.mxu0 0
    %8416 = vmatprep.subr.bf16.mxu0 0
    %8417 = vmatpush1.bf16.msra.mxu0 0
    %8418 = vmatprep.subr.bf16.mxu0 0
    %8419 = vmatpush1.bf16.msra.mxu0 0
    %8420 = vmatprep.subr.bf16.mxu0 0
    %8421 = vmatpush1.bf16.msra.mxu0 0
    %8422 = vmatprep.subr.bf16.mxu0 0
    %8423 = vmatpush1.bf16.msra.mxu0 0
    %8424 = vmatprep.subr.bf16.mxu0 0
    %8425 = vmatpush1.bf16.msra.mxu0 0
    %8426 = vmatprep.subr.bf16.mxu0 0
    %8427 = vmatpush1.bf16.msra.mxu0 0
    %8428 = vmatprep.subr.bf16.mxu0 0
    %8429 = vmatpush1.bf16.msra.mxu0 0
    %8430 = vmatprep.subr.bf16.mxu0 0
    %8431 = vmatpush1.bf16.msra.mxu0 0
    %8432 = vmatprep.subr.bf16.mxu0 0
    %8433 = vmatpush1.bf16.msra.mxu0 0
    %8434 = vmatprep.mubr.bf16.mxu0 0
    %8435 = vmatmul.mubr.bf16.gmra.mrb[0].mxu0 %v8359
    %v8436 = vpop.f32.mrb[0].mxu0
    %v8437 = vadd.f32 0.0, %v8436
    %v8438 = vpop.f32.mrb[0].mxu0
    %v8439 = vadd.f32 0.0, %v8438
    %v8440 = vpop.f32.mrb[0].mxu0
    %v8441 = vpop.f32.mrb[0].mxu0
    %8442 = vdwg.mxu0
    %v8443 = vadd.f32 %v8303, %v8396
    %v8444 = vadd.f32 %v8304, %v8398
    %v8445 = vadd.f32 %v8305, %v8437
    %v8446 = vadd.f32 %v8306, %v8439
    %s8447 = scalar_lea.vmem [#allocation13], 2944
    %v8448 = vld [vmem:[%s8447] sm:$0xff]
    %v8449 = vld [vmem:[%s8447 + $0x8] sm:$0xff]
    %v8450 = vld [vmem:[%s8447 + $0x10] sm:$0xff]
    %v8451 = vld [vmem:[%s8447 + $0x18] sm:$0xff]
    %v8452 = vld [vmem:[%s8447 + $0x20] sm:$0xff]
    %v8453 = vld [vmem:[%s8447 + $0x28] sm:$0xff]
    %v8454 = vld [vmem:[%s8447 + $0x30] sm:$0xff]
    %v8455 = vld [vmem:[%s8447 + $0x38] sm:$0xff]
    %v8456 = vrot.slane %v8168, 2
    %v8465 = vunpack.c.l.b16 %v8448
    %v8466 = vunpack.c.h.b16 %v8448
    %v8467 = vunpack.c.l.b16 %v8449
    %v8468 = vunpack.c.h.b16 %v8449
    %v8469 = vunpack.c.l.b16 %v8450
    %v8470 = vunpack.c.h.b16 %v8450
    %v8471 = vunpack.c.l.b16 %v8451
    %v8472 = vunpack.c.h.b16 %v8451
    %v8473 = vunpack.c.l.b16 %v8452
    %v8474 = vunpack.c.h.b16 %v8452
    %v8475 = vunpack.c.l.b16 %v8453
    %v8476 = vunpack.c.h.b16 %v8453
    %v8477 = vunpack.c.l.b16 %v8454
    %v8478 = vunpack.c.h.b16 %v8454
    %v8479 = vunpack.c.l.b16 %v8455
    %v8480 = vunpack.c.h.b16 %v8455
    %v8481 = vpack.c.b16 %v8469, %v8465
    %v8482 = vpack.c.b16 %v8470, %v8466
    %v8483 = vpack.c.b16 %v8471, %v8467
    %v8484 = vpack.c.b16 %v8472, %v8468
    %v8485 = vpack.c.b16 %v8477, %v8473
    %v8486 = vpack.c.b16 %v8478, %v8474
    %v8487 = vpack.c.b16 %v8479, %v8475
    %v8488 = vpack.c.b16 %v8480, %v8476
    %v8498 = vsel %vm574, %v8456, 0
    %8500 = vmatprep.subr.bf16.mxu0 %v8482
    %8501 = vmatpush1.bf16.msra.mxu0 %v8481
    %8502 = vmatprep.subr.bf16.mxu0 %v8486
    %8503 = vmatpush1.bf16.msra.mxu0 %v8485
    %8504 = vmatprep.subr.bf16.mxu0 0
    %8505 = vmatpush1.bf16.msra.mxu0 0
    %8506 = vmatprep.subr.bf16.mxu0 0
    %8507 = vmatpush1.bf16.msra.mxu0 0
    %8508 = vmatprep.subr.bf16.mxu0 0
    %8509 = vmatpush1.bf16.msra.mxu0 0
    %8510 = vmatprep.subr.bf16.mxu0 0
    %8511 = vmatpush1.bf16.msra.mxu0 0
    %8512 = vmatprep.subr.bf16.mxu0 0
    %8513 = vmatpush1.bf16.msra.mxu0 0
    %8514 = vmatprep.subr.bf16.mxu0 0
    %8515 = vmatpush1.bf16.msra.mxu0 0
    %8516 = vmatprep.subr.bf16.mxu0 0
    %8517 = vmatpush1.bf16.msra.mxu0 0
    %8518 = vmatprep.subr.bf16.mxu0 0
    %8519 = vmatpush1.bf16.msra.mxu0 0
    %8520 = vmatprep.subr.bf16.mxu0 0
    %8521 = vmatpush1.bf16.msra.mxu0 0
    %8522 = vmatprep.subr.bf16.mxu0 0
    %8523 = vmatpush1.bf16.msra.mxu0 0
    %8524 = vmatprep.subr.bf16.mxu0 0
    %8525 = vmatpush1.bf16.msra.mxu0 0
    %8526 = vmatprep.subr.bf16.mxu0 0
    %8527 = vmatpush1.bf16.msra.mxu0 0
    %8528 = vmatprep.subr.bf16.mxu0 0
    %8529 = vmatpush1.bf16.msra.mxu0 0
    %8530 = vmatprep.subr.bf16.mxu0 0
    %8531 = vmatpush1.bf16.msra.mxu0 0
    %8532 = vmatprep.mubr.bf16.mxu0 0
    %8533 = vmatmul.mubr.bf16.gmra.mrb[0].mxu0 %v8498
    %v8534 = vpop.f32.mrb[0].mxu0
    %v8535 = vadd.f32 0.0, %v8534
    %v8536 = vpop.f32.mrb[0].mxu0
    %v8537 = vadd.f32 0.0, %v8536
    %v8538 = vpop.f32.mrb[0].mxu0
    %v8539 = vpop.f32.mrb[0].mxu0
    %8540 = vdwg.mxu0
    %8541 = vmatprep.subr.bf16.mxu0 %v8484
    %8542 = vmatpush1.bf16.msra.mxu0 %v8483
    %8543 = vmatprep.subr.bf16.mxu0 %v8488
    %8544 = vmatpush1.bf16.msra.mxu0 %v8487
    %8545 = vmatprep.subr.bf16.mxu0 0
    %8546 = vmatpush1.bf16.msra.mxu0 0
    %8547 = vmatprep.subr.bf16.mxu0 0
    %8548 = vmatpush1.bf16.msra.mxu0 0
    %8549 = vmatprep.subr.bf16.mxu0 0
    %8550 = vmatpush1.bf16.msra.mxu0 0
    %8551 = vmatprep.subr.bf16.mxu0 0
    %8552 = vmatpush1.bf16.msra.mxu0 0
    %8553 = vmatprep.subr.bf16.mxu0 0
    %8554 = vmatpush1.bf16.msra.mxu0 0
    %8555 = vmatprep.subr.bf16.mxu0 0
    %8556 = vmatpush1.bf16.msra.mxu0 0
    %8557 = vmatprep.subr.bf16.mxu0 0
    %8558 = vmatpush1.bf16.msra.mxu0 0
    %8559 = vmatprep.subr.bf16.mxu0 0
    %8560 = vmatpush1.bf16.msra.mxu0 0
    %8561 = vmatprep.subr.bf16.mxu0 0
    %8562 = vmatpush1.bf16.msra.mxu0 0
    %8563 = vmatprep.subr.bf16.mxu0 0
    %8564 = vmatpush1.bf16.msra.mxu0 0
    %8565 = vmatprep.subr.bf16.mxu0 0
    %8566 = vmatpush1.bf16.msra.mxu0 0
    %8567 = vmatprep.subr.bf16.mxu0 0
    %8568 = vmatpush1.bf16.msra.mxu0 0
    %8569 = vmatprep.subr.bf16.mxu0 0
    %8570 = vmatpush1.bf16.msra.mxu0 0
    %8571 = vmatprep.subr.bf16.mxu0 0
    %8572 = vmatpush1.bf16.msra.mxu0 0
    %8573 = vmatprep.mubr.bf16.mxu0 0
    %8574 = vmatmul.mubr.bf16.gmra.mrb[0].mxu0 %v8498
    %v8575 = vpop.f32.mrb[0].mxu0
    %v8576 = vadd.f32 0.0, %v8575
    %v8577 = vpop.f32.mrb[0].mxu0
    %v8578 = vadd.f32 0.0, %v8577
    %v8579 = vpop.f32.mrb[0].mxu0
    %v8580 = vpop.f32.mrb[0].mxu0
    %8581 = vdwg.mxu0
    %v8582 = vadd.f32 %v8443, %v8535
    %v8583 = vadd.f32 %v8444, %v8537
    %v8584 = vadd.f32 %v8445, %v8576
    %v8585 = vadd.f32 %v8446, %v8578
    %s8586 = scalar_lea.vmem [#allocation13], 3008
    %v8587 = vld [vmem:[%s8586] sm:$0xff]
    %v8588 = vld [vmem:[%s8586 + $0x8] sm:$0xff]
    %v8589 = vld [vmem:[%s8586 + $0x10] sm:$0xff]
    %v8590 = vld [vmem:[%s8586 + $0x18] sm:$0xff]
    %v8591 = vld [vmem:[%s8586 + $0x20] sm:$0xff]
    %v8592 = vld [vmem:[%s8586 + $0x28] sm:$0xff]
    %v8593 = vld [vmem:[%s8586 + $0x30] sm:$0xff]
    %v8594 = vld [vmem:[%s8586 + $0x38] sm:$0xff]
    %v8595 = vrot.slane %v8168, 3
    %v8604 = vunpack.c.l.b16 %v8587
    %v8605 = vunpack.c.h.b16 %v8587
    %v8606 = vunpack.c.l.b16 %v8588
    %v8607 = vunpack.c.h.b16 %v8588
    %v8608 = vunpack.c.l.b16 %v8589
    %v8609 = vunpack.c.h.b16 %v8589
    %v8610 = vunpack.c.l.b16 %v8590
    %v8611 = vunpack.c.h.b16 %v8590
    %v8612 = vunpack.c.l.b16 %v8591
    %v8613 = vunpack.c.h.b16 %v8591
    %v8614 = vunpack.c.l.b16 %v8592
    %v8615 = vunpack.c.h.b16 %v8592
    %v8616 = vunpack.c.l.b16 %v8593
    %v8617 = vunpack.c.h.b16 %v8593
    %v8618 = vunpack.c.l.b16 %v8594
    %v8619 = vunpack.c.h.b16 %v8594
    %v8620 = vpack.c.b16 %v8608, %v8604
    %v8621 = vpack.c.b16 %v8609, %v8605
    %v8622 = vpack.c.b16 %v8610, %v8606
    %v8623 = vpack.c.b16 %v8611, %v8607
    %v8624 = vpack.c.b16 %v8616, %v8612
    %v8625 = vpack.c.b16 %v8617, %v8613
    %v8626 = vpack.c.b16 %v8618, %v8614
    %v8627 = vpack.c.b16 %v8619, %v8615
    %v8637 = vsel %vm574, %v8595, 0
    %8639 = vmatprep.subr.bf16.mxu0 %v8621
    %8640 = vmatpush1.bf16.msra.mxu0 %v8620
    %8641 = vmatprep.subr.bf16.mxu0 %v8625
    %8642 = vmatpush1.bf16.msra.mxu0 %v8624
    %8643 = vmatprep.subr.bf16.mxu0 0
    %8644 = vmatpush1.bf16.msra.mxu0 0
    %8645 = vmatprep.subr.bf16.mxu0 0
    %8646 = vmatpush1.bf16.msra.mxu0 0
    %8647 = vmatprep.subr.bf16.mxu0 0
    %8648 = vmatpush1.bf16.msra.mxu0 0
    %8649 = vmatprep.subr.bf16.mxu0 0
    %8650 = vmatpush1.bf16.msra.mxu0 0
    %8651 = vmatprep.subr.bf16.mxu0 0
    %8652 = vmatpush1.bf16.msra.mxu0 0
    %8653 = vmatprep.subr.bf16.mxu0 0
    %8654 = vmatpush1.bf16.msra.mxu0 0
    %8655 = vmatprep.subr.bf16.mxu0 0
    %8656 = vmatpush1.bf16.msra.mxu0 0
    %8657 = vmatprep.subr.bf16.mxu0 0
    %8658 = vmatpush1.bf16.msra.mxu0 0
    %8659 = vmatprep.subr.bf16.mxu0 0
    %8660 = vmatpush1.bf16.msra.mxu0 0
    %8661 = vmatprep.subr.bf16.mxu0 0
    %8662 = vmatpush1.bf16.msra.mxu0 0
    %8663 = vmatprep.subr.bf16.mxu0 0
    %8664 = vmatpush1.bf16.msra.mxu0 0
    %8665 = vmatprep.subr.bf16.mxu0 0
    %8666 = vmatpush1.bf16.msra.mxu0 0
    %8667 = vmatprep.subr.bf16.mxu0 0
    %8668 = vmatpush1.bf16.msra.mxu0 0
    %8669 = vmatprep.subr.bf16.mxu0 0
    %8670 = vmatpush1.bf16.msra.mxu0 0
    %8671 = vmatprep.mubr.bf16.mxu0 0
    %8672 = vmatmul.mubr.bf16.gmra.mrb[0].mxu0 %v8637
    %v8673 = vpop.f32.mrb[0].mxu0
    %v8674 = vadd.f32 0.0, %v8673
    %v8675 = vpop.f32.mrb[0].mxu0
    %v8676 = vadd.f32 0.0, %v8675
    %v8677 = vpop.f32.mrb[0].mxu0
    %v8678 = vpop.f32.mrb[0].mxu0
    %8679 = vdwg.mxu0
    %8680 = vmatprep.subr.bf16.mxu0 %v8623
    %8681 = vmatpush1.bf16.msra.mxu0 %v8622
    %8682 = vmatprep.subr.bf16.mxu0 %v8627
    %8683 = vmatpush1.bf16.msra.mxu0 %v8626
    %8684 = vmatprep.subr.bf16.mxu0 0
    %8685 = vmatpush1.bf16.msra.mxu0 0
    %8686 = vmatprep.subr.bf16.mxu0 0
    %8687 = vmatpush1.bf16.msra.mxu0 0
    %8688 = vmatprep.subr.bf16.mxu0 0
    %8689 = vmatpush1.bf16.msra.mxu0 0
    %8690 = vmatprep.subr.bf16.mxu0 0
    %8691 = vmatpush1.bf16.msra.mxu0 0
    %8692 = vmatprep.subr.bf16.mxu0 0
    %8693 = vmatpush1.bf16.msra.mxu0 0
    %8694 = vmatprep.subr.bf16.mxu0 0
    %8695 = vmatpush1.bf16.msra.mxu0 0
    %8696 = vmatprep.subr.bf16.mxu0 0
    %8697 = vmatpush1.bf16.msra.mxu0 0
    %8698 = vmatprep.subr.bf16.mxu0 0
    %8699 = vmatpush1.bf16.msra.mxu0 0
    %8700 = vmatprep.subr.bf16.mxu0 0
    %8701 = vmatpush1.bf16.msra.mxu0 0
    %8702 = vmatprep.subr.bf16.mxu0 0
    %8703 = vmatpush1.bf16.msra.mxu0 0
    %8704 = vmatprep.subr.bf16.mxu0 0
    %8705 = vmatpush1.bf16.msra.mxu0 0
    %8706 = vmatprep.subr.bf16.mxu0 0
    %8707 = vmatpush1.bf16.msra.mxu0 0
    %8708 = vmatprep.subr.bf16.mxu0 0
    %8709 = vmatpush1.bf16.msra.mxu0 0
    %8710 = vmatprep.subr.bf16.mxu0 0
    %8711 = vmatpush1.bf16.msra.mxu0 0
    %8712 = vmatprep.mubr.bf16.mxu0 0
    %8713 = vmatmul.mubr.bf16.gmra.mrb[0].mxu0 %v8637
    %v8714 = vpop.f32.mrb[0].mxu0
    %v8715 = vadd.f32 0.0, %v8714
    %v8716 = vpop.f32.mrb[0].mxu0
    %v8717 = vadd.f32 0.0, %v8716
    %v8718 = vpop.f32.mrb[0].mxu0
    %v8719 = vpop.f32.mrb[0].mxu0
    %8720 = vdwg.mxu0
    %v8721 = vadd.f32 %v8582, %v8674
    %v8722 = vadd.f32 %v8583, %v8676
    %v8723 = vadd.f32 %v8584, %v8715
    %v8724 = vadd.f32 %v8585, %v8717
    %v8725 = vpack.c.bf16 %v2047, %v2047
    %s8726 = scalar_lea.vmem [#allocation13], 3072
    %v8727 = vld [vmem:[%s8726] sm:$0xff]
    %v8728 = vld [vmem:[%s8726 + $0x8] sm:$0xff]
    %v8729 = vld [vmem:[%s8726 + $0x10] sm:$0xff]
    %v8730 = vld [vmem:[%s8726 + $0x18] sm:$0xff]
    %v8731 = vld [vmem:[%s8726 + $0x20] sm:$0xff]
    %v8732 = vld [vmem:[%s8726 + $0x28] sm:$0xff]
    %v8733 = vld [vmem:[%s8726 + $0x30] sm:$0xff]
    %v8734 = vld [vmem:[%s8726 + $0x38] sm:$0xff]
    %v8743 = vunpack.c.l.b16 %v8727
    %v8744 = vunpack.c.h.b16 %v8727
    %v8745 = vunpack.c.l.b16 %v8728
    %v8746 = vunpack.c.h.b16 %v8728
    %v8747 = vunpack.c.l.b16 %v8729
    %v8748 = vunpack.c.h.b16 %v8729
    %v8749 = vunpack.c.l.b16 %v8730
    %v8750 = vunpack.c.h.b16 %v8730
    %v8751 = vunpack.c.l.b16 %v8731
    %v8752 = vunpack.c.h.b16 %v8731
    %v8753 = vunpack.c.l.b16 %v8732
    %v8754 = vunpack.c.h.b16 %v8732
    %v8755 = vunpack.c.l.b16 %v8733
    %v8756 = vunpack.c.h.b16 %v8733
    %v8757 = vunpack.c.l.b16 %v8734
    %v8758 = vunpack.c.h.b16 %v8734
    %v8759 = vpack.c.b16 %v8747, %v8743
    %v8760 = vpack.c.b16 %v8748, %v8744
    %v8761 = vpack.c.b16 %v8749, %v8745
    %v8762 = vpack.c.b16 %v8750, %v8746
    %v8763 = vpack.c.b16 %v8755, %v8751
    %v8764 = vpack.c.b16 %v8756, %v8752
    %v8765 = vpack.c.b16 %v8757, %v8753
    %v8766 = vpack.c.b16 %v8758, %v8754
    %v8776 = vsel %vm574, %v8725, 0
    %8778 = vmatprep.subr.bf16.mxu0 %v8760
    %8779 = vmatpush1.bf16.msra.mxu0 %v8759
    %8780 = vmatprep.subr.bf16.mxu0 %v8764
    %8781 = vmatpush1.bf16.msra.mxu0 %v8763
    %8782 = vmatprep.subr.bf16.mxu0 0
    %8783 = vmatpush1.bf16.msra.mxu0 0
    %8784 = vmatprep.subr.bf16.mxu0 0
    %8785 = vmatpush1.bf16.msra.mxu0 0
    %8786 = vmatprep.subr.bf16.mxu0 0
    %8787 = vmatpush1.bf16.msra.mxu0 0
    %8788 = vmatprep.subr.bf16.mxu0 0
    %8789 = vmatpush1.bf16.msra.mxu0 0
    %8790 = vmatprep.subr.bf16.mxu0 0
    %8791 = vmatpush1.bf16.msra.mxu0 0
    %8792 = vmatprep.subr.bf16.mxu0 0
    %8793 = vmatpush1.bf16.msra.mxu0 0
    %8794 = vmatprep.subr.bf16.mxu0 0
    %8795 = vmatpush1.bf16.msra.mxu0 0
    %8796 = vmatprep.subr.bf16.mxu0 0
    %8797 = vmatpush1.bf16.msra.mxu0 0
    %8798 = vmatprep.subr.bf16.mxu0 0
    %8799 = vmatpush1.bf16.msra.mxu0 0
    %8800 = vmatprep.subr.bf16.mxu0 0
    %8801 = vmatpush1.bf16.msra.mxu0 0
    %8802 = vmatprep.subr.bf16.mxu0 0
    %8803 = vmatpush1.bf16.msra.mxu0 0
    %8804 = vmatprep.subr.bf16.mxu0 0
    %8805 = vmatpush1.bf16.msra.mxu0 0
    %8806 = vmatprep.subr.bf16.mxu0 0
    %8807 = vmatpush1.bf16.msra.mxu0 0
    %8808 = vmatprep.subr.bf16.mxu0 0
    %8809 = vmatpush1.bf16.msra.mxu0 0
    %8810 = vmatprep.mubr.bf16.mxu0 0
    %8811 = vmatmul.mubr.bf16.gmra.mrb[0].mxu0 %v8776
    %v8812 = vpop.f32.mrb[0].mxu0
    %v8813 = vadd.f32 0.0, %v8812
    %v8814 = vpop.f32.mrb[0].mxu0
    %v8815 = vadd.f32 0.0, %v8814
    %v8816 = vpop.f32.mrb[0].mxu0
    %v8817 = vpop.f32.mrb[0].mxu0
    %8818 = vdwg.mxu0
    %8819 = vmatprep.subr.bf16.mxu0 %v8762
    %8820 = vmatpush1.bf16.msra.mxu0 %v8761
    %8821 = vmatprep.subr.bf16.mxu0 %v8766
    %8822 = vmatpush1.bf16.msra.mxu0 %v8765
    %8823 = vmatprep.subr.bf16.mxu0 0
    %8824 = vmatpush1.bf16.msra.mxu0 0
    %8825 = vmatprep.subr.bf16.mxu0 0
    %8826 = vmatpush1.bf16.msra.mxu0 0
    %8827 = vmatprep.subr.bf16.mxu0 0
    %8828 = vmatpush1.bf16.msra.mxu0 0
    %8829 = vmatprep.subr.bf16.mxu0 0
    %8830 = vmatpush1.bf16.msra.mxu0 0
    %8831 = vmatprep.subr.bf16.mxu0 0
    %8832 = vmatpush1.bf16.msra.mxu0 0
    %8833 = vmatprep.subr.bf16.mxu0 0
    %8834 = vmatpush1.bf16.msra.mxu0 0
    %8835 = vmatprep.subr.bf16.mxu0 0
    %8836 = vmatpush1.bf16.msra.mxu0 0
    %8837 = vmatprep.subr.bf16.mxu0 0
    %8838 = vmatpush1.bf16.msra.mxu0 0
    %8839 = vmatprep.subr.bf16.mxu0 0
    %8840 = vmatpush1.bf16.msra.mxu0 0
    %8841 = vmatprep.subr.bf16.mxu0 0
    %8842 = vmatpush1.bf16.msra.mxu0 0
    %8843 = vmatprep.subr.bf16.mxu0 0
    %8844 = vmatpush1.bf16.msra.mxu0 0
    %8845 = vmatprep.subr.bf16.mxu0 0
    %8846 = vmatpush1.bf16.msra.mxu0 0
    %8847 = vmatprep.subr.bf16.mxu0 0
    %8848 = vmatpush1.bf16.msra.mxu0 0
    %8849 = vmatprep.subr.bf16.mxu0 0
    %8850 = vmatpush1.bf16.msra.mxu0 0
    %8851 = vmatprep.mubr.bf16.mxu0 0
    %8852 = vmatmul.mubr.bf16.gmra.mrb[0].mxu0 %v8776
    %v8853 = vpop.f32.mrb[0].mxu0
    %v8854 = vadd.f32 0.0, %v8853
    %v8855 = vpop.f32.mrb[0].mxu0
    %v8856 = vadd.f32 0.0, %v8855
    %v8857 = vpop.f32.mrb[0].mxu0
    %v8858 = vpop.f32.mrb[0].mxu0
    %8859 = vdwg.mxu0
    %v8860 = vadd.f32 %v8721, %v8813
    %v8861 = vadd.f32 %v8722, %v8815
    %v8862 = vadd.f32 %v8723, %v8854
    %v8863 = vadd.f32 %v8724, %v8856
    %s8864 = scalar_lea.vmem [#allocation13], 3136
    %v8865 = vld [vmem:[%s8864] sm:$0xff]
    %v8866 = vld [vmem:[%s8864 + $0x8] sm:$0xff]
    %v8867 = vld [vmem:[%s8864 + $0x10] sm:$0xff]
    %v8868 = vld [vmem:[%s8864 + $0x18] sm:$0xff]
    %v8869 = vld [vmem:[%s8864 + $0x20] sm:$0xff]
    %v8870 = vld [vmem:[%s8864 + $0x28] sm:$0xff]
    %v8871 = vld [vmem:[%s8864 + $0x30] sm:$0xff]
    %v8872 = vld [vmem:[%s8864 + $0x38] sm:$0xff]
    %v8874 = vrot.slane %v8725, 1
    %v8883 = vunpack.c.l.b16 %v8865
    %v8884 = vunpack.c.h.b16 %v8865
    %v8885 = vunpack.c.l.b16 %v8866
    %v8886 = vunpack.c.h.b16 %v8866
    %v8887 = vunpack.c.l.b16 %v8867
    %v8888 = vunpack.c.h.b16 %v8867
    %v8889 = vunpack.c.l.b16 %v8868
    %v8890 = vunpack.c.h.b16 %v8868
    %v8891 = vunpack.c.l.b16 %v8869
    %v8892 = vunpack.c.h.b16 %v8869
    %v8893 = vunpack.c.l.b16 %v8870
    %v8894 = vunpack.c.h.b16 %v8870
    %v8895 = vunpack.c.l.b16 %v8871
    %v8896 = vunpack.c.h.b16 %v8871
    %v8897 = vunpack.c.l.b16 %v8872
    %v8898 = vunpack.c.h.b16 %v8872
    %v8899 = vpack.c.b16 %v8887, %v8883
    %v8900 = vpack.c.b16 %v8888, %v8884
    %v8901 = vpack.c.b16 %v8889, %v8885
    %v8902 = vpack.c.b16 %v8890, %v8886
    %v8903 = vpack.c.b16 %v8895, %v8891
    %v8904 = vpack.c.b16 %v8896, %v8892
    %v8905 = vpack.c.b16 %v8897, %v8893
    %v8906 = vpack.c.b16 %v8898, %v8894
    %v8916 = vsel %vm574, %v8874, 0
    %8918 = vmatprep.subr.bf16.mxu0 %v8900
    %8919 = vmatpush1.bf16.msra.mxu0 %v8899
    %8920 = vmatprep.subr.bf16.mxu0 %v8904
    %8921 = vmatpush1.bf16.msra.mxu0 %v8903
    %8922 = vmatprep.subr.bf16.mxu0 0
    %8923 = vmatpush1.bf16.msra.mxu0 0
    %8924 = vmatprep.subr.bf16.mxu0 0
    %8925 = vmatpush1.bf16.msra.mxu0 0
    %8926 = vmatprep.subr.bf16.mxu0 0
    %8927 = vmatpush1.bf16.msra.mxu0 0
    %8928 = vmatprep.subr.bf16.mxu0 0
    %8929 = vmatpush1.bf16.msra.mxu0 0
    %8930 = vmatprep.subr.bf16.mxu0 0
    %8931 = vmatpush1.bf16.msra.mxu0 0
    %8932 = vmatprep.subr.bf16.mxu0 0
    %8933 = vmatpush1.bf16.msra.mxu0 0
    %8934 = vmatprep.subr.bf16.mxu0 0
    %8935 = vmatpush1.bf16.msra.mxu0 0
    %8936 = vmatprep.subr.bf16.mxu0 0
    %8937 = vmatpush1.bf16.msra.mxu0 0
    %8938 = vmatprep.subr.bf16.mxu0 0
    %8939 = vmatpush1.bf16.msra.mxu0 0
    %8940 = vmatprep.subr.bf16.mxu0 0
    %8941 = vmatpush1.bf16.msra.mxu0 0
    %8942 = vmatprep.subr.bf16.mxu0 0
    %8943 = vmatpush1.bf16.msra.mxu0 0
    %8944 = vmatprep.subr.bf16.mxu0 0
    %8945 = vmatpush1.bf16.msra.mxu0 0
    %8946 = vmatprep.subr.bf16.mxu0 0
    %8947 = vmatpush1.bf16.msra.mxu0 0
    %8948 = vmatprep.subr.bf16.mxu0 0
    %8949 = vmatpush1.bf16.msra.mxu0 0
    %8950 = vmatprep.mubr.bf16.mxu0 0
    %8951 = vmatmul.mubr.bf16.gmra.mrb[0].mxu0 %v8916
    %v8952 = vpop.f32.mrb[0].mxu0
    %v8953 = vadd.f32 0.0, %v8952
    %v8954 = vpop.f32.mrb[0].mxu0
    %v8955 = vadd.f32 0.0, %v8954
    %v8956 = vpop.f32.mrb[0].mxu0
    %v8957 = vpop.f32.mrb[0].mxu0
    %8958 = vdwg.mxu0
    %8959 = vmatprep.subr.bf16.mxu0 %v8902
    %8960 = vmatpush1.bf16.msra.mxu0 %v8901
    %8961 = vmatprep.subr.bf16.mxu0 %v8906
    %8962 = vmatpush1.bf16.msra.mxu0 %v8905
    %8963 = vmatprep.subr.bf16.mxu0 0
    %8964 = vmatpush1.bf16.msra.mxu0 0
    %8965 = vmatprep.subr.bf16.mxu0 0
    %8966 = vmatpush1.bf16.msra.mxu0 0
    %8967 = vmatprep.subr.bf16.mxu0 0
    %8968 = vmatpush1.bf16.msra.mxu0 0
    %8969 = vmatprep.subr.bf16.mxu0 0
    %8970 = vmatpush1.bf16.msra.mxu0 0
    %8971 = vmatprep.subr.bf16.mxu0 0
    %8972 = vmatpush1.bf16.msra.mxu0 0
    %8973 = vmatprep.subr.bf16.mxu0 0
    %8974 = vmatpush1.bf16.msra.mxu0 0
    %8975 = vmatprep.subr.bf16.mxu0 0
    %8976 = vmatpush1.bf16.msra.mxu0 0
    %8977 = vmatprep.subr.bf16.mxu0 0
    %8978 = vmatpush1.bf16.msra.mxu0 0
    %8979 = vmatprep.subr.bf16.mxu0 0
    %8980 = vmatpush1.bf16.msra.mxu0 0
    %8981 = vmatprep.subr.bf16.mxu0 0
    %8982 = vmatpush1.bf16.msra.mxu0 0
    %8983 = vmatprep.subr.bf16.mxu0 0
    %8984 = vmatpush1.bf16.msra.mxu0 0
    %8985 = vmatprep.subr.bf16.mxu0 0
    %8986 = vmatpush1.bf16.msra.mxu0 0
    %8987 = vmatprep.subr.bf16.mxu0 0
    %8988 = vmatpush1.bf16.msra.mxu0 0
    %8989 = vmatprep.subr.bf16.mxu0 0
    %8990 = vmatpush1.bf16.msra.mxu0 0
    %8991 = vmatprep.mubr.bf16.mxu0 0
    %8992 = vmatmul.mubr.bf16.gmra.mrb[0].mxu0 %v8916
    %v8993 = vpop.f32.mrb[0].mxu0
    %v8994 = vadd.f32 0.0, %v8993
    %v8995 = vpop.f32.mrb[0].mxu0
    %v8996 = vadd.f32 0.0, %v8995
    %v8997 = vpop.f32.mrb[0].mxu0
    %v8998 = vpop.f32.mrb[0].mxu0
    %8999 = vdwg.mxu0
    %v9000 = vadd.f32 %v8860, %v8953
    %v9001 = vadd.f32 %v8861, %v8955
    %v9002 = vadd.f32 %v8862, %v8994
    %v9003 = vadd.f32 %v8863, %v8996
    %s9004 = scalar_lea.vmem [#allocation13], 3200
    %v9005 = vld [vmem:[%s9004] sm:$0xff]
    %v9006 = vld [vmem:[%s9004 + $0x8] sm:$0xff]
    %v9007 = vld [vmem:[%s9004 + $0x10] sm:$0xff]
    %v9008 = vld [vmem:[%s9004 + $0x18] sm:$0xff]
    %v9009 = vld [vmem:[%s9004 + $0x20] sm:$0xff]
    %v9010 = vld [vmem:[%s9004 + $0x28] sm:$0xff]
    %v9011 = vld [vmem:[%s9004 + $0x30] sm:$0xff]
    %v9012 = vld [vmem:[%s9004 + $0x38] sm:$0xff]
    %v9013 = vrot.slane %v8725, 2
    %v9022 = vunpack.c.l.b16 %v9005
    %v9023 = vunpack.c.h.b16 %v9005
    %v9024 = vunpack.c.l.b16 %v9006
    %v9025 = vunpack.c.h.b16 %v9006
    %v9026 = vunpack.c.l.b16 %v9007
    %v9027 = vunpack.c.h.b16 %v9007
    %v9028 = vunpack.c.l.b16 %v9008
    %v9029 = vunpack.c.h.b16 %v9008
    %v9030 = vunpack.c.l.b16 %v9009
    %v9031 = vunpack.c.h.b16 %v9009
    %v9032 = vunpack.c.l.b16 %v9010
    %v9033 = vunpack.c.h.b16 %v9010
    %v9034 = vunpack.c.l.b16 %v9011
    %v9035 = vunpack.c.h.b16 %v9011
    %v9036 = vunpack.c.l.b16 %v9012
    %v9037 = vunpack.c.h.b16 %v9012
    %v9038 = vpack.c.b16 %v9026, %v9022
    %v9039 = vpack.c.b16 %v9027, %v9023
    %v9040 = vpack.c.b16 %v9028, %v9024
    %v9041 = vpack.c.b16 %v9029, %v9025
    %v9042 = vpack.c.b16 %v9034, %v9030
    %v9043 = vpack.c.b16 %v9035, %v9031
    %v9044 = vpack.c.b16 %v9036, %v9032
    %v9045 = vpack.c.b16 %v9037, %v9033
    %v9055 = vsel %vm574, %v9013, 0
    %9057 = vmatprep.subr.bf16.mxu0 %v9039
    %9058 = vmatpush1.bf16.msra.mxu0 %v9038
    %9059 = vmatprep.subr.bf16.mxu0 %v9043
    %9060 = vmatpush1.bf16.msra.mxu0 %v9042
    %9061 = vmatprep.subr.bf16.mxu0 0
    %9062 = vmatpush1.bf16.msra.mxu0 0
    %9063 = vmatprep.subr.bf16.mxu0 0
    %9064 = vmatpush1.bf16.msra.mxu0 0
    %9065 = vmatprep.subr.bf16.mxu0 0
    %9066 = vmatpush1.bf16.msra.mxu0 0
    %9067 = vmatprep.subr.bf16.mxu0 0
    %9068 = vmatpush1.bf16.msra.mxu0 0
    %9069 = vmatprep.subr.bf16.mxu0 0
    %9070 = vmatpush1.bf16.msra.mxu0 0
    %9071 = vmatprep.subr.bf16.mxu0 0
    %9072 = vmatpush1.bf16.msra.mxu0 0
    %9073 = vmatprep.subr.bf16.mxu0 0
    %9074 = vmatpush1.bf16.msra.mxu0 0
    %9075 = vmatprep.subr.bf16.mxu0 0
    %9076 = vmatpush1.bf16.msra.mxu0 0
    %9077 = vmatprep.subr.bf16.mxu0 0
    %9078 = vmatpush1.bf16.msra.mxu0 0
    %9079 = vmatprep.subr.bf16.mxu0 0
    %9080 = vmatpush1.bf16.msra.mxu0 0
    %9081 = vmatprep.subr.bf16.mxu0 0
    %9082 = vmatpush1.bf16.msra.mxu0 0
    %9083 = vmatprep.subr.bf16.mxu0 0
    %9084 = vmatpush1.bf16.msra.mxu0 0
    %9085 = vmatprep.subr.bf16.mxu0 0
    %9086 = vmatpush1.bf16.msra.mxu0 0
    %9087 = vmatprep.subr.bf16.mxu0 0
    %9088 = vmatpush1.bf16.msra.mxu0 0
    %9089 = vmatprep.mubr.bf16.mxu0 0
    %9090 = vmatmul.mubr.bf16.gmra.mrb[0].mxu0 %v9055
    %v9091 = vpop.f32.mrb[0].mxu0
    %v9092 = vadd.f32 0.0, %v9091
    %v9093 = vpop.f32.mrb[0].mxu0
    %v9094 = vadd.f32 0.0, %v9093
    %v9095 = vpop.f32.mrb[0].mxu0
    %v9096 = vpop.f32.mrb[0].mxu0
    %9097 = vdwg.mxu0
    %9098 = vmatprep.subr.bf16.mxu0 %v9041
    %9099 = vmatpush1.bf16.msra.mxu0 %v9040
    %9100 = vmatprep.subr.bf16.mxu0 %v9045
    %9101 = vmatpush1.bf16.msra.mxu0 %v9044
    %9102 = vmatprep.subr.bf16.mxu0 0
    %9103 = vmatpush1.bf16.msra.mxu0 0
    %9104 = vmatprep.subr.bf16.mxu0 0
    %9105 = vmatpush1.bf16.msra.mxu0 0
    %9106 = vmatprep.subr.bf16.mxu0 0
    %9107 = vmatpush1.bf16.msra.mxu0 0
    %9108 = vmatprep.subr.bf16.mxu0 0
    %9109 = vmatpush1.bf16.msra.mxu0 0
    %9110 = vmatprep.subr.bf16.mxu0 0
    %9111 = vmatpush1.bf16.msra.mxu0 0
    %9112 = vmatprep.subr.bf16.mxu0 0
    %9113 = vmatpush1.bf16.msra.mxu0 0
    %9114 = vmatprep.subr.bf16.mxu0 0
    %9115 = vmatpush1.bf16.msra.mxu0 0
    %9116 = vmatprep.subr.bf16.mxu0 0
    %9117 = vmatpush1.bf16.msra.mxu0 0
    %9118 = vmatprep.subr.bf16.mxu0 0
    %9119 = vmatpush1.bf16.msra.mxu0 0
    %9120 = vmatprep.subr.bf16.mxu0 0
    %9121 = vmatpush1.bf16.msra.mxu0 0
    %9122 = vmatprep.subr.bf16.mxu0 0
    %9123 = vmatpush1.bf16.msra.mxu0 0
    %9124 = vmatprep.subr.bf16.mxu0 0
    %9125 = vmatpush1.bf16.msra.mxu0 0
    %9126 = vmatprep.subr.bf16.mxu0 0
    %9127 = vmatpush1.bf16.msra.mxu0 0
    %9128 = vmatprep.subr.bf16.mxu0 0
    %9129 = vmatpush1.bf16.msra.mxu0 0
    %9130 = vmatprep.mubr.bf16.mxu0 0
    %9131 = vmatmul.mubr.bf16.gmra.mrb[0].mxu0 %v9055
    %v9132 = vpop.f32.mrb[0].mxu0
    %v9133 = vadd.f32 0.0, %v9132
    %v9134 = vpop.f32.mrb[0].mxu0
    %v9135 = vadd.f32 0.0, %v9134
    %v9136 = vpop.f32.mrb[0].mxu0
    %v9137 = vpop.f32.mrb[0].mxu0
    %9138 = vdwg.mxu0
    %v9139 = vadd.f32 %v9000, %v9092
    %v9140 = vadd.f32 %v9001, %v9094
    %v9141 = vadd.f32 %v9002, %v9133
    %v9142 = vadd.f32 %v9003, %v9135
    %s9143 = scalar_lea.vmem [#allocation13], 3264
    %v9144 = vld [vmem:[%s9143] sm:$0xff]
    %v9145 = vld [vmem:[%s9143 + $0x8] sm:$0xff]
    %v9146 = vld [vmem:[%s9143 + $0x10] sm:$0xff]
    %v9147 = vld [vmem:[%s9143 + $0x18] sm:$0xff]
    %v9148 = vld [vmem:[%s9143 + $0x20] sm:$0xff]
    %v9149 = vld [vmem:[%s9143 + $0x28] sm:$0xff]
    %v9150 = vld [vmem:[%s9143 + $0x30] sm:$0xff]
    %v9151 = vld [vmem:[%s9143 + $0x38] sm:$0xff]
    %v9152 = vrot.slane %v8725, 3
    %v9161 = vunpack.c.l.b16 %v9144
    %v9162 = vunpack.c.h.b16 %v9144
    %v9163 = vunpack.c.l.b16 %v9145
    %v9164 = vunpack.c.h.b16 %v9145
    %v9165 = vunpack.c.l.b16 %v9146
    %v9166 = vunpack.c.h.b16 %v9146
    %v9167 = vunpack.c.l.b16 %v9147
    %v9168 = vunpack.c.h.b16 %v9147
    %v9169 = vunpack.c.l.b16 %v9148
    %v9170 = vunpack.c.h.b16 %v9148
    %v9171 = vunpack.c.l.b16 %v9149
    %v9172 = vunpack.c.h.b16 %v9149
    %v9173 = vunpack.c.l.b16 %v9150
    %v9174 = vunpack.c.h.b16 %v9150
    %v9175 = vunpack.c.l.b16 %v9151
    %v9176 = vunpack.c.h.b16 %v9151
    %v9177 = vpack.c.b16 %v9165, %v9161
    %v9178 = vpack.c.b16 %v9166, %v9162
    %v9179 = vpack.c.b16 %v9167, %v9163
    %v9180 = vpack.c.b16 %v9168, %v9164
    %v9181 = vpack.c.b16 %v9173, %v9169
    %v9182 = vpack.c.b16 %v9174, %v9170
    %v9183 = vpack.c.b16 %v9175, %v9171
    %v9184 = vpack.c.b16 %v9176, %v9172
    %v9194 = vsel %vm574, %v9152, 0
    %9196 = vmatprep.subr.bf16.mxu0 %v9178
    %9197 = vmatpush1.bf16.msra.mxu0 %v9177
    %9198 = vmatprep.subr.bf16.mxu0 %v9182
    %9199 = vmatpush1.bf16.msra.mxu0 %v9181
    %9200 = vmatprep.subr.bf16.mxu0 0
    %9201 = vmatpush1.bf16.msra.mxu0 0
    %9202 = vmatprep.subr.bf16.mxu0 0
    %9203 = vmatpush1.bf16.msra.mxu0 0
    %9204 = vmatprep.subr.bf16.mxu0 0
    %9205 = vmatpush1.bf16.msra.mxu0 0
    %9206 = vmatprep.subr.bf16.mxu0 0
    %9207 = vmatpush1.bf16.msra.mxu0 0
    %9208 = vmatprep.subr.bf16.mxu0 0
    %9209 = vmatpush1.bf16.msra.mxu0 0
    %9210 = vmatprep.subr.bf16.mxu0 0
    %9211 = vmatpush1.bf16.msra.mxu0 0
    %9212 = vmatprep.subr.bf16.mxu0 0
    %9213 = vmatpush1.bf16.msra.mxu0 0
    %9214 = vmatprep.subr.bf16.mxu0 0
    %9215 = vmatpush1.bf16.msra.mxu0 0
    %9216 = vmatprep.subr.bf16.mxu0 0
    %9217 = vmatpush1.bf16.msra.mxu0 0
    %9218 = vmatprep.subr.bf16.mxu0 0
    %9219 = vmatpush1.bf16.msra.mxu0 0
    %9220 = vmatprep.subr.bf16.mxu0 0
    %9221 = vmatpush1.bf16.msra.mxu0 0
    %9222 = vmatprep.subr.bf16.mxu0 0
    %9223 = vmatpush1.bf16.msra.mxu0 0
    %9224 = vmatprep.subr.bf16.mxu0 0
    %9225 = vmatpush1.bf16.msra.mxu0 0
    %9226 = vmatprep.subr.bf16.mxu0 0
    %9227 = vmatpush1.bf16.msra.mxu0 0
    %9228 = vmatprep.mubr.bf16.mxu0 0
    %9229 = vmatmul.mubr.bf16.gmra.mrb[0].mxu0 %v9194
    %v9230 = vpop.f32.mrb[0].mxu0
    %v9231 = vadd.f32 0.0, %v9230
    %v9232 = vpop.f32.mrb[0].mxu0
    %v9233 = vadd.f32 0.0, %v9232
    %v9234 = vpop.f32.mrb[0].mxu0
    %v9235 = vpop.f32.mrb[0].mxu0
    %9236 = vdwg.mxu0
    %9237 = vmatprep.subr.bf16.mxu0 %v9180
    %9238 = vmatpush1.bf16.msra.mxu0 %v9179
    %9239 = vmatprep.subr.bf16.mxu0 %v9184
    %9240 = vmatpush1.bf16.msra.mxu0 %v9183
    %9241 = vmatprep.subr.bf16.mxu0 0
    %9242 = vmatpush1.bf16.msra.mxu0 0
    %9243 = vmatprep.subr.bf16.mxu0 0
    %9244 = vmatpush1.bf16.msra.mxu0 0
    %9245 = vmatprep.subr.bf16.mxu0 0
    %9246 = vmatpush1.bf16.msra.mxu0 0
    %9247 = vmatprep.subr.bf16.mxu0 0
    %9248 = vmatpush1.bf16.msra.mxu0 0
    %9249 = vmatprep.subr.bf16.mxu0 0
    %9250 = vmatpush1.bf16.msra.mxu0 0
    %9251 = vmatprep.subr.bf16.mxu0 0
    %9252 = vmatpush1.bf16.msra.mxu0 0
    %9253 = vmatprep.subr.bf16.mxu0 0
    %9254 = vmatpush1.bf16.msra.mxu0 0
    %9255 = vmatprep.subr.bf16.mxu0 0
    %9256 = vmatpush1.bf16.msra.mxu0 0
    %9257 = vmatprep.subr.bf16.mxu0 0
    %9258 = vmatpush1.bf16.msra.mxu0 0
    %9259 = vmatprep.subr.bf16.mxu0 0
    %9260 = vmatpush1.bf16.msra.mxu0 0
    %9261 = vmatprep.subr.bf16.mxu0 0
    %9262 = vmatpush1.bf16.msra.mxu0 0
    %9263 = vmatprep.subr.bf16.mxu0 0
    %9264 = vmatpush1.bf16.msra.mxu0 0
    %9265 = vmatprep.subr.bf16.mxu0 0
    %9266 = vmatpush1.bf16.msra.mxu0 0
    %9267 = vmatprep.subr.bf16.mxu0 0
    %9268 = vmatpush1.bf16.msra.mxu0 0
    %9269 = vmatprep.mubr.bf16.mxu0 0
    %9270 = vmatmul.mubr.bf16.gmra.mrb[0].mxu0 %v9194
    %v9271 = vpop.f32.mrb[0].mxu0
    %v9272 = vadd.f32 0.0, %v9271
    %v9273 = vpop.f32.mrb[0].mxu0
    %v9274 = vadd.f32 0.0, %v9273
    %v9275 = vpop.f32.mrb[0].mxu0
    %v9276 = vpop.f32.mrb[0].mxu0
    %9277 = vdwg.mxu0
    %v9278 = vadd.f32 %v9139, %v9231
    %v9279 = vadd.f32 %v9140, %v9233
    %v9280 = vadd.f32 %v9141, %v9272
    %v9281 = vadd.f32 %v9142, %v9274
    %v9282 = vpack.c.bf16 %v2048, %v2048
    %s9283 = scalar_lea.vmem [#allocation13], 3328
    %v9284 = vld [vmem:[%s9283] sm:$0xff]
    %v9285 = vld [vmem:[%s9283 + $0x8] sm:$0xff]
    %v9286 = vld [vmem:[%s9283 + $0x10] sm:$0xff]
    %v9287 = vld [vmem:[%s9283 + $0x18] sm:$0xff]
    %v9288 = vld [vmem:[%s9283 + $0x20] sm:$0xff]
    %v9289 = vld [vmem:[%s9283 + $0x28] sm:$0xff]
    %v9290 = vld [vmem:[%s9283 + $0x30] sm:$0xff]
    %v9291 = vld [vmem:[%s9283 + $0x38] sm:$0xff]
    %v9300 = vunpack.c.l.b16 %v9284
    %v9301 = vunpack.c.h.b16 %v9284
    %v9302 = vunpack.c.l.b16 %v9285
    %v9303 = vunpack.c.h.b16 %v9285
    %v9304 = vunpack.c.l.b16 %v9286
    %v9305 = vunpack.c.h.b16 %v9286
    %v9306 = vunpack.c.l.b16 %v9287
    %v9307 = vunpack.c.h.b16 %v9287
    %v9308 = vunpack.c.l.b16 %v9288
    %v9309 = vunpack.c.h.b16 %v9288
    %v9310 = vunpack.c.l.b16 %v9289
    %v9311 = vunpack.c.h.b16 %v9289
    %v9312 = vunpack.c.l.b16 %v9290
    %v9313 = vunpack.c.h.b16 %v9290
    %v9314 = vunpack.c.l.b16 %v9291
    %v9315 = vunpack.c.h.b16 %v9291
    %v9316 = vpack.c.b16 %v9304, %v9300
    %v9317 = vpack.c.b16 %v9305, %v9301
    %v9318 = vpack.c.b16 %v9306, %v9302
    %v9319 = vpack.c.b16 %v9307, %v9303
    %v9320 = vpack.c.b16 %v9312, %v9308
    %v9321 = vpack.c.b16 %v9313, %v9309
    %v9322 = vpack.c.b16 %v9314, %v9310
    %v9323 = vpack.c.b16 %v9315, %v9311
    %v9333 = vsel %vm574, %v9282, 0
    %9335 = vmatprep.subr.bf16.mxu0 %v9317
    %9336 = vmatpush1.bf16.msra.mxu0 %v9316
    %9337 = vmatprep.subr.bf16.mxu0 %v9321
    %9338 = vmatpush1.bf16.msra.mxu0 %v9320
    %9339 = vmatprep.subr.bf16.mxu0 0
    %9340 = vmatpush1.bf16.msra.mxu0 0
    %9341 = vmatprep.subr.bf16.mxu0 0
    %9342 = vmatpush1.bf16.msra.mxu0 0
    %9343 = vmatprep.subr.bf16.mxu0 0
    %9344 = vmatpush1.bf16.msra.mxu0 0
    %9345 = vmatprep.subr.bf16.mxu0 0
    %9346 = vmatpush1.bf16.msra.mxu0 0
    %9347 = vmatprep.subr.bf16.mxu0 0
    %9348 = vmatpush1.bf16.msra.mxu0 0
    %9349 = vmatprep.subr.bf16.mxu0 0
    %9350 = vmatpush1.bf16.msra.mxu0 0
    %9351 = vmatprep.subr.bf16.mxu0 0
    %9352 = vmatpush1.bf16.msra.mxu0 0
    %9353 = vmatprep.subr.bf16.mxu0 0
    %9354 = vmatpush1.bf16.msra.mxu0 0
    %9355 = vmatprep.subr.bf16.mxu0 0
    %9356 = vmatpush1.bf16.msra.mxu0 0
    %9357 = vmatprep.subr.bf16.mxu0 0
    %9358 = vmatpush1.bf16.msra.mxu0 0
    %9359 = vmatprep.subr.bf16.mxu0 0
    %9360 = vmatpush1.bf16.msra.mxu0 0
    %9361 = vmatprep.subr.bf16.mxu0 0
    %9362 = vmatpush1.bf16.msra.mxu0 0
    %9363 = vmatprep.subr.bf16.mxu0 0
    %9364 = vmatpush1.bf16.msra.mxu0 0
    %9365 = vmatprep.subr.bf16.mxu0 0
    %9366 = vmatpush1.bf16.msra.mxu0 0
    %9367 = vmatprep.mubr.bf16.mxu0 0
    %9368 = vmatmul.mubr.bf16.gmra.mrb[0].mxu0 %v9333
    %v9369 = vpop.f32.mrb[0].mxu0
    %v9370 = vadd.f32 0.0, %v9369
    %v9371 = vpop.f32.mrb[0].mxu0
    %v9372 = vadd.f32 0.0, %v9371
    %v9373 = vpop.f32.mrb[0].mxu0
    %v9374 = vpop.f32.mrb[0].mxu0
    %9375 = vdwg.mxu0
    %9376 = vmatprep.subr.bf16.mxu0 %v9319
    %9377 = vmatpush1.bf16.msra.mxu0 %v9318
    %9378 = vmatprep.subr.bf16.mxu0 %v9323
    %9379 = vmatpush1.bf16.msra.mxu0 %v9322
    %9380 = vmatprep.subr.bf16.mxu0 0
    %9381 = vmatpush1.bf16.msra.mxu0 0
    %9382 = vmatprep.subr.bf16.mxu0 0
    %9383 = vmatpush1.bf16.msra.mxu0 0
    %9384 = vmatprep.subr.bf16.mxu0 0
    %9385 = vmatpush1.bf16.msra.mxu0 0
    %9386 = vmatprep.subr.bf16.mxu0 0
    %9387 = vmatpush1.bf16.msra.mxu0 0
    %9388 = vmatprep.subr.bf16.mxu0 0
    %9389 = vmatpush1.bf16.msra.mxu0 0
    %9390 = vmatprep.subr.bf16.mxu0 0
    %9391 = vmatpush1.bf16.msra.mxu0 0
    %9392 = vmatprep.subr.bf16.mxu0 0
    %9393 = vmatpush1.bf16.msra.mxu0 0
    %9394 = vmatprep.subr.bf16.mxu0 0
    %9395 = vmatpush1.bf16.msra.mxu0 0
    %9396 = vmatprep.subr.bf16.mxu0 0
    %9397 = vmatpush1.bf16.msra.mxu0 0
    %9398 = vmatprep.subr.bf16.mxu0 0
    %9399 = vmatpush1.bf16.msra.mxu0 0
    %9400 = vmatprep.subr.bf16.mxu0 0
    %9401 = vmatpush1.bf16.msra.mxu0 0
    %9402 = vmatprep.subr.bf16.mxu0 0
    %9403 = vmatpush1.bf16.msra.mxu0 0
    %9404 = vmatprep.subr.bf16.mxu0 0
    %9405 = vmatpush1.bf16.msra.mxu0 0
    %9406 = vmatprep.subr.bf16.mxu0 0
    %9407 = vmatpush1.bf16.msra.mxu0 0
    %9408 = vmatprep.mubr.bf16.mxu0 0
    %9409 = vmatmul.mubr.bf16.gmra.mrb[0].mxu0 %v9333
    %v9410 = vpop.f32.mrb[0].mxu0
    %v9411 = vadd.f32 0.0, %v9410
    %v9412 = vpop.f32.mrb[0].mxu0
    %v9413 = vadd.f32 0.0, %v9412
    %v9414 = vpop.f32.mrb[0].mxu0
    %v9415 = vpop.f32.mrb[0].mxu0
    %9416 = vdwg.mxu0
    %v9417 = vadd.f32 %v9278, %v9370
    %v9418 = vadd.f32 %v9279, %v9372
    %v9419 = vadd.f32 %v9280, %v9411
    %v9420 = vadd.f32 %v9281, %v9413
    %s9421 = scalar_lea.vmem [#allocation13], 3392
    %v9422 = vld [vmem:[%s9421] sm:$0xff]
    %v9423 = vld [vmem:[%s9421 + $0x8] sm:$0xff]
    %v9424 = vld [vmem:[%s9421 + $0x10] sm:$0xff]
    %v9425 = vld [vmem:[%s9421 + $0x18] sm:$0xff]
    %v9426 = vld [vmem:[%s9421 + $0x20] sm:$0xff]
    %v9427 = vld [vmem:[%s9421 + $0x28] sm:$0xff]
    %v9428 = vld [vmem:[%s9421 + $0x30] sm:$0xff]
    %v9429 = vld [vmem:[%s9421 + $0x38] sm:$0xff]
    %v9431 = vrot.slane %v9282, 1
    %v9440 = vunpack.c.l.b16 %v9422
    %v9441 = vunpack.c.h.b16 %v9422
    %v9442 = vunpack.c.l.b16 %v9423
    %v9443 = vunpack.c.h.b16 %v9423
    %v9444 = vunpack.c.l.b16 %v9424
    %v9445 = vunpack.c.h.b16 %v9424
    %v9446 = vunpack.c.l.b16 %v9425
    %v9447 = vunpack.c.h.b16 %v9425
    %v9448 = vunpack.c.l.b16 %v9426
    %v9449 = vunpack.c.h.b16 %v9426
    %v9450 = vunpack.c.l.b16 %v9427
    %v9451 = vunpack.c.h.b16 %v9427
    %v9452 = vunpack.c.l.b16 %v9428
    %v9453 = vunpack.c.h.b16 %v9428
    %v9454 = vunpack.c.l.b16 %v9429
    %v9455 = vunpack.c.h.b16 %v9429
    %v9456 = vpack.c.b16 %v9444, %v9440
    %v9457 = vpack.c.b16 %v9445, %v9441
    %v9458 = vpack.c.b16 %v9446, %v9442
    %v9459 = vpack.c.b16 %v9447, %v9443
    %v9460 = vpack.c.b16 %v9452, %v9448
    %v9461 = vpack.c.b16 %v9453, %v9449
    %v9462 = vpack.c.b16 %v9454, %v9450
    %v9463 = vpack.c.b16 %v9455, %v9451
    %v9473 = vsel %vm574, %v9431, 0
    %9475 = vmatprep.subr.bf16.mxu0 %v9457
    %9476 = vmatpush1.bf16.msra.mxu0 %v9456
    %9477 = vmatprep.subr.bf16.mxu0 %v9461
    %9478 = vmatpush1.bf16.msra.mxu0 %v9460
    %9479 = vmatprep.subr.bf16.mxu0 0
    %9480 = vmatpush1.bf16.msra.mxu0 0
    %9481 = vmatprep.subr.bf16.mxu0 0
    %9482 = vmatpush1.bf16.msra.mxu0 0
    %9483 = vmatprep.subr.bf16.mxu0 0
    %9484 = vmatpush1.bf16.msra.mxu0 0
    %9485 = vmatprep.subr.bf16.mxu0 0
    %9486 = vmatpush1.bf16.msra.mxu0 0
    %9487 = vmatprep.subr.bf16.mxu0 0
    %9488 = vmatpush1.bf16.msra.mxu0 0
    %9489 = vmatprep.subr.bf16.mxu0 0
    %9490 = vmatpush1.bf16.msra.mxu0 0
    %9491 = vmatprep.subr.bf16.mxu0 0
    %9492 = vmatpush1.bf16.msra.mxu0 0
    %9493 = vmatprep.subr.bf16.mxu0 0
    %9494 = vmatpush1.bf16.msra.mxu0 0
    %9495 = vmatprep.subr.bf16.mxu0 0
    %9496 = vmatpush1.bf16.msra.mxu0 0
    %9497 = vmatprep.subr.bf16.mxu0 0
    %9498 = vmatpush1.bf16.msra.mxu0 0
    %9499 = vmatprep.subr.bf16.mxu0 0
    %9500 = vmatpush1.bf16.msra.mxu0 0
    %9501 = vmatprep.subr.bf16.mxu0 0
    %9502 = vmatpush1.bf16.msra.mxu0 0
    %9503 = vmatprep.subr.bf16.mxu0 0
    %9504 = vmatpush1.bf16.msra.mxu0 0
    %9505 = vmatprep.subr.bf16.mxu0 0
    %9506 = vmatpush1.bf16.msra.mxu0 0
    %9507 = vmatprep.mubr.bf16.mxu0 0
    %9508 = vmatmul.mubr.bf16.gmra.mrb[0].mxu0 %v9473
    %v9509 = vpop.f32.mrb[0].mxu0
    %v9510 = vadd.f32 0.0, %v9509
    %v9511 = vpop.f32.mrb[0].mxu0
    %v9512 = vadd.f32 0.0, %v9511
    %v9513 = vpop.f32.mrb[0].mxu0
    %v9514 = vpop.f32.mrb[0].mxu0
    %9515 = vdwg.mxu0
    %9516 = vmatprep.subr.bf16.mxu0 %v9459
    %9517 = vmatpush1.bf16.msra.mxu0 %v9458
    %9518 = vmatprep.subr.bf16.mxu0 %v9463
    %9519 = vmatpush1.bf16.msra.mxu0 %v9462
    %9520 = vmatprep.subr.bf16.mxu0 0
    %9521 = vmatpush1.bf16.msra.mxu0 0
    %9522 = vmatprep.subr.bf16.mxu0 0
    %9523 = vmatpush1.bf16.msra.mxu0 0
    %9524 = vmatprep.subr.bf16.mxu0 0
    %9525 = vmatpush1.bf16.msra.mxu0 0
    %9526 = vmatprep.subr.bf16.mxu0 0
    %9527 = vmatpush1.bf16.msra.mxu0 0
    %9528 = vmatprep.subr.bf16.mxu0 0
    %9529 = vmatpush1.bf16.msra.mxu0 0
    %9530 = vmatprep.subr.bf16.mxu0 0
    %9531 = vmatpush1.bf16.msra.mxu0 0
    %9532 = vmatprep.subr.bf16.mxu0 0
    %9533 = vmatpush1.bf16.msra.mxu0 0
    %9534 = vmatprep.subr.bf16.mxu0 0
    %9535 = vmatpush1.bf16.msra.mxu0 0
    %9536 = vmatprep.subr.bf16.mxu0 0
    %9537 = vmatpush1.bf16.msra.mxu0 0
    %9538 = vmatprep.subr.bf16.mxu0 0
    %9539 = vmatpush1.bf16.msra.mxu0 0
    %9540 = vmatprep.subr.bf16.mxu0 0
    %9541 = vmatpush1.bf16.msra.mxu0 0
    %9542 = vmatprep.subr.bf16.mxu0 0
    %9543 = vmatpush1.bf16.msra.mxu0 0
    %9544 = vmatprep.subr.bf16.mxu0 0
    %9545 = vmatpush1.bf16.msra.mxu0 0
    %9546 = vmatprep.subr.bf16.mxu0 0
    %9547 = vmatpush1.bf16.msra.mxu0 0
    %9548 = vmatprep.mubr.bf16.mxu0 0
    %9549 = vmatmul.mubr.bf16.gmra.mrb[0].mxu0 %v9473
    %v9550 = vpop.f32.mrb[0].mxu0
    %v9551 = vadd.f32 0.0, %v9550
    %v9552 = vpop.f32.mrb[0].mxu0
    %v9553 = vadd.f32 0.0, %v9552
    %v9554 = vpop.f32.mrb[0].mxu0
    %v9555 = vpop.f32.mrb[0].mxu0
    %9556 = vdwg.mxu0
    %v9557 = vadd.f32 %v9417, %v9510
    %v9558 = vadd.f32 %v9418, %v9512
    %v9559 = vadd.f32 %v9419, %v9551
    %v9560 = vadd.f32 %v9420, %v9553
    %s9561 = scalar_lea.vmem [#allocation13], 3456
    %v9562 = vld [vmem:[%s9561] sm:$0xff]
    %v9563 = vld [vmem:[%s9561 + $0x8] sm:$0xff]
    %v9564 = vld [vmem:[%s9561 + $0x10] sm:$0xff]
    %v9565 = vld [vmem:[%s9561 + $0x18] sm:$0xff]
    %v9566 = vld [vmem:[%s9561 + $0x20] sm:$0xff]
    %v9567 = vld [vmem:[%s9561 + $0x28] sm:$0xff]
    %v9568 = vld [vmem:[%s9561 + $0x30] sm:$0xff]
    %v9569 = vld [vmem:[%s9561 + $0x38] sm:$0xff]
    %v9570 = vrot.slane %v9282, 2
    %v9579 = vunpack.c.l.b16 %v9562
    %v9580 = vunpack.c.h.b16 %v9562
    %v9581 = vunpack.c.l.b16 %v9563
    %v9582 = vunpack.c.h.b16 %v9563
    %v9583 = vunpack.c.l.b16 %v9564
    %v9584 = vunpack.c.h.b16 %v9564
    %v9585 = vunpack.c.l.b16 %v9565
    %v9586 = vunpack.c.h.b16 %v9565
    %v9587 = vunpack.c.l.b16 %v9566
    %v9588 = vunpack.c.h.b16 %v9566
    %v9589 = vunpack.c.l.b16 %v9567
    %v9590 = vunpack.c.h.b16 %v9567
    %v9591 = vunpack.c.l.b16 %v9568
    %v9592 = vunpack.c.h.b16 %v9568
    %v9593 = vunpack.c.l.b16 %v9569
    %v9594 = vunpack.c.h.b16 %v9569
    %v9595 = vpack.c.b16 %v9583, %v9579
    %v9596 = vpack.c.b16 %v9584, %v9580
    %v9597 = vpack.c.b16 %v9585, %v9581
    %v9598 = vpack.c.b16 %v9586, %v9582
    %v9599 = vpack.c.b16 %v9591, %v9587
    %v9600 = vpack.c.b16 %v9592, %v9588
    %v9601 = vpack.c.b16 %v9593, %v9589
    %v9602 = vpack.c.b16 %v9594, %v9590
    %v9612 = vsel %vm574, %v9570, 0
    %9614 = vmatprep.subr.bf16.mxu0 %v9596
    %9615 = vmatpush1.bf16.msra.mxu0 %v9595
    %9616 = vmatprep.subr.bf16.mxu0 %v9600
    %9617 = vmatpush1.bf16.msra.mxu0 %v9599
    %9618 = vmatprep.subr.bf16.mxu0 0
    %9619 = vmatpush1.bf16.msra.mxu0 0
    %9620 = vmatprep.subr.bf16.mxu0 0
    %9621 = vmatpush1.bf16.msra.mxu0 0
    %9622 = vmatprep.subr.bf16.mxu0 0
    %9623 = vmatpush1.bf16.msra.mxu0 0
    %9624 = vmatprep.subr.bf16.mxu0 0
    %9625 = vmatpush1.bf16.msra.mxu0 0
    %9626 = vmatprep.subr.bf16.mxu0 0
    %9627 = vmatpush1.bf16.msra.mxu0 0
    %9628 = vmatprep.subr.bf16.mxu0 0
    %9629 = vmatpush1.bf16.msra.mxu0 0
    %9630 = vmatprep.subr.bf16.mxu0 0
    %9631 = vmatpush1.bf16.msra.mxu0 0
    %9632 = vmatprep.subr.bf16.mxu0 0
    %9633 = vmatpush1.bf16.msra.mxu0 0
    %9634 = vmatprep.subr.bf16.mxu0 0
    %9635 = vmatpush1.bf16.msra.mxu0 0
    %9636 = vmatprep.subr.bf16.mxu0 0
    %9637 = vmatpush1.bf16.msra.mxu0 0
    %9638 = vmatprep.subr.bf16.mxu0 0
    %9639 = vmatpush1.bf16.msra.mxu0 0
    %9640 = vmatprep.subr.bf16.mxu0 0
    %9641 = vmatpush1.bf16.msra.mxu0 0
    %9642 = vmatprep.subr.bf16.mxu0 0
    %9643 = vmatpush1.bf16.msra.mxu0 0
    %9644 = vmatprep.subr.bf16.mxu0 0
    %9645 = vmatpush1.bf16.msra.mxu0 0
    %9646 = vmatprep.mubr.bf16.mxu0 0
    %9647 = vmatmul.mubr.bf16.gmra.mrb[0].mxu0 %v9612
    %v9648 = vpop.f32.mrb[0].mxu0
    %v9649 = vadd.f32 0.0, %v9648
    %v9650 = vpop.f32.mrb[0].mxu0
    %v9651 = vadd.f32 0.0, %v9650
    %v9652 = vpop.f32.mrb[0].mxu0
    %v9653 = vpop.f32.mrb[0].mxu0
    %9654 = vdwg.mxu0
    %9655 = vmatprep.subr.bf16.mxu0 %v9598
    %9656 = vmatpush1.bf16.msra.mxu0 %v9597
    %9657 = vmatprep.subr.bf16.mxu0 %v9602
    %9658 = vmatpush1.bf16.msra.mxu0 %v9601
    %9659 = vmatprep.subr.bf16.mxu0 0
    %9660 = vmatpush1.bf16.msra.mxu0 0
    %9661 = vmatprep.subr.bf16.mxu0 0
    %9662 = vmatpush1.bf16.msra.mxu0 0
    %9663 = vmatprep.subr.bf16.mxu0 0
    %9664 = vmatpush1.bf16.msra.mxu0 0
    %9665 = vmatprep.subr.bf16.mxu0 0
    %9666 = vmatpush1.bf16.msra.mxu0 0
    %9667 = vmatprep.subr.bf16.mxu0 0
    %9668 = vmatpush1.bf16.msra.mxu0 0
    %9669 = vmatprep.subr.bf16.mxu0 0
    %9670 = vmatpush1.bf16.msra.mxu0 0
    %9671 = vmatprep.subr.bf16.mxu0 0
    %9672 = vmatpush1.bf16.msra.mxu0 0
    %9673 = vmatprep.subr.bf16.mxu0 0
    %9674 = vmatpush1.bf16.msra.mxu0 0
    %9675 = vmatprep.subr.bf16.mxu0 0
    %9676 = vmatpush1.bf16.msra.mxu0 0
    %9677 = vmatprep.subr.bf16.mxu0 0
    %9678 = vmatpush1.bf16.msra.mxu0 0
    %9679 = vmatprep.subr.bf16.mxu0 0
    %9680 = vmatpush1.bf16.msra.mxu0 0
    %9681 = vmatprep.subr.bf16.mxu0 0
    %9682 = vmatpush1.bf16.msra.mxu0 0
    %9683 = vmatprep.subr.bf16.mxu0 0
    %9684 = vmatpush1.bf16.msra.mxu0 0
    %9685 = vmatprep.subr.bf16.mxu0 0
    %9686 = vmatpush1.bf16.msra.mxu0 0
    %9687 = vmatprep.mubr.bf16.mxu0 0
    %9688 = vmatmul.mubr.bf16.gmra.mrb[0].mxu0 %v9612
    %v9689 = vpop.f32.mrb[0].mxu0
    %v9690 = vadd.f32 0.0, %v9689
    %v9691 = vpop.f32.mrb[0].mxu0
    %v9692 = vadd.f32 0.0, %v9691
    %v9693 = vpop.f32.mrb[0].mxu0
    %v9694 = vpop.f32.mrb[0].mxu0
    %9695 = vdwg.mxu0
    %v9696 = vadd.f32 %v9557, %v9649
    %v9697 = vadd.f32 %v9558, %v9651
    %v9698 = vadd.f32 %v9559, %v9690
    %v9699 = vadd.f32 %v9560, %v9692
    %s9700 = scalar_lea.vmem [#allocation13], 3520
    %v9701 = vld [vmem:[%s9700] sm:$0xff]
    %v9702 = vld [vmem:[%s9700 + $0x8] sm:$0xff]
    %v9703 = vld [vmem:[%s9700 + $0x10] sm:$0xff]
    %v9704 = vld [vmem:[%s9700 + $0x18] sm:$0xff]
    %v9705 = vld [vmem:[%s9700 + $0x20] sm:$0xff]
    %v9706 = vld [vmem:[%s9700 + $0x28] sm:$0xff]
    %v9707 = vld [vmem:[%s9700 + $0x30] sm:$0xff]
    %v9708 = vld [vmem:[%s9700 + $0x38] sm:$0xff]
    %v9709 = vrot.slane %v9282, 3
    %v9718 = vunpack.c.l.b16 %v9701
    %v9719 = vunpack.c.h.b16 %v9701
    %v9720 = vunpack.c.l.b16 %v9702
    %v9721 = vunpack.c.h.b16 %v9702
    %v9722 = vunpack.c.l.b16 %v9703
    %v9723 = vunpack.c.h.b16 %v9703
    %v9724 = vunpack.c.l.b16 %v9704
    %v9725 = vunpack.c.h.b16 %v9704
    %v9726 = vunpack.c.l.b16 %v9705
    %v9727 = vunpack.c.h.b16 %v9705
    %v9728 = vunpack.c.l.b16 %v9706
    %v9729 = vunpack.c.h.b16 %v9706
    %v9730 = vunpack.c.l.b16 %v9707
    %v9731 = vunpack.c.h.b16 %v9707
    %v9732 = vunpack.c.l.b16 %v9708
    %v9733 = vunpack.c.h.b16 %v9708
    %v9734 = vpack.c.b16 %v9722, %v9718
    %v9735 = vpack.c.b16 %v9723, %v9719
    %v9736 = vpack.c.b16 %v9724, %v9720
    %v9737 = vpack.c.b16 %v9725, %v9721
    %v9738 = vpack.c.b16 %v9730, %v9726
    %v9739 = vpack.c.b16 %v9731, %v9727
    %v9740 = vpack.c.b16 %v9732, %v9728
    %v9741 = vpack.c.b16 %v9733, %v9729
    %v9751 = vsel %vm574, %v9709, 0
    %9753 = vmatprep.subr.bf16.mxu0 %v9735
    %9754 = vmatpush1.bf16.msra.mxu0 %v9734
    %9755 = vmatprep.subr.bf16.mxu0 %v9739
    %9756 = vmatpush1.bf16.msra.mxu0 %v9738
    %9757 = vmatprep.subr.bf16.mxu0 0
    %9758 = vmatpush1.bf16.msra.mxu0 0
    %9759 = vmatprep.subr.bf16.mxu0 0
    %9760 = vmatpush1.bf16.msra.mxu0 0
    %9761 = vmatprep.subr.bf16.mxu0 0
    %9762 = vmatpush1.bf16.msra.mxu0 0
    %9763 = vmatprep.subr.bf16.mxu0 0
    %9764 = vmatpush1.bf16.msra.mxu0 0
    %9765 = vmatprep.subr.bf16.mxu0 0
    %9766 = vmatpush1.bf16.msra.mxu0 0
    %9767 = vmatprep.subr.bf16.mxu0 0
    %9768 = vmatpush1.bf16.msra.mxu0 0
    %9769 = vmatprep.subr.bf16.mxu0 0
    %9770 = vmatpush1.bf16.msra.mxu0 0
    %9771 = vmatprep.subr.bf16.mxu0 0
    %9772 = vmatpush1.bf16.msra.mxu0 0
    %9773 = vmatprep.subr.bf16.mxu0 0
    %9774 = vmatpush1.bf16.msra.mxu0 0
    %9775 = vmatprep.subr.bf16.mxu0 0
    %9776 = vmatpush1.bf16.msra.mxu0 0
    %9777 = vmatprep.subr.bf16.mxu0 0
    %9778 = vmatpush1.bf16.msra.mxu0 0
    %9779 = vmatprep.subr.bf16.mxu0 0
    %9780 = vmatpush1.bf16.msra.mxu0 0
    %9781 = vmatprep.subr.bf16.mxu0 0
    %9782 = vmatpush1.bf16.msra.mxu0 0
    %9783 = vmatprep.subr.bf16.mxu0 0
    %9784 = vmatpush1.bf16.msra.mxu0 0
    %9785 = vmatprep.mubr.bf16.mxu0 0
    %9786 = vmatmul.mubr.bf16.gmra.mrb[0].mxu0 %v9751
    %v9787 = vpop.f32.mrb[0].mxu0
    %v9788 = vadd.f32 0.0, %v9787
    %v9789 = vpop.f32.mrb[0].mxu0
    %v9790 = vadd.f32 0.0, %v9789
    %v9791 = vpop.f32.mrb[0].mxu0
    %v9792 = vpop.f32.mrb[0].mxu0
    %9793 = vdwg.mxu0
    %9794 = vmatprep.subr.bf16.mxu0 %v9737
    %9795 = vmatpush1.bf16.msra.mxu0 %v9736
    %9796 = vmatprep.subr.bf16.mxu0 %v9741
    %9797 = vmatpush1.bf16.msra.mxu0 %v9740
    %9798 = vmatprep.subr.bf16.mxu0 0
    %9799 = vmatpush1.bf16.msra.mxu0 0
    %9800 = vmatprep.subr.bf16.mxu0 0
    %9801 = vmatpush1.bf16.msra.mxu0 0
    %9802 = vmatprep.subr.bf16.mxu0 0
    %9803 = vmatpush1.bf16.msra.mxu0 0
    %9804 = vmatprep.subr.bf16.mxu0 0
    %9805 = vmatpush1.bf16.msra.mxu0 0
    %9806 = vmatprep.subr.bf16.mxu0 0
    %9807 = vmatpush1.bf16.msra.mxu0 0
    %9808 = vmatprep.subr.bf16.mxu0 0
    %9809 = vmatpush1.bf16.msra.mxu0 0
    %9810 = vmatprep.subr.bf16.mxu0 0
    %9811 = vmatpush1.bf16.msra.mxu0 0
    %9812 = vmatprep.subr.bf16.mxu0 0
    %9813 = vmatpush1.bf16.msra.mxu0 0
    %9814 = vmatprep.subr.bf16.mxu0 0
    %9815 = vmatpush1.bf16.msra.mxu0 0
    %9816 = vmatprep.subr.bf16.mxu0 0
    %9817 = vmatpush1.bf16.msra.mxu0 0
    %9818 = vmatprep.subr.bf16.mxu0 0
    %9819 = vmatpush1.bf16.msra.mxu0 0
    %9820 = vmatprep.subr.bf16.mxu0 0
    %9821 = vmatpush1.bf16.msra.mxu0 0
    %9822 = vmatprep.subr.bf16.mxu0 0
    %9823 = vmatpush1.bf16.msra.mxu0 0
    %9824 = vmatprep.subr.bf16.mxu0 0
    %9825 = vmatpush1.bf16.msra.mxu0 0
    %9826 = vmatprep.mubr.bf16.mxu0 0
    %9827 = vmatmul.mubr.bf16.gmra.mrb[0].mxu0 %v9751
    %v9828 = vpop.f32.mrb[0].mxu0
    %v9829 = vadd.f32 0.0, %v9828
    %v9830 = vpop.f32.mrb[0].mxu0
    %v9831 = vadd.f32 0.0, %v9830
    %v9832 = vpop.f32.mrb[0].mxu0
    %v9833 = vpop.f32.mrb[0].mxu0
    %9834 = vdwg.mxu0
    %v9835 = vadd.f32 %v9696, %v9788
    %v9836 = vadd.f32 %v9697, %v9790
    %v9837 = vadd.f32 %v9698, %v9829
    %v9838 = vadd.f32 %v9699, %v9831
    %v9839 = vpack.c.bf16 %v2049, %v2049
    %s9840 = scalar_lea.vmem [#allocation13], 3584
    %v9841 = vld [vmem:[%s9840] sm:$0xff]
    %v9842 = vld [vmem:[%s9840 + $0x8] sm:$0xff]
    %v9843 = vld [vmem:[%s9840 + $0x10] sm:$0xff]
    %v9844 = vld [vmem:[%s9840 + $0x18] sm:$0xff]
    %v9845 = vld [vmem:[%s9840 + $0x20] sm:$0xff]
    %v9846 = vld [vmem:[%s9840 + $0x28] sm:$0xff]
    %v9847 = vld [vmem:[%s9840 + $0x30] sm:$0xff]
    %v9848 = vld [vmem:[%s9840 + $0x38] sm:$0xff]
    %v9857 = vunpack.c.l.b16 %v9841
    %v9858 = vunpack.c.h.b16 %v9841
    %v9859 = vunpack.c.l.b16 %v9842
    %v9860 = vunpack.c.h.b16 %v9842
    %v9861 = vunpack.c.l.b16 %v9843
    %v9862 = vunpack.c.h.b16 %v9843
    %v9863 = vunpack.c.l.b16 %v9844
    %v9864 = vunpack.c.h.b16 %v9844
    %v9865 = vunpack.c.l.b16 %v9845
    %v9866 = vunpack.c.h.b16 %v9845
    %v9867 = vunpack.c.l.b16 %v9846
    %v9868 = vunpack.c.h.b16 %v9846
    %v9869 = vunpack.c.l.b16 %v9847
    %v9870 = vunpack.c.h.b16 %v9847
    %v9871 = vunpack.c.l.b16 %v9848
    %v9872 = vunpack.c.h.b16 %v9848
    %v9873 = vpack.c.b16 %v9861, %v9857
    %v9874 = vpack.c.b16 %v9862, %v9858
    %v9875 = vpack.c.b16 %v9863, %v9859
    %v9876 = vpack.c.b16 %v9864, %v9860
    %v9877 = vpack.c.b16 %v9869, %v9865
    %v9878 = vpack.c.b16 %v9870, %v9866
    %v9879 = vpack.c.b16 %v9871, %v9867
    %v9880 = vpack.c.b16 %v9872, %v9868
    %v9890 = vsel %vm574, %v9839, 0
    %9892 = vmatprep.subr.bf16.mxu0 %v9874
    %9893 = vmatpush1.bf16.msra.mxu0 %v9873
    %9894 = vmatprep.subr.bf16.mxu0 %v9878
    %9895 = vmatpush1.bf16.msra.mxu0 %v9877
    %9896 = vmatprep.subr.bf16.mxu0 0
    %9897 = vmatpush1.bf16.msra.mxu0 0
    %9898 = vmatprep.subr.bf16.mxu0 0
    %9899 = vmatpush1.bf16.msra.mxu0 0
    %9900 = vmatprep.subr.bf16.mxu0 0
    %9901 = vmatpush1.bf16.msra.mxu0 0
    %9902 = vmatprep.subr.bf16.mxu0 0
    %9903 = vmatpush1.bf16.msra.mxu0 0
    %9904 = vmatprep.subr.bf16.mxu0 0
    %9905 = vmatpush1.bf16.msra.mxu0 0
    %9906 = vmatprep.subr.bf16.mxu0 0
    %9907 = vmatpush1.bf16.msra.mxu0 0
    %9908 = vmatprep.subr.bf16.mxu0 0
    %9909 = vmatpush1.bf16.msra.mxu0 0
    %9910 = vmatprep.subr.bf16.mxu0 0
    %9911 = vmatpush1.bf16.msra.mxu0 0
    %9912 = vmatprep.subr.bf16.mxu0 0
    %9913 = vmatpush1.bf16.msra.mxu0 0
    %9914 = vmatprep.subr.bf16.mxu0 0
    %9915 = vmatpush1.bf16.msra.mxu0 0
    %9916 = vmatprep.subr.bf16.mxu0 0
    %9917 = vmatpush1.bf16.msra.mxu0 0
    %9918 = vmatprep.subr.bf16.mxu0 0
    %9919 = vmatpush1.bf16.msra.mxu0 0
    %9920 = vmatprep.subr.bf16.mxu0 0
    %9921 = vmatpush1.bf16.msra.mxu0 0
    %9922 = vmatprep.subr.bf16.mxu0 0
    %9923 = vmatpush1.bf16.msra.mxu0 0
    %9924 = vmatprep.mubr.bf16.mxu0 0
    %9925 = vmatmul.mubr.bf16.gmra.mrb[0].mxu0 %v9890
    %v9926 = vpop.f32.mrb[0].mxu0
    %v9927 = vadd.f32 0.0, %v9926
    %v9928 = vpop.f32.mrb[0].mxu0
    %v9929 = vadd.f32 0.0, %v9928
    %v9930 = vpop.f32.mrb[0].mxu0
    %v9931 = vpop.f32.mrb[0].mxu0
    %9932 = vdwg.mxu0
    %9933 = vmatprep.subr.bf16.mxu0 %v9876
    %9934 = vmatpush1.bf16.msra.mxu0 %v9875
    %9935 = vmatprep.subr.bf16.mxu0 %v9880
    %9936 = vmatpush1.bf16.msra.mxu0 %v9879
    %9937 = vmatprep.subr.bf16.mxu0 0
    %9938 = vmatpush1.bf16.msra.mxu0 0
    %9939 = vmatprep.subr.bf16.mxu0 0
    %9940 = vmatpush1.bf16.msra.mxu0 0
    %9941 = vmatprep.subr.bf16.mxu0 0
    %9942 = vmatpush1.bf16.msra.mxu0 0
    %9943 = vmatprep.subr.bf16.mxu0 0
    %9944 = vmatpush1.bf16.msra.mxu0 0
    %9945 = vmatprep.subr.bf16.mxu0 0
    %9946 = vmatpush1.bf16.msra.mxu0 0
    %9947 = vmatprep.subr.bf16.mxu0 0
    %9948 = vmatpush1.bf16.msra.mxu0 0
    %9949 = vmatprep.subr.bf16.mxu0 0
    %9950 = vmatpush1.bf16.msra.mxu0 0
    %9951 = vmatprep.subr.bf16.mxu0 0
    %9952 = vmatpush1.bf16.msra.mxu0 0
    %9953 = vmatprep.subr.bf16.mxu0 0
    %9954 = vmatpush1.bf16.msra.mxu0 0
    %9955 = vmatprep.subr.bf16.mxu0 0
    %9956 = vmatpush1.bf16.msra.mxu0 0
    %9957 = vmatprep.subr.bf16.mxu0 0
    %9958 = vmatpush1.bf16.msra.mxu0 0
    %9959 = vmatprep.subr.bf16.mxu0 0
    %9960 = vmatpush1.bf16.msra.mxu0 0
    %9961 = vmatprep.subr.bf16.mxu0 0
    %9962 = vmatpush1.bf16.msra.mxu0 0
    %9963 = vmatprep.subr.bf16.mxu0 0
    %9964 = vmatpush1.bf16.msra.mxu0 0
    %9965 = vmatprep.mubr.bf16.mxu0 0
    %9966 = vmatmul.mubr.bf16.gmra.mrb[0].mxu0 %v9890
    %v9967 = vpop.f32.mrb[0].mxu0
    %v9968 = vadd.f32 0.0, %v9967
    %v9969 = vpop.f32.mrb[0].mxu0
    %v9970 = vadd.f32 0.0, %v9969
    %v9971 = vpop.f32.mrb[0].mxu0
    %v9972 = vpop.f32.mrb[0].mxu0
    %9973 = vdwg.mxu0
    %v9974 = vadd.f32 %v9835, %v9927
    %v9975 = vadd.f32 %v9836, %v9929
    %v9976 = vadd.f32 %v9837, %v9968
    %v9977 = vadd.f32 %v9838, %v9970
    %s9978 = scalar_lea.vmem [#allocation13], 3648
    %v9979 = vld [vmem:[%s9978] sm:$0xff]
    %v9980 = vld [vmem:[%s9978 + $0x8] sm:$0xff]
    %v9981 = vld [vmem:[%s9978 + $0x10] sm:$0xff]
    %v9982 = vld [vmem:[%s9978 + $0x18] sm:$0xff]
    %v9983 = vld [vmem:[%s9978 + $0x20] sm:$0xff]
    %v9984 = vld [vmem:[%s9978 + $0x28] sm:$0xff]
    %v9985 = vld [vmem:[%s9978 + $0x30] sm:$0xff]
    %v9986 = vld [vmem:[%s9978 + $0x38] sm:$0xff]
    %v9988 = vrot.slane %v9839, 1
    %v9997 = vunpack.c.l.b16 %v9979
    %v9998 = vunpack.c.h.b16 %v9979
    %v9999 = vunpack.c.l.b16 %v9980
    %v10000 = vunpack.c.h.b16 %v9980
    %v10001 = vunpack.c.l.b16 %v9981
    %v10002 = vunpack.c.h.b16 %v9981
    %v10003 = vunpack.c.l.b16 %v9982
    %v10004 = vunpack.c.h.b16 %v9982
    %v10005 = vunpack.c.l.b16 %v9983
    %v10006 = vunpack.c.h.b16 %v9983
    %v10007 = vunpack.c.l.b16 %v9984
    %v10008 = vunpack.c.h.b16 %v9984
    %v10009 = vunpack.c.l.b16 %v9985
    %v10010 = vunpack.c.h.b16 %v9985
    %v10011 = vunpack.c.l.b16 %v9986
    %v10012 = vunpack.c.h.b16 %v9986
    %v10013 = vpack.c.b16 %v10001, %v9997
    %v10014 = vpack.c.b16 %v10002, %v9998
    %v10015 = vpack.c.b16 %v10003, %v9999
    %v10016 = vpack.c.b16 %v10004, %v10000
    %v10017 = vpack.c.b16 %v10009, %v10005
    %v10018 = vpack.c.b16 %v10010, %v10006
    %v10019 = vpack.c.b16 %v10011, %v10007
    %v10020 = vpack.c.b16 %v10012, %v10008
    %v10030 = vsel %vm574, %v9988, 0
    %10032 = vmatprep.subr.bf16.mxu0 %v10014
    %10033 = vmatpush1.bf16.msra.mxu0 %v10013
    %10034 = vmatprep.subr.bf16.mxu0 %v10018
    %10035 = vmatpush1.bf16.msra.mxu0 %v10017
    %10036 = vmatprep.subr.bf16.mxu0 0
    %10037 = vmatpush1.bf16.msra.mxu0 0
    %10038 = vmatprep.subr.bf16.mxu0 0
    %10039 = vmatpush1.bf16.msra.mxu0 0
    %10040 = vmatprep.subr.bf16.mxu0 0
    %10041 = vmatpush1.bf16.msra.mxu0 0
    %10042 = vmatprep.subr.bf16.mxu0 0
    %10043 = vmatpush1.bf16.msra.mxu0 0
    %10044 = vmatprep.subr.bf16.mxu0 0
    %10045 = vmatpush1.bf16.msra.mxu0 0
    %10046 = vmatprep.subr.bf16.mxu0 0
    %10047 = vmatpush1.bf16.msra.mxu0 0
    %10048 = vmatprep.subr.bf16.mxu0 0
    %10049 = vmatpush1.bf16.msra.mxu0 0
    %10050 = vmatprep.subr.bf16.mxu0 0
    %10051 = vmatpush1.bf16.msra.mxu0 0
    %10052 = vmatprep.subr.bf16.mxu0 0
    %10053 = vmatpush1.bf16.msra.mxu0 0
    %10054 = vmatprep.subr.bf16.mxu0 0
    %10055 = vmatpush1.bf16.msra.mxu0 0
    %10056 = vmatprep.subr.bf16.mxu0 0
    %10057 = vmatpush1.bf16.msra.mxu0 0
    %10058 = vmatprep.subr.bf16.mxu0 0
    %10059 = vmatpush1.bf16.msra.mxu0 0
    %10060 = vmatprep.subr.bf16.mxu0 0
    %10061 = vmatpush1.bf16.msra.mxu0 0
    %10062 = vmatprep.subr.bf16.mxu0 0
    %10063 = vmatpush1.bf16.msra.mxu0 0
    %10064 = vmatprep.mubr.bf16.mxu0 0
    %10065 = vmatmul.mubr.bf16.gmra.mrb[0].mxu0 %v10030
    %v10066 = vpop.f32.mrb[0].mxu0
    %v10067 = vadd.f32 0.0, %v10066
    %v10068 = vpop.f32.mrb[0].mxu0
    %v10069 = vadd.f32 0.0, %v10068
    %v10070 = vpop.f32.mrb[0].mxu0
    %v10071 = vpop.f32.mrb[0].mxu0
    %10072 = vdwg.mxu0
    %10073 = vmatprep.subr.bf16.mxu0 %v10016
    %10074 = vmatpush1.bf16.msra.mxu0 %v10015
    %10075 = vmatprep.subr.bf16.mxu0 %v10020
    %10076 = vmatpush1.bf16.msra.mxu0 %v10019
    %10077 = vmatprep.subr.bf16.mxu0 0
    %10078 = vmatpush1.bf16.msra.mxu0 0
    %10079 = vmatprep.subr.bf16.mxu0 0
    %10080 = vmatpush1.bf16.msra.mxu0 0
    %10081 = vmatprep.subr.bf16.mxu0 0
    %10082 = vmatpush1.bf16.msra.mxu0 0
    %10083 = vmatprep.subr.bf16.mxu0 0
    %10084 = vmatpush1.bf16.msra.mxu0 0
    %10085 = vmatprep.subr.bf16.mxu0 0
    %10086 = vmatpush1.bf16.msra.mxu0 0
    %10087 = vmatprep.subr.bf16.mxu0 0
    %10088 = vmatpush1.bf16.msra.mxu0 0
    %10089 = vmatprep.subr.bf16.mxu0 0
    %10090 = vmatpush1.bf16.msra.mxu0 0
    %10091 = vmatprep.subr.bf16.mxu0 0
    %10092 = vmatpush1.bf16.msra.mxu0 0
    %10093 = vmatprep.subr.bf16.mxu0 0
    %10094 = vmatpush1.bf16.msra.mxu0 0
    %10095 = vmatprep.subr.bf16.mxu0 0
    %10096 = vmatpush1.bf16.msra.mxu0 0
    %10097 = vmatprep.subr.bf16.mxu0 0
    %10098 = vmatpush1.bf16.msra.mxu0 0
    %10099 = vmatprep.subr.bf16.mxu0 0
    %10100 = vmatpush1.bf16.msra.mxu0 0
    %10101 = vmatprep.subr.bf16.mxu0 0
    %10102 = vmatpush1.bf16.msra.mxu0 0
    %10103 = vmatprep.subr.bf16.mxu0 0
    %10104 = vmatpush1.bf16.msra.mxu0 0
    %10105 = vmatprep.mubr.bf16.mxu0 0
    %10106 = vmatmul.mubr.bf16.gmra.mrb[0].mxu0 %v10030
    %v10107 = vpop.f32.mrb[0].mxu0
    %v10108 = vadd.f32 0.0, %v10107
    %v10109 = vpop.f32.mrb[0].mxu0
    %v10110 = vadd.f32 0.0, %v10109
    %v10111 = vpop.f32.mrb[0].mxu0
    %v10112 = vpop.f32.mrb[0].mxu0
    %10113 = vdwg.mxu0
    %v10114 = vadd.f32 %v9974, %v10067
    %v10115 = vadd.f32 %v9975, %v10069
    %v10116 = vadd.f32 %v9976, %v10108
    %v10117 = vadd.f32 %v9977, %v10110
    %s10118 = scalar_lea.vmem [#allocation13], 3712
    %v10119 = vld [vmem:[%s10118] sm:$0xff]
    %v10120 = vld [vmem:[%s10118 + $0x8] sm:$0xff]
    %v10121 = vld [vmem:[%s10118 + $0x10] sm:$0xff]
    %v10122 = vld [vmem:[%s10118 + $0x18] sm:$0xff]
    %v10123 = vld [vmem:[%s10118 + $0x20] sm:$0xff]
    %v10124 = vld [vmem:[%s10118 + $0x28] sm:$0xff]
    %v10125 = vld [vmem:[%s10118 + $0x30] sm:$0xff]
    %v10126 = vld [vmem:[%s10118 + $0x38] sm:$0xff]
    %v10127 = vrot.slane %v9839, 2
    %v10136 = vunpack.c.l.b16 %v10119
    %v10137 = vunpack.c.h.b16 %v10119
    %v10138 = vunpack.c.l.b16 %v10120
    %v10139 = vunpack.c.h.b16 %v10120
    %v10140 = vunpack.c.l.b16 %v10121
    %v10141 = vunpack.c.h.b16 %v10121
    %v10142 = vunpack.c.l.b16 %v10122
    %v10143 = vunpack.c.h.b16 %v10122
    %v10144 = vunpack.c.l.b16 %v10123
    %v10145 = vunpack.c.h.b16 %v10123
    %v10146 = vunpack.c.l.b16 %v10124
    %v10147 = vunpack.c.h.b16 %v10124
    %v10148 = vunpack.c.l.b16 %v10125
    %v10149 = vunpack.c.h.b16 %v10125
    %v10150 = vunpack.c.l.b16 %v10126
    %v10151 = vunpack.c.h.b16 %v10126
    %v10152 = vpack.c.b16 %v10140, %v10136
    %v10153 = vpack.c.b16 %v10141, %v10137
    %v10154 = vpack.c.b16 %v10142, %v10138
    %v10155 = vpack.c.b16 %v10143, %v10139
    %v10156 = vpack.c.b16 %v10148, %v10144
    %v10157 = vpack.c.b16 %v10149, %v10145
    %v10158 = vpack.c.b16 %v10150, %v10146
    %v10159 = vpack.c.b16 %v10151, %v10147
    %v10169 = vsel %vm574, %v10127, 0
    %10171 = vmatprep.subr.bf16.mxu0 %v10153
    %10172 = vmatpush1.bf16.msra.mxu0 %v10152
    %10173 = vmatprep.subr.bf16.mxu0 %v10157
    %10174 = vmatpush1.bf16.msra.mxu0 %v10156
    %10175 = vmatprep.subr.bf16.mxu0 0
    %10176 = vmatpush1.bf16.msra.mxu0 0
    %10177 = vmatprep.subr.bf16.mxu0 0
    %10178 = vmatpush1.bf16.msra.mxu0 0
    %10179 = vmatprep.subr.bf16.mxu0 0
    %10180 = vmatpush1.bf16.msra.mxu0 0
    %10181 = vmatprep.subr.bf16.mxu0 0
    %10182 = vmatpush1.bf16.msra.mxu0 0
    %10183 = vmatprep.subr.bf16.mxu0 0
    %10184 = vmatpush1.bf16.msra.mxu0 0
    %10185 = vmatprep.subr.bf16.mxu0 0
    %10186 = vmatpush1.bf16.msra.mxu0 0
    %10187 = vmatprep.subr.bf16.mxu0 0
    %10188 = vmatpush1.bf16.msra.mxu0 0
    %10189 = vmatprep.subr.bf16.mxu0 0
    %10190 = vmatpush1.bf16.msra.mxu0 0
    %10191 = vmatprep.subr.bf16.mxu0 0
    %10192 = vmatpush1.bf16.msra.mxu0 0
    %10193 = vmatprep.subr.bf16.mxu0 0
    %10194 = vmatpush1.bf16.msra.mxu0 0
    %10195 = vmatprep.subr.bf16.mxu0 0
    %10196 = vmatpush1.bf16.msra.mxu0 0
    %10197 = vmatprep.subr.bf16.mxu0 0
    %10198 = vmatpush1.bf16.msra.mxu0 0
    %10199 = vmatprep.subr.bf16.mxu0 0
    %10200 = vmatpush1.bf16.msra.mxu0 0
    %10201 = vmatprep.subr.bf16.mxu0 0
    %10202 = vmatpush1.bf16.msra.mxu0 0
    %10203 = vmatprep.mubr.bf16.mxu0 0
    %10204 = vmatmul.mubr.bf16.gmra.mrb[0].mxu0 %v10169
    %v10205 = vpop.f32.mrb[0].mxu0
    %v10206 = vadd.f32 0.0, %v10205
    %v10207 = vpop.f32.mrb[0].mxu0
    %v10208 = vadd.f32 0.0, %v10207
    %v10209 = vpop.f32.mrb[0].mxu0
    %v10210 = vpop.f32.mrb[0].mxu0
    %10211 = vdwg.mxu0
    %10212 = vmatprep.subr.bf16.mxu0 %v10155
    %10213 = vmatpush1.bf16.msra.mxu0 %v10154
    %10214 = vmatprep.subr.bf16.mxu0 %v10159
    %10215 = vmatpush1.bf16.msra.mxu0 %v10158
    %10216 = vmatprep.subr.bf16.mxu0 0
    %10217 = vmatpush1.bf16.msra.mxu0 0
    %10218 = vmatprep.subr.bf16.mxu0 0
    %10219 = vmatpush1.bf16.msra.mxu0 0
    %10220 = vmatprep.subr.bf16.mxu0 0
    %10221 = vmatpush1.bf16.msra.mxu0 0
    %10222 = vmatprep.subr.bf16.mxu0 0
    %10223 = vmatpush1.bf16.msra.mxu0 0
    %10224 = vmatprep.subr.bf16.mxu0 0
    %10225 = vmatpush1.bf16.msra.mxu0 0
    %10226 = vmatprep.subr.bf16.mxu0 0
    %10227 = vmatpush1.bf16.msra.mxu0 0
    %10228 = vmatprep.subr.bf16.mxu0 0
    %10229 = vmatpush1.bf16.msra.mxu0 0
    %10230 = vmatprep.subr.bf16.mxu0 0
    %10231 = vmatpush1.bf16.msra.mxu0 0
    %10232 = vmatprep.subr.bf16.mxu0 0
    %10233 = vmatpush1.bf16.msra.mxu0 0
    %10234 = vmatprep.subr.bf16.mxu0 0
    %10235 = vmatpush1.bf16.msra.mxu0 0
    %10236 = vmatprep.subr.bf16.mxu0 0
    %10237 = vmatpush1.bf16.msra.mxu0 0
    %10238 = vmatprep.subr.bf16.mxu0 0
    %10239 = vmatpush1.bf16.msra.mxu0 0
    %10240 = vmatprep.subr.bf16.mxu0 0
    %10241 = vmatpush1.bf16.msra.mxu0 0
    %10242 = vmatprep.subr.bf16.mxu0 0
    %10243 = vmatpush1.bf16.msra.mxu0 0
    %10244 = vmatprep.mubr.bf16.mxu0 0
    %10245 = vmatmul.mubr.bf16.gmra.mrb[0].mxu0 %v10169
    %v10246 = vpop.f32.mrb[0].mxu0
    %v10247 = vadd.f32 0.0, %v10246
    %v10248 = vpop.f32.mrb[0].mxu0
    %v10249 = vadd.f32 0.0, %v10248
    %v10250 = vpop.f32.mrb[0].mxu0
    %v10251 = vpop.f32.mrb[0].mxu0
    %10252 = vdwg.mxu0
    %v10253 = vadd.f32 %v10114, %v10206
    %v10254 = vadd.f32 %v10115, %v10208
    %v10255 = vadd.f32 %v10116, %v10247
    %v10256 = vadd.f32 %v10117, %v10249
    %s10257 = scalar_lea.vmem [#allocation13], 3776
    %v10258 = vld [vmem:[%s10257] sm:$0xff]
    %v10259 = vld [vmem:[%s10257 + $0x8] sm:$0xff]
    %v10260 = vld [vmem:[%s10257 + $0x10] sm:$0xff]
    %v10261 = vld [vmem:[%s10257 + $0x18] sm:$0xff]
    %v10262 = vld [vmem:[%s10257 + $0x20] sm:$0xff]
    %v10263 = vld [vmem:[%s10257 + $0x28] sm:$0xff]
    %v10264 = vld [vmem:[%s10257 + $0x30] sm:$0xff]
    %v10265 = vld [vmem:[%s10257 + $0x38] sm:$0xff]
    %v10266 = vrot.slane %v9839, 3
    %v10275 = vunpack.c.l.b16 %v10258
    %v10276 = vunpack.c.h.b16 %v10258
    %v10277 = vunpack.c.l.b16 %v10259
    %v10278 = vunpack.c.h.b16 %v10259
    %v10279 = vunpack.c.l.b16 %v10260
    %v10280 = vunpack.c.h.b16 %v10260
    %v10281 = vunpack.c.l.b16 %v10261
    %v10282 = vunpack.c.h.b16 %v10261
    %v10283 = vunpack.c.l.b16 %v10262
    %v10284 = vunpack.c.h.b16 %v10262
    %v10285 = vunpack.c.l.b16 %v10263
    %v10286 = vunpack.c.h.b16 %v10263
    %v10287 = vunpack.c.l.b16 %v10264
    %v10288 = vunpack.c.h.b16 %v10264
    %v10289 = vunpack.c.l.b16 %v10265
    %v10290 = vunpack.c.h.b16 %v10265
    %v10291 = vpack.c.b16 %v10279, %v10275
    %v10292 = vpack.c.b16 %v10280, %v10276
    %v10293 = vpack.c.b16 %v10281, %v10277
    %v10294 = vpack.c.b16 %v10282, %v10278
    %v10295 = vpack.c.b16 %v10287, %v10283
    %v10296 = vpack.c.b16 %v10288, %v10284
    %v10297 = vpack.c.b16 %v10289, %v10285
    %v10298 = vpack.c.b16 %v10290, %v10286
    %v10308 = vsel %vm574, %v10266, 0
    %10310 = vmatprep.subr.bf16.mxu0 %v10292
    %10311 = vmatpush1.bf16.msra.mxu0 %v10291
    %10312 = vmatprep.subr.bf16.mxu0 %v10296
    %10313 = vmatpush1.bf16.msra.mxu0 %v10295
    %10314 = vmatprep.subr.bf16.mxu0 0
    %10315 = vmatpush1.bf16.msra.mxu0 0
    %10316 = vmatprep.subr.bf16.mxu0 0
    %10317 = vmatpush1.bf16.msra.mxu0 0
    %10318 = vmatprep.subr.bf16.mxu0 0
    %10319 = vmatpush1.bf16.msra.mxu0 0
    %10320 = vmatprep.subr.bf16.mxu0 0
    %10321 = vmatpush1.bf16.msra.mxu0 0
    %10322 = vmatprep.subr.bf16.mxu0 0
    %10323 = vmatpush1.bf16.msra.mxu0 0
    %10324 = vmatprep.subr.bf16.mxu0 0
    %10325 = vmatpush1.bf16.msra.mxu0 0
    %10326 = vmatprep.subr.bf16.mxu0 0
    %10327 = vmatpush1.bf16.msra.mxu0 0
    %10328 = vmatprep.subr.bf16.mxu0 0
    %10329 = vmatpush1.bf16.msra.mxu0 0
    %10330 = vmatprep.subr.bf16.mxu0 0
    %10331 = vmatpush1.bf16.msra.mxu0 0
    %10332 = vmatprep.subr.bf16.mxu0 0
    %10333 = vmatpush1.bf16.msra.mxu0 0
    %10334 = vmatprep.subr.bf16.mxu0 0
    %10335 = vmatpush1.bf16.msra.mxu0 0
    %10336 = vmatprep.subr.bf16.mxu0 0
    %10337 = vmatpush1.bf16.msra.mxu0 0
    %10338 = vmatprep.subr.bf16.mxu0 0
    %10339 = vmatpush1.bf16.msra.mxu0 0
    %10340 = vmatprep.subr.bf16.mxu0 0
    %10341 = vmatpush1.bf16.msra.mxu0 0
    %10342 = vmatprep.mubr.bf16.mxu0 0
    %10343 = vmatmul.mubr.bf16.gmra.mrb[0].mxu0 %v10308
    %v10344 = vpop.f32.mrb[0].mxu0
    %v10345 = vadd.f32 0.0, %v10344
    %v10346 = vpop.f32.mrb[0].mxu0
    %v10347 = vadd.f32 0.0, %v10346
    %v10348 = vpop.f32.mrb[0].mxu0
    %v10349 = vpop.f32.mrb[0].mxu0
    %10350 = vdwg.mxu0
    %10351 = vmatprep.subr.bf16.mxu0 %v10294
    %10352 = vmatpush1.bf16.msra.mxu0 %v10293
    %10353 = vmatprep.subr.bf16.mxu0 %v10298
    %10354 = vmatpush1.bf16.msra.mxu0 %v10297
    %10355 = vmatprep.subr.bf16.mxu0 0
    %10356 = vmatpush1.bf16.msra.mxu0 0
    %10357 = vmatprep.subr.bf16.mxu0 0
    %10358 = vmatpush1.bf16.msra.mxu0 0
    %10359 = vmatprep.subr.bf16.mxu0 0
    %10360 = vmatpush1.bf16.msra.mxu0 0
    %10361 = vmatprep.subr.bf16.mxu0 0
    %10362 = vmatpush1.bf16.msra.mxu0 0
    %10363 = vmatprep.subr.bf16.mxu0 0
    %10364 = vmatpush1.bf16.msra.mxu0 0
    %10365 = vmatprep.subr.bf16.mxu0 0
    %10366 = vmatpush1.bf16.msra.mxu0 0
    %10367 = vmatprep.subr.bf16.mxu0 0
    %10368 = vmatpush1.bf16.msra.mxu0 0
    %10369 = vmatprep.subr.bf16.mxu0 0
    %10370 = vmatpush1.bf16.msra.mxu0 0
    %10371 = vmatprep.subr.bf16.mxu0 0
    %10372 = vmatpush1.bf16.msra.mxu0 0
    %10373 = vmatprep.subr.bf16.mxu0 0
    %10374 = vmatpush1.bf16.msra.mxu0 0
    %10375 = vmatprep.subr.bf16.mxu0 0
    %10376 = vmatpush1.bf16.msra.mxu0 0
    %10377 = vmatprep.subr.bf16.mxu0 0
    %10378 = vmatpush1.bf16.msra.mxu0 0
    %10379 = vmatprep.subr.bf16.mxu0 0
    %10380 = vmatpush1.bf16.msra.mxu0 0
    %10381 = vmatprep.subr.bf16.mxu0 0
    %10382 = vmatpush1.bf16.msra.mxu0 0
    %10383 = vmatprep.mubr.bf16.mxu0 0
    %10384 = vmatmul.mubr.bf16.gmra.mrb[0].mxu0 %v10308
    %v10385 = vpop.f32.mrb[0].mxu0
    %v10386 = vadd.f32 0.0, %v10385
    %v10387 = vpop.f32.mrb[0].mxu0
    %v10388 = vadd.f32 0.0, %v10387
    %v10389 = vpop.f32.mrb[0].mxu0
    %v10390 = vpop.f32.mrb[0].mxu0
    %10391 = vdwg.mxu0
    %v10392 = vadd.f32 %v10253, %v10345
    %v10393 = vadd.f32 %v10254, %v10347
    %v10394 = vadd.f32 %v10255, %v10386
    %v10395 = vadd.f32 %v10256, %v10388
    %v10396 = vld [vmem:[#allocation15] sm:$0xf]
    %v10398 = vlaneseq
    %v10399 = vshrl.u32 %v10398, 7
    %v10400 = vsub.s32 0, %v10399
    %v10401 = vrot.slane %v10396, %v10400
    %v10402 = vlaneseq
    %v10403 = vshrl.u32 %v10402, 7
    %v10404 = vsub.s32 1, %v10403
    %v10405 = vrot.slane %v10396, %v10404
    %v10406 = vlaneseq
    %v10407 = vshrl.u32 %v10406, 7
    %v10408 = vsub.s32 2, %v10407
    %v10409 = vrot.slane %v10396, %v10408
    %v10410 = vlaneseq
    %v10411 = vshrl.u32 %v10410, 7
    %v10412 = vsub.s32 3, %v10411
    %v10413 = vrot.slane %v10396, %v10412
    %v10418 = vadd.f32 %v10392, %v10401
    %v10419 = vadd.f32 %v10393, %v10405
    %v10420 = vadd.f32 %v10394, %v10409
    %v10421 = vadd.f32 %v10395, %v10413
    %v10422 = vmax.f32 %v10418, 0.0
    %v10423 = vmax.f32 %v10419, 0.0
    %v10424 = vmax.f32 %v10420, 0.0
    %v10425 = vmax.f32 %v10421, 0.0
    %v10426 = vpack.c.bf16 %v10422, %v10422
    %v10427 = vpack.c.bf16 %v10423, %v10423
    %v10428 = vpack.c.bf16 %v10424, %v10424
    %v10429 = vpack.c.bf16 %v10425, %v10425
    %v10430 = vld [vmem:[#allocation16] sm:$0xf]
    %v10431 = vld [vmem:[#allocation16 + $0x4] sm:$0xf]
    %v10432 = vld [vmem:[#allocation16 + $0x8] sm:$0xf]
    %v10433 = vld [vmem:[#allocation16 + $0xc] sm:$0xf]
    %v10434 = vld [vmem:[#allocation16 + $0x10] sm:$0xf]
    %v10435 = vld [vmem:[#allocation16 + $0x14] sm:$0xf]
    %v10436 = vld [vmem:[#allocation16 + $0x18] sm:$0xf]
    %v10437 = vld [vmem:[#allocation16 + $0x1c] sm:$0xf]
    %v10438 = vld [vmem:[#allocation16 + $0x20] sm:$0xf]
    %v10439 = vld [vmem:[#allocation16 + $0x24] sm:$0xf]
    %v10440 = vld [vmem:[#allocation16 + $0x28] sm:$0xf]
    %v10441 = vld [vmem:[#allocation16 + $0x2c] sm:$0xf]
    %v10442 = vld [vmem:[#allocation16 + $0x30] sm:$0xf]
    %v10443 = vld [vmem:[#allocation16 + $0x34] sm:$0xf]
    %v10444 = vld [vmem:[#allocation16 + $0x38] sm:$0xf]
    %v10445 = vld [vmem:[#allocation16 + $0x3c] sm:$0xf]
    %v10446 = vld [vmem:[#allocation16 + $0x40] sm:$0xf]
    %v10447 = vld [vmem:[#allocation16 + $0x44] sm:$0xf]
    %v10448 = vld [vmem:[#allocation16 + $0x48] sm:$0xf]
    %v10449 = vld [vmem:[#allocation16 + $0x4c] sm:$0xf]
    %v10450 = vld [vmem:[#allocation16 + $0x50] sm:$0xf]
    %v10451 = vld [vmem:[#allocation16 + $0x54] sm:$0xf]
    %v10452 = vld [vmem:[#allocation16 + $0x58] sm:$0xf]
    %v10453 = vld [vmem:[#allocation16 + $0x5c] sm:$0xf]
    %v10454 = vld [vmem:[#allocation16 + $0x60] sm:$0xf]
    %v10455 = vld [vmem:[#allocation16 + $0x64] sm:$0xf]
    %v10456 = vld [vmem:[#allocation16 + $0x68] sm:$0xf]
    %v10457 = vld [vmem:[#allocation16 + $0x6c] sm:$0xf]
    %v10458 = vld [vmem:[#allocation16 + $0x70] sm:$0xf]
    %v10459 = vld [vmem:[#allocation16 + $0x74] sm:$0xf]
    %v10460 = vld [vmem:[#allocation16 + $0x78] sm:$0xf]
    %v10461 = vld [vmem:[#allocation16 + $0x7c] sm:$0xf]
    %v10462 = vld [vmem:[#allocation16 + $0x80] sm:$0xf]
    %v10463 = vld [vmem:[#allocation16 + $0x84] sm:$0xf]
    %v10464 = vld [vmem:[#allocation16 + $0x88] sm:$0xf]
    %v10465 = vld [vmem:[#allocation16 + $0x8c] sm:$0xf]
    %v10466 = vld [vmem:[#allocation16 + $0x90] sm:$0xf]
    %v10467 = vld [vmem:[#allocation16 + $0x94] sm:$0xf]
    %v10468 = vld [vmem:[#allocation16 + $0x98] sm:$0xf]
    %v10469 = vld [vmem:[#allocation16 + $0x9c] sm:$0xf]
    %v10470 = vld [vmem:[#allocation16 + $0xa0] sm:$0xf]
    %v10471 = vld [vmem:[#allocation16 + $0xa4] sm:$0xf]
    %v10472 = vld [vmem:[#allocation16 + $0xa8] sm:$0xf]
    %v10473 = vld [vmem:[#allocation16 + $0xac] sm:$0xf]
    %v10474 = vld [vmem:[#allocation16 + $0xb0] sm:$0xf]
    %v10475 = vld [vmem:[#allocation16 + $0xb4] sm:$0xf]
    %v10476 = vld [vmem:[#allocation16 + $0xb8] sm:$0xf]
    %v10477 = vld [vmem:[#allocation16 + $0xbc] sm:$0xf]
    %v10478 = vld [vmem:[#allocation16 + $0xc0] sm:$0xf]
    %v10479 = vld [vmem:[#allocation16 + $0xc4] sm:$0xf]
    %v10480 = vld [vmem:[#allocation16 + $0xc8] sm:$0xf]
    %v10481 = vld [vmem:[#allocation16 + $0xcc] sm:$0xf]
    %v10482 = vld [vmem:[#allocation16 + $0xd0] sm:$0xf]
    %v10483 = vld [vmem:[#allocation16 + $0xd4] sm:$0xf]
    %v10484 = vld [vmem:[#allocation16 + $0xd8] sm:$0xf]
    %v10485 = vld [vmem:[#allocation16 + $0xdc] sm:$0xf]
    %v10486 = vld [vmem:[#allocation16 + $0xe0] sm:$0xf]
    %v10487 = vld [vmem:[#allocation16 + $0xe4] sm:$0xf]
    %v10488 = vld [vmem:[#allocation16 + $0xe8] sm:$0xf]
    %v10489 = vld [vmem:[#allocation16 + $0xec] sm:$0xf]
    %v10490 = vld [vmem:[#allocation16 + $0xf0] sm:$0xf]
    %v10491 = vld [vmem:[#allocation16 + $0xf4] sm:$0xf]
    %v10492 = vld [vmem:[#allocation16 + $0xf8] sm:$0xf]
    %v10493 = vld [vmem:[#allocation16 + $0xfc] sm:$0xf]
    %v10494 = vld [vmem:[#allocation18] sm:$0x1]
    %v10496 = vlaneseq
    %v10497 = vshrl.u32 %v10496, 7
    %v10498 = vsub.s32 0, %v10497
    %v10499 = vrot.slane %v10494, %v10498
    %v10565 = vunpack.c.l.b16 %v10430
    %v10566 = vunpack.c.l.b16 %v10431
    %v10567 = vunpack.c.l.b16 %v10432
    %v10568 = vunpack.c.l.b16 %v10433
    %v10569 = vunpack.c.l.b16 %v10434
    %v10570 = vunpack.c.l.b16 %v10435
    %v10571 = vunpack.c.l.b16 %v10436
    %v10572 = vunpack.c.l.b16 %v10437
    %v10573 = vunpack.c.l.b16 %v10438
    %v10574 = vunpack.c.l.b16 %v10439
    %v10575 = vunpack.c.l.b16 %v10440
    %v10576 = vunpack.c.l.b16 %v10441
    %v10577 = vunpack.c.l.b16 %v10442
    %v10578 = vunpack.c.l.b16 %v10443
    %v10579 = vunpack.c.l.b16 %v10444
    %v10580 = vunpack.c.l.b16 %v10445
    %v10581 = vunpack.c.l.b16 %v10446
    %v10582 = vunpack.c.l.b16 %v10447
    %v10583 = vunpack.c.l.b16 %v10448
    %v10584 = vunpack.c.l.b16 %v10449
    %v10585 = vunpack.c.l.b16 %v10450
    %v10586 = vunpack.c.l.b16 %v10451
    %v10587 = vunpack.c.l.b16 %v10452
    %v10588 = vunpack.c.l.b16 %v10453
    %v10589 = vunpack.c.l.b16 %v10454
    %v10590 = vunpack.c.l.b16 %v10455
    %v10591 = vunpack.c.l.b16 %v10456
    %v10592 = vunpack.c.l.b16 %v10457
    %v10593 = vunpack.c.l.b16 %v10458
    %v10594 = vunpack.c.l.b16 %v10459
    %v10595 = vunpack.c.l.b16 %v10460
    %v10596 = vunpack.c.l.b16 %v10461
    %v10597 = vunpack.c.l.b16 %v10462
    %v10598 = vunpack.c.l.b16 %v10463
    %v10599 = vunpack.c.l.b16 %v10464
    %v10600 = vunpack.c.l.b16 %v10465
    %v10601 = vunpack.c.l.b16 %v10466
    %v10602 = vunpack.c.l.b16 %v10467
    %v10603 = vunpack.c.l.b16 %v10468
    %v10604 = vunpack.c.l.b16 %v10469
    %v10605 = vunpack.c.l.b16 %v10470
    %v10606 = vunpack.c.l.b16 %v10471
    %v10607 = vunpack.c.l.b16 %v10472
    %v10608 = vunpack.c.l.b16 %v10473
    %v10609 = vunpack.c.l.b16 %v10474
    %v10610 = vunpack.c.l.b16 %v10475
    %v10611 = vunpack.c.l.b16 %v10476
    %v10612 = vunpack.c.l.b16 %v10477
    %v10613 = vunpack.c.l.b16 %v10478
    %v10614 = vunpack.c.l.b16 %v10479
    %v10615 = vunpack.c.l.b16 %v10480
    %v10616 = vunpack.c.l.b16 %v10481
    %v10617 = vunpack.c.l.b16 %v10482
    %v10618 = vunpack.c.l.b16 %v10483
    %v10619 = vunpack.c.l.b16 %v10484
    %v10620 = vunpack.c.l.b16 %v10485
    %v10621 = vunpack.c.l.b16 %v10486
    %v10622 = vunpack.c.l.b16 %v10487
    %v10623 = vunpack.c.l.b16 %v10488
    %v10624 = vunpack.c.l.b16 %v10489
    %v10625 = vunpack.c.l.b16 %v10490
    %v10626 = vunpack.c.l.b16 %v10491
    %v10627 = vunpack.c.l.b16 %v10492
    %v10628 = vunpack.c.l.b16 %v10493
    %v10629 = vpack.c.b16 %v10566, %v10565
    %v10630 = vpack.c.b16 %v10568, %v10567
    %v10631 = vpack.c.b16 %v10570, %v10569
    %v10632 = vpack.c.b16 %v10572, %v10571
    %v10633 = vpack.c.b16 %v10574, %v10573
    %v10634 = vpack.c.b16 %v10576, %v10575
    %v10635 = vpack.c.b16 %v10578, %v10577
    %v10636 = vpack.c.b16 %v10580, %v10579
    %v10637 = vpack.c.b16 %v10582, %v10581
    %v10638 = vpack.c.b16 %v10584, %v10583
    %v10639 = vpack.c.b16 %v10586, %v10585
    %v10640 = vpack.c.b16 %v10588, %v10587
    %v10641 = vpack.c.b16 %v10590, %v10589
    %v10642 = vpack.c.b16 %v10592, %v10591
    %v10643 = vpack.c.b16 %v10594, %v10593
    %v10644 = vpack.c.b16 %v10596, %v10595
    %v10645 = vpack.c.b16 %v10598, %v10597
    %v10646 = vpack.c.b16 %v10600, %v10599
    %v10647 = vpack.c.b16 %v10602, %v10601
    %v10648 = vpack.c.b16 %v10604, %v10603
    %v10649 = vpack.c.b16 %v10606, %v10605
    %v10650 = vpack.c.b16 %v10608, %v10607
    %v10651 = vpack.c.b16 %v10610, %v10609
    %v10652 = vpack.c.b16 %v10612, %v10611
    %v10653 = vpack.c.b16 %v10614, %v10613
    %v10654 = vpack.c.b16 %v10616, %v10615
    %v10655 = vpack.c.b16 %v10618, %v10617
    %v10656 = vpack.c.b16 %v10620, %v10619
    %v10657 = vpack.c.b16 %v10622, %v10621
    %v10658 = vpack.c.b16 %v10624, %v10623
    %v10659 = vpack.c.b16 %v10626, %v10625
    %v10660 = vpack.c.b16 %v10628, %v10627
    %10693 = vmatprep.subr.bf16.mxu0 0
    %10694 = vmatpush1.bf16.msra.mxu0 %v10629
    %10695 = vmatprep.subr.bf16.mxu0 0
    %10696 = vmatpush1.bf16.msra.mxu0 %v10630
    %10697 = vmatprep.subr.bf16.mxu0 0
    %10698 = vmatpush1.bf16.msra.mxu0 %v10631
    %10699 = vmatprep.subr.bf16.mxu0 0
    %10700 = vmatpush1.bf16.msra.mxu0 %v10632
    %10701 = vmatprep.subr.bf16.mxu0 0
    %10702 = vmatpush1.bf16.msra.mxu0 %v10633
    %10703 = vmatprep.subr.bf16.mxu0 0
    %10704 = vmatpush1.bf16.msra.mxu0 %v10634
    %10705 = vmatprep.subr.bf16.mxu0 0
    %10706 = vmatpush1.bf16.msra.mxu0 %v10635
    %10707 = vmatprep.subr.bf16.mxu0 0
    %10708 = vmatpush1.bf16.msra.mxu0 %v10636
    %10709 = vmatprep.subr.bf16.mxu0 0
    %10710 = vmatpush1.bf16.msra.mxu0 %v10637
    %10711 = vmatprep.subr.bf16.mxu0 0
    %10712 = vmatpush1.bf16.msra.mxu0 %v10638
    %10713 = vmatprep.subr.bf16.mxu0 0
    %10714 = vmatpush1.bf16.msra.mxu0 %v10639
    %10715 = vmatprep.subr.bf16.mxu0 0
    %10716 = vmatpush1.bf16.msra.mxu0 %v10640
    %10717 = vmatprep.subr.bf16.mxu0 0
    %10718 = vmatpush1.bf16.msra.mxu0 %v10641
    %10719 = vmatprep.subr.bf16.mxu0 0
    %10720 = vmatpush1.bf16.msra.mxu0 %v10642
    %10721 = vmatprep.subr.bf16.mxu0 0
    %10722 = vmatpush1.bf16.msra.mxu0 %v10643
    %10723 = vmatprep.subr.bf16.mxu0 0
    %10724 = vmatpush1.bf16.msra.mxu0 %v10644
    %10725 = vmatprep.mubr.bf16.mxu0 %v10427
    %10726 = vmatmul.mubr.bf16.gmra.mrb[0].mxu0 %v10426
    %v10727 = vpop.f32.mrb[0].mxu0
    %v10728 = vadd.f32 %v10499, %v10727
    %v10729 = vpop.f32.mrb[0].mxu0
    %v10730 = vpop.f32.mrb[0].mxu0
    %v10731 = vpop.f32.mrb[0].mxu0
    %10732 = vdwg.mxu0
    %10733 = vmatprep.subr.bf16.mxu0 0
    %10734 = vmatpush1.bf16.msra.mxu0 %v10645
    %10735 = vmatprep.subr.bf16.mxu0 0
    %10736 = vmatpush1.bf16.msra.mxu0 %v10646
    %10737 = vmatprep.subr.bf16.mxu0 0
    %10738 = vmatpush1.bf16.msra.mxu0 %v10647
    %10739 = vmatprep.subr.bf16.mxu0 0
    %10740 = vmatpush1.bf16.msra.mxu0 %v10648
    %10741 = vmatprep.subr.bf16.mxu0 0
    %10742 = vmatpush1.bf16.msra.mxu0 %v10649
    %10743 = vmatprep.subr.bf16.mxu0 0
    %10744 = vmatpush1.bf16.msra.mxu0 %v10650
    %10745 = vmatprep.subr.bf16.mxu0 0
    %10746 = vmatpush1.bf16.msra.mxu0 %v10651
    %10747 = vmatprep.subr.bf16.mxu0 0
    %10748 = vmatpush1.bf16.msra.mxu0 %v10652
    %10749 = vmatprep.subr.bf16.mxu0 0
    %10750 = vmatpush1.bf16.msra.mxu0 %v10653
    %10751 = vmatprep.subr.bf16.mxu0 0
    %10752 = vmatpush1.bf16.msra.mxu0 %v10654
    %10753 = vmatprep.subr.bf16.mxu0 0
    %10754 = vmatpush1.bf16.msra.mxu0 %v10655
    %10755 = vmatprep.subr.bf16.mxu0 0
    %10756 = vmatpush1.bf16.msra.mxu0 %v10656
    %10757 = vmatprep.subr.bf16.mxu0 0
    %10758 = vmatpush1.bf16.msra.mxu0 %v10657
    %10759 = vmatprep.subr.bf16.mxu0 0
    %10760 = vmatpush1.bf16.msra.mxu0 %v10658
    %10761 = vmatprep.subr.bf16.mxu0 0
    %10762 = vmatpush1.bf16.msra.mxu0 %v10659
    %10763 = vmatprep.subr.bf16.mxu0 0
    %10764 = vmatpush1.bf16.msra.mxu0 %v10660
    %10765 = vmatprep.mubr.bf16.mxu0 %v10429
    %10766 = vmatmul.mubr.bf16.gmra.mrb[0].mxu0 %v10428
    %v10767 = vpop.f32.mrb[0].mxu0
    %v10768 = vadd.f32 %v10728, %v10767
    %v10769 = vpop.f32.mrb[0].mxu0
    %v10770 = vpop.f32.mrb[0].mxu0
    %v10771 = vpop.f32.mrb[0].mxu0
    %10772 = vdwg.mxu0
    %v10773 = vmax.f32 %v10768, 0.0
    %v10774 = vpack.c.bf16 %v10773, %v10773
    %v10775 = vld [vmem:[%s11] sm:$0xf]
    %v10776 = vld [vmem:[%s11 + $0x4] sm:$0xf]
    %v10777 = vld [vmem:[%s11 + $0x8] sm:$0xf]
    %v10778 = vld [vmem:[%s11 + $0xc] sm:$0xf]
    %v10779 = vld [vmem:[%s11 + $0x10] sm:$0xf]
    %v10780 = vld [vmem:[%s11 + $0x14] sm:$0xf]
    %v10781 = vld [vmem:[%s11 + $0x18] sm:$0xf]
    %v10782 = vld [vmem:[%s11 + $0x1c] sm:$0xf]
    %v10783 = vld [vmem:[%s11 + $0x20] sm:$0xf]
    %v10784 = vld [vmem:[%s11 + $0x24] sm:$0xf]
    %v10785 = vld [vmem:[%s11 + $0x28] sm:$0xf]
    %v10786 = vld [vmem:[%s11 + $0x2c] sm:$0xf]
    %v10787 = vld [vmem:[%s11 + $0x30] sm:$0xf]
    %v10788 = vld [vmem:[%s11 + $0x34] sm:$0xf]
    %v10789 = vld [vmem:[%s11 + $0x38] sm:$0xf]
    %v10790 = vld [vmem:[%s11 + $0x3c] sm:$0xf]
    %v10791 = vld [vmem:[#allocation19] sm:$0x1]
    %v10793 = vlaneseq
    %v10794 = vshrl.u32 %v10793, 7
    %v10795 = vsub.s32 0, %v10794
    %v10796 = vrot.slane %v10791, %v10795
    %v10814 = vunpack.c.l.b16 %v10775
    %v10815 = vunpack.c.l.b16 %v10776
    %v10816 = vunpack.c.l.b16 %v10777
    %v10817 = vunpack.c.l.b16 %v10778
    %v10818 = vunpack.c.l.b16 %v10779
    %v10819 = vunpack.c.l.b16 %v10780
    %v10820 = vunpack.c.l.b16 %v10781
    %v10821 = vunpack.c.l.b16 %v10782
    %v10822 = vunpack.c.l.b16 %v10783
    %v10823 = vunpack.c.l.b16 %v10784
    %v10824 = vunpack.c.l.b16 %v10785
    %v10825 = vunpack.c.l.b16 %v10786
    %v10826 = vunpack.c.l.b16 %v10787
    %v10827 = vunpack.c.l.b16 %v10788
    %v10828 = vunpack.c.l.b16 %v10789
    %v10829 = vunpack.c.l.b16 %v10790
    %v10830 = vpack.c.b16 %v10815, %v10814
    %v10831 = vpack.c.b16 %v10817, %v10816
    %v10832 = vpack.c.b16 %v10819, %v10818
    %v10833 = vpack.c.b16 %v10821, %v10820
    %v10834 = vpack.c.b16 %v10823, %v10822
    %v10835 = vpack.c.b16 %v10825, %v10824
    %v10836 = vpack.c.b16 %v10827, %v10826
    %v10837 = vpack.c.b16 %v10829, %v10828
    %10846 = vmatprep.subr.bf16.mxu0 0
    %10847 = vmatpush1.bf16.msra.mxu0 %v10830
    %10848 = vmatprep.subr.bf16.mxu0 0
    %10849 = vmatpush1.bf16.msra.mxu0 %v10831
    %10850 = vmatprep.subr.bf16.mxu0 0
    %10851 = vmatpush1.bf16.msra.mxu0 %v10832
    %10852 = vmatprep.subr.bf16.mxu0 0
    %10853 = vmatpush1.bf16.msra.mxu0 %v10833
    %10854 = vmatprep.subr.bf16.mxu0 0
    %10855 = vmatpush1.bf16.msra.mxu0 %v10834
    %10856 = vmatprep.subr.bf16.mxu0 0
    %10857 = vmatpush1.bf16.msra.mxu0 %v10835
    %10858 = vmatprep.subr.bf16.mxu0 0
    %10859 = vmatpush1.bf16.msra.mxu0 %v10836
    %10860 = vmatprep.subr.bf16.mxu0 0
    %10861 = vmatpush1.bf16.msra.mxu0 %v10837
    %10862 = vmatprep.subr.bf16.mxu0 0
    %10863 = vmatpush1.bf16.msra.mxu0 0
    %10864 = vmatprep.subr.bf16.mxu0 0
    %10865 = vmatpush1.bf16.msra.mxu0 0
    %10866 = vmatprep.subr.bf16.mxu0 0
    %10867 = vmatpush1.bf16.msra.mxu0 0
    %10868 = vmatprep.subr.bf16.mxu0 0
    %10869 = vmatpush1.bf16.msra.mxu0 0
    %10870 = vmatprep.subr.bf16.mxu0 0
    %10871 = vmatpush1.bf16.msra.mxu0 0
    %10872 = vmatprep.subr.bf16.mxu0 0
    %10873 = vmatpush1.bf16.msra.mxu0 0
    %10874 = vmatprep.subr.bf16.mxu0 0
    %10875 = vmatpush1.bf16.msra.mxu0 0
    %10876 = vmatprep.subr.bf16.mxu0 0
    %10877 = vmatpush1.bf16.msra.mxu0 0
    %10878 = vmatprep.mubr.bf16.mxu0 0
    %10879 = vmatmul.mubr.bf16.gmra.mrb[0].mxu0 %v10774
    %v10880 = vpop.f32.mrb[0].mxu0
    %v10881 = vadd.f32 %v10796, %v10880
    %v10882 = vpop.f32.mrb[0].mxu0
    %v10883 = vpop.f32.mrb[0].mxu0
    %v10884 = vpop.f32.mrb[0].mxu0
    %10885 = vdwg.mxu0
    %vm10886 = vcmask 156672
    %v10887 = vsel %vm10886, %v10881, -inf
    %10888 = vmax.xlane.f32.xlu0 %v10887
    %v10889 = vpop.xlane.xlu0 %10888
    %v10890 = vsub.f32 %v10881, %v10889
    %v10891 = vmul.f32 %v10890, 1.442695
    %v10892 = vpow.pop %v10891
    %v10893 = vsel %vm10886, %v10892, 0.0
    %10894 = vadd.xlane.f32.xlu0 %v10893
    %v10895 = vpop.xlane.xlu0 %10894
    %v10896 = vlog2.pop %v10895
    %v10897 = vmul.f32 %v10896, 0.6931472
    %v10898 = vsub.f32 %v10890, %v10897
    %10899 = vst.msk [vmem:[#allocation21] sm:$0x3] %vm10886, %v10898
    // Predicated region
    $region94: #{forward.1} parent=1 // pred_check
      _
    $region95: #{forward.1} parent=1 // pred_check_branch
      %10901 = sbr.rel (0) target = $region97
    $region96: #{forward.1} parent=1 // pred_region
      %s10903 = ssub.s32 32, 32
      %10904 = vsyncadd [#allocation6], %s10903
      %s10906 = sshll.u32 [#allocation21], 4
      %s10907 = int_to_ptr.vmem [resolvable:$true] %s10906
      %10909 = dma.vmem_to_hbm [thread:$0]  %s10907, 32, %s13, [#allocation6]
    $region97: #{forward.1} parent=1 // pred_fallthru
      _
    // Predicated region
    $region98: #{forward.1} parent=1 // pred_check
      _
    $region99: #{forward.1} parent=1 // pred_check_branch
      %10911 = sbr.rel (0) target = $region101
    $region100: #{forward.1} parent=1 // pred_region
      %10912 = dma.done [#allocation6], 32
    $region101: #{forward.1} parent=1 // pred_fallthru
      _
    %10913 = vsyncpa [#allocation5], 1
    %10914 = vsyncpa [#allocation8], 1
    %10915 = vsyncpa [#allocation11], 1
    %10916 = vsyncpa [#allocation14], 1
    %10917 = vsyncpa [#allocation17], 1
    %10918 = vsyncpa [#allocation20], 1
    %10919 = vsyncpa [#allocation6], 1

</llo_original>
